<compile_context>
chip_gen: v7x
topology: tpu7x:2x2x1
jax: 0.10.0
libtpu: 0.0.40
codegen_flags: <defaults>
</compile_context>

<pallas_src>
import jax
import jax.numpy as jnp
from jax.experimental import pallas as pl
from jax.experimental.pallas import tpu as pltpu

# ---------------- model sizes (small, lane-dense, consistent with the module) ----------------
B          = 8      # batch (source.shape[1])
SRC_LEN    = 6
TGT_LEN    = 8      # target.shape[0]
SRC_VOCAB  = 128
TGT_VOCAB  = 128    # len(english.vocab)
EMB        = 128
HID        = 128    # EMB == HID so both stacked-LSTM layers share the (128, 4H) shape
NUM_LAYERS = 2
G4         = 4 * HID


# ---------------- fused seq2seq kernel ----------------
def seq2seq_kernel(tf_ref,                       # SMEM (TGT_LEN,) int32 (scalar prefetch)
                   src_col_ref, tgt_col_ref,     # VMEM int32 (SRC_LEN*B,1) / (TGT_LEN*B,1)
                   enc_w_ref, enc_b_ref,         # VMEM bf16 (4,128,4H) / f32 (2,B,4H)
                   dec_w_hbm, dec_b_ref,         # HBM  bf16 (4,128,4H) / VMEM f32 (2,B,4H)
                   fc_w_ref, fc_b_ref,           # VMEM bf16 (HID,V) / f32 (B,V)
                   out_ref,                      # VMEM f32 (TGT_LEN, B, V)
                   dec_w_vmem, src_xg_ref, tgt_xg_ref, dma_sem):   # scratch

    # Kick off the decoder-weight DMA right away; overlap it with the encoder.
    dec_copy = pltpu.make_async_copy(dec_w_hbm, dec_w_vmem, dma_sem.at[0])
    dec_copy.start()

    def gate_act(gates, c):
        # PyTorch LSTM gate order (i, f, g, o); lane-aligned 128-wide slices.
        i = jax.nn.sigmoid(gates[:, 0 * HID:1 * HID])
        f = jax.nn.sigmoid(gates[:, 1 * HID:2 * HID])
        g = jnp.tanh(gates[:, 2 * HID:3 * HID])
        o = jax.nn.sigmoid(gates[:, 3 * HID:4 * HID])
        c_new = f * c + i * g
        h_new = o * jnp.tanh(c_new)
        return h_new, c_new

    # ---- hoisted encoder input projection: all 6 source one-hots -> gate space at once ----
    src_iota = jax.lax.broadcasted_iota(jnp.int32, (SRC_LEN * B, SRC_VOCAB), 1)
    src_oh = (src_iota == src_col_ref[...]).astype(jnp.bfloat16)          # (48, 128)
    src_xg_ref[...] = jnp.dot(src_oh, enc_w_ref[0],
                              preferred_element_type=jnp.float32)          # (48, 4H) f32

    zeros = jnp.zeros((B, HID), jnp.float32)
    h0, c0, h1, c1 = zeros, zeros, zeros, zeros

    # ---------------- encoder: stacked LSTM over the source sequence ----------------
    for t in range(SRC_LEN):
        g0 = (src_xg_ref[t * B:(t + 1) * B, :]
              + jnp.dot(h0.astype(jnp.bfloat16), enc_w_ref[2],
                        preferred_element_type=jnp.float32)
              + enc_b_ref[0])
        h0, c0 = gate_act(g0, c0)
        g1 = (jnp.dot(h0.astype(jnp.bfloat16), enc_w_ref[1],
                      preferred_element_type=jnp.float32)
              + jnp.dot(h1.astype(jnp.bfloat16), enc_w_ref[3],
                        preferred_element_type=jnp.float32)
              + enc_b_ref[1])
        h1, c1 = gate_act(g1, c1)        # inter-layer dropout = identity at inference

    # ---- decoder weights must be resident from here on ----
    dec_copy.wait()

    # Hoisted teacher-forcing input projections for all target tokens.
    tgt_iota = jax.lax.broadcasted_iota(jnp.int32, (TGT_LEN * B, TGT_VOCAB), 1)
    tgt_oh = (tgt_iota == tgt_col_ref[...]).astype(jnp.bfloat16)           # (64, 128)
    tgt_xg_ref[...] = jnp.dot(tgt_oh, dec_w_vmem[0],
                              preferred_element_type=jnp.float32)          # (64, 4H) f32

    out_ref[0] = jnp.zeros((B, TGT_VOCAB), jnp.float32)   # outputs[0] stays zero
    x_gate = tgt_xg_ref[0:B, :]                           # input at step 1 = target[0] (<sos>)

    lane_ids = jax.lax.broadcasted_iota(jnp.int32, (B, TGT_VOCAB), 1)

    # ---------------- decoder: per-step LSTM + FC, argmax / teacher-forcing feedback ----------------
    for t in range(1, TGT_LEN):
        g0 = (x_gate
              + jnp.dot(h0.astype(jnp.bfloat16), dec_w_vmem[2],
                        preferred_element_type=jnp.float32)
              + dec_b_ref[0])
        h0, c0 = gate_act(g0, c0)
        g1 = (jnp.dot(h0.astype(jnp.bfloat16), dec_w_vmem[1],
                      preferred_element_type=jnp.float32)
              + jnp.dot(h1.astype(jnp.bfloat16), dec_w_vmem[3],
                        preferred_element_type=jnp.float32)
              + dec_b_ref[1])
        h1, c1 = gate_act(g1, c1)

        logits = (jnp.dot(h1.astype(jnp.bfloat16), fc_w_ref[...],
                          preferred_element_type=jnp.float32)
                  + fc_b_ref[...])                                         # (B, V) f32
        out_ref[t] = logits

        if t < TGT_LEN - 1:
            # best_guess = argmax(logits, axis=1), first maximal index, fed as a one-hot
            # gate contribution (one-hot @ folded embedding projection).
            maxv = jnp.max(logits, axis=1, keepdims=True)
            cand = jnp.where(logits == maxv, lane_ids, jnp.int32(TGT_VOCAB))
            best = jnp.min(cand, axis=1, keepdims=True)
            best_oh = (lane_ids == best).astype(jnp.bfloat16)
            best_gate = jnp.dot(best_oh, dec_w_vmem[0],
                                preferred_element_type=jnp.float32)
            tf_gate = tgt_xg_ref[t * B:(t + 1) * B, :]
            x_gate = jnp.where(tf_ref[t] == 1, tf_gate, best_gate)


# ---------------- wrapper: single pallas_call ----------------
def seq2seq_forward(source, target, params, tf_mask):
    # Host-side layout plumbing only: token ids as lane-column int32 arrays.
    src_col = source.reshape(SRC_LEN * B, 1).astype(jnp.int32)
    tgt_col = target.reshape(TGT_LEN * B, 1).astype(jnp.int32)

    grid_spec = pltpu.PrefetchScalarGridSpec(
        num_scalar_prefetch=1,                # teacher-forcing mask -> SMEM
        grid=(1,),                            # single invocation; time loops are in-kernel
        in_specs=[
            pl.BlockSpec((SRC_LEN * B, 1), lambda i, tf: (0, 0)),
            pl.BlockSpec((TGT_LEN * B, 1), lambda i, tf: (0, 0)),
            pl.BlockSpec((4, EMB, G4), lambda i, tf: (0, 0, 0)),            # enc weights (bf16)
            pl.BlockSpec((NUM_LAYERS, B, G4), lambda i, tf: (0, 0, 0)),     # enc biases (f32)
            pl.BlockSpec(memory_space=pl.ANY),                              # dec weights: manual DMA
            pl.BlockSpec((NUM_LAYERS, B, G4), lambda i, tf: (0, 0, 0)),     # dec biases (f32)
            pl.BlockSpec((HID, TGT_VOCAB), lambda i, tf: (0, 0)),           # fc weight (bf16)
            pl.BlockSpec((B, TGT_VOCAB), lambda i, tf: (0, 0)),             # fc bias (f32)
        ],
        out_specs=pl.BlockSpec((TGT_LEN, B, TGT_VOCAB), lambda i, tf: (0, 0, 0)),
        scratch_shapes=[
            pltpu.VMEM((4, EMB, G4), jnp.bfloat16),           # decoder weights landing buffer
            pltpu.VMEM((SRC_LEN * B, G4), jnp.float32),       # hoisted encoder x-gate table
            pltpu.VMEM((TGT_LEN * B, G4), jnp.float32),       # hoisted decoder x-gate table
            pltpu.SemaphoreType.DMA((1,)),
        ],
    )
    return pl.pallas_call(
        seq2seq_kernel,
        out_shape=jax.ShapeDtypeStruct((TGT_LEN, B, TGT_VOCAB), jnp.float32),
        grid_spec=grid_spec,
        compiler_params=pltpu.CompilerParams(dimension_semantics=("arbitrary",)),
    )(tf_mask, src_col, tgt_col,
      params["enc_w"], params["enc_b"],
      params["dec_w"], params["dec_b"],
      params["fc_w"], params["fc_b"])


# ---------------- parameter construction ----------------
def init_raw_params(key):
    ks = jax.random.split(key, 10)
    s = 0.1
    return {
        "enc_emb":  s * jax.random.normal(ks[0], (SRC_VOCAB, EMB), jnp.float32),
        "enc_w_ih": s * jax.random.normal(ks[1], (NUM_LAYERS, EMB, G4), jnp.float32),
        "enc_w_hh": s * jax.random.normal(ks[2], (NUM_LAYERS, HID, G4), jnp.float32),
        "enc_b":    s * jax.random.normal(ks[3], (NUM_LAYERS, G4), jnp.float32),   # b_ih + b_hh
        "dec_emb":  s * jax.random.normal(ks[4], (TGT_VOCAB, EMB), jnp.float32),
        "dec_w_ih": s * jax.random.normal(ks[5], (NUM_LAYERS, EMB, G4), jnp.float32),
        "dec_w_hh": s * jax.random.normal(ks[6], (NUM_LAYERS, HID, G4), jnp.float32),
        "dec_b":    s * jax.random.normal(ks[7], (NUM_LAYERS, G4), jnp.float32),   # b_ih + b_hh
        "fc_w":     s * jax.random.normal(ks[8], (HID, TGT_VOCAB), jnp.float32),
        "fc_b":     s * jax.random.normal(ks[9], (TGT_VOCAB,), jnp.float32),
    }


def pack_params(raw):
    def pack_lstm(emb, w_ih, w_hh):
        # slot 0: emb @ W_ih layer 0 (embedding folded into the input projection)
        # slot 1: W_ih layer 1 (its input is the layer-0 hidden state)
        # slot 2/3: W_hh layer 0 / layer 1
        return jnp.stack([emb @ w_ih[0], w_ih[1], w_hh[0], w_hh[1]]).astype(jnp.bfloat16)

    return {
        "enc_w": pack_lstm(raw["enc_emb"], raw["enc_w_ih"], raw["enc_w_hh"]),
        "enc_b": jnp.broadcast_to(raw["enc_b"][:, None, :],
                                  (NUM_LAYERS, B, G4)).astype(jnp.float32),
        "dec_w": pack_lstm(raw["dec_emb"], raw["dec_w_ih"], raw["dec_w_hh"]),
        "dec_b": jnp.broadcast_to(raw["dec_b"][:, None, :],
                                  (NUM_LAYERS, B, G4)).astype(jnp.float32),
        "fc_w":  raw["fc_w"].astype(jnp.bfloat16),
        "fc_b":  jnp.broadcast_to(raw["fc_b"][None, :], (B, TGT_VOCAB)).astype(jnp.float32),
    }


if __name__ == "__main__":
    key = jax.random.PRNGKey(0)
    k_par, k_src, k_tgt, k_tf = jax.random.split(key, 4)

    params = pack_params(init_raw_params(k_par))
    source = jax.random.randint(k_src, (SRC_LEN, B), 0, SRC_VOCAB, dtype=jnp.int32)
    target = jax.random.randint(k_tgt, (TGT_LEN, B), 0, TGT_VOCAB, dtype=jnp.int32)
    # deterministic stand-in for `random.random() < teacher_force_ratio` per step
    tf_mask = jax.random.bernoulli(k_tf, 0.5, (TGT_LEN,)).astype(jnp.int32)

    outputs = seq2seq_forward(source, target, params, tf_mask)
    outputs = jax.block_until_ready(outputs)

    assert outputs.shape == (TGT_LEN, B, TGT_VOCAB)
    assert outputs.dtype == jnp.float32
    assert bool(jnp.all(outputs[0] == 0.0))
    assert bool(jnp.all(jnp.isfinite(outputs)))
    print("KERNEL_OK")
</pallas_src>

<mosaic_0001>
module attributes {stable_mosaic.version = 11 : i64} {
  func.func @seq2seq_kernel(%arg0: i32, %arg1: memref<8xi32, #tpu.memory_space<smem>>, %arg2: memref<48x1xi32, #tpu.memory_space<vmem>>, %arg3: memref<64x1xi32, #tpu.memory_space<vmem>>, %arg4: memref<4x128x512xbf16, #tpu.memory_space<vmem>>, %arg5: memref<2x8x512xf32, #tpu.memory_space<vmem>>, %arg6: memref<4x128x512xbf16, #tpu.memory_space<any>>, %arg7: memref<2x8x512xf32, #tpu.memory_space<vmem>>, %arg8: memref<128x128xbf16, #tpu.memory_space<vmem>>, %arg9: memref<8x128xf32, #tpu.memory_space<vmem>>, %arg10: memref<8x8x128xf32, #tpu.memory_space<vmem>>, %arg11: memref<4x128x512xbf16, #tpu.memory_space<vmem>>, %arg12: memref<48x512xf32, #tpu.memory_space<vmem>>, %arg13: memref<64x512xf32, #tpu.memory_space<vmem>>, %arg14: memref<1x!tpu.dma_semaphore, #tpu.memory_space<semaphore_mem>>) attributes {dimension_semantics = [#tpu.dimension_semantics<arbitrary>], iteration_bounds = array<i64: 1>, scalar_prefetch = 1 : i64, scratch_operands = 4 : i64, tpu.core_type = #tpu.core_type<tc>, window_params = [{pipeline_mode = #tpu.pipeline_mode<synchronous>, transform_indices = @transform_0, window_bounds = array<i64: 48, 1>}, {pipeline_mode = #tpu.pipeline_mode<synchronous>, transform_indices = @transform_1, window_bounds = array<i64: 64, 1>}, {pipeline_mode = #tpu.pipeline_mode<synchronous>, transform_indices = @transform_2, window_bounds = array<i64: 4, 128, 512>}, {pipeline_mode = #tpu.pipeline_mode<synchronous>, transform_indices = @transform_3, window_bounds = array<i64: 2, 8, 512>}, {}, {pipeline_mode = #tpu.pipeline_mode<synchronous>, transform_indices = @transform_5, window_bounds = array<i64: 2, 8, 512>}, {pipeline_mode = #tpu.pipeline_mode<synchronous>, transform_indices = @transform_6, window_bounds = array<i64: 128, 128>}, {pipeline_mode = #tpu.pipeline_mode<synchronous>, transform_indices = @transform_7, window_bounds = array<i64: 8, 128>}, {pipeline_mode = #tpu.pipeline_mode<synchronous>, transform_indices = @transform_8, window_bounds = array<i64: 8, 8, 128>}]} {
    %c0_i32 = arith.constant 0 : i32
    %0 = tpu.memref_slice %arg14[%c0_i32] : memref<1x!tpu.dma_semaphore, #tpu.memory_space<semaphore_mem>> -> memref<1x!tpu.dma_semaphore, #tpu.memory_space<semaphore_mem>>
    %1 = tpu.memref_squeeze %0 : memref<1x!tpu.dma_semaphore, #tpu.memory_space<semaphore_mem>> -> memref<!tpu.dma_semaphore, #tpu.memory_space<semaphore_mem>>
    tpu.enqueue_dma source(%arg6 : memref<4x128x512xbf16, #tpu.memory_space<any>>) target(%arg11 : memref<4x128x512xbf16, #tpu.memory_space<vmem>>) target_semaphore(%1 : memref<!tpu.dma_semaphore, #tpu.memory_space<semaphore_mem>>)
    %2 = tpu.iota {dimensions = array<i32: 1>} : vector<48x128xi32>
    %c0 = arith.constant 0 : index
    %c0_0 = arith.constant 0 : index
    %3 = vector.load %arg2[%c0, %c0_0] : memref<48x1xi32, #tpu.memory_space<vmem>>, vector<48x1xi32>
    %4 = vector.broadcast %3 : vector<48x1xi32> to vector<48x128xi32>
    %5 = arith.cmpi eq, %2, %4 : vector<48x128xi32>
    %6 = arith.extui %5 : vector<48x128xi1> to vector<48x128xi32>
    %7 = arith.sitofp %6 : vector<48x128xi32> to vector<48x128xf32>
    %8 = arith.truncf %7 : vector<48x128xf32> to vector<48x128xbf16>
    %c0_1 = arith.constant 0 : index
    %c0_2 = arith.constant 0 : index
    %c0_3 = arith.constant 0 : index
    %9 = vector.load %arg4[%c0_1, %c0_2, %c0_3] : memref<4x128x512xbf16, #tpu.memory_space<vmem>>, vector<1x128x512xbf16>
    %10 = vector.shape_cast %9 : vector<1x128x512xbf16> to vector<128x512xbf16>
    %cst = arith.constant dense<0.000000e+00> : vector<48x512xf32>
    %11 = tpu.matmul %8, %10, %cst {dimension_numbers = #tpu.dot_dimension_numbers<[1], [0], [0], [1], [0, 0, 1, 1], [], []>} : vector<48x128xbf16>, vector<128x512xbf16>, vector<48x512xf32> -> vector<48x512xf32>
    %c0_4 = arith.constant 0 : index
    %c0_5 = arith.constant 0 : index
    %12 = vector.load %arg12[%c0_4, %c0_5] : memref<48x512xf32, #tpu.memory_space<vmem>>, vector<48x512xf32>
    tpu.vector_store %arg12[%c0_4, %c0_5], %11 {strides = array<i32>} : memref<48x512xf32, #tpu.memory_space<vmem>>, vector<48x512xf32>,
    %cst_6 = arith.constant 0.000000e+00 : f32
    %13 = vector.broadcast %cst_6 : f32 to vector<8x128xf32>
    %c0_7 = arith.constant 0 : index
    %c0_8 = arith.constant 0 : index
    %14 = vector.load %arg12[%c0_7, %c0_8] : memref<48x512xf32, #tpu.memory_space<vmem>>, vector<8x512xf32>
    %15 = arith.truncf %13 : vector<8x128xf32> to vector<8x128xbf16>
    %c2 = arith.constant 2 : index
    %c0_9 = arith.constant 0 : index
    %c0_10 = arith.constant 0 : index
    %16 = vector.load %arg4[%c2, %c0_9, %c0_10] : memref<4x128x512xbf16, #tpu.memory_space<vmem>>, vector<1x128x512xbf16>
    %17 = vector.shape_cast %16 : vector<1x128x512xbf16> to vector<128x512xbf16>
    %cst_11 = arith.constant dense<0.000000e+00> : vector<8x512xf32>
    %18 = tpu.matmul %15, %17, %cst_11 {dimension_numbers = #tpu.dot_dimension_numbers<[1], [0], [0], [1], [0, 0, 1, 1], [], []>} : vector<8x128xbf16>, vector<128x512xbf16>, vector<8x512xf32> -> vector<8x512xf32>
    %19 = arith.addf %14, %18 : vector<8x512xf32>
    %c0_12 = arith.constant 0 : index
    %c0_13 = arith.constant 0 : index
    %c0_14 = arith.constant 0 : index
    %20 = vector.load %arg5[%c0_12, %c0_13, %c0_14] : memref<2x8x512xf32, #tpu.memory_space<vmem>>, vector<1x8x512xf32>
    %21 = vector.shape_cast %20 : vector<1x8x512xf32> to vector<8x512xf32>
    %22 = arith.addf %19, %21 : vector<8x512xf32>
    %23 = vector.extract_strided_slice %22 {offsets = [0, 0], sizes = [8, 128], strides = [1, 1]} : vector<8x512xf32> to vector<8x128xf32>
    %24 = arith.negf %23 : vector<8x128xf32>
    %25 = math.exp %24 : vector<8x128xf32>
    %cst_15 = arith.constant 1.000000e+00 : f32
    %26 = vector.broadcast %cst_15 : f32 to vector<8x128xf32>
    %27 = arith.addf %26, %25 : vector<8x128xf32>
    %28 = arith.divf %26, %27 : vector<8x128xf32>
    %29 = vector.extract_strided_slice %22 {offsets = [0, 128], sizes = [8, 128], strides = [1, 1]} : vector<8x512xf32> to vector<8x128xf32>
    %30 = arith.negf %29 : vector<8x128xf32>
    %31 = math.exp %30 : vector<8x128xf32>
    %cst_16 = arith.constant 1.000000e+00 : f32
    %32 = vector.broadcast %cst_16 : f32 to vector<8x128xf32>
    %33 = arith.addf %32, %31 : vector<8x128xf32>
    %34 = arith.divf %32, %33 : vector<8x128xf32>
    %35 = vector.extract_strided_slice %22 {offsets = [0, 256], sizes = [8, 128], strides = [1, 1]} : vector<8x512xf32> to vector<8x128xf32>
    %36 = math.tanh %35 : vector<8x128xf32>
    %37 = vector.extract_strided_slice %22 {offsets = [0, 384], sizes = [8, 128], strides = [1, 1]} : vector<8x512xf32> to vector<8x128xf32>
    %38 = arith.negf %37 : vector<8x128xf32>
    %39 = math.exp %38 : vector<8x128xf32>
    %cst_17 = arith.constant 1.000000e+00 : f32
    %40 = vector.broadcast %cst_17 : f32 to vector<8x128xf32>
    %41 = arith.addf %40, %39 : vector<8x128xf32>
    %42 = arith.divf %40, %41 : vector<8x128xf32>
    %43 = arith.mulf %34, %13 : vector<8x128xf32>
    %44 = arith.mulf %28, %36 : vector<8x128xf32>
    %45 = arith.addf %43, %44 : vector<8x128xf32>
    %46 = math.tanh %45 : vector<8x128xf32>
    %47 = arith.mulf %42, %46 : vector<8x128xf32>
    %48 = arith.truncf %47 : vector<8x128xf32> to vector<8x128xbf16>
    %c1 = arith.constant 1 : index
    %c0_18 = arith.constant 0 : index
    %c0_19 = arith.constant 0 : index
    %49 = vector.load %arg4[%c1, %c0_18, %c0_19] : memref<4x128x512xbf16, #tpu.memory_space<vmem>>, vector<1x128x512xbf16>
    %50 = vector.shape_cast %49 : vector<1x128x512xbf16> to vector<128x512xbf16>
    %cst_20 = arith.constant dense<0.000000e+00> : vector<8x512xf32>
    %51 = tpu.matmul %48, %50, %cst_20 {dimension_numbers = #tpu.dot_dimension_numbers<[1], [0], [0], [1], [0, 0, 1, 1], [], []>} : vector<8x128xbf16>, vector<128x512xbf16>, vector<8x512xf32> -> vector<8x512xf32>
    %52 = arith.truncf %13 : vector<8x128xf32> to vector<8x128xbf16>
    %c3 = arith.constant 3 : index
    %c0_21 = arith.constant 0 : index
    %c0_22 = arith.constant 0 : index
    %53 = vector.load %arg4[%c3, %c0_21, %c0_22] : memref<4x128x512xbf16, #tpu.memory_space<vmem>>, vector<1x128x512xbf16>
    %54 = vector.shape_cast %53 : vector<1x128x512xbf16> to vector<128x512xbf16>
    %cst_23 = arith.constant dense<0.000000e+00> : vector<8x512xf32>
    %55 = tpu.matmul %52, %54, %cst_23 {dimension_numbers = #tpu.dot_dimension_numbers<[1], [0], [0], [1], [0, 0, 1, 1], [], []>} : vector<8x128xbf16>, vector<128x512xbf16>, vector<8x512xf32> -> vector<8x512xf32>
    %56 = arith.addf %51, %55 : vector<8x512xf32>
    %c1_24 = arith.constant 1 : index
    %c0_25 = arith.constant 0 : index
    %c0_26 = arith.constant 0 : index
    %57 = vector.load %arg5[%c1_24, %c0_25, %c0_26] : memref<2x8x512xf32, #tpu.memory_space<vmem>>, vector<1x8x512xf32>
    %58 = vector.shape_cast %57 : vector<1x8x512xf32> to vector<8x512xf32>
    %59 = arith.addf %56, %58 : vector<8x512xf32>
    %60 = vector.extract_strided_slice %59 {offsets = [0, 0], sizes = [8, 128], strides = [1, 1]} : vector<8x512xf32> to vector<8x128xf32>
    %61 = arith.negf %60 : vector<8x128xf32>
    %62 = math.exp %61 : vector<8x128xf32>
    %cst_27 = arith.constant 1.000000e+00 : f32
    %63 = vector.broadcast %cst_27 : f32 to vector<8x128xf32>
    %64 = arith.addf %63, %62 : vector<8x128xf32>
    %65 = arith.divf %63, %64 : vector<8x128xf32>
    %66 = vector.extract_strided_slice %59 {offsets = [0, 128], sizes = [8, 128], strides = [1, 1]} : vector<8x512xf32> to vector<8x128xf32>
    %67 = arith.negf %66 : vector<8x128xf32>
    %68 = math.exp %67 : vector<8x128xf32>
    %cst_28 = arith.constant 1.000000e+00 : f32
    %69 = vector.broadcast %cst_28 : f32 to vector<8x128xf32>
    %70 = arith.addf %69, %68 : vector<8x128xf32>
    %71 = arith.divf %69, %70 : vector<8x128xf32>
    %72 = vector.extract_strided_slice %59 {offsets = [0, 256], sizes = [8, 128], strides = [1, 1]} : vector<8x512xf32> to vector<8x128xf32>
    %73 = math.tanh %72 : vector<8x128xf32>
    %74 = vector.extract_strided_slice %59 {offsets = [0, 384], sizes = [8, 128], strides = [1, 1]} : vector<8x512xf32> to vector<8x128xf32>
    %75 = arith.negf %74 : vector<8x128xf32>
    %76 = math.exp %75 : vector<8x128xf32>
    %cst_29 = arith.constant 1.000000e+00 : f32
    %77 = vector.broadcast %cst_29 : f32 to vector<8x128xf32>
    %78 = arith.addf %77, %76 : vector<8x128xf32>
    %79 = arith.divf %77, %78 : vector<8x128xf32>
    %80 = arith.mulf %71, %13 : vector<8x128xf32>
    %81 = arith.mulf %65, %73 : vector<8x128xf32>
    %82 = arith.addf %80, %81 : vector<8x128xf32>
    %83 = math.tanh %82 : vector<8x128xf32>
    %84 = arith.mulf %79, %83 : vector<8x128xf32>
    %c8 = arith.constant 8 : index
    %c0_30 = arith.constant 0 : index
    %85 = vector.load %arg12[%c8, %c0_30] : memref<48x512xf32, #tpu.memory_space<vmem>>, vector<8x512xf32>
    %86 = arith.truncf %47 : vector<8x128xf32> to vector<8x128xbf16>
    %c2_31 = arith.constant 2 : index
    %c0_32 = arith.constant 0 : index
    %c0_33 = arith.constant 0 : index
    %87 = vector.load %arg4[%c2_31, %c0_32, %c0_33] : memref<4x128x512xbf16, #tpu.memory_space<vmem>>, vector<1x128x512xbf16>
    %88 = vector.shape_cast %87 : vector<1x128x512xbf16> to vector<128x512xbf16>
    %cst_34 = arith.constant dense<0.000000e+00> : vector<8x512xf32>
    %89 = tpu.matmul %86, %88, %cst_34 {dimension_numbers = #tpu.dot_dimension_numbers<[1], [0], [0], [1], [0, 0, 1, 1], [], []>} : vector<8x128xbf16>, vector<128x512xbf16>, vector<8x512xf32> -> vector<8x512xf32>
    %90 = arith.addf %85, %89 : vector<8x512xf32>
    %c0_35 = arith.constant 0 : index
    %c0_36 = arith.constant 0 : index
    %c0_37 = arith.constant 0 : index
    %91 = vector.load %arg5[%c0_35, %c0_36, %c0_37] : memref<2x8x512xf32, #tpu.memory_space<vmem>>, vector<1x8x512xf32>
    %92 = vector.shape_cast %91 : vector<1x8x512xf32> to vector<8x512xf32>
    %93 = arith.addf %90, %92 : vector<8x512xf32>
    %94 = vector.extract_strided_slice %93 {offsets = [0, 0], sizes = [8, 128], strides = [1, 1]} : vector<8x512xf32> to vector<8x128xf32>
    %95 = arith.negf %94 : vector<8x128xf32>
    %96 = math.exp %95 : vector<8x128xf32>
    %cst_38 = arith.constant 1.000000e+00 : f32
    %97 = vector.broadcast %cst_38 : f32 to vector<8x128xf32>
    %98 = arith.addf %97, %96 : vector<8x128xf32>
    %99 = arith.divf %97, %98 : vector<8x128xf32>
    %100 = vector.extract_strided_slice %93 {offsets = [0, 128], sizes = [8, 128], strides = [1, 1]} : vector<8x512xf32> to vector<8x128xf32>
    %101 = arith.negf %100 : vector<8x128xf32>
    %102 = math.exp %101 : vector<8x128xf32>
    %cst_39 = arith.constant 1.000000e+00 : f32
    %103 = vector.broadcast %cst_39 : f32 to vector<8x128xf32>
    %104 = arith.addf %103, %102 : vector<8x128xf32>
    %105 = arith.divf %103, %104 : vector<8x128xf32>
    %106 = vector.extract_strided_slice %93 {offsets = [0, 256], sizes = [8, 128], strides = [1, 1]} : vector<8x512xf32> to vector<8x128xf32>
    %107 = math.tanh %106 : vector<8x128xf32>
    %108 = vector.extract_strided_slice %93 {offsets = [0, 384], sizes = [8, 128], strides = [1, 1]} : vector<8x512xf32> to vector<8x128xf32>
    %109 = arith.negf %108 : vector<8x128xf32>
    %110 = math.exp %109 : vector<8x128xf32>
    %cst_40 = arith.constant 1.000000e+00 : f32
    %111 = vector.broadcast %cst_40 : f32 to vector<8x128xf32>
    %112 = arith.addf %111, %110 : vector<8x128xf32>
    %113 = arith.divf %111, %112 : vector<8x128xf32>
    %114 = arith.mulf %105, %45 : vector<8x128xf32>
    %115 = arith.mulf %99, %107 : vector<8x128xf32>
    %116 = arith.addf %114, %115 : vector<8x128xf32>
    %117 = math.tanh %116 : vector<8x128xf32>
    %118 = arith.mulf %113, %117 : vector<8x128xf32>
    %119 = arith.truncf %118 : vector<8x128xf32> to vector<8x128xbf16>
    %c1_41 = arith.constant 1 : index
    %c0_42 = arith.constant 0 : index
    %c0_43 = arith.constant 0 : index
    %120 = vector.load %arg4[%c1_41, %c0_42, %c0_43] : memref<4x128x512xbf16, #tpu.memory_space<vmem>>, vector<1x128x512xbf16>
    %121 = vector.shape_cast %120 : vector<1x128x512xbf16> to vector<128x512xbf16>
    %cst_44 = arith.constant dense<0.000000e+00> : vector<8x512xf32>
    %122 = tpu.matmul %119, %121, %cst_44 {dimension_numbers = #tpu.dot_dimension_numbers<[1], [0], [0], [1], [0, 0, 1, 1], [], []>} : vector<8x128xbf16>, vector<128x512xbf16>, vector<8x512xf32> -> vector<8x512xf32>
    %123 = arith.truncf %84 : vector<8x128xf32> to vector<8x128xbf16>
    %c3_45 = arith.constant 3 : index
    %c0_46 = arith.constant 0 : index
    %c0_47 = arith.constant 0 : index
    %124 = vector.load %arg4[%c3_45, %c0_46, %c0_47] : memref<4x128x512xbf16, #tpu.memory_space<vmem>>, vector<1x128x512xbf16>
    %125 = vector.shape_cast %124 : vector<1x128x512xbf16> to vector<128x512xbf16>
    %cst_48 = arith.constant dense<0.000000e+00> : vector<8x512xf32>
    %126 = tpu.matmul %123, %125, %cst_48 {dimension_numbers = #tpu.dot_dimension_numbers<[1], [0], [0], [1], [0, 0, 1, 1], [], []>} : vector<8x128xbf16>, vector<128x512xbf16>, vector<8x512xf32> -> vector<8x512xf32>
    %127 = arith.addf %122, %126 : vector<8x512xf32>
    %c1_49 = arith.constant 1 : index
    %c0_50 = arith.constant 0 : index
    %c0_51 = arith.constant 0 : index
    %128 = vector.load %arg5[%c1_49, %c0_50, %c0_51] : memref<2x8x512xf32, #tpu.memory_space<vmem>>, vector<1x8x512xf32>
    %129 = vector.shape_cast %128 : vector<1x8x512xf32> to vector<8x512xf32>
    %130 = arith.addf %127, %129 : vector<8x512xf32>
    %131 = vector.extract_strided_slice %130 {offsets = [0, 0], sizes = [8, 128], strides = [1, 1]} : vector<8x512xf32> to vector<8x128xf32>
    %132 = arith.negf %131 : vector<8x128xf32>
    %133 = math.exp %132 : vector<8x128xf32>
    %cst_52 = arith.constant 1.000000e+00 : f32
    %134 = vector.broadcast %cst_52 : f32 to vector<8x128xf32>
    %135 = arith.addf %134, %133 : vector<8x128xf32>
    %136 = arith.divf %134, %135 : vector<8x128xf32>
    %137 = vector.extract_strided_slice %130 {offsets = [0, 128], sizes = [8, 128], strides = [1, 1]} : vector<8x512xf32> to vector<8x128xf32>
    %138 = arith.negf %137 : vector<8x128xf32>
    %139 = math.exp %138 : vector<8x128xf32>
    %cst_53 = arith.constant 1.000000e+00 : f32
    %140 = vector.broadcast %cst_53 : f32 to vector<8x128xf32>
    %141 = arith.addf %140, %139 : vector<8x128xf32>
    %142 = arith.divf %140, %141 : vector<8x128xf32>
    %143 = vector.extract_strided_slice %130 {offsets = [0, 256], sizes = [8, 128], strides = [1, 1]} : vector<8x512xf32> to vector<8x128xf32>
    %144 = math.tanh %143 : vector<8x128xf32>
    %145 = vector.extract_strided_slice %130 {offsets = [0, 384], sizes = [8, 128], strides = [1, 1]} : vector<8x512xf32> to vector<8x128xf32>
    %146 = arith.negf %145 : vector<8x128xf32>
    %147 = math.exp %146 : vector<8x128xf32>
    %cst_54 = arith.constant 1.000000e+00 : f32
    %148 = vector.broadcast %cst_54 : f32 to vector<8x128xf32>
    %149 = arith.addf %148, %147 : vector<8x128xf32>
    %150 = arith.divf %148, %149 : vector<8x128xf32>
    %151 = arith.mulf %142, %82 : vector<8x128xf32>
    %152 = arith.mulf %136, %144 : vector<8x128xf32>
    %153 = arith.addf %151, %152 : vector<8x128xf32>
    %154 = math.tanh %153 : vector<8x128xf32>
    %155 = arith.mulf %150, %154 : vector<8x128xf32>
    %c16 = arith.constant 16 : index
    %c0_55 = arith.constant 0 : index
    %156 = vector.load %arg12[%c16, %c0_55] : memref<48x512xf32, #tpu.memory_space<vmem>>, vector<8x512xf32>
    %157 = arith.truncf %118 : vector<8x128xf32> to vector<8x128xbf16>
    %c2_56 = arith.constant 2 : index
    %c0_57 = arith.constant 0 : index
    %c0_58 = arith.constant 0 : index
    %158 = vector.load %arg4[%c2_56, %c0_57, %c0_58] : memref<4x128x512xbf16, #tpu.memory_space<vmem>>, vector<1x128x512xbf16>
    %159 = vector.shape_cast %158 : vector<1x128x512xbf16> to vector<128x512xbf16>
    %cst_59 = arith.constant dense<0.000000e+00> : vector<8x512xf32>
    %160 = tpu.matmul %157, %159, %cst_59 {dimension_numbers = #tpu.dot_dimension_numbers<[1], [0], [0], [1], [0, 0, 1, 1], [], []>} : vector<8x128xbf16>, vector<128x512xbf16>, vector<8x512xf32> -> vector<8x512xf32>
    %161 = arith.addf %156, %160 : vector<8x512xf32>
    %c0_60 = arith.constant 0 : index
    %c0_61 = arith.constant 0 : index
    %c0_62 = arith.constant 0 : index
    %162 = vector.load %arg5[%c0_60, %c0_61, %c0_62] : memref<2x8x512xf32, #tpu.memory_space<vmem>>, vector<1x8x512xf32>
    %163 = vector.shape_cast %162 : vector<1x8x512xf32> to vector<8x512xf32>
    %164 = arith.addf %161, %163 : vector<8x512xf32>
    %165 = vector.extract_strided_slice %164 {offsets = [0, 0], sizes = [8, 128], strides = [1, 1]} : vector<8x512xf32> to vector<8x128xf32>
    %166 = arith.negf %165 : vector<8x128xf32>
    %167 = math.exp %166 : vector<8x128xf32>
    %cst_63 = arith.constant 1.000000e+00 : f32
    %168 = vector.broadcast %cst_63 : f32 to vector<8x128xf32>
    %169 = arith.addf %168, %167 : vector<8x128xf32>
    %170 = arith.divf %168, %169 : vector<8x128xf32>
    %171 = vector.extract_strided_slice %164 {offsets = [0, 128], sizes = [8, 128], strides = [1, 1]} : vector<8x512xf32> to vector<8x128xf32>
    %172 = arith.negf %171 : vector<8x128xf32>
    %173 = math.exp %172 : vector<8x128xf32>
    %cst_64 = arith.constant 1.000000e+00 : f32
    %174 = vector.broadcast %cst_64 : f32 to vector<8x128xf32>
    %175 = arith.addf %174, %173 : vector<8x128xf32>
    %176 = arith.divf %174, %175 : vector<8x128xf32>
    %177 = vector.extract_strided_slice %164 {offsets = [0, 256], sizes = [8, 128], strides = [1, 1]} : vector<8x512xf32> to vector<8x128xf32>
    %178 = math.tanh %177 : vector<8x128xf32>
    %179 = vector.extract_strided_slice %164 {offsets = [0, 384], sizes = [8, 128], strides = [1, 1]} : vector<8x512xf32> to vector<8x128xf32>
    %180 = arith.negf %179 : vector<8x128xf32>
    %181 = math.exp %180 : vector<8x128xf32>
    %cst_65 = arith.constant 1.000000e+00 : f32
    %182 = vector.broadcast %cst_65 : f32 to vector<8x128xf32>
    %183 = arith.addf %182, %181 : vector<8x128xf32>
    %184 = arith.divf %182, %183 : vector<8x128xf32>
    %185 = arith.mulf %176, %116 : vector<8x128xf32>
    %186 = arith.mulf %170, %178 : vector<8x128xf32>
    %187 = arith.addf %185, %186 : vector<8x128xf32>
    %188 = math.tanh %187 : vector<8x128xf32>
    %189 = arith.mulf %184, %188 : vector<8x128xf32>
    %190 = arith.truncf %189 : vector<8x128xf32> to vector<8x128xbf16>
    %c1_66 = arith.constant 1 : index
    %c0_67 = arith.constant 0 : index
    %c0_68 = arith.constant 0 : index
    %191 = vector.load %arg4[%c1_66, %c0_67, %c0_68] : memref<4x128x512xbf16, #tpu.memory_space<vmem>>, vector<1x128x512xbf16>
    %192 = vector.shape_cast %191 : vector<1x128x512xbf16> to vector<128x512xbf16>
    %cst_69 = arith.constant dense<0.000000e+00> : vector<8x512xf32>
    %193 = tpu.matmul %190, %192, %cst_69 {dimension_numbers = #tpu.dot_dimension_numbers<[1], [0], [0], [1], [0, 0, 1, 1], [], []>} : vector<8x128xbf16>, vector<128x512xbf16>, vector<8x512xf32> -> vector<8x512xf32>
    %194 = arith.truncf %155 : vector<8x128xf32> to vector<8x128xbf16>
    %c3_70 = arith.constant 3 : index
    %c0_71 = arith.constant 0 : index
    %c0_72 = arith.constant 0 : index
    %195 = vector.load %arg4[%c3_70, %c0_71, %c0_72] : memref<4x128x512xbf16, #tpu.memory_space<vmem>>, vector<1x128x512xbf16>
    %196 = vector.shape_cast %195 : vector<1x128x512xbf16> to vector<128x512xbf16>
    %cst_73 = arith.constant dense<0.000000e+00> : vector<8x512xf32>
    %197 = tpu.matmul %194, %196, %cst_73 {dimension_numbers = #tpu.dot_dimension_numbers<[1], [0], [0], [1], [0, 0, 1, 1], [], []>} : vector<8x128xbf16>, vector<128x512xbf16>, vector<8x512xf32> -> vector<8x512xf32>
    %198 = arith.addf %193, %197 : vector<8x512xf32>
    %c1_74 = arith.constant 1 : index
    %c0_75 = arith.constant 0 : index
    %c0_76 = arith.constant 0 : index
    %199 = vector.load %arg5[%c1_74, %c0_75, %c0_76] : memref<2x8x512xf32, #tpu.memory_space<vmem>>, vector<1x8x512xf32>
    %200 = vector.shape_cast %199 : vector<1x8x512xf32> to vector<8x512xf32>
    %201 = arith.addf %198, %200 : vector<8x512xf32>
    %202 = vector.extract_strided_slice %201 {offsets = [0, 0], sizes = [8, 128], strides = [1, 1]} : vector<8x512xf32> to vector<8x128xf32>
    %203 = arith.negf %202 : vector<8x128xf32>
    %204 = math.exp %203 : vector<8x128xf32>
    %cst_77 = arith.constant 1.000000e+00 : f32
    %205 = vector.broadcast %cst_77 : f32 to vector<8x128xf32>
    %206 = arith.addf %205, %204 : vector<8x128xf32>
    %207 = arith.divf %205, %206 : vector<8x128xf32>
    %208 = vector.extract_strided_slice %201 {offsets = [0, 128], sizes = [8, 128], strides = [1, 1]} : vector<8x512xf32> to vector<8x128xf32>
    %209 = arith.negf %208 : vector<8x128xf32>
    %210 = math.exp %209 : vector<8x128xf32>
    %cst_78 = arith.constant 1.000000e+00 : f32
    %211 = vector.broadcast %cst_78 : f32 to vector<8x128xf32>
    %212 = arith.addf %211, %210 : vector<8x128xf32>
    %213 = arith.divf %211, %212 : vector<8x128xf32>
    %214 = vector.extract_strided_slice %201 {offsets = [0, 256], sizes = [8, 128], strides = [1, 1]} : vector<8x512xf32> to vector<8x128xf32>
    %215 = math.tanh %214 : vector<8x128xf32>
    %216 = vector.extract_strided_slice %201 {offsets = [0, 384], sizes = [8, 128], strides = [1, 1]} : vector<8x512xf32> to vector<8x128xf32>
    %217 = arith.negf %216 : vector<8x128xf32>
    %218 = math.exp %217 : vector<8x128xf32>
    %cst_79 = arith.constant 1.000000e+00 : f32
    %219 = vector.broadcast %cst_79 : f32 to vector<8x128xf32>
    %220 = arith.addf %219, %218 : vector<8x128xf32>
    %221 = arith.divf %219, %220 : vector<8x128xf32>
    %222 = arith.mulf %213, %153 : vector<8x128xf32>
    %223 = arith.mulf %207, %215 : vector<8x128xf32>
    %224 = arith.addf %222, %223 : vector<8x128xf32>
    %225 = math.tanh %224 : vector<8x128xf32>
    %226 = arith.mulf %221, %225 : vector<8x128xf32>
    %c24 = arith.constant 24 : index
    %c0_80 = arith.constant 0 : index
    %227 = vector.load %arg12[%c24, %c0_80] : memref<48x512xf32, #tpu.memory_space<vmem>>, vector<8x512xf32>
    %228 = arith.truncf %189 : vector<8x128xf32> to vector<8x128xbf16>
    %c2_81 = arith.constant 2 : index
    %c0_82 = arith.constant 0 : index
    %c0_83 = arith.constant 0 : index
    %229 = vector.load %arg4[%c2_81, %c0_82, %c0_83] : memref<4x128x512xbf16, #tpu.memory_space<vmem>>, vector<1x128x512xbf16>
    %230 = vector.shape_cast %229 : vector<1x128x512xbf16> to vector<128x512xbf16>
    %cst_84 = arith.constant dense<0.000000e+00> : vector<8x512xf32>
    %231 = tpu.matmul %228, %230, %cst_84 {dimension_numbers = #tpu.dot_dimension_numbers<[1], [0], [0], [1], [0, 0, 1, 1], [], []>} : vector<8x128xbf16>, vector<128x512xbf16>, vector<8x512xf32> -> vector<8x512xf32>
    %232 = arith.addf %227, %231 : vector<8x512xf32>
    %c0_85 = arith.constant 0 : index
    %c0_86 = arith.constant 0 : index
    %c0_87 = arith.constant 0 : index
    %233 = vector.load %arg5[%c0_85, %c0_86, %c0_87] : memref<2x8x512xf32, #tpu.memory_space<vmem>>, vector<1x8x512xf32>
    %234 = vector.shape_cast %233 : vector<1x8x512xf32> to vector<8x512xf32>
    %235 = arith.addf %232, %234 : vector<8x512xf32>
    %236 = vector.extract_strided_slice %235 {offsets = [0, 0], sizes = [8, 128], strides = [1, 1]} : vector<8x512xf32> to vector<8x128xf32>
    %237 = arith.negf %236 : vector<8x128xf32>
    %238 = math.exp %237 : vector<8x128xf32>
    %cst_88 = arith.constant 1.000000e+00 : f32
    %239 = vector.broadcast %cst_88 : f32 to vector<8x128xf32>
    %240 = arith.addf %239, %238 : vector<8x128xf32>
    %241 = arith.divf %239, %240 : vector<8x128xf32>
    %242 = vector.extract_strided_slice %235 {offsets = [0, 128], sizes = [8, 128], strides = [1, 1]} : vector<8x512xf32> to vector<8x128xf32>
    %243 = arith.negf %242 : vector<8x128xf32>
    %244 = math.exp %243 : vector<8x128xf32>
    %cst_89 = arith.constant 1.000000e+00 : f32
    %245 = vector.broadcast %cst_89 : f32 to vector<8x128xf32>
    %246 = arith.addf %245, %244 : vector<8x128xf32>
    %247 = arith.divf %245, %246 : vector<8x128xf32>
    %248 = vector.extract_strided_slice %235 {offsets = [0, 256], sizes = [8, 128], strides = [1, 1]} : vector<8x512xf32> to vector<8x128xf32>
    %249 = math.tanh %248 : vector<8x128xf32>
    %250 = vector.extract_strided_slice %235 {offsets = [0, 384], sizes = [8, 128], strides = [1, 1]} : vector<8x512xf32> to vector<8x128xf32>
    %251 = arith.negf %250 : vector<8x128xf32>
    %252 = math.exp %251 : vector<8x128xf32>
    %cst_90 = arith.constant 1.000000e+00 : f32
    %253 = vector.broadcast %cst_90 : f32 to vector<8x128xf32>
    %254 = arith.addf %253, %252 : vector<8x128xf32>
    %255 = arith.divf %253, %254 : vector<8x128xf32>
    %256 = arith.mulf %247, %187 : vector<8x128xf32>
    %257 = arith.mulf %241, %249 : vector<8x128xf32>
    %258 = arith.addf %256, %257 : vector<8x128xf32>
    %259 = math.tanh %258 : vector<8x128xf32>
    %260 = arith.mulf %255, %259 : vector<8x128xf32>
    %261 = arith.truncf %260 : vector<8x128xf32> to vector<8x128xbf16>
    %c1_91 = arith.constant 1 : index
    %c0_92 = arith.constant 0 : index
    %c0_93 = arith.constant 0 : index
    %262 = vector.load %arg4[%c1_91, %c0_92, %c0_93] : memref<4x128x512xbf16, #tpu.memory_space<vmem>>, vector<1x128x512xbf16>
    %263 = vector.shape_cast %262 : vector<1x128x512xbf16> to vector<128x512xbf16>
    %cst_94 = arith.constant dense<0.000000e+00> : vector<8x512xf32>
    %264 = tpu.matmul %261, %263, %cst_94 {dimension_numbers = #tpu.dot_dimension_numbers<[1], [0], [0], [1], [0, 0, 1, 1], [], []>} : vector<8x128xbf16>, vector<128x512xbf16>, vector<8x512xf32> -> vector<8x512xf32>
    %265 = arith.truncf %226 : vector<8x128xf32> to vector<8x128xbf16>
    %c3_95 = arith.constant 3 : index
    %c0_96 = arith.constant 0 : index
    %c0_97 = arith.constant 0 : index
    %266 = vector.load %arg4[%c3_95, %c0_96, %c0_97] : memref<4x128x512xbf16, #tpu.memory_space<vmem>>, vector<1x128x512xbf16>
    %267 = vector.shape_cast %266 : vector<1x128x512xbf16> to vector<128x512xbf16>
    %cst_98 = arith.constant dense<0.000000e+00> : vector<8x512xf32>
    %268 = tpu.matmul %265, %267, %cst_98 {dimension_numbers = #tpu.dot_dimension_numbers<[1], [0], [0], [1], [0, 0, 1, 1], [], []>} : vector<8x128xbf16>, vector<128x512xbf16>, vector<8x512xf32> -> vector<8x512xf32>
    %269 = arith.addf %264, %268 : vector<8x512xf32>
    %c1_99 = arith.constant 1 : index
    %c0_100 = arith.constant 0 : index
    %c0_101 = arith.constant 0 : index
    %270 = vector.load %arg5[%c1_99, %c0_100, %c0_101] : memref<2x8x512xf32, #tpu.memory_space<vmem>>, vector<1x8x512xf32>
    %271 = vector.shape_cast %270 : vector<1x8x512xf32> to vector<8x512xf32>
    %272 = arith.addf %269, %271 : vector<8x512xf32>
    %273 = vector.extract_strided_slice %272 {offsets = [0, 0], sizes = [8, 128], strides = [1, 1]} : vector<8x512xf32> to vector<8x128xf32>
    %274 = arith.negf %273 : vector<8x128xf32>
    %275 = math.exp %274 : vector<8x128xf32>
    %cst_102 = arith.constant 1.000000e+00 : f32
    %276 = vector.broadcast %cst_102 : f32 to vector<8x128xf32>
    %277 = arith.addf %276, %275 : vector<8x128xf32>
    %278 = arith.divf %276, %277 : vector<8x128xf32>
    %279 = vector.extract_strided_slice %272 {offsets = [0, 128], sizes = [8, 128], strides = [1, 1]} : vector<8x512xf32> to vector<8x128xf32>
    %280 = arith.negf %279 : vector<8x128xf32>
    %281 = math.exp %280 : vector<8x128xf32>
    %cst_103 = arith.constant 1.000000e+00 : f32
    %282 = vector.broadcast %cst_103 : f32 to vector<8x128xf32>
    %283 = arith.addf %282, %281 : vector<8x128xf32>
    %284 = arith.divf %282, %283 : vector<8x128xf32>
    %285 = vector.extract_strided_slice %272 {offsets = [0, 256], sizes = [8, 128], strides = [1, 1]} : vector<8x512xf32> to vector<8x128xf32>
    %286 = math.tanh %285 : vector<8x128xf32>
    %287 = vector.extract_strided_slice %272 {offsets = [0, 384], sizes = [8, 128], strides = [1, 1]} : vector<8x512xf32> to vector<8x128xf32>
    %288 = arith.negf %287 : vector<8x128xf32>
    %289 = math.exp %288 : vector<8x128xf32>
    %cst_104 = arith.constant 1.000000e+00 : f32
    %290 = vector.broadcast %cst_104 : f32 to vector<8x128xf32>
    %291 = arith.addf %290, %289 : vector<8x128xf32>
    %292 = arith.divf %290, %291 : vector<8x128xf32>
    %293 = arith.mulf %284, %224 : vector<8x128xf32>
    %294 = arith.mulf %278, %286 : vector<8x128xf32>
    %295 = arith.addf %293, %294 : vector<8x128xf32>
    %296 = math.tanh %295 : vector<8x128xf32>
    %297 = arith.mulf %292, %296 : vector<8x128xf32>
    %c32 = arith.constant 32 : index
    %c0_105 = arith.constant 0 : index
    %298 = vector.load %arg12[%c32, %c0_105] : memref<48x512xf32, #tpu.memory_space<vmem>>, vector<8x512xf32>
    %299 = arith.truncf %260 : vector<8x128xf32> to vector<8x128xbf16>
    %c2_106 = arith.constant 2 : index
    %c0_107 = arith.constant 0 : index
    %c0_108 = arith.constant 0 : index
    %300 = vector.load %arg4[%c2_106, %c0_107, %c0_108] : memref<4x128x512xbf16, #tpu.memory_space<vmem>>, vector<1x128x512xbf16>
    %301 = vector.shape_cast %300 : vector<1x128x512xbf16> to vector<128x512xbf16>
    %cst_109 = arith.constant dense<0.000000e+00> : vector<8x512xf32>
    %302 = tpu.matmul %299, %301, %cst_109 {dimension_numbers = #tpu.dot_dimension_numbers<[1], [0], [0], [1], [0, 0, 1, 1], [], []>} : vector<8x128xbf16>, vector<128x512xbf16>, vector<8x512xf32> -> vector<8x512xf32>
    %303 = arith.addf %298, %302 : vector<8x512xf32>
    %c0_110 = arith.constant 0 : index
    %c0_111 = arith.constant 0 : index
    %c0_112 = arith.constant 0 : index
    %304 = vector.load %arg5[%c0_110, %c0_111, %c0_112] : memref<2x8x512xf32, #tpu.memory_space<vmem>>, vector<1x8x512xf32>
    %305 = vector.shape_cast %304 : vector<1x8x512xf32> to vector<8x512xf32>
    %306 = arith.addf %303, %305 : vector<8x512xf32>
    %307 = vector.extract_strided_slice %306 {offsets = [0, 0], sizes = [8, 128], strides = [1, 1]} : vector<8x512xf32> to vector<8x128xf32>
    %308 = arith.negf %307 : vector<8x128xf32>
    %309 = math.exp %308 : vector<8x128xf32>
    %cst_113 = arith.constant 1.000000e+00 : f32
    %310 = vector.broadcast %cst_113 : f32 to vector<8x128xf32>
    %311 = arith.addf %310, %309 : vector<8x128xf32>
    %312 = arith.divf %310, %311 : vector<8x128xf32>
    %313 = vector.extract_strided_slice %306 {offsets = [0, 128], sizes = [8, 128], strides = [1, 1]} : vector<8x512xf32> to vector<8x128xf32>
    %314 = arith.negf %313 : vector<8x128xf32>
    %315 = math.exp %314 : vector<8x128xf32>
    %cst_114 = arith.constant 1.000000e+00 : f32
    %316 = vector.broadcast %cst_114 : f32 to vector<8x128xf32>
    %317 = arith.addf %316, %315 : vector<8x128xf32>
    %318 = arith.divf %316, %317 : vector<8x128xf32>
    %319 = vector.extract_strided_slice %306 {offsets = [0, 256], sizes = [8, 128], strides = [1, 1]} : vector<8x512xf32> to vector<8x128xf32>
    %320 = math.tanh %319 : vector<8x128xf32>
    %321 = vector.extract_strided_slice %306 {offsets = [0, 384], sizes = [8, 128], strides = [1, 1]} : vector<8x512xf32> to vector<8x128xf32>
    %322 = arith.negf %321 : vector<8x128xf32>
    %323 = math.exp %322 : vector<8x128xf32>
    %cst_115 = arith.constant 1.000000e+00 : f32
    %324 = vector.broadcast %cst_115 : f32 to vector<8x128xf32>
    %325 = arith.addf %324, %323 : vector<8x128xf32>
    %326 = arith.divf %324, %325 : vector<8x128xf32>
    %327 = arith.mulf %318, %258 : vector<8x128xf32>
    %328 = arith.mulf %312, %320 : vector<8x128xf32>
    %329 = arith.addf %327, %328 : vector<8x128xf32>
    %330 = math.tanh %329 : vector<8x128xf32>
    %331 = arith.mulf %326, %330 : vector<8x128xf32>
    %332 = arith.truncf %331 : vector<8x128xf32> to vector<8x128xbf16>
    %c1_116 = arith.constant 1 : index
    %c0_117 = arith.constant 0 : index
    %c0_118 = arith.constant 0 : index
    %333 = vector.load %arg4[%c1_116, %c0_117, %c0_118] : memref<4x128x512xbf16, #tpu.memory_space<vmem>>, vector<1x128x512xbf16>
    %334 = vector.shape_cast %333 : vector<1x128x512xbf16> to vector<128x512xbf16>
    %cst_119 = arith.constant dense<0.000000e+00> : vector<8x512xf32>
    %335 = tpu.matmul %332, %334, %cst_119 {dimension_numbers = #tpu.dot_dimension_numbers<[1], [0], [0], [1], [0, 0, 1, 1], [], []>} : vector<8x128xbf16>, vector<128x512xbf16>, vector<8x512xf32> -> vector<8x512xf32>
    %336 = arith.truncf %297 : vector<8x128xf32> to vector<8x128xbf16>
    %c3_120 = arith.constant 3 : index
    %c0_121 = arith.constant 0 : index
    %c0_122 = arith.constant 0 : index
    %337 = vector.load %arg4[%c3_120, %c0_121, %c0_122] : memref<4x128x512xbf16, #tpu.memory_space<vmem>>, vector<1x128x512xbf16>
    %338 = vector.shape_cast %337 : vector<1x128x512xbf16> to vector<128x512xbf16>
    %cst_123 = arith.constant dense<0.000000e+00> : vector<8x512xf32>
    %339 = tpu.matmul %336, %338, %cst_123 {dimension_numbers = #tpu.dot_dimension_numbers<[1], [0], [0], [1], [0, 0, 1, 1], [], []>} : vector<8x128xbf16>, vector<128x512xbf16>, vector<8x512xf32> -> vector<8x512xf32>
    %340 = arith.addf %335, %339 : vector<8x512xf32>
    %c1_124 = arith.constant 1 : index
    %c0_125 = arith.constant 0 : index
    %c0_126 = arith.constant 0 : index
    %341 = vector.load %arg5[%c1_124, %c0_125, %c0_126] : memref<2x8x512xf32, #tpu.memory_space<vmem>>, vector<1x8x512xf32>
    %342 = vector.shape_cast %341 : vector<1x8x512xf32> to vector<8x512xf32>
    %343 = arith.addf %340, %342 : vector<8x512xf32>
    %344 = vector.extract_strided_slice %343 {offsets = [0, 0], sizes = [8, 128], strides = [1, 1]} : vector<8x512xf32> to vector<8x128xf32>
    %345 = arith.negf %344 : vector<8x128xf32>
    %346 = math.exp %345 : vector<8x128xf32>
    %cst_127 = arith.constant 1.000000e+00 : f32
    %347 = vector.broadcast %cst_127 : f32 to vector<8x128xf32>
    %348 = arith.addf %347, %346 : vector<8x128xf32>
    %349 = arith.divf %347, %348 : vector<8x128xf32>
    %350 = vector.extract_strided_slice %343 {offsets = [0, 128], sizes = [8, 128], strides = [1, 1]} : vector<8x512xf32> to vector<8x128xf32>
    %351 = arith.negf %350 : vector<8x128xf32>
    %352 = math.exp %351 : vector<8x128xf32>
    %cst_128 = arith.constant 1.000000e+00 : f32
    %353 = vector.broadcast %cst_128 : f32 to vector<8x128xf32>
    %354 = arith.addf %353, %352 : vector<8x128xf32>
    %355 = arith.divf %353, %354 : vector<8x128xf32>
    %356 = vector.extract_strided_slice %343 {offsets = [0, 256], sizes = [8, 128], strides = [1, 1]} : vector<8x512xf32> to vector<8x128xf32>
    %357 = math.tanh %356 : vector<8x128xf32>
    %358 = vector.extract_strided_slice %343 {offsets = [0, 384], sizes = [8, 128], strides = [1, 1]} : vector<8x512xf32> to vector<8x128xf32>
    %359 = arith.negf %358 : vector<8x128xf32>
    %360 = math.exp %359 : vector<8x128xf32>
    %cst_129 = arith.constant 1.000000e+00 : f32
    %361 = vector.broadcast %cst_129 : f32 to vector<8x128xf32>
    %362 = arith.addf %361, %360 : vector<8x128xf32>
    %363 = arith.divf %361, %362 : vector<8x128xf32>
    %364 = arith.mulf %355, %295 : vector<8x128xf32>
    %365 = arith.mulf %349, %357 : vector<8x128xf32>
    %366 = arith.addf %364, %365 : vector<8x128xf32>
    %367 = math.tanh %366 : vector<8x128xf32>
    %368 = arith.mulf %363, %367 : vector<8x128xf32>
    %c40 = arith.constant 40 : index
    %c0_130 = arith.constant 0 : index
    %369 = vector.load %arg12[%c40, %c0_130] : memref<48x512xf32, #tpu.memory_space<vmem>>, vector<8x512xf32>
    %370 = arith.truncf %331 : vector<8x128xf32> to vector<8x128xbf16>
    %c2_131 = arith.constant 2 : index
    %c0_132 = arith.constant 0 : index
    %c0_133 = arith.constant 0 : index
    %371 = vector.load %arg4[%c2_131, %c0_132, %c0_133] : memref<4x128x512xbf16, #tpu.memory_space<vmem>>, vector<1x128x512xbf16>
    %372 = vector.shape_cast %371 : vector<1x128x512xbf16> to vector<128x512xbf16>
    %cst_134 = arith.constant dense<0.000000e+00> : vector<8x512xf32>
    %373 = tpu.matmul %370, %372, %cst_134 {dimension_numbers = #tpu.dot_dimension_numbers<[1], [0], [0], [1], [0, 0, 1, 1], [], []>} : vector<8x128xbf16>, vector<128x512xbf16>, vector<8x512xf32> -> vector<8x512xf32>
    %374 = arith.addf %369, %373 : vector<8x512xf32>
    %c0_135 = arith.constant 0 : index
    %c0_136 = arith.constant 0 : index
    %c0_137 = arith.constant 0 : index
    %375 = vector.load %arg5[%c0_135, %c0_136, %c0_137] : memref<2x8x512xf32, #tpu.memory_space<vmem>>, vector<1x8x512xf32>
    %376 = vector.shape_cast %375 : vector<1x8x512xf32> to vector<8x512xf32>
    %377 = arith.addf %374, %376 : vector<8x512xf32>
    %378 = vector.extract_strided_slice %377 {offsets = [0, 0], sizes = [8, 128], strides = [1, 1]} : vector<8x512xf32> to vector<8x128xf32>
    %379 = arith.negf %378 : vector<8x128xf32>
    %380 = math.exp %379 : vector<8x128xf32>
    %cst_138 = arith.constant 1.000000e+00 : f32
    %381 = vector.broadcast %cst_138 : f32 to vector<8x128xf32>
    %382 = arith.addf %381, %380 : vector<8x128xf32>
    %383 = arith.divf %381, %382 : vector<8x128xf32>
    %384 = vector.extract_strided_slice %377 {offsets = [0, 128], sizes = [8, 128], strides = [1, 1]} : vector<8x512xf32> to vector<8x128xf32>
    %385 = arith.negf %384 : vector<8x128xf32>
    %386 = math.exp %385 : vector<8x128xf32>
    %cst_139 = arith.constant 1.000000e+00 : f32
    %387 = vector.broadcast %cst_139 : f32 to vector<8x128xf32>
    %388 = arith.addf %387, %386 : vector<8x128xf32>
    %389 = arith.divf %387, %388 : vector<8x128xf32>
    %390 = vector.extract_strided_slice %377 {offsets = [0, 256], sizes = [8, 128], strides = [1, 1]} : vector<8x512xf32> to vector<8x128xf32>
    %391 = math.tanh %390 : vector<8x128xf32>
    %392 = vector.extract_strided_slice %377 {offsets = [0, 384], sizes = [8, 128], strides = [1, 1]} : vector<8x512xf32> to vector<8x128xf32>
    %393 = arith.negf %392 : vector<8x128xf32>
    %394 = math.exp %393 : vector<8x128xf32>
    %cst_140 = arith.constant 1.000000e+00 : f32
    %395 = vector.broadcast %cst_140 : f32 to vector<8x128xf32>
    %396 = arith.addf %395, %394 : vector<8x128xf32>
    %397 = arith.divf %395, %396 : vector<8x128xf32>
    %398 = arith.mulf %389, %329 : vector<8x128xf32>
    %399 = arith.mulf %383, %391 : vector<8x128xf32>
    %400 = arith.addf %398, %399 : vector<8x128xf32>
    %401 = math.tanh %400 : vector<8x128xf32>
    %402 = arith.mulf %397, %401 : vector<8x128xf32>
    %403 = arith.truncf %402 : vector<8x128xf32> to vector<8x128xbf16>
    %c1_141 = arith.constant 1 : index
    %c0_142 = arith.constant 0 : index
    %c0_143 = arith.constant 0 : index
    %404 = vector.load %arg4[%c1_141, %c0_142, %c0_143] : memref<4x128x512xbf16, #tpu.memory_space<vmem>>, vector<1x128x512xbf16>
    %405 = vector.shape_cast %404 : vector<1x128x512xbf16> to vector<128x512xbf16>
    %cst_144 = arith.constant dense<0.000000e+00> : vector<8x512xf32>
    %406 = tpu.matmul %403, %405, %cst_144 {dimension_numbers = #tpu.dot_dimension_numbers<[1], [0], [0], [1], [0, 0, 1, 1], [], []>} : vector<8x128xbf16>, vector<128x512xbf16>, vector<8x512xf32> -> vector<8x512xf32>
    %407 = arith.truncf %368 : vector<8x128xf32> to vector<8x128xbf16>
    %c3_145 = arith.constant 3 : index
    %c0_146 = arith.constant 0 : index
    %c0_147 = arith.constant 0 : index
    %408 = vector.load %arg4[%c3_145, %c0_146, %c0_147] : memref<4x128x512xbf16, #tpu.memory_space<vmem>>, vector<1x128x512xbf16>
    %409 = vector.shape_cast %408 : vector<1x128x512xbf16> to vector<128x512xbf16>
    %cst_148 = arith.constant dense<0.000000e+00> : vector<8x512xf32>
    %410 = tpu.matmul %407, %409, %cst_148 {dimension_numbers = #tpu.dot_dimension_numbers<[1], [0], [0], [1], [0, 0, 1, 1], [], []>} : vector<8x128xbf16>, vector<128x512xbf16>, vector<8x512xf32> -> vector<8x512xf32>
    %411 = arith.addf %406, %410 : vector<8x512xf32>
    %c1_149 = arith.constant 1 : index
    %c0_150 = arith.constant 0 : index
    %c0_151 = arith.constant 0 : index
    %412 = vector.load %arg5[%c1_149, %c0_150, %c0_151] : memref<2x8x512xf32, #tpu.memory_space<vmem>>, vector<1x8x512xf32>
    %413 = vector.shape_cast %412 : vector<1x8x512xf32> to vector<8x512xf32>
    %414 = arith.addf %411, %413 : vector<8x512xf32>
    %415 = vector.extract_strided_slice %414 {offsets = [0, 0], sizes = [8, 128], strides = [1, 1]} : vector<8x512xf32> to vector<8x128xf32>
    %416 = arith.negf %415 : vector<8x128xf32>
    %417 = math.exp %416 : vector<8x128xf32>
    %cst_152 = arith.constant 1.000000e+00 : f32
    %418 = vector.broadcast %cst_152 : f32 to vector<8x128xf32>
    %419 = arith.addf %418, %417 : vector<8x128xf32>
    %420 = arith.divf %418, %419 : vector<8x128xf32>
    %421 = vector.extract_strided_slice %414 {offsets = [0, 128], sizes = [8, 128], strides = [1, 1]} : vector<8x512xf32> to vector<8x128xf32>
    %422 = arith.negf %421 : vector<8x128xf32>
    %423 = math.exp %422 : vector<8x128xf32>
    %cst_153 = arith.constant 1.000000e+00 : f32
    %424 = vector.broadcast %cst_153 : f32 to vector<8x128xf32>
    %425 = arith.addf %424, %423 : vector<8x128xf32>
    %426 = arith.divf %424, %425 : vector<8x128xf32>
    %427 = vector.extract_strided_slice %414 {offsets = [0, 256], sizes = [8, 128], strides = [1, 1]} : vector<8x512xf32> to vector<8x128xf32>
    %428 = math.tanh %427 : vector<8x128xf32>
    %429 = vector.extract_strided_slice %414 {offsets = [0, 384], sizes = [8, 128], strides = [1, 1]} : vector<8x512xf32> to vector<8x128xf32>
    %430 = arith.negf %429 : vector<8x128xf32>
    %431 = math.exp %430 : vector<8x128xf32>
    %cst_154 = arith.constant 1.000000e+00 : f32
    %432 = vector.broadcast %cst_154 : f32 to vector<8x128xf32>
    %433 = arith.addf %432, %431 : vector<8x128xf32>
    %434 = arith.divf %432, %433 : vector<8x128xf32>
    %435 = arith.mulf %426, %366 : vector<8x128xf32>
    %436 = arith.mulf %420, %428 : vector<8x128xf32>
    %437 = arith.addf %435, %436 : vector<8x128xf32>
    %438 = math.tanh %437 : vector<8x128xf32>
    %439 = arith.mulf %434, %438 : vector<8x128xf32>
    %c0_i32_155 = arith.constant 0 : i32
    %440 = tpu.memref_slice %arg14[%c0_i32_155] : memref<1x!tpu.dma_semaphore, #tpu.memory_space<semaphore_mem>> -> memref<1x!tpu.dma_semaphore, #tpu.memory_space<semaphore_mem>>
    %441 = tpu.memref_squeeze %440 : memref<1x!tpu.dma_semaphore, #tpu.memory_space<semaphore_mem>> -> memref<!tpu.dma_semaphore, #tpu.memory_space<semaphore_mem>>
    tpu.wait_dma2 semaphore(%441 : memref<!tpu.dma_semaphore, #tpu.memory_space<semaphore_mem>>) src(%arg6 : memref<4x128x512xbf16, #tpu.memory_space<any>>) dst(%arg11 : memref<4x128x512xbf16, #tpu.memory_space<vmem>>)
    %442 = tpu.iota {dimensions = array<i32: 1>} : vector<64x128xi32>
    %c0_156 = arith.constant 0 : index
    %c0_157 = arith.constant 0 : index
    %443 = vector.load %arg3[%c0_156, %c0_157] : memref<64x1xi32, #tpu.memory_space<vmem>>, vector<64x1xi32>
    %444 = vector.broadcast %443 : vector<64x1xi32> to vector<64x128xi32>
    %445 = arith.cmpi eq, %442, %444 : vector<64x128xi32>
    %446 = arith.extui %445 : vector<64x128xi1> to vector<64x128xi32>
    %447 = arith.sitofp %446 : vector<64x128xi32> to vector<64x128xf32>
    %448 = arith.truncf %447 : vector<64x128xf32> to vector<64x128xbf16>
    %c0_158 = arith.constant 0 : index
    %c0_159 = arith.constant 0 : index
    %c0_160 = arith.constant 0 : index
    %449 = vector.load %arg11[%c0_158, %c0_159, %c0_160] : memref<4x128x512xbf16, #tpu.memory_space<vmem>>, vector<1x128x512xbf16>
    %450 = vector.shape_cast %449 : vector<1x128x512xbf16> to vector<128x512xbf16>
    %cst_161 = arith.constant dense<0.000000e+00> : vector<64x512xf32>
    %451 = tpu.matmul %448, %450, %cst_161 {dimension_numbers = #tpu.dot_dimension_numbers<[1], [0], [0], [1], [0, 0, 1, 1], [], []>} : vector<64x128xbf16>, vector<128x512xbf16>, vector<64x512xf32> -> vector<64x512xf32>
    %c0_162 = arith.constant 0 : index
    %c0_163 = arith.constant 0 : index
    %452 = vector.load %arg13[%c0_162, %c0_163] : memref<64x512xf32, #tpu.memory_space<vmem>>, vector<64x512xf32>
    tpu.vector_store %arg13[%c0_162, %c0_163], %451 {strides = array<i32>} : memref<64x512xf32, #tpu.memory_space<vmem>>, vector<64x512xf32>,
    %cst_164 = arith.constant 0.000000e+00 : f32
    %453 = vector.broadcast %cst_164 : f32 to vector<8x128xf32>
    %c0_165 = arith.constant 0 : index
    %c0_166 = arith.constant 0 : index
    %c0_167 = arith.constant 0 : index
    %454 = vector.load %arg10[%c0_165, %c0_166, %c0_167] : memref<8x8x128xf32, #tpu.memory_space<vmem>>, vector<1x8x128xf32>
    %455 = vector.shape_cast %454 : vector<1x8x128xf32> to vector<8x128xf32>
    %456 = vector.shape_cast %453 : vector<8x128xf32> to vector<1x8x128xf32>
    tpu.vector_store %arg10[%c0_165, %c0_166, %c0_167], %456 {strides = array<i32>} : memref<8x8x128xf32, #tpu.memory_space<vmem>>, vector<1x8x128xf32>,
    %c0_168 = arith.constant 0 : index
    %c0_169 = arith.constant 0 : index
    %457 = vector.load %arg13[%c0_168, %c0_169] : memref<64x512xf32, #tpu.memory_space<vmem>>, vector<8x512xf32>
    %458 = tpu.iota {dimensions = array<i32: 1>} : vector<8x128xi32>
    %459 = arith.truncf %402 : vector<8x128xf32> to vector<8x128xbf16>
    %c2_170 = arith.constant 2 : index
    %c0_171 = arith.constant 0 : index
    %c0_172 = arith.constant 0 : index
    %460 = vector.load %arg11[%c2_170, %c0_171, %c0_172] : memref<4x128x512xbf16, #tpu.memory_space<vmem>>, vector<1x128x512xbf16>
    %461 = vector.shape_cast %460 : vector<1x128x512xbf16> to vector<128x512xbf16>
    %cst_173 = arith.constant dense<0.000000e+00> : vector<8x512xf32>
    %462 = tpu.matmul %459, %461, %cst_173 {dimension_numbers = #tpu.dot_dimension_numbers<[1], [0], [0], [1], [0, 0, 1, 1], [], []>} : vector<8x128xbf16>, vector<128x512xbf16>, vector<8x512xf32> -> vector<8x512xf32>
    %463 = arith.addf %457, %462 : vector<8x512xf32>
    %c0_174 = arith.constant 0 : index
    %c0_175 = arith.constant 0 : index
    %c0_176 = arith.constant 0 : index
    %464 = vector.load %arg7[%c0_174, %c0_175, %c0_176] : memref<2x8x512xf32, #tpu.memory_space<vmem>>, vector<1x8x512xf32>
    %465 = vector.shape_cast %464 : vector<1x8x512xf32> to vector<8x512xf32>
    %466 = arith.addf %463, %465 : vector<8x512xf32>
    %467 = vector.extract_strided_slice %466 {offsets = [0, 0], sizes = [8, 128], strides = [1, 1]} : vector<8x512xf32> to vector<8x128xf32>
    %468 = arith.negf %467 : vector<8x128xf32>
    %469 = math.exp %468 : vector<8x128xf32>
    %cst_177 = arith.constant 1.000000e+00 : f32
    %470 = vector.broadcast %cst_177 : f32 to vector<8x128xf32>
    %471 = arith.addf %470, %469 : vector<8x128xf32>
    %472 = arith.divf %470, %471 : vector<8x128xf32>
    %473 = vector.extract_strided_slice %466 {offsets = [0, 128], sizes = [8, 128], strides = [1, 1]} : vector<8x512xf32> to vector<8x128xf32>
    %474 = arith.negf %473 : vector<8x128xf32>
    %475 = math.exp %474 : vector<8x128xf32>
    %cst_178 = arith.constant 1.000000e+00 : f32
    %476 = vector.broadcast %cst_178 : f32 to vector<8x128xf32>
    %477 = arith.addf %476, %475 : vector<8x128xf32>
    %478 = arith.divf %476, %477 : vector<8x128xf32>
    %479 = vector.extract_strided_slice %466 {offsets = [0, 256], sizes = [8, 128], strides = [1, 1]} : vector<8x512xf32> to vector<8x128xf32>
    %480 = math.tanh %479 : vector<8x128xf32>
    %481 = vector.extract_strided_slice %466 {offsets = [0, 384], sizes = [8, 128], strides = [1, 1]} : vector<8x512xf32> to vector<8x128xf32>
    %482 = arith.negf %481 : vector<8x128xf32>
    %483 = math.exp %482 : vector<8x128xf32>
    %cst_179 = arith.constant 1.000000e+00 : f32
    %484 = vector.broadcast %cst_179 : f32 to vector<8x128xf32>
    %485 = arith.addf %484, %483 : vector<8x128xf32>
    %486 = arith.divf %484, %485 : vector<8x128xf32>
    %487 = arith.mulf %478, %400 : vector<8x128xf32>
    %488 = arith.mulf %472, %480 : vector<8x128xf32>
    %489 = arith.addf %487, %488 : vector<8x128xf32>
    %490 = math.tanh %489 : vector<8x128xf32>
    %491 = arith.mulf %486, %490 : vector<8x128xf32>
    %492 = arith.truncf %491 : vector<8x128xf32> to vector<8x128xbf16>
    %c1_180 = arith.constant 1 : index
    %c0_181 = arith.constant 0 : index
    %c0_182 = arith.constant 0 : index
    %493 = vector.load %arg11[%c1_180, %c0_181, %c0_182] : memref<4x128x512xbf16, #tpu.memory_space<vmem>>, vector<1x128x512xbf16>
    %494 = vector.shape_cast %493 : vector<1x128x512xbf16> to vector<128x512xbf16>
    %cst_183 = arith.constant dense<0.000000e+00> : vector<8x512xf32>
    %495 = tpu.matmul %492, %494, %cst_183 {dimension_numbers = #tpu.dot_dimension_numbers<[1], [0], [0], [1], [0, 0, 1, 1], [], []>} : vector<8x128xbf16>, vector<128x512xbf16>, vector<8x512xf32> -> vector<8x512xf32>
    %496 = arith.truncf %439 : vector<8x128xf32> to vector<8x128xbf16>
    %c3_184 = arith.constant 3 : index
    %c0_185 = arith.constant 0 : index
    %c0_186 = arith.constant 0 : index
    %497 = vector.load %arg11[%c3_184, %c0_185, %c0_186] : memref<4x128x512xbf16, #tpu.memory_space<vmem>>, vector<1x128x512xbf16>
    %498 = vector.shape_cast %497 : vector<1x128x512xbf16> to vector<128x512xbf16>
    %cst_187 = arith.constant dense<0.000000e+00> : vector<8x512xf32>
    %499 = tpu.matmul %496, %498, %cst_187 {dimension_numbers = #tpu.dot_dimension_numbers<[1], [0], [0], [1], [0, 0, 1, 1], [], []>} : vector<8x128xbf16>, vector<128x512xbf16>, vector<8x512xf32> -> vector<8x512xf32>
    %500 = arith.addf %495, %499 : vector<8x512xf32>
    %c1_188 = arith.constant 1 : index
    %c0_189 = arith.constant 0 : index
    %c0_190 = arith.constant 0 : index
    %501 = vector.load %arg7[%c1_188, %c0_189, %c0_190] : memref<2x8x512xf32, #tpu.memory_space<vmem>>, vector<1x8x512xf32>
    %502 = vector.shape_cast %501 : vector<1x8x512xf32> to vector<8x512xf32>
    %503 = arith.addf %500, %502 : vector<8x512xf32>
    %504 = vector.extract_strided_slice %503 {offsets = [0, 0], sizes = [8, 128], strides = [1, 1]} : vector<8x512xf32> to vector<8x128xf32>
    %505 = arith.negf %504 : vector<8x128xf32>
    %506 = math.exp %505 : vector<8x128xf32>
    %cst_191 = arith.constant 1.000000e+00 : f32
    %507 = vector.broadcast %cst_191 : f32 to vector<8x128xf32>
    %508 = arith.addf %507, %506 : vector<8x128xf32>
    %509 = arith.divf %507, %508 : vector<8x128xf32>
    %510 = vector.extract_strided_slice %503 {offsets = [0, 128], sizes = [8, 128], strides = [1, 1]} : vector<8x512xf32> to vector<8x128xf32>
    %511 = arith.negf %510 : vector<8x128xf32>
    %512 = math.exp %511 : vector<8x128xf32>
    %cst_192 = arith.constant 1.000000e+00 : f32
    %513 = vector.broadcast %cst_192 : f32 to vector<8x128xf32>
    %514 = arith.addf %513, %512 : vector<8x128xf32>
    %515 = arith.divf %513, %514 : vector<8x128xf32>
    %516 = vector.extract_strided_slice %503 {offsets = [0, 256], sizes = [8, 128], strides = [1, 1]} : vector<8x512xf32> to vector<8x128xf32>
    %517 = math.tanh %516 : vector<8x128xf32>
    %518 = vector.extract_strided_slice %503 {offsets = [0, 384], sizes = [8, 128], strides = [1, 1]} : vector<8x512xf32> to vector<8x128xf32>
    %519 = arith.negf %518 : vector<8x128xf32>
    %520 = math.exp %519 : vector<8x128xf32>
    %cst_193 = arith.constant 1.000000e+00 : f32
    %521 = vector.broadcast %cst_193 : f32 to vector<8x128xf32>
    %522 = arith.addf %521, %520 : vector<8x128xf32>
    %523 = arith.divf %521, %522 : vector<8x128xf32>
    %524 = arith.mulf %515, %437 : vector<8x128xf32>
    %525 = arith.mulf %509, %517 : vector<8x128xf32>
    %526 = arith.addf %524, %525 : vector<8x128xf32>
    %527 = math.tanh %526 : vector<8x128xf32>
    %528 = arith.mulf %523, %527 : vector<8x128xf32>
    %529 = arith.truncf %528 : vector<8x128xf32> to vector<8x128xbf16>
    %c0_194 = arith.constant 0 : index
    %c0_195 = arith.constant 0 : index
    %530 = vector.load %arg8[%c0_194, %c0_195] : memref<128x128xbf16, #tpu.memory_space<vmem>>, vector<128x128xbf16>
    %cst_196 = arith.constant dense<0.000000e+00> : vector<8x128xf32>
    %531 = tpu.matmul %529, %530, %cst_196 {dimension_numbers = #tpu.dot_dimension_numbers<[1], [0], [0], [1], [0, 0, 1, 1], [], []>} : vector<8x128xbf16>, vector<128x128xbf16>, vector<8x128xf32> -> vector<8x128xf32>
    %c0_197 = arith.constant 0 : index
    %c0_198 = arith.constant 0 : index
    %532 = vector.load %arg9[%c0_197, %c0_198] : memref<8x128xf32, #tpu.memory_space<vmem>>, vector<8x128xf32>
    %533 = arith.addf %531, %532 : vector<8x128xf32>
    %c1_199 = arith.constant 1 : index
    %c0_200 = arith.constant 0 : index
    %c0_201 = arith.constant 0 : index
    %534 = vector.load %arg10[%c1_199, %c0_200, %c0_201] : memref<8x8x128xf32, #tpu.memory_space<vmem>>, vector<1x8x128xf32>
    %535 = vector.shape_cast %534 : vector<1x8x128xf32> to vector<8x128xf32>
    %536 = vector.shape_cast %533 : vector<8x128xf32> to vector<1x8x128xf32>
    tpu.vector_store %arg10[%c1_199, %c0_200, %c0_201], %536 {strides = array<i32>} : memref<8x8x128xf32, #tpu.memory_space<vmem>>, vector<1x8x128xf32>,
    %cst_202 = arith.constant dense<0xFF800000> : vector<8xf32>
    %537 = vector.multi_reduction <maximumf>, %533, %cst_202 [1] : vector<8x128xf32> to vector<8xf32>
    %538 = vector.shape_cast %537 : vector<8xf32> to vector<8x1xf32>
    %539 = vector.broadcast %538 : vector<8x1xf32> to vector<8x128xf32>
    %540 = arith.cmpf oeq, %533, %539 : vector<8x128xf32>
    %c128_i32 = arith.constant 128 : i32
    %541 = vector.broadcast %c128_i32 : i32 to vector<8x128xi32>
    %542 = arith.select %540, %458, %541 : vector<8x128xi1>, vector<8x128xi32>
    %cst_203 = arith.constant dense<2147483647> : vector<8xi32>
    %543 = vector.multi_reduction <minsi>, %542, %cst_203 [1] : vector<8x128xi32> to vector<8xi32>
    %544 = vector.shape_cast %543 : vector<8xi32> to vector<8x1xi32>
    %545 = vector.broadcast %544 : vector<8x1xi32> to vector<8x128xi32>
    %546 = arith.cmpi eq, %458, %545 : vector<8x128xi32>
    %547 = arith.extui %546 : vector<8x128xi1> to vector<8x128xi32>
    %548 = arith.sitofp %547 : vector<8x128xi32> to vector<8x128xf32>
    %549 = arith.truncf %548 : vector<8x128xf32> to vector<8x128xbf16>
    %c0_204 = arith.constant 0 : index
    %c0_205 = arith.constant 0 : index
    %c0_206 = arith.constant 0 : index
    %550 = vector.load %arg11[%c0_204, %c0_205, %c0_206] : memref<4x128x512xbf16, #tpu.memory_space<vmem>>, vector<1x128x512xbf16>
    %551 = vector.shape_cast %550 : vector<1x128x512xbf16> to vector<128x512xbf16>
    %cst_207 = arith.constant dense<0.000000e+00> : vector<8x512xf32>
    %552 = tpu.matmul %549, %551, %cst_207 {dimension_numbers = #tpu.dot_dimension_numbers<[1], [0], [0], [1], [0, 0, 1, 1], [], []>} : vector<8x128xbf16>, vector<128x512xbf16>, vector<8x512xf32> -> vector<8x512xf32>
    %c8_208 = arith.constant 8 : index
    %c0_209 = arith.constant 0 : index
    %553 = vector.load %arg13[%c8_208, %c0_209] : memref<64x512xf32, #tpu.memory_space<vmem>>, vector<8x512xf32>
    %c1_210 = arith.constant 1 : index
    %554 = memref.load %arg1[%c1_210] : memref<8xi32, #tpu.memory_space<smem>>
    %c1_i32 = arith.constant 1 : i32
    %555 = arith.cmpi eq, %554, %c1_i32 : i32
    %556 = arith.select %555, %553, %552 : vector<8x512xf32>
    %557 = arith.truncf %491 : vector<8x128xf32> to vector<8x128xbf16>
    %c2_211 = arith.constant 2 : index
    %c0_212 = arith.constant 0 : index
    %c0_213 = arith.constant 0 : index
    %558 = vector.load %arg11[%c2_211, %c0_212, %c0_213] : memref<4x128x512xbf16, #tpu.memory_space<vmem>>, vector<1x128x512xbf16>
    %559 = vector.shape_cast %558 : vector<1x128x512xbf16> to vector<128x512xbf16>
    %cst_214 = arith.constant dense<0.000000e+00> : vector<8x512xf32>
    %560 = tpu.matmul %557, %559, %cst_214 {dimension_numbers = #tpu.dot_dimension_numbers<[1], [0], [0], [1], [0, 0, 1, 1], [], []>} : vector<8x128xbf16>, vector<128x512xbf16>, vector<8x512xf32> -> vector<8x512xf32>
    %561 = arith.addf %556, %560 : vector<8x512xf32>
    %c0_215 = arith.constant 0 : index
    %c0_216 = arith.constant 0 : index
    %c0_217 = arith.constant 0 : index
    %562 = vector.load %arg7[%c0_215, %c0_216, %c0_217] : memref<2x8x512xf32, #tpu.memory_space<vmem>>, vector<1x8x512xf32>
    %563 = vector.shape_cast %562 : vector<1x8x512xf32> to vector<8x512xf32>
    %564 = arith.addf %561, %563 : vector<8x512xf32>
    %565 = vector.extract_strided_slice %564 {offsets = [0, 0], sizes = [8, 128], strides = [1, 1]} : vector<8x512xf32> to vector<8x128xf32>
    %566 = arith.negf %565 : vector<8x128xf32>
    %567 = math.exp %566 : vector<8x128xf32>
    %cst_218 = arith.constant 1.000000e+00 : f32
    %568 = vector.broadcast %cst_218 : f32 to vector<8x128xf32>
    %569 = arith.addf %568, %567 : vector<8x128xf32>
    %570 = arith.divf %568, %569 : vector<8x128xf32>
    %571 = vector.extract_strided_slice %564 {offsets = [0, 128], sizes = [8, 128], strides = [1, 1]} : vector<8x512xf32> to vector<8x128xf32>
    %572 = arith.negf %571 : vector<8x128xf32>
    %573 = math.exp %572 : vector<8x128xf32>
    %cst_219 = arith.constant 1.000000e+00 : f32
    %574 = vector.broadcast %cst_219 : f32 to vector<8x128xf32>
    %575 = arith.addf %574, %573 : vector<8x128xf32>
    %576 = arith.divf %574, %575 : vector<8x128xf32>
    %577 = vector.extract_strided_slice %564 {offsets = [0, 256], sizes = [8, 128], strides = [1, 1]} : vector<8x512xf32> to vector<8x128xf32>
    %578 = math.tanh %577 : vector<8x128xf32>
    %579 = vector.extract_strided_slice %564 {offsets = [0, 384], sizes = [8, 128], strides = [1, 1]} : vector<8x512xf32> to vector<8x128xf32>
    %580 = arith.negf %579 : vector<8x128xf32>
    %581 = math.exp %580 : vector<8x128xf32>
    %cst_220 = arith.constant 1.000000e+00 : f32
    %582 = vector.broadcast %cst_220 : f32 to vector<8x128xf32>
    %583 = arith.addf %582, %581 : vector<8x128xf32>
    %584 = arith.divf %582, %583 : vector<8x128xf32>
    %585 = arith.mulf %576, %489 : vector<8x128xf32>
    %586 = arith.mulf %570, %578 : vector<8x128xf32>
    %587 = arith.addf %585, %586 : vector<8x128xf32>
    %588 = math.tanh %587 : vector<8x128xf32>
    %589 = arith.mulf %584, %588 : vector<8x128xf32>
    %590 = arith.truncf %589 : vector<8x128xf32> to vector<8x128xbf16>
    %c1_221 = arith.constant 1 : index
    %c0_222 = arith.constant 0 : index
    %c0_223 = arith.constant 0 : index
    %591 = vector.load %arg11[%c1_221, %c0_222, %c0_223] : memref<4x128x512xbf16, #tpu.memory_space<vmem>>, vector<1x128x512xbf16>
    %592 = vector.shape_cast %591 : vector<1x128x512xbf16> to vector<128x512xbf16>
    %cst_224 = arith.constant dense<0.000000e+00> : vector<8x512xf32>
    %593 = tpu.matmul %590, %592, %cst_224 {dimension_numbers = #tpu.dot_dimension_numbers<[1], [0], [0], [1], [0, 0, 1, 1], [], []>} : vector<8x128xbf16>, vector<128x512xbf16>, vector<8x512xf32> -> vector<8x512xf32>
    %594 = arith.truncf %528 : vector<8x128xf32> to vector<8x128xbf16>
    %c3_225 = arith.constant 3 : index
    %c0_226 = arith.constant 0 : index
    %c0_227 = arith.constant 0 : index
    %595 = vector.load %arg11[%c3_225, %c0_226, %c0_227] : memref<4x128x512xbf16, #tpu.memory_space<vmem>>, vector<1x128x512xbf16>
    %596 = vector.shape_cast %595 : vector<1x128x512xbf16> to vector<128x512xbf16>
    %cst_228 = arith.constant dense<0.000000e+00> : vector<8x512xf32>
    %597 = tpu.matmul %594, %596, %cst_228 {dimension_numbers = #tpu.dot_dimension_numbers<[1], [0], [0], [1], [0, 0, 1, 1], [], []>} : vector<8x128xbf16>, vector<128x512xbf16>, vector<8x512xf32> -> vector<8x512xf32>
    %598 = arith.addf %593, %597 : vector<8x512xf32>
    %c1_229 = arith.constant 1 : index
    %c0_230 = arith.constant 0 : index
    %c0_231 = arith.constant 0 : index
    %599 = vector.load %arg7[%c1_229, %c0_230, %c0_231] : memref<2x8x512xf32, #tpu.memory_space<vmem>>, vector<1x8x512xf32>
    %600 = vector.shape_cast %599 : vector<1x8x512xf32> to vector<8x512xf32>
    %601 = arith.addf %598, %600 : vector<8x512xf32>
    %602 = vector.extract_strided_slice %601 {offsets = [0, 0], sizes = [8, 128], strides = [1, 1]} : vector<8x512xf32> to vector<8x128xf32>
    %603 = arith.negf %602 : vector<8x128xf32>
    %604 = math.exp %603 : vector<8x128xf32>
    %cst_232 = arith.constant 1.000000e+00 : f32
    %605 = vector.broadcast %cst_232 : f32 to vector<8x128xf32>
    %606 = arith.addf %605, %604 : vector<8x128xf32>
    %607 = arith.divf %605, %606 : vector<8x128xf32>
    %608 = vector.extract_strided_slice %601 {offsets = [0, 128], sizes = [8, 128], strides = [1, 1]} : vector<8x512xf32> to vector<8x128xf32>
    %609 = arith.negf %608 : vector<8x128xf32>
    %610 = math.exp %609 : vector<8x128xf32>
    %cst_233 = arith.constant 1.000000e+00 : f32
    %611 = vector.broadcast %cst_233 : f32 to vector<8x128xf32>
    %612 = arith.addf %611, %610 : vector<8x128xf32>
    %613 = arith.divf %611, %612 : vector<8x128xf32>
    %614 = vector.extract_strided_slice %601 {offsets = [0, 256], sizes = [8, 128], strides = [1, 1]} : vector<8x512xf32> to vector<8x128xf32>
    %615 = math.tanh %614 : vector<8x128xf32>
    %616 = vector.extract_strided_slice %601 {offsets = [0, 384], sizes = [8, 128], strides = [1, 1]} : vector<8x512xf32> to vector<8x128xf32>
    %617 = arith.negf %616 : vector<8x128xf32>
    %618 = math.exp %617 : vector<8x128xf32>
    %cst_234 = arith.constant 1.000000e+00 : f32
    %619 = vector.broadcast %cst_234 : f32 to vector<8x128xf32>
    %620 = arith.addf %619, %618 : vector<8x128xf32>
    %621 = arith.divf %619, %620 : vector<8x128xf32>
    %622 = arith.mulf %613, %526 : vector<8x128xf32>
    %623 = arith.mulf %607, %615 : vector<8x128xf32>
    %624 = arith.addf %622, %623 : vector<8x128xf32>
    %625 = math.tanh %624 : vector<8x128xf32>
    %626 = arith.mulf %621, %625 : vector<8x128xf32>
    %627 = arith.truncf %626 : vector<8x128xf32> to vector<8x128xbf16>
    %c0_235 = arith.constant 0 : index
    %c0_236 = arith.constant 0 : index
    %628 = vector.load %arg8[%c0_235, %c0_236] : memref<128x128xbf16, #tpu.memory_space<vmem>>, vector<128x128xbf16>
    %cst_237 = arith.constant dense<0.000000e+00> : vector<8x128xf32>
    %629 = tpu.matmul %627, %628, %cst_237 {dimension_numbers = #tpu.dot_dimension_numbers<[1], [0], [0], [1], [0, 0, 1, 1], [], []>} : vector<8x128xbf16>, vector<128x128xbf16>, vector<8x128xf32> -> vector<8x128xf32>
    %c0_238 = arith.constant 0 : index
    %c0_239 = arith.constant 0 : index
    %630 = vector.load %arg9[%c0_238, %c0_239] : memref<8x128xf32, #tpu.memory_space<vmem>>, vector<8x128xf32>
    %631 = arith.addf %629, %630 : vector<8x128xf32>
    %c2_240 = arith.constant 2 : index
    %c0_241 = arith.constant 0 : index
    %c0_242 = arith.constant 0 : index
    %632 = vector.load %arg10[%c2_240, %c0_241, %c0_242] : memref<8x8x128xf32, #tpu.memory_space<vmem>>, vector<1x8x128xf32>
    %633 = vector.shape_cast %632 : vector<1x8x128xf32> to vector<8x128xf32>
    %634 = vector.shape_cast %631 : vector<8x128xf32> to vector<1x8x128xf32>
    tpu.vector_store %arg10[%c2_240, %c0_241, %c0_242], %634 {strides = array<i32>} : memref<8x8x128xf32, #tpu.memory_space<vmem>>, vector<1x8x128xf32>,
    %cst_243 = arith.constant dense<0xFF800000> : vector<8xf32>
    %635 = vector.multi_reduction <maximumf>, %631, %cst_243 [1] : vector<8x128xf32> to vector<8xf32>
    %636 = vector.shape_cast %635 : vector<8xf32> to vector<8x1xf32>
    %637 = vector.broadcast %636 : vector<8x1xf32> to vector<8x128xf32>
    %638 = arith.cmpf oeq, %631, %637 : vector<8x128xf32>
    %c128_i32_244 = arith.constant 128 : i32
    %639 = vector.broadcast %c128_i32_244 : i32 to vector<8x128xi32>
    %640 = arith.select %638, %458, %639 : vector<8x128xi1>, vector<8x128xi32>
    %cst_245 = arith.constant dense<2147483647> : vector<8xi32>
    %641 = vector.multi_reduction <minsi>, %640, %cst_245 [1] : vector<8x128xi32> to vector<8xi32>
    %642 = vector.shape_cast %641 : vector<8xi32> to vector<8x1xi32>
    %643 = vector.broadcast %642 : vector<8x1xi32> to vector<8x128xi32>
    %644 = arith.cmpi eq, %458, %643 : vector<8x128xi32>
    %645 = arith.extui %644 : vector<8x128xi1> to vector<8x128xi32>
    %646 = arith.sitofp %645 : vector<8x128xi32> to vector<8x128xf32>
    %647 = arith.truncf %646 : vector<8x128xf32> to vector<8x128xbf16>
    %c0_246 = arith.constant 0 : index
    %c0_247 = arith.constant 0 : index
    %c0_248 = arith.constant 0 : index
    %648 = vector.load %arg11[%c0_246, %c0_247, %c0_248] : memref<4x128x512xbf16, #tpu.memory_space<vmem>>, vector<1x128x512xbf16>
    %649 = vector.shape_cast %648 : vector<1x128x512xbf16> to vector<128x512xbf16>
    %cst_249 = arith.constant dense<0.000000e+00> : vector<8x512xf32>
    %650 = tpu.matmul %647, %649, %cst_249 {dimension_numbers = #tpu.dot_dimension_numbers<[1], [0], [0], [1], [0, 0, 1, 1], [], []>} : vector<8x128xbf16>, vector<128x512xbf16>, vector<8x512xf32> -> vector<8x512xf32>
    %c16_250 = arith.constant 16 : index
    %c0_251 = arith.constant 0 : index
    %651 = vector.load %arg13[%c16_250, %c0_251] : memref<64x512xf32, #tpu.memory_space<vmem>>, vector<8x512xf32>
    %c2_252 = arith.constant 2 : index
    %652 = memref.load %arg1[%c2_252] : memref<8xi32, #tpu.memory_space<smem>>
    %c1_i32_253 = arith.constant 1 : i32
    %653 = arith.cmpi eq, %652, %c1_i32_253 : i32
    %654 = arith.select %653, %651, %650 : vector<8x512xf32>
    %655 = arith.truncf %589 : vector<8x128xf32> to vector<8x128xbf16>
    %c2_254 = arith.constant 2 : index
    %c0_255 = arith.constant 0 : index
    %c0_256 = arith.constant 0 : index
    %656 = vector.load %arg11[%c2_254, %c0_255, %c0_256] : memref<4x128x512xbf16, #tpu.memory_space<vmem>>, vector<1x128x512xbf16>
    %657 = vector.shape_cast %656 : vector<1x128x512xbf16> to vector<128x512xbf16>
    %cst_257 = arith.constant dense<0.000000e+00> : vector<8x512xf32>
    %658 = tpu.matmul %655, %657, %cst_257 {dimension_numbers = #tpu.dot_dimension_numbers<[1], [0], [0], [1], [0, 0, 1, 1], [], []>} : vector<8x128xbf16>, vector<128x512xbf16>, vector<8x512xf32> -> vector<8x512xf32>
    %659 = arith.addf %654, %658 : vector<8x512xf32>
    %c0_258 = arith.constant 0 : index
    %c0_259 = arith.constant 0 : index
    %c0_260 = arith.constant 0 : index
    %660 = vector.load %arg7[%c0_258, %c0_259, %c0_260] : memref<2x8x512xf32, #tpu.memory_space<vmem>>, vector<1x8x512xf32>
    %661 = vector.shape_cast %660 : vector<1x8x512xf32> to vector<8x512xf32>
    %662 = arith.addf %659, %661 : vector<8x512xf32>
    %663 = vector.extract_strided_slice %662 {offsets = [0, 0], sizes = [8, 128], strides = [1, 1]} : vector<8x512xf32> to vector<8x128xf32>
    %664 = arith.negf %663 : vector<8x128xf32>
    %665 = math.exp %664 : vector<8x128xf32>
    %cst_261 = arith.constant 1.000000e+00 : f32
    %666 = vector.broadcast %cst_261 : f32 to vector<8x128xf32>
    %667 = arith.addf %666, %665 : vector<8x128xf32>
    %668 = arith.divf %666, %667 : vector<8x128xf32>
    %669 = vector.extract_strided_slice %662 {offsets = [0, 128], sizes = [8, 128], strides = [1, 1]} : vector<8x512xf32> to vector<8x128xf32>
    %670 = arith.negf %669 : vector<8x128xf32>
    %671 = math.exp %670 : vector<8x128xf32>
    %cst_262 = arith.constant 1.000000e+00 : f32
    %672 = vector.broadcast %cst_262 : f32 to vector<8x128xf32>
    %673 = arith.addf %672, %671 : vector<8x128xf32>
    %674 = arith.divf %672, %673 : vector<8x128xf32>
    %675 = vector.extract_strided_slice %662 {offsets = [0, 256], sizes = [8, 128], strides = [1, 1]} : vector<8x512xf32> to vector<8x128xf32>
    %676 = math.tanh %675 : vector<8x128xf32>
    %677 = vector.extract_strided_slice %662 {offsets = [0, 384], sizes = [8, 128], strides = [1, 1]} : vector<8x512xf32> to vector<8x128xf32>
    %678 = arith.negf %677 : vector<8x128xf32>
    %679 = math.exp %678 : vector<8x128xf32>
    %cst_263 = arith.constant 1.000000e+00 : f32
    %680 = vector.broadcast %cst_263 : f32 to vector<8x128xf32>
    %681 = arith.addf %680, %679 : vector<8x128xf32>
    %682 = arith.divf %680, %681 : vector<8x128xf32>
    %683 = arith.mulf %674, %587 : vector<8x128xf32>
    %684 = arith.mulf %668, %676 : vector<8x128xf32>
    %685 = arith.addf %683, %684 : vector<8x128xf32>
    %686 = math.tanh %685 : vector<8x128xf32>
    %687 = arith.mulf %682, %686 : vector<8x128xf32>
    %688 = arith.truncf %687 : vector<8x128xf32> to vector<8x128xbf16>
    %c1_264 = arith.constant 1 : index
    %c0_265 = arith.constant 0 : index
    %c0_266 = arith.constant 0 : index
    %689 = vector.load %arg11[%c1_264, %c0_265, %c0_266] : memref<4x128x512xbf16, #tpu.memory_space<vmem>>, vector<1x128x512xbf16>
    %690 = vector.shape_cast %689 : vector<1x128x512xbf16> to vector<128x512xbf16>
    %cst_267 = arith.constant dense<0.000000e+00> : vector<8x512xf32>
    %691 = tpu.matmul %688, %690, %cst_267 {dimension_numbers = #tpu.dot_dimension_numbers<[1], [0], [0], [1], [0, 0, 1, 1], [], []>} : vector<8x128xbf16>, vector<128x512xbf16>, vector<8x512xf32> -> vector<8x512xf32>
    %692 = arith.truncf %626 : vector<8x128xf32> to vector<8x128xbf16>
    %c3_268 = arith.constant 3 : index
    %c0_269 = arith.constant 0 : index
    %c0_270 = arith.constant 0 : index
    %693 = vector.load %arg11[%c3_268, %c0_269, %c0_270] : memref<4x128x512xbf16, #tpu.memory_space<vmem>>, vector<1x128x512xbf16>
    %694 = vector.shape_cast %693 : vector<1x128x512xbf16> to vector<128x512xbf16>
    %cst_271 = arith.constant dense<0.000000e+00> : vector<8x512xf32>
    %695 = tpu.matmul %692, %694, %cst_271 {dimension_numbers = #tpu.dot_dimension_numbers<[1], [0], [0], [1], [0, 0, 1, 1], [], []>} : vector<8x128xbf16>, vector<128x512xbf16>, vector<8x512xf32> -> vector<8x512xf32>
    %696 = arith.addf %691, %695 : vector<8x512xf32>
    %c1_272 = arith.constant 1 : index
    %c0_273 = arith.constant 0 : index
    %c0_274 = arith.constant 0 : index
    %697 = vector.load %arg7[%c1_272, %c0_273, %c0_274] : memref<2x8x512xf32, #tpu.memory_space<vmem>>, vector<1x8x512xf32>
    %698 = vector.shape_cast %697 : vector<1x8x512xf32> to vector<8x512xf32>
    %699 = arith.addf %696, %698 : vector<8x512xf32>
    %700 = vector.extract_strided_slice %699 {offsets = [0, 0], sizes = [8, 128], strides = [1, 1]} : vector<8x512xf32> to vector<8x128xf32>
    %701 = arith.negf %700 : vector<8x128xf32>
    %702 = math.exp %701 : vector<8x128xf32>
    %cst_275 = arith.constant 1.000000e+00 : f32
    %703 = vector.broadcast %cst_275 : f32 to vector<8x128xf32>
    %704 = arith.addf %703, %702 : vector<8x128xf32>
    %705 = arith.divf %703, %704 : vector<8x128xf32>
    %706 = vector.extract_strided_slice %699 {offsets = [0, 128], sizes = [8, 128], strides = [1, 1]} : vector<8x512xf32> to vector<8x128xf32>
    %707 = arith.negf %706 : vector<8x128xf32>
    %708 = math.exp %707 : vector<8x128xf32>
    %cst_276 = arith.constant 1.000000e+00 : f32
    %709 = vector.broadcast %cst_276 : f32 to vector<8x128xf32>
    %710 = arith.addf %709, %708 : vector<8x128xf32>
    %711 = arith.divf %709, %710 : vector<8x128xf32>
    %712 = vector.extract_strided_slice %699 {offsets = [0, 256], sizes = [8, 128], strides = [1, 1]} : vector<8x512xf32> to vector<8x128xf32>
    %713 = math.tanh %712 : vector<8x128xf32>
    %714 = vector.extract_strided_slice %699 {offsets = [0, 384], sizes = [8, 128], strides = [1, 1]} : vector<8x512xf32> to vector<8x128xf32>
    %715 = arith.negf %714 : vector<8x128xf32>
    %716 = math.exp %715 : vector<8x128xf32>
    %cst_277 = arith.constant 1.000000e+00 : f32
    %717 = vector.broadcast %cst_277 : f32 to vector<8x128xf32>
    %718 = arith.addf %717, %716 : vector<8x128xf32>
    %719 = arith.divf %717, %718 : vector<8x128xf32>
    %720 = arith.mulf %711, %624 : vector<8x128xf32>
    %721 = arith.mulf %705, %713 : vector<8x128xf32>
    %722 = arith.addf %720, %721 : vector<8x128xf32>
    %723 = math.tanh %722 : vector<8x128xf32>
    %724 = arith.mulf %719, %723 : vector<8x128xf32>
    %725 = arith.truncf %724 : vector<8x128xf32> to vector<8x128xbf16>
    %c0_278 = arith.constant 0 : index
    %c0_279 = arith.constant 0 : index
    %726 = vector.load %arg8[%c0_278, %c0_279] : memref<128x128xbf16, #tpu.memory_space<vmem>>, vector<128x128xbf16>
    %cst_280 = arith.constant dense<0.000000e+00> : vector<8x128xf32>
    %727 = tpu.matmul %725, %726, %cst_280 {dimension_numbers = #tpu.dot_dimension_numbers<[1], [0], [0], [1], [0, 0, 1, 1], [], []>} : vector<8x128xbf16>, vector<128x128xbf16>, vector<8x128xf32> -> vector<8x128xf32>
    %c0_281 = arith.constant 0 : index
    %c0_282 = arith.constant 0 : index
    %728 = vector.load %arg9[%c0_281, %c0_282] : memref<8x128xf32, #tpu.memory_space<vmem>>, vector<8x128xf32>
    %729 = arith.addf %727, %728 : vector<8x128xf32>
    %c3_283 = arith.constant 3 : index
    %c0_284 = arith.constant 0 : index
    %c0_285 = arith.constant 0 : index
    %730 = vector.load %arg10[%c3_283, %c0_284, %c0_285] : memref<8x8x128xf32, #tpu.memory_space<vmem>>, vector<1x8x128xf32>
    %731 = vector.shape_cast %730 : vector<1x8x128xf32> to vector<8x128xf32>
    %732 = vector.shape_cast %729 : vector<8x128xf32> to vector<1x8x128xf32>
    tpu.vector_store %arg10[%c3_283, %c0_284, %c0_285], %732 {strides = array<i32>} : memref<8x8x128xf32, #tpu.memory_space<vmem>>, vector<1x8x128xf32>,
    %cst_286 = arith.constant dense<0xFF800000> : vector<8xf32>
    %733 = vector.multi_reduction <maximumf>, %729, %cst_286 [1] : vector<8x128xf32> to vector<8xf32>
    %734 = vector.shape_cast %733 : vector<8xf32> to vector<8x1xf32>
    %735 = vector.broadcast %734 : vector<8x1xf32> to vector<8x128xf32>
    %736 = arith.cmpf oeq, %729, %735 : vector<8x128xf32>
    %c128_i32_287 = arith.constant 128 : i32
    %737 = vector.broadcast %c128_i32_287 : i32 to vector<8x128xi32>
    %738 = arith.select %736, %458, %737 : vector<8x128xi1>, vector<8x128xi32>
    %cst_288 = arith.constant dense<2147483647> : vector<8xi32>
    %739 = vector.multi_reduction <minsi>, %738, %cst_288 [1] : vector<8x128xi32> to vector<8xi32>
    %740 = vector.shape_cast %739 : vector<8xi32> to vector<8x1xi32>
    %741 = vector.broadcast %740 : vector<8x1xi32> to vector<8x128xi32>
    %742 = arith.cmpi eq, %458, %741 : vector<8x128xi32>
    %743 = arith.extui %742 : vector<8x128xi1> to vector<8x128xi32>
    %744 = arith.sitofp %743 : vector<8x128xi32> to vector<8x128xf32>
    %745 = arith.truncf %744 : vector<8x128xf32> to vector<8x128xbf16>
    %c0_289 = arith.constant 0 : index
    %c0_290 = arith.constant 0 : index
    %c0_291 = arith.constant 0 : index
    %746 = vector.load %arg11[%c0_289, %c0_290, %c0_291] : memref<4x128x512xbf16, #tpu.memory_space<vmem>>, vector<1x128x512xbf16>
    %747 = vector.shape_cast %746 : vector<1x128x512xbf16> to vector<128x512xbf16>
    %cst_292 = arith.constant dense<0.000000e+00> : vector<8x512xf32>
    %748 = tpu.matmul %745, %747, %cst_292 {dimension_numbers = #tpu.dot_dimension_numbers<[1], [0], [0], [1], [0, 0, 1, 1], [], []>} : vector<8x128xbf16>, vector<128x512xbf16>, vector<8x512xf32> -> vector<8x512xf32>
    %c24_293 = arith.constant 24 : index
    %c0_294 = arith.constant 0 : index
    %749 = vector.load %arg13[%c24_293, %c0_294] : memref<64x512xf32, #tpu.memory_space<vmem>>, vector<8x512xf32>
    %c3_295 = arith.constant 3 : index
    %750 = memref.load %arg1[%c3_295] : memref<8xi32, #tpu.memory_space<smem>>
    %c1_i32_296 = arith.constant 1 : i32
    %751 = arith.cmpi eq, %750, %c1_i32_296 : i32
    %752 = arith.select %751, %749, %748 : vector<8x512xf32>
    %753 = arith.truncf %687 : vector<8x128xf32> to vector<8x128xbf16>
    %c2_297 = arith.constant 2 : index
    %c0_298 = arith.constant 0 : index
    %c0_299 = arith.constant 0 : index
    %754 = vector.load %arg11[%c2_297, %c0_298, %c0_299] : memref<4x128x512xbf16, #tpu.memory_space<vmem>>, vector<1x128x512xbf16>
    %755 = vector.shape_cast %754 : vector<1x128x512xbf16> to vector<128x512xbf16>
    %cst_300 = arith.constant dense<0.000000e+00> : vector<8x512xf32>
    %756 = tpu.matmul %753, %755, %cst_300 {dimension_numbers = #tpu.dot_dimension_numbers<[1], [0], [0], [1], [0, 0, 1, 1], [], []>} : vector<8x128xbf16>, vector<128x512xbf16>, vector<8x512xf32> -> vector<8x512xf32>
    %757 = arith.addf %752, %756 : vector<8x512xf32>
    %c0_301 = arith.constant 0 : index
    %c0_302 = arith.constant 0 : index
    %c0_303 = arith.constant 0 : index
    %758 = vector.load %arg7[%c0_301, %c0_302, %c0_303] : memref<2x8x512xf32, #tpu.memory_space<vmem>>, vector<1x8x512xf32>
    %759 = vector.shape_cast %758 : vector<1x8x512xf32> to vector<8x512xf32>
    %760 = arith.addf %757, %759 : vector<8x512xf32>
    %761 = vector.extract_strided_slice %760 {offsets = [0, 0], sizes = [8, 128], strides = [1, 1]} : vector<8x512xf32> to vector<8x128xf32>
    %762 = arith.negf %761 : vector<8x128xf32>
    %763 = math.exp %762 : vector<8x128xf32>
    %cst_304 = arith.constant 1.000000e+00 : f32
    %764 = vector.broadcast %cst_304 : f32 to vector<8x128xf32>
    %765 = arith.addf %764, %763 : vector<8x128xf32>
    %766 = arith.divf %764, %765 : vector<8x128xf32>
    %767 = vector.extract_strided_slice %760 {offsets = [0, 128], sizes = [8, 128], strides = [1, 1]} : vector<8x512xf32> to vector<8x128xf32>
    %768 = arith.negf %767 : vector<8x128xf32>
    %769 = math.exp %768 : vector<8x128xf32>
    %cst_305 = arith.constant 1.000000e+00 : f32
    %770 = vector.broadcast %cst_305 : f32 to vector<8x128xf32>
    %771 = arith.addf %770, %769 : vector<8x128xf32>
    %772 = arith.divf %770, %771 : vector<8x128xf32>
    %773 = vector.extract_strided_slice %760 {offsets = [0, 256], sizes = [8, 128], strides = [1, 1]} : vector<8x512xf32> to vector<8x128xf32>
    %774 = math.tanh %773 : vector<8x128xf32>
    %775 = vector.extract_strided_slice %760 {offsets = [0, 384], sizes = [8, 128], strides = [1, 1]} : vector<8x512xf32> to vector<8x128xf32>
    %776 = arith.negf %775 : vector<8x128xf32>
    %777 = math.exp %776 : vector<8x128xf32>
    %cst_306 = arith.constant 1.000000e+00 : f32
    %778 = vector.broadcast %cst_306 : f32 to vector<8x128xf32>
    %779 = arith.addf %778, %777 : vector<8x128xf32>
    %780 = arith.divf %778, %779 : vector<8x128xf32>
    %781 = arith.mulf %772, %685 : vector<8x128xf32>
    %782 = arith.mulf %766, %774 : vector<8x128xf32>
    %783 = arith.addf %781, %782 : vector<8x128xf32>
    %784 = math.tanh %783 : vector<8x128xf32>
    %785 = arith.mulf %780, %784 : vector<8x128xf32>
    %786 = arith.truncf %785 : vector<8x128xf32> to vector<8x128xbf16>
    %c1_307 = arith.constant 1 : index
    %c0_308 = arith.constant 0 : index
    %c0_309 = arith.constant 0 : index
    %787 = vector.load %arg11[%c1_307, %c0_308, %c0_309] : memref<4x128x512xbf16, #tpu.memory_space<vmem>>, vector<1x128x512xbf16>
    %788 = vector.shape_cast %787 : vector<1x128x512xbf16> to vector<128x512xbf16>
    %cst_310 = arith.constant dense<0.000000e+00> : vector<8x512xf32>
    %789 = tpu.matmul %786, %788, %cst_310 {dimension_numbers = #tpu.dot_dimension_numbers<[1], [0], [0], [1], [0, 0, 1, 1], [], []>} : vector<8x128xbf16>, vector<128x512xbf16>, vector<8x512xf32> -> vector<8x512xf32>
    %790 = arith.truncf %724 : vector<8x128xf32> to vector<8x128xbf16>
    %c3_311 = arith.constant 3 : index
    %c0_312 = arith.constant 0 : index
    %c0_313 = arith.constant 0 : index
    %791 = vector.load %arg11[%c3_311, %c0_312, %c0_313] : memref<4x128x512xbf16, #tpu.memory_space<vmem>>, vector<1x128x512xbf16>
    %792 = vector.shape_cast %791 : vector<1x128x512xbf16> to vector<128x512xbf16>
    %cst_314 = arith.constant dense<0.000000e+00> : vector<8x512xf32>
    %793 = tpu.matmul %790, %792, %cst_314 {dimension_numbers = #tpu.dot_dimension_numbers<[1], [0], [0], [1], [0, 0, 1, 1], [], []>} : vector<8x128xbf16>, vector<128x512xbf16>, vector<8x512xf32> -> vector<8x512xf32>
    %794 = arith.addf %789, %793 : vector<8x512xf32>
    %c1_315 = arith.constant 1 : index
    %c0_316 = arith.constant 0 : index
    %c0_317 = arith.constant 0 : index
    %795 = vector.load %arg7[%c1_315, %c0_316, %c0_317] : memref<2x8x512xf32, #tpu.memory_space<vmem>>, vector<1x8x512xf32>
    %796 = vector.shape_cast %795 : vector<1x8x512xf32> to vector<8x512xf32>
    %797 = arith.addf %794, %796 : vector<8x512xf32>
    %798 = vector.extract_strided_slice %797 {offsets = [0, 0], sizes = [8, 128], strides = [1, 1]} : vector<8x512xf32> to vector<8x128xf32>
    %799 = arith.negf %798 : vector<8x128xf32>
    %800 = math.exp %799 : vector<8x128xf32>
    %cst_318 = arith.constant 1.000000e+00 : f32
    %801 = vector.broadcast %cst_318 : f32 to vector<8x128xf32>
    %802 = arith.addf %801, %800 : vector<8x128xf32>
    %803 = arith.divf %801, %802 : vector<8x128xf32>
    %804 = vector.extract_strided_slice %797 {offsets = [0, 128], sizes = [8, 128], strides = [1, 1]} : vector<8x512xf32> to vector<8x128xf32>
    %805 = arith.negf %804 : vector<8x128xf32>
    %806 = math.exp %805 : vector<8x128xf32>
    %cst_319 = arith.constant 1.000000e+00 : f32
    %807 = vector.broadcast %cst_319 : f32 to vector<8x128xf32>
    %808 = arith.addf %807, %806 : vector<8x128xf32>
    %809 = arith.divf %807, %808 : vector<8x128xf32>
    %810 = vector.extract_strided_slice %797 {offsets = [0, 256], sizes = [8, 128], strides = [1, 1]} : vector<8x512xf32> to vector<8x128xf32>
    %811 = math.tanh %810 : vector<8x128xf32>
    %812 = vector.extract_strided_slice %797 {offsets = [0, 384], sizes = [8, 128], strides = [1, 1]} : vector<8x512xf32> to vector<8x128xf32>
    %813 = arith.negf %812 : vector<8x128xf32>
    %814 = math.exp %813 : vector<8x128xf32>
    %cst_320 = arith.constant 1.000000e+00 : f32
    %815 = vector.broadcast %cst_320 : f32 to vector<8x128xf32>
    %816 = arith.addf %815, %814 : vector<8x128xf32>
    %817 = arith.divf %815, %816 : vector<8x128xf32>
    %818 = arith.mulf %809, %722 : vector<8x128xf32>
    %819 = arith.mulf %803, %811 : vector<8x128xf32>
    %820 = arith.addf %818, %819 : vector<8x128xf32>
    %821 = math.tanh %820 : vector<8x128xf32>
    %822 = arith.mulf %817, %821 : vector<8x128xf32>
    %823 = arith.truncf %822 : vector<8x128xf32> to vector<8x128xbf16>
    %c0_321 = arith.constant 0 : index
    %c0_322 = arith.constant 0 : index
    %824 = vector.load %arg8[%c0_321, %c0_322] : memref<128x128xbf16, #tpu.memory_space<vmem>>, vector<128x128xbf16>
    %cst_323 = arith.constant dense<0.000000e+00> : vector<8x128xf32>
    %825 = tpu.matmul %823, %824, %cst_323 {dimension_numbers = #tpu.dot_dimension_numbers<[1], [0], [0], [1], [0, 0, 1, 1], [], []>} : vector<8x128xbf16>, vector<128x128xbf16>, vector<8x128xf32> -> vector<8x128xf32>
    %c0_324 = arith.constant 0 : index
    %c0_325 = arith.constant 0 : index
    %826 = vector.load %arg9[%c0_324, %c0_325] : memref<8x128xf32, #tpu.memory_space<vmem>>, vector<8x128xf32>
    %827 = arith.addf %825, %826 : vector<8x128xf32>
    %c4 = arith.constant 4 : index
    %c0_326 = arith.constant 0 : index
    %c0_327 = arith.constant 0 : index
    %828 = vector.load %arg10[%c4, %c0_326, %c0_327] : memref<8x8x128xf32, #tpu.memory_space<vmem>>, vector<1x8x128xf32>
    %829 = vector.shape_cast %828 : vector<1x8x128xf32> to vector<8x128xf32>
    %830 = vector.shape_cast %827 : vector<8x128xf32> to vector<1x8x128xf32>
    tpu.vector_store %arg10[%c4, %c0_326, %c0_327], %830 {strides = array<i32>} : memref<8x8x128xf32, #tpu.memory_space<vmem>>, vector<1x8x128xf32>,
    %cst_328 = arith.constant dense<0xFF800000> : vector<8xf32>
    %831 = vector.multi_reduction <maximumf>, %827, %cst_328 [1] : vector<8x128xf32> to vector<8xf32>
    %832 = vector.shape_cast %831 : vector<8xf32> to vector<8x1xf32>
    %833 = vector.broadcast %832 : vector<8x1xf32> to vector<8x128xf32>
    %834 = arith.cmpf oeq, %827, %833 : vector<8x128xf32>
    %c128_i32_329 = arith.constant 128 : i32
    %835 = vector.broadcast %c128_i32_329 : i32 to vector<8x128xi32>
    %836 = arith.select %834, %458, %835 : vector<8x128xi1>, vector<8x128xi32>
    %cst_330 = arith.constant dense<2147483647> : vector<8xi32>
    %837 = vector.multi_reduction <minsi>, %836, %cst_330 [1] : vector<8x128xi32> to vector<8xi32>
    %838 = vector.shape_cast %837 : vector<8xi32> to vector<8x1xi32>
    %839 = vector.broadcast %838 : vector<8x1xi32> to vector<8x128xi32>
    %840 = arith.cmpi eq, %458, %839 : vector<8x128xi32>
    %841 = arith.extui %840 : vector<8x128xi1> to vector<8x128xi32>
    %842 = arith.sitofp %841 : vector<8x128xi32> to vector<8x128xf32>
    %843 = arith.truncf %842 : vector<8x128xf32> to vector<8x128xbf16>
    %c0_331 = arith.constant 0 : index
    %c0_332 = arith.constant 0 : index
    %c0_333 = arith.constant 0 : index
    %844 = vector.load %arg11[%c0_331, %c0_332, %c0_333] : memref<4x128x512xbf16, #tpu.memory_space<vmem>>, vector<1x128x512xbf16>
    %845 = vector.shape_cast %844 : vector<1x128x512xbf16> to vector<128x512xbf16>
    %cst_334 = arith.constant dense<0.000000e+00> : vector<8x512xf32>
    %846 = tpu.matmul %843, %845, %cst_334 {dimension_numbers = #tpu.dot_dimension_numbers<[1], [0], [0], [1], [0, 0, 1, 1], [], []>} : vector<8x128xbf16>, vector<128x512xbf16>, vector<8x512xf32> -> vector<8x512xf32>
    %c32_335 = arith.constant 32 : index
    %c0_336 = arith.constant 0 : index
    %847 = vector.load %arg13[%c32_335, %c0_336] : memref<64x512xf32, #tpu.memory_space<vmem>>, vector<8x512xf32>
    %c4_337 = arith.constant 4 : index
    %848 = memref.load %arg1[%c4_337] : memref<8xi32, #tpu.memory_space<smem>>
    %c1_i32_338 = arith.constant 1 : i32
    %849 = arith.cmpi eq, %848, %c1_i32_338 : i32
    %850 = arith.select %849, %847, %846 : vector<8x512xf32>
    %851 = arith.truncf %785 : vector<8x128xf32> to vector<8x128xbf16>
    %c2_339 = arith.constant 2 : index
    %c0_340 = arith.constant 0 : index
    %c0_341 = arith.constant 0 : index
    %852 = vector.load %arg11[%c2_339, %c0_340, %c0_341] : memref<4x128x512xbf16, #tpu.memory_space<vmem>>, vector<1x128x512xbf16>
    %853 = vector.shape_cast %852 : vector<1x128x512xbf16> to vector<128x512xbf16>
    %cst_342 = arith.constant dense<0.000000e+00> : vector<8x512xf32>
    %854 = tpu.matmul %851, %853, %cst_342 {dimension_numbers = #tpu.dot_dimension_numbers<[1], [0], [0], [1], [0, 0, 1, 1], [], []>} : vector<8x128xbf16>, vector<128x512xbf16>, vector<8x512xf32> -> vector<8x512xf32>
    %855 = arith.addf %850, %854 : vector<8x512xf32>
    %c0_343 = arith.constant 0 : index
    %c0_344 = arith.constant 0 : index
    %c0_345 = arith.constant 0 : index
    %856 = vector.load %arg7[%c0_343, %c0_344, %c0_345] : memref<2x8x512xf32, #tpu.memory_space<vmem>>, vector<1x8x512xf32>
    %857 = vector.shape_cast %856 : vector<1x8x512xf32> to vector<8x512xf32>
    %858 = arith.addf %855, %857 : vector<8x512xf32>
    %859 = vector.extract_strided_slice %858 {offsets = [0, 0], sizes = [8, 128], strides = [1, 1]} : vector<8x512xf32> to vector<8x128xf32>
    %860 = arith.negf %859 : vector<8x128xf32>
    %861 = math.exp %860 : vector<8x128xf32>
    %cst_346 = arith.constant 1.000000e+00 : f32
    %862 = vector.broadcast %cst_346 : f32 to vector<8x128xf32>
    %863 = arith.addf %862, %861 : vector<8x128xf32>
    %864 = arith.divf %862, %863 : vector<8x128xf32>
    %865 = vector.extract_strided_slice %858 {offsets = [0, 128], sizes = [8, 128], strides = [1, 1]} : vector<8x512xf32> to vector<8x128xf32>
    %866 = arith.negf %865 : vector<8x128xf32>
    %867 = math.exp %866 : vector<8x128xf32>
    %cst_347 = arith.constant 1.000000e+00 : f32
    %868 = vector.broadcast %cst_347 : f32 to vector<8x128xf32>
    %869 = arith.addf %868, %867 : vector<8x128xf32>
    %870 = arith.divf %868, %869 : vector<8x128xf32>
    %871 = vector.extract_strided_slice %858 {offsets = [0, 256], sizes = [8, 128], strides = [1, 1]} : vector<8x512xf32> to vector<8x128xf32>
    %872 = math.tanh %871 : vector<8x128xf32>
    %873 = vector.extract_strided_slice %858 {offsets = [0, 384], sizes = [8, 128], strides = [1, 1]} : vector<8x512xf32> to vector<8x128xf32>
    %874 = arith.negf %873 : vector<8x128xf32>
    %875 = math.exp %874 : vector<8x128xf32>
    %cst_348 = arith.constant 1.000000e+00 : f32
    %876 = vector.broadcast %cst_348 : f32 to vector<8x128xf32>
    %877 = arith.addf %876, %875 : vector<8x128xf32>
    %878 = arith.divf %876, %877 : vector<8x128xf32>
    %879 = arith.mulf %870, %783 : vector<8x128xf32>
    %880 = arith.mulf %864, %872 : vector<8x128xf32>
    %881 = arith.addf %879, %880 : vector<8x128xf32>
    %882 = math.tanh %881 : vector<8x128xf32>
    %883 = arith.mulf %878, %882 : vector<8x128xf32>
    %884 = arith.truncf %883 : vector<8x128xf32> to vector<8x128xbf16>
    %c1_349 = arith.constant 1 : index
    %c0_350 = arith.constant 0 : index
    %c0_351 = arith.constant 0 : index
    %885 = vector.load %arg11[%c1_349, %c0_350, %c0_351] : memref<4x128x512xbf16, #tpu.memory_space<vmem>>, vector<1x128x512xbf16>
    %886 = vector.shape_cast %885 : vector<1x128x512xbf16> to vector<128x512xbf16>
    %cst_352 = arith.constant dense<0.000000e+00> : vector<8x512xf32>
    %887 = tpu.matmul %884, %886, %cst_352 {dimension_numbers = #tpu.dot_dimension_numbers<[1], [0], [0], [1], [0, 0, 1, 1], [], []>} : vector<8x128xbf16>, vector<128x512xbf16>, vector<8x512xf32> -> vector<8x512xf32>
    %888 = arith.truncf %822 : vector<8x128xf32> to vector<8x128xbf16>
    %c3_353 = arith.constant 3 : index
    %c0_354 = arith.constant 0 : index
    %c0_355 = arith.constant 0 : index
    %889 = vector.load %arg11[%c3_353, %c0_354, %c0_355] : memref<4x128x512xbf16, #tpu.memory_space<vmem>>, vector<1x128x512xbf16>
    %890 = vector.shape_cast %889 : vector<1x128x512xbf16> to vector<128x512xbf16>
    %cst_356 = arith.constant dense<0.000000e+00> : vector<8x512xf32>
    %891 = tpu.matmul %888, %890, %cst_356 {dimension_numbers = #tpu.dot_dimension_numbers<[1], [0], [0], [1], [0, 0, 1, 1], [], []>} : vector<8x128xbf16>, vector<128x512xbf16>, vector<8x512xf32> -> vector<8x512xf32>
    %892 = arith.addf %887, %891 : vector<8x512xf32>
    %c1_357 = arith.constant 1 : index
    %c0_358 = arith.constant 0 : index
    %c0_359 = arith.constant 0 : index
    %893 = vector.load %arg7[%c1_357, %c0_358, %c0_359] : memref<2x8x512xf32, #tpu.memory_space<vmem>>, vector<1x8x512xf32>
    %894 = vector.shape_cast %893 : vector<1x8x512xf32> to vector<8x512xf32>
    %895 = arith.addf %892, %894 : vector<8x512xf32>
    %896 = vector.extract_strided_slice %895 {offsets = [0, 0], sizes = [8, 128], strides = [1, 1]} : vector<8x512xf32> to vector<8x128xf32>
    %897 = arith.negf %896 : vector<8x128xf32>
    %898 = math.exp %897 : vector<8x128xf32>
    %cst_360 = arith.constant 1.000000e+00 : f32
    %899 = vector.broadcast %cst_360 : f32 to vector<8x128xf32>
    %900 = arith.addf %899, %898 : vector<8x128xf32>
    %901 = arith.divf %899, %900 : vector<8x128xf32>
    %902 = vector.extract_strided_slice %895 {offsets = [0, 128], sizes = [8, 128], strides = [1, 1]} : vector<8x512xf32> to vector<8x128xf32>
    %903 = arith.negf %902 : vector<8x128xf32>
    %904 = math.exp %903 : vector<8x128xf32>
    %cst_361 = arith.constant 1.000000e+00 : f32
    %905 = vector.broadcast %cst_361 : f32 to vector<8x128xf32>
    %906 = arith.addf %905, %904 : vector<8x128xf32>
    %907 = arith.divf %905, %906 : vector<8x128xf32>
    %908 = vector.extract_strided_slice %895 {offsets = [0, 256], sizes = [8, 128], strides = [1, 1]} : vector<8x512xf32> to vector<8x128xf32>
    %909 = math.tanh %908 : vector<8x128xf32>
    %910 = vector.extract_strided_slice %895 {offsets = [0, 384], sizes = [8, 128], strides = [1, 1]} : vector<8x512xf32> to vector<8x128xf32>
    %911 = arith.negf %910 : vector<8x128xf32>
    %912 = math.exp %911 : vector<8x128xf32>
    %cst_362 = arith.constant 1.000000e+00 : f32
    %913 = vector.broadcast %cst_362 : f32 to vector<8x128xf32>
    %914 = arith.addf %913, %912 : vector<8x128xf32>
    %915 = arith.divf %913, %914 : vector<8x128xf32>
    %916 = arith.mulf %907, %820 : vector<8x128xf32>
    %917 = arith.mulf %901, %909 : vector<8x128xf32>
    %918 = arith.addf %916, %917 : vector<8x128xf32>
    %919 = math.tanh %918 : vector<8x128xf32>
    %920 = arith.mulf %915, %919 : vector<8x128xf32>
    %921 = arith.truncf %920 : vector<8x128xf32> to vector<8x128xbf16>
    %c0_363 = arith.constant 0 : index
    %c0_364 = arith.constant 0 : index
    %922 = vector.load %arg8[%c0_363, %c0_364] : memref<128x128xbf16, #tpu.memory_space<vmem>>, vector<128x128xbf16>
    %cst_365 = arith.constant dense<0.000000e+00> : vector<8x128xf32>
    %923 = tpu.matmul %921, %922, %cst_365 {dimension_numbers = #tpu.dot_dimension_numbers<[1], [0], [0], [1], [0, 0, 1, 1], [], []>} : vector<8x128xbf16>, vector<128x128xbf16>, vector<8x128xf32> -> vector<8x128xf32>
    %c0_366 = arith.constant 0 : index
    %c0_367 = arith.constant 0 : index
    %924 = vector.load %arg9[%c0_366, %c0_367] : memref<8x128xf32, #tpu.memory_space<vmem>>, vector<8x128xf32>
    %925 = arith.addf %923, %924 : vector<8x128xf32>
    %c5 = arith.constant 5 : index
    %c0_368 = arith.constant 0 : index
    %c0_369 = arith.constant 0 : index
    %926 = vector.load %arg10[%c5, %c0_368, %c0_369] : memref<8x8x128xf32, #tpu.memory_space<vmem>>, vector<1x8x128xf32>
    %927 = vector.shape_cast %926 : vector<1x8x128xf32> to vector<8x128xf32>
    %928 = vector.shape_cast %925 : vector<8x128xf32> to vector<1x8x128xf32>
    tpu.vector_store %arg10[%c5, %c0_368, %c0_369], %928 {strides = array<i32>} : memref<8x8x128xf32, #tpu.memory_space<vmem>>, vector<1x8x128xf32>,
    %cst_370 = arith.constant dense<0xFF800000> : vector<8xf32>
    %929 = vector.multi_reduction <maximumf>, %925, %cst_370 [1] : vector<8x128xf32> to vector<8xf32>
    %930 = vector.shape_cast %929 : vector<8xf32> to vector<8x1xf32>
    %931 = vector.broadcast %930 : vector<8x1xf32> to vector<8x128xf32>
    %932 = arith.cmpf oeq, %925, %931 : vector<8x128xf32>
    %c128_i32_371 = arith.constant 128 : i32
    %933 = vector.broadcast %c128_i32_371 : i32 to vector<8x128xi32>
    %934 = arith.select %932, %458, %933 : vector<8x128xi1>, vector<8x128xi32>
    %cst_372 = arith.constant dense<2147483647> : vector<8xi32>
    %935 = vector.multi_reduction <minsi>, %934, %cst_372 [1] : vector<8x128xi32> to vector<8xi32>
    %936 = vector.shape_cast %935 : vector<8xi32> to vector<8x1xi32>
    %937 = vector.broadcast %936 : vector<8x1xi32> to vector<8x128xi32>
    %938 = arith.cmpi eq, %458, %937 : vector<8x128xi32>
    %939 = arith.extui %938 : vector<8x128xi1> to vector<8x128xi32>
    %940 = arith.sitofp %939 : vector<8x128xi32> to vector<8x128xf32>
    %941 = arith.truncf %940 : vector<8x128xf32> to vector<8x128xbf16>
    %c0_373 = arith.constant 0 : index
    %c0_374 = arith.constant 0 : index
    %c0_375 = arith.constant 0 : index
    %942 = vector.load %arg11[%c0_373, %c0_374, %c0_375] : memref<4x128x512xbf16, #tpu.memory_space<vmem>>, vector<1x128x512xbf16>
    %943 = vector.shape_cast %942 : vector<1x128x512xbf16> to vector<128x512xbf16>
    %cst_376 = arith.constant dense<0.000000e+00> : vector<8x512xf32>
    %944 = tpu.matmul %941, %943, %cst_376 {dimension_numbers = #tpu.dot_dimension_numbers<[1], [0], [0], [1], [0, 0, 1, 1], [], []>} : vector<8x128xbf16>, vector<128x512xbf16>, vector<8x512xf32> -> vector<8x512xf32>
    %c40_377 = arith.constant 40 : index
    %c0_378 = arith.constant 0 : index
    %945 = vector.load %arg13[%c40_377, %c0_378] : memref<64x512xf32, #tpu.memory_space<vmem>>, vector<8x512xf32>
    %c5_379 = arith.constant 5 : index
    %946 = memref.load %arg1[%c5_379] : memref<8xi32, #tpu.memory_space<smem>>
    %c1_i32_380 = arith.constant 1 : i32
    %947 = arith.cmpi eq, %946, %c1_i32_380 : i32
    %948 = arith.select %947, %945, %944 : vector<8x512xf32>
    %949 = arith.truncf %883 : vector<8x128xf32> to vector<8x128xbf16>
    %c2_381 = arith.constant 2 : index
    %c0_382 = arith.constant 0 : index
    %c0_383 = arith.constant 0 : index
    %950 = vector.load %arg11[%c2_381, %c0_382, %c0_383] : memref<4x128x512xbf16, #tpu.memory_space<vmem>>, vector<1x128x512xbf16>
    %951 = vector.shape_cast %950 : vector<1x128x512xbf16> to vector<128x512xbf16>
    %cst_384 = arith.constant dense<0.000000e+00> : vector<8x512xf32>
    %952 = tpu.matmul %949, %951, %cst_384 {dimension_numbers = #tpu.dot_dimension_numbers<[1], [0], [0], [1], [0, 0, 1, 1], [], []>} : vector<8x128xbf16>, vector<128x512xbf16>, vector<8x512xf32> -> vector<8x512xf32>
    %953 = arith.addf %948, %952 : vector<8x512xf32>
    %c0_385 = arith.constant 0 : index
    %c0_386 = arith.constant 0 : index
    %c0_387 = arith.constant 0 : index
    %954 = vector.load %arg7[%c0_385, %c0_386, %c0_387] : memref<2x8x512xf32, #tpu.memory_space<vmem>>, vector<1x8x512xf32>
    %955 = vector.shape_cast %954 : vector<1x8x512xf32> to vector<8x512xf32>
    %956 = arith.addf %953, %955 : vector<8x512xf32>
    %957 = vector.extract_strided_slice %956 {offsets = [0, 0], sizes = [8, 128], strides = [1, 1]} : vector<8x512xf32> to vector<8x128xf32>
    %958 = arith.negf %957 : vector<8x128xf32>
    %959 = math.exp %958 : vector<8x128xf32>
    %cst_388 = arith.constant 1.000000e+00 : f32
    %960 = vector.broadcast %cst_388 : f32 to vector<8x128xf32>
    %961 = arith.addf %960, %959 : vector<8x128xf32>
    %962 = arith.divf %960, %961 : vector<8x128xf32>
    %963 = vector.extract_strided_slice %956 {offsets = [0, 128], sizes = [8, 128], strides = [1, 1]} : vector<8x512xf32> to vector<8x128xf32>
    %964 = arith.negf %963 : vector<8x128xf32>
    %965 = math.exp %964 : vector<8x128xf32>
    %cst_389 = arith.constant 1.000000e+00 : f32
    %966 = vector.broadcast %cst_389 : f32 to vector<8x128xf32>
    %967 = arith.addf %966, %965 : vector<8x128xf32>
    %968 = arith.divf %966, %967 : vector<8x128xf32>
    %969 = vector.extract_strided_slice %956 {offsets = [0, 256], sizes = [8, 128], strides = [1, 1]} : vector<8x512xf32> to vector<8x128xf32>
    %970 = math.tanh %969 : vector<8x128xf32>
    %971 = vector.extract_strided_slice %956 {offsets = [0, 384], sizes = [8, 128], strides = [1, 1]} : vector<8x512xf32> to vector<8x128xf32>
    %972 = arith.negf %971 : vector<8x128xf32>
    %973 = math.exp %972 : vector<8x128xf32>
    %cst_390 = arith.constant 1.000000e+00 : f32
    %974 = vector.broadcast %cst_390 : f32 to vector<8x128xf32>
    %975 = arith.addf %974, %973 : vector<8x128xf32>
    %976 = arith.divf %974, %975 : vector<8x128xf32>
    %977 = arith.mulf %968, %881 : vector<8x128xf32>
    %978 = arith.mulf %962, %970 : vector<8x128xf32>
    %979 = arith.addf %977, %978 : vector<8x128xf32>
    %980 = math.tanh %979 : vector<8x128xf32>
    %981 = arith.mulf %976, %980 : vector<8x128xf32>
    %982 = arith.truncf %981 : vector<8x128xf32> to vector<8x128xbf16>
    %c1_391 = arith.constant 1 : index
    %c0_392 = arith.constant 0 : index
    %c0_393 = arith.constant 0 : index
    %983 = vector.load %arg11[%c1_391, %c0_392, %c0_393] : memref<4x128x512xbf16, #tpu.memory_space<vmem>>, vector<1x128x512xbf16>
    %984 = vector.shape_cast %983 : vector<1x128x512xbf16> to vector<128x512xbf16>
    %cst_394 = arith.constant dense<0.000000e+00> : vector<8x512xf32>
    %985 = tpu.matmul %982, %984, %cst_394 {dimension_numbers = #tpu.dot_dimension_numbers<[1], [0], [0], [1], [0, 0, 1, 1], [], []>} : vector<8x128xbf16>, vector<128x512xbf16>, vector<8x512xf32> -> vector<8x512xf32>
    %986 = arith.truncf %920 : vector<8x128xf32> to vector<8x128xbf16>
    %c3_395 = arith.constant 3 : index
    %c0_396 = arith.constant 0 : index
    %c0_397 = arith.constant 0 : index
    %987 = vector.load %arg11[%c3_395, %c0_396, %c0_397] : memref<4x128x512xbf16, #tpu.memory_space<vmem>>, vector<1x128x512xbf16>
    %988 = vector.shape_cast %987 : vector<1x128x512xbf16> to vector<128x512xbf16>
    %cst_398 = arith.constant dense<0.000000e+00> : vector<8x512xf32>
    %989 = tpu.matmul %986, %988, %cst_398 {dimension_numbers = #tpu.dot_dimension_numbers<[1], [0], [0], [1], [0, 0, 1, 1], [], []>} : vector<8x128xbf16>, vector<128x512xbf16>, vector<8x512xf32> -> vector<8x512xf32>
    %990 = arith.addf %985, %989 : vector<8x512xf32>
    %c1_399 = arith.constant 1 : index
    %c0_400 = arith.constant 0 : index
    %c0_401 = arith.constant 0 : index
    %991 = vector.load %arg7[%c1_399, %c0_400, %c0_401] : memref<2x8x512xf32, #tpu.memory_space<vmem>>, vector<1x8x512xf32>
    %992 = vector.shape_cast %991 : vector<1x8x512xf32> to vector<8x512xf32>
    %993 = arith.addf %990, %992 : vector<8x512xf32>
    %994 = vector.extract_strided_slice %993 {offsets = [0, 0], sizes = [8, 128], strides = [1, 1]} : vector<8x512xf32> to vector<8x128xf32>
    %995 = arith.negf %994 : vector<8x128xf32>
    %996 = math.exp %995 : vector<8x128xf32>
    %cst_402 = arith.constant 1.000000e+00 : f32
    %997 = vector.broadcast %cst_402 : f32 to vector<8x128xf32>
    %998 = arith.addf %997, %996 : vector<8x128xf32>
    %999 = arith.divf %997, %998 : vector<8x128xf32>
    %1000 = vector.extract_strided_slice %993 {offsets = [0, 128], sizes = [8, 128], strides = [1, 1]} : vector<8x512xf32> to vector<8x128xf32>
    %1001 = arith.negf %1000 : vector<8x128xf32>
    %1002 = math.exp %1001 : vector<8x128xf32>
    %cst_403 = arith.constant 1.000000e+00 : f32
    %1003 = vector.broadcast %cst_403 : f32 to vector<8x128xf32>
    %1004 = arith.addf %1003, %1002 : vector<8x128xf32>
    %1005 = arith.divf %1003, %1004 : vector<8x128xf32>
    %1006 = vector.extract_strided_slice %993 {offsets = [0, 256], sizes = [8, 128], strides = [1, 1]} : vector<8x512xf32> to vector<8x128xf32>
    %1007 = math.tanh %1006 : vector<8x128xf32>
    %1008 = vector.extract_strided_slice %993 {offsets = [0, 384], sizes = [8, 128], strides = [1, 1]} : vector<8x512xf32> to vector<8x128xf32>
    %1009 = arith.negf %1008 : vector<8x128xf32>
    %1010 = math.exp %1009 : vector<8x128xf32>
    %cst_404 = arith.constant 1.000000e+00 : f32
    %1011 = vector.broadcast %cst_404 : f32 to vector<8x128xf32>
    %1012 = arith.addf %1011, %1010 : vector<8x128xf32>
    %1013 = arith.divf %1011, %1012 : vector<8x128xf32>
    %1014 = arith.mulf %1005, %918 : vector<8x128xf32>
    %1015 = arith.mulf %999, %1007 : vector<8x128xf32>
    %1016 = arith.addf %1014, %1015 : vector<8x128xf32>
    %1017 = math.tanh %1016 : vector<8x128xf32>
    %1018 = arith.mulf %1013, %1017 : vector<8x128xf32>
    %1019 = arith.truncf %1018 : vector<8x128xf32> to vector<8x128xbf16>
    %c0_405 = arith.constant 0 : index
    %c0_406 = arith.constant 0 : index
    %1020 = vector.load %arg8[%c0_405, %c0_406] : memref<128x128xbf16, #tpu.memory_space<vmem>>, vector<128x128xbf16>
    %cst_407 = arith.constant dense<0.000000e+00> : vector<8x128xf32>
    %1021 = tpu.matmul %1019, %1020, %cst_407 {dimension_numbers = #tpu.dot_dimension_numbers<[1], [0], [0], [1], [0, 0, 1, 1], [], []>} : vector<8x128xbf16>, vector<128x128xbf16>, vector<8x128xf32> -> vector<8x128xf32>
    %c0_408 = arith.constant 0 : index
    %c0_409 = arith.constant 0 : index
    %1022 = vector.load %arg9[%c0_408, %c0_409] : memref<8x128xf32, #tpu.memory_space<vmem>>, vector<8x128xf32>
    %1023 = arith.addf %1021, %1022 : vector<8x128xf32>
    %c6 = arith.constant 6 : index
    %c0_410 = arith.constant 0 : index
    %c0_411 = arith.constant 0 : index
    %1024 = vector.load %arg10[%c6, %c0_410, %c0_411] : memref<8x8x128xf32, #tpu.memory_space<vmem>>, vector<1x8x128xf32>
    %1025 = vector.shape_cast %1024 : vector<1x8x128xf32> to vector<8x128xf32>
    %1026 = vector.shape_cast %1023 : vector<8x128xf32> to vector<1x8x128xf32>
    tpu.vector_store %arg10[%c6, %c0_410, %c0_411], %1026 {strides = array<i32>} : memref<8x8x128xf32, #tpu.memory_space<vmem>>, vector<1x8x128xf32>,
    %cst_412 = arith.constant dense<0xFF800000> : vector<8xf32>
    %1027 = vector.multi_reduction <maximumf>, %1023, %cst_412 [1] : vector<8x128xf32> to vector<8xf32>
    %1028 = vector.shape_cast %1027 : vector<8xf32> to vector<8x1xf32>
    %1029 = vector.broadcast %1028 : vector<8x1xf32> to vector<8x128xf32>
    %1030 = arith.cmpf oeq, %1023, %1029 : vector<8x128xf32>
    %c128_i32_413 = arith.constant 128 : i32
    %1031 = vector.broadcast %c128_i32_413 : i32 to vector<8x128xi32>
    %1032 = arith.select %1030, %458, %1031 : vector<8x128xi1>, vector<8x128xi32>
    %cst_414 = arith.constant dense<2147483647> : vector<8xi32>
    %1033 = vector.multi_reduction <minsi>, %1032, %cst_414 [1] : vector<8x128xi32> to vector<8xi32>
    %1034 = vector.shape_cast %1033 : vector<8xi32> to vector<8x1xi32>
    %1035 = vector.broadcast %1034 : vector<8x1xi32> to vector<8x128xi32>
    %1036 = arith.cmpi eq, %458, %1035 : vector<8x128xi32>
    %1037 = arith.extui %1036 : vector<8x128xi1> to vector<8x128xi32>
    %1038 = arith.sitofp %1037 : vector<8x128xi32> to vector<8x128xf32>
    %1039 = arith.truncf %1038 : vector<8x128xf32> to vector<8x128xbf16>
    %c0_415 = arith.constant 0 : index
    %c0_416 = arith.constant 0 : index
    %c0_417 = arith.constant 0 : index
    %1040 = vector.load %arg11[%c0_415, %c0_416, %c0_417] : memref<4x128x512xbf16, #tpu.memory_space<vmem>>, vector<1x128x512xbf16>
    %1041 = vector.shape_cast %1040 : vector<1x128x512xbf16> to vector<128x512xbf16>
    %cst_418 = arith.constant dense<0.000000e+00> : vector<8x512xf32>
    %1042 = tpu.matmul %1039, %1041, %cst_418 {dimension_numbers = #tpu.dot_dimension_numbers<[1], [0], [0], [1], [0, 0, 1, 1], [], []>} : vector<8x128xbf16>, vector<128x512xbf16>, vector<8x512xf32> -> vector<8x512xf32>
    %c48 = arith.constant 48 : index
    %c0_419 = arith.constant 0 : index
    %1043 = vector.load %arg13[%c48, %c0_419] : memref<64x512xf32, #tpu.memory_space<vmem>>, vector<8x512xf32>
    %c6_420 = arith.constant 6 : index
    %1044 = memref.load %arg1[%c6_420] : memref<8xi32, #tpu.memory_space<smem>>
    %c1_i32_421 = arith.constant 1 : i32
    %1045 = arith.cmpi eq, %1044, %c1_i32_421 : i32
    %1046 = arith.select %1045, %1043, %1042 : vector<8x512xf32>
    %1047 = arith.truncf %981 : vector<8x128xf32> to vector<8x128xbf16>
    %c2_422 = arith.constant 2 : index
    %c0_423 = arith.constant 0 : index
    %c0_424 = arith.constant 0 : index
    %1048 = vector.load %arg11[%c2_422, %c0_423, %c0_424] : memref<4x128x512xbf16, #tpu.memory_space<vmem>>, vector<1x128x512xbf16>
    %1049 = vector.shape_cast %1048 : vector<1x128x512xbf16> to vector<128x512xbf16>
    %cst_425 = arith.constant dense<0.000000e+00> : vector<8x512xf32>
    %1050 = tpu.matmul %1047, %1049, %cst_425 {dimension_numbers = #tpu.dot_dimension_numbers<[1], [0], [0], [1], [0, 0, 1, 1], [], []>} : vector<8x128xbf16>, vector<128x512xbf16>, vector<8x512xf32> -> vector<8x512xf32>
    %1051 = arith.addf %1046, %1050 : vector<8x512xf32>
    %c0_426 = arith.constant 0 : index
    %c0_427 = arith.constant 0 : index
    %c0_428 = arith.constant 0 : index
    %1052 = vector.load %arg7[%c0_426, %c0_427, %c0_428] : memref<2x8x512xf32, #tpu.memory_space<vmem>>, vector<1x8x512xf32>
    %1053 = vector.shape_cast %1052 : vector<1x8x512xf32> to vector<8x512xf32>
    %1054 = arith.addf %1051, %1053 : vector<8x512xf32>
    %1055 = vector.extract_strided_slice %1054 {offsets = [0, 0], sizes = [8, 128], strides = [1, 1]} : vector<8x512xf32> to vector<8x128xf32>
    %1056 = arith.negf %1055 : vector<8x128xf32>
    %1057 = math.exp %1056 : vector<8x128xf32>
    %cst_429 = arith.constant 1.000000e+00 : f32
    %1058 = vector.broadcast %cst_429 : f32 to vector<8x128xf32>
    %1059 = arith.addf %1058, %1057 : vector<8x128xf32>
    %1060 = arith.divf %1058, %1059 : vector<8x128xf32>
    %1061 = vector.extract_strided_slice %1054 {offsets = [0, 128], sizes = [8, 128], strides = [1, 1]} : vector<8x512xf32> to vector<8x128xf32>
    %1062 = arith.negf %1061 : vector<8x128xf32>
    %1063 = math.exp %1062 : vector<8x128xf32>
    %cst_430 = arith.constant 1.000000e+00 : f32
    %1064 = vector.broadcast %cst_430 : f32 to vector<8x128xf32>
    %1065 = arith.addf %1064, %1063 : vector<8x128xf32>
    %1066 = arith.divf %1064, %1065 : vector<8x128xf32>
    %1067 = vector.extract_strided_slice %1054 {offsets = [0, 256], sizes = [8, 128], strides = [1, 1]} : vector<8x512xf32> to vector<8x128xf32>
    %1068 = math.tanh %1067 : vector<8x128xf32>
    %1069 = vector.extract_strided_slice %1054 {offsets = [0, 384], sizes = [8, 128], strides = [1, 1]} : vector<8x512xf32> to vector<8x128xf32>
    %1070 = arith.negf %1069 : vector<8x128xf32>
    %1071 = math.exp %1070 : vector<8x128xf32>
    %cst_431 = arith.constant 1.000000e+00 : f32
    %1072 = vector.broadcast %cst_431 : f32 to vector<8x128xf32>
    %1073 = arith.addf %1072, %1071 : vector<8x128xf32>
    %1074 = arith.divf %1072, %1073 : vector<8x128xf32>
    %1075 = arith.mulf %1066, %979 : vector<8x128xf32>
    %1076 = arith.mulf %1060, %1068 : vector<8x128xf32>
    %1077 = arith.addf %1075, %1076 : vector<8x128xf32>
    %1078 = math.tanh %1077 : vector<8x128xf32>
    %1079 = arith.mulf %1074, %1078 : vector<8x128xf32>
    %1080 = arith.truncf %1079 : vector<8x128xf32> to vector<8x128xbf16>
    %c1_432 = arith.constant 1 : index
    %c0_433 = arith.constant 0 : index
    %c0_434 = arith.constant 0 : index
    %1081 = vector.load %arg11[%c1_432, %c0_433, %c0_434] : memref<4x128x512xbf16, #tpu.memory_space<vmem>>, vector<1x128x512xbf16>
    %1082 = vector.shape_cast %1081 : vector<1x128x512xbf16> to vector<128x512xbf16>
    %cst_435 = arith.constant dense<0.000000e+00> : vector<8x512xf32>
    %1083 = tpu.matmul %1080, %1082, %cst_435 {dimension_numbers = #tpu.dot_dimension_numbers<[1], [0], [0], [1], [0, 0, 1, 1], [], []>} : vector<8x128xbf16>, vector<128x512xbf16>, vector<8x512xf32> -> vector<8x512xf32>
    %1084 = arith.truncf %1018 : vector<8x128xf32> to vector<8x128xbf16>
    %c3_436 = arith.constant 3 : index
    %c0_437 = arith.constant 0 : index
    %c0_438 = arith.constant 0 : index
    %1085 = vector.load %arg11[%c3_436, %c0_437, %c0_438] : memref<4x128x512xbf16, #tpu.memory_space<vmem>>, vector<1x128x512xbf16>
    %1086 = vector.shape_cast %1085 : vector<1x128x512xbf16> to vector<128x512xbf16>
    %cst_439 = arith.constant dense<0.000000e+00> : vector<8x512xf32>
    %1087 = tpu.matmul %1084, %1086, %cst_439 {dimension_numbers = #tpu.dot_dimension_numbers<[1], [0], [0], [1], [0, 0, 1, 1], [], []>} : vector<8x128xbf16>, vector<128x512xbf16>, vector<8x512xf32> -> vector<8x512xf32>
    %1088 = arith.addf %1083, %1087 : vector<8x512xf32>
    %c1_440 = arith.constant 1 : index
    %c0_441 = arith.constant 0 : index
    %c0_442 = arith.constant 0 : index
    %1089 = vector.load %arg7[%c1_440, %c0_441, %c0_442] : memref<2x8x512xf32, #tpu.memory_space<vmem>>, vector<1x8x512xf32>
    %1090 = vector.shape_cast %1089 : vector<1x8x512xf32> to vector<8x512xf32>
    %1091 = arith.addf %1088, %1090 : vector<8x512xf32>
    %1092 = vector.extract_strided_slice %1091 {offsets = [0, 0], sizes = [8, 128], strides = [1, 1]} : vector<8x512xf32> to vector<8x128xf32>
    %1093 = arith.negf %1092 : vector<8x128xf32>
    %1094 = math.exp %1093 : vector<8x128xf32>
    %cst_443 = arith.constant 1.000000e+00 : f32
    %1095 = vector.broadcast %cst_443 : f32 to vector<8x128xf32>
    %1096 = arith.addf %1095, %1094 : vector<8x128xf32>
    %1097 = arith.divf %1095, %1096 : vector<8x128xf32>
    %1098 = vector.extract_strided_slice %1091 {offsets = [0, 128], sizes = [8, 128], strides = [1, 1]} : vector<8x512xf32> to vector<8x128xf32>
    %1099 = arith.negf %1098 : vector<8x128xf32>
    %1100 = math.exp %1099 : vector<8x128xf32>
    %cst_444 = arith.constant 1.000000e+00 : f32
    %1101 = vector.broadcast %cst_444 : f32 to vector<8x128xf32>
    %1102 = arith.addf %1101, %1100 : vector<8x128xf32>
    %1103 = arith.divf %1101, %1102 : vector<8x128xf32>
    %1104 = vector.extract_strided_slice %1091 {offsets = [0, 256], sizes = [8, 128], strides = [1, 1]} : vector<8x512xf32> to vector<8x128xf32>
    %1105 = math.tanh %1104 : vector<8x128xf32>
    %1106 = vector.extract_strided_slice %1091 {offsets = [0, 384], sizes = [8, 128], strides = [1, 1]} : vector<8x512xf32> to vector<8x128xf32>
    %1107 = arith.negf %1106 : vector<8x128xf32>
    %1108 = math.exp %1107 : vector<8x128xf32>
    %cst_445 = arith.constant 1.000000e+00 : f32
    %1109 = vector.broadcast %cst_445 : f32 to vector<8x128xf32>
    %1110 = arith.addf %1109, %1108 : vector<8x128xf32>
    %1111 = arith.divf %1109, %1110 : vector<8x128xf32>
    %1112 = arith.mulf %1103, %1016 : vector<8x128xf32>
    %1113 = arith.mulf %1097, %1105 : vector<8x128xf32>
    %1114 = arith.addf %1112, %1113 : vector<8x128xf32>
    %1115 = math.tanh %1114 : vector<8x128xf32>
    %1116 = arith.mulf %1111, %1115 : vector<8x128xf32>
    %1117 = arith.truncf %1116 : vector<8x128xf32> to vector<8x128xbf16>
    %c0_446 = arith.constant 0 : index
    %c0_447 = arith.constant 0 : index
    %1118 = vector.load %arg8[%c0_446, %c0_447] : memref<128x128xbf16, #tpu.memory_space<vmem>>, vector<128x128xbf16>
    %cst_448 = arith.constant dense<0.000000e+00> : vector<8x128xf32>
    %1119 = tpu.matmul %1117, %1118, %cst_448 {dimension_numbers = #tpu.dot_dimension_numbers<[1], [0], [0], [1], [0, 0, 1, 1], [], []>} : vector<8x128xbf16>, vector<128x128xbf16>, vector<8x128xf32> -> vector<8x128xf32>
    %c0_449 = arith.constant 0 : index
    %c0_450 = arith.constant 0 : index
    %1120 = vector.load %arg9[%c0_449, %c0_450] : memref<8x128xf32, #tpu.memory_space<vmem>>, vector<8x128xf32>
    %1121 = arith.addf %1119, %1120 : vector<8x128xf32>
    %c7 = arith.constant 7 : index
    %c0_451 = arith.constant 0 : index
    %c0_452 = arith.constant 0 : index
    %1122 = vector.load %arg10[%c7, %c0_451, %c0_452] : memref<8x8x128xf32, #tpu.memory_space<vmem>>, vector<1x8x128xf32>
    %1123 = vector.shape_cast %1122 : vector<1x8x128xf32> to vector<8x128xf32>
    %1124 = vector.shape_cast %1121 : vector<8x128xf32> to vector<1x8x128xf32>
    tpu.vector_store %arg10[%c7, %c0_451, %c0_452], %1124 {strides = array<i32>} : memref<8x8x128xf32, #tpu.memory_space<vmem>>, vector<1x8x128xf32>,
    return
  }
  func.func @transform_0(%arg0: i32, %arg1: memref<8xi32, #tpu.memory_space<smem>>) -> (i32, i32) {
    %c0_i32 = arith.constant 0 : i32
    %c0_i32_0 = arith.constant 0 : i32
    %c0_i32_1 = arith.constant 0 : i32
    return %c0_i32, %c0_i32_0 : i32, i32
  }
  func.func @transform_1(%arg0: i32, %arg1: memref<8xi32, #tpu.memory_space<smem>>) -> (i32, i32) {
    %c0_i32 = arith.constant 0 : i32
    %c0_i32_0 = arith.constant 0 : i32
    %c0_i32_1 = arith.constant 0 : i32
    return %c0_i32, %c0_i32_0 : i32, i32
  }
  func.func @transform_2(%arg0: i32, %arg1: memref<8xi32, #tpu.memory_space<smem>>) -> (i32, i32, i32) {
    %c0_i32 = arith.constant 0 : i32
    %c0_i32_0 = arith.constant 0 : i32
    %c0_i32_1 = arith.constant 0 : i32
    %c0_i32_2 = arith.constant 0 : i32
    return %c0_i32, %c0_i32_0, %c0_i32_1 : i32, i32, i32
  }
  func.func @transform_3(%arg0: i32, %arg1: memref<8xi32, #tpu.memory_space<smem>>) -> (i32, i32, i32) {
    %c0_i32 = arith.constant 0 : i32
    %c0_i32_0 = arith.constant 0 : i32
    %c0_i32_1 = arith.constant 0 : i32
    %c0_i32_2 = arith.constant 0 : i32
    return %c0_i32, %c0_i32_0, %c0_i32_1 : i32, i32, i32
  }
  func.func @transform_5(%arg0: i32, %arg1: memref<8xi32, #tpu.memory_space<smem>>) -> (i32, i32, i32) {
    %c0_i32 = arith.constant 0 : i32
    %c0_i32_0 = arith.constant 0 : i32
    %c0_i32_1 = arith.constant 0 : i32
    %c0_i32_2 = arith.constant 0 : i32
    return %c0_i32, %c0_i32_0, %c0_i32_1 : i32, i32, i32
  }
  func.func @transform_6(%arg0: i32, %arg1: memref<8xi32, #tpu.memory_space<smem>>) -> (i32, i32) {
    %c0_i32 = arith.constant 0 : i32
    %c0_i32_0 = arith.constant 0 : i32
    %c0_i32_1 = arith.constant 0 : i32
    return %c0_i32, %c0_i32_0 : i32, i32
  }
  func.func @transform_7(%arg0: i32, %arg1: memref<8xi32, #tpu.memory_space<smem>>) -> (i32, i32) {
    %c0_i32 = arith.constant 0 : i32
    %c0_i32_0 = arith.constant 0 : i32
    %c0_i32_1 = arith.constant 0 : i32
    return %c0_i32, %c0_i32_0 : i32, i32
  }
  func.func @transform_8(%arg0: i32, %arg1: memref<8xi32, #tpu.memory_space<smem>>) -> (i32, i32, i32) {
    %c0_i32 = arith.constant 0 : i32
    %c0_i32_0 = arith.constant 0 : i32
    %c0_i32_1 = arith.constant 0 : i32
    %c0_i32_2 = arith.constant 0 : i32
    return %c0_i32, %c0_i32_0, %c0_i32_1 : i32, i32, i32
  }
}

</mosaic_0001>

<llo_original>
// kernel: tpu_custom_call.1
$region0: #{tpu_custom_call.1}
  #allocation0 [shape = 'u32[]', space=smem, size = 0x4, offset = 0x4, fixed_abs, tag = 'smem constant byte address 0x4 - core index']
  #allocation1 [shape = 'u32[144,128]{1,0:T(1,128)}', space=vmem, size = 0x12000, scoped, tag = 'internal scratch']
  #allocation2 [shape = 'bf16[4,128,512]{2,1,0:T(16,128)(2,1)}', space=vmem, size = 0x80000, scoped, tag = 'scratch operand']
  #allocation3 [shape = 'f32[48,512]{1,0:T(8,128)}', space=vmem, size = 0x18000, scoped, tag = 'scratch operand']
  #allocation4 [shape = 'f32[64,512]{1,0:T(8,128)}', space=vmem, size = 0x20000, scoped, tag = 'scratch operand']
  #allocation5 [shape = 's32[1]{0}', space=sflag, size = 0x4, scoped, tag = 'scratch operand']
  #allocation6 [shape = 's32[1]{0}', space=sflag, size = 0x4, scoped, tag = 'scoped memory for tpu_custom_call.1']
  #allocation7 [shape = 'u8[512]{0}', space=smem, size = 0x200, scoped, tag = 'prefetched SMEM operand 0']
  #allocation14 [shape = 's32[]', space=sflag, size = 0x4, offset = 0, fixed_abs, tag = 'sflag constant byte address 0x0 - dummy sync flag']
  %s0 = inlined_call_operand.hbm [shape: s32[8], index: 0, kind: input, shape index: {}]
  %s1 = inlined_call_operand.vmem [shape: s32[48,1], index: 1, kind: input, shape index: {}]
  %s2 = inlined_call_operand.vmem [shape: s32[64,1], index: 2, kind: input, shape index: {}]
  %s3 = inlined_call_operand.hbm [shape: bf16[4,128,512], index: 3, kind: input, shape index: {}]
  %s4 = inlined_call_operand.vmem [shape: f32[2,8,512], index: 4, kind: input, shape index: {}]
  %s5 = inlined_call_operand.hbm [shape: bf16[4,128,512], index: 5, kind: input, shape index: {}]
  %s6 = inlined_call_operand.vmem [shape: f32[2,8,512], index: 6, kind: input, shape index: {}]
  %s7 = inlined_call_operand.hbm [shape: bf16[128,128], index: 7, kind: input, shape index: {}]
  %s8 = inlined_call_operand.vmem [shape: f32[8,128], index: 8, kind: input, shape index: {}]
  %s9 = inlined_call_operand.hbm [shape: f32[8,8,128], index: 9, kind: output, shape index: {}]
  %s10 = sld [smem:[#allocation0]]
  $region46: #{tpu_custom_call.1} parent=0
    _
  %s12 = ssub.s32 1, %s10
  %s13 = scalar_select 0, %s12, %s10
  %15 = dma.hbm_to_smem %s0, 16, [#allocation7], [#allocation6]
  %16 = dma.done [#allocation6], 16
  %17 = sfence
  $region1: #{tpu_custom_call.1} parent=0
    #allocation8 [shape = 'u8[524288]{0}', space=vmem, size = 0x80000, scoped, tag = 'input window, operand 3, single buffered']
    #allocation9 [shape = 's32[1]{0}', space=sflag, size = 0x4, scoped, tag = 'scoped memory for tpu_custom_call.1']
    #allocation10 [shape = 's32[1]{0}', space=sflag, size = 0x4, scoped, tag = 'scoped memory for tpu_custom_call.1']
    #allocation11 [shape = 'u8[32768]{0}', space=vmem, size = 0x8000, scoped, tag = 'input window, operand 7, single buffered']
    #allocation12 [shape = 's32[1]{0}', space=sflag, size = 0x4, scoped, tag = 'scoped memory for tpu_custom_call.1']
    #allocation13 [shape = 'u8[32768]{0}', space=vmem, size = 0x8000, scoped, tag = 'output window, operand 0, single buffered']
    #allocation15 [shape = 'u32[9]{0}', space=smem, size = 0x24, scoped, tag = 'DMA stride descriptor']
    %18 = vsyncpa [#allocation9], 0
    %19 = vsyncpa [#allocation12], 0
    %20 = vsyncpa [#allocation10], 0
    // Predicated region
    $region2: #{tpu_custom_call.1} parent=1 // pred_check
      _
    $region3: #{tpu_custom_call.1} parent=1 // pred_check_branch
      %22 = sbr.rel (0) target = $region5
    $region4: #{tpu_custom_call.1} parent=1 // pred_region
      _
    $region5: #{tpu_custom_call.1} parent=1 // pred_fallthru
      _
    // Predicated region
    $region6: #{tpu_custom_call.1} parent=1 // pred_check
      _
    $region7: #{tpu_custom_call.1} parent=1 // pred_check_branch
      %24 = sbr.rel (0) target = $region9
    $region8: #{tpu_custom_call.1} parent=1 // pred_region
      _
    $region9: #{tpu_custom_call.1} parent=1 // pred_fallthru
      _
    // Predicated region
    $region10: #{tpu_custom_call.1} parent=1 // pred_check
      _
    $region11: #{tpu_custom_call.1} parent=1 // pred_check_branch
      %26 = sbr.rel (0) target = $region13
    $region12: #{tpu_custom_call.1} parent=1 // pred_region
      %s28 = ssub.s32 16384, 16384
      %29 = vsyncadd [#allocation9], %s28
      %s30 = sshll.u32 [#allocation8], 4
      %s31 = int_to_ptr.vmem [resolvable:$true] %s30
      %36 = dma.hbm_to_vmem [thread:$0]  %s3, 16384, %s31, [#allocation9], 256, 256, 16
    $region13: #{tpu_custom_call.1} parent=1 // pred_fallthru
      _
    // Predicated region
    $region14: #{tpu_custom_call.1} parent=1 // pred_check
      _
    $region15: #{tpu_custom_call.1} parent=1 // pred_check_branch
      %38 = sbr.rel (0) target = $region17
    $region16: #{tpu_custom_call.1} parent=1 // pred_region
      _
    $region17: #{tpu_custom_call.1} parent=1 // pred_fallthru
      _
    // Predicated region
    $region18: #{tpu_custom_call.1} parent=1 // pred_check
      _
    $region19: #{tpu_custom_call.1} parent=1 // pred_check_branch
      %40 = sbr.rel (0) target = $region21
    $region20: #{tpu_custom_call.1} parent=1 // pred_region
      _
    $region21: #{tpu_custom_call.1} parent=1 // pred_fallthru
      _
    // Predicated region
    $region22: #{tpu_custom_call.1} parent=1 // pred_check
      _
    $region23: #{tpu_custom_call.1} parent=1 // pred_check_branch
      %42 = sbr.rel (0) target = $region25
    $region24: #{tpu_custom_call.1} parent=1 // pred_region
      %s44 = ssub.s32 1024, 1024
      %45 = vsyncadd [#allocation12], %s44
      %s46 = sshll.u32 [#allocation11], 4
      %s47 = int_to_ptr.vmem [resolvable:$true] %s46
      %52 = dma.hbm_to_vmem [thread:$0]  %s7, 1024, %s47, [#allocation12], 64, 64, 4
    $region25: #{tpu_custom_call.1} parent=1 // pred_fallthru
      _
    // Predicated region
    $region26: #{tpu_custom_call.1} parent=1 // pred_check
      _
    $region27: #{tpu_custom_call.1} parent=1 // pred_check_branch
      %54 = sbr.rel (0) target = $region29
    $region28: #{tpu_custom_call.1} parent=1 // pred_region
      _
    $region29: #{tpu_custom_call.1} parent=1 // pred_fallthru
      _
    // Predicated region
    $region30: #{tpu_custom_call.1} parent=1 // pred_check
      _
    $region31: #{tpu_custom_call.1} parent=1 // pred_check_branch
      %56 = sbr.rel (0) target = $region33
    $region32: #{tpu_custom_call.1} parent=1 // pred_region
      %57 = dma.done [#allocation9], 16384
    $region33: #{tpu_custom_call.1} parent=1 // pred_fallthru
      _
    // Predicated region
    $region34: #{tpu_custom_call.1} parent=1 // pred_check
      _
    $region35: #{tpu_custom_call.1} parent=1 // pred_check_branch
      %59 = sbr.rel (0) target = $region37
    $region36: #{tpu_custom_call.1} parent=1 // pred_region
      %60 = dma.done [#allocation12], 1024
    $region37: #{tpu_custom_call.1} parent=1 // pred_fallthru
      _
    %s63 = sshll.u32 1, 14
    %s64 = sxor.u32 4294967295, %s63
    %s66 = sld [smem:[#allocation0]]
    %s67 = sadd.s32 2, %s66
    %s69 = sshll.u32 7, 26
    %s70 = sxor.u32 4294967295, %s69
    %s71 = sand.u32 0, %s70
    %s72 = sshll.u32 %s67, 26
    %s73 = sor.u32 %s71, %s72
    %s74 = sshll.u32 [#allocation2], 4
    %s75 = int_to_ptr.vmem [resolvable:$true] %s74
    %78 = sst [smem:[#allocation15]] 512
    %s79 = scalar_lea.smem [#allocation15], 1
    %80 = sst [smem:[%s79]] 512
    %s81 = scalar_lea.smem [#allocation15], 2
    %82 = sst [smem:[%s81]] 4
    %s83 = scalar_lea.smem [#allocation15], 3
    %84 = sst [smem:[%s83]] 64
    %s85 = scalar_lea.smem [#allocation15], 4
    %86 = sst [smem:[%s85]] 128
    %s87 = scalar_lea.smem [#allocation15], 5
    %88 = sst [smem:[%s87]] 2
    %s89 = scalar_lea.smem [#allocation15], 6
    %90 = sst [smem:[%s89]] 256
    %s91 = scalar_lea.smem [#allocation15], 7
    %92 = sst [smem:[%s91]] 64
    %s93 = scalar_lea.smem [#allocation15], 8
    %94 = sst [smem:[%s93]] 4
    %96 = dma.general %s5, 16384, %s75, [#allocation5], [#allocation14], [#allocation15], %s73, 0
    %v97 = vlaneseq
    %v98 = vand.u32 %v97, 127
    %v99 = vld [vmem:[%s1] sm:$0xff]
    %v100 = vld [vmem:[%s1 + $0x8] sm:$0xff]
    %v101 = vld [vmem:[%s1 + $0x10] sm:$0xff]
    %v102 = vld [vmem:[%s1 + $0x18] sm:$0xff]
    %v103 = vld [vmem:[%s1 + $0x20] sm:$0xff]
    %v104 = vld [vmem:[%s1 + $0x28] sm:$0xff]
    %105 = vset.pattern.permute.xlu0 0
    %106 = vperm.xlu0 %105, %v99
    %v107 = vpop.permute.xlu0 %106
    %108 = vset.pattern.permute.xlu0 0
    %109 = vperm.xlu0 %108, %v100
    %v110 = vpop.permute.xlu0 %109
    %111 = vset.pattern.permute.xlu0 0
    %112 = vperm.xlu0 %111, %v101
    %v113 = vpop.permute.xlu0 %112
    %114 = vset.pattern.permute.xlu0 0
    %115 = vperm.xlu0 %114, %v102
    %v116 = vpop.permute.xlu0 %115
    %117 = vset.pattern.permute.xlu0 0
    %118 = vperm.xlu0 %117, %v103
    %v119 = vpop.permute.xlu0 %118
    %120 = vset.pattern.permute.xlu0 0
    %121 = vperm.xlu0 %120, %v104
    %v122 = vpop.permute.xlu0 %121
    %vm123 = vcmp.eq.s32.totalorder %v98, %v107
    %vm124 = vcmp.eq.s32.totalorder %v98, %v110
    %vm125 = vcmp.eq.s32.totalorder %v98, %v113
    %vm126 = vcmp.eq.s32.totalorder %v98, %v116
    %vm127 = vcmp.eq.s32.totalorder %v98, %v119
    %vm128 = vcmp.eq.s32.totalorder %v98, %v122
    %v129 = vsel %vm123, 1, 0
    %v130 = vsel %vm124, 1, 0
    %v131 = vsel %vm125, 1, 0
    %v132 = vsel %vm126, 1, 0
    %v133 = vsel %vm127, 1, 0
    %v134 = vsel %vm128, 1, 0
    %v135 = vcvt.s32.f32 %v129
    %v136 = vcvt.s32.f32 %v130
    %v137 = vcvt.s32.f32 %v131
    %v138 = vcvt.s32.f32 %v132
    %v139 = vcvt.s32.f32 %v133
    %v140 = vcvt.s32.f32 %v134
    %v141 = vpack.c.bf16 %v136, %v135
    %v142 = vpack.c.bf16 %v138, %v137
    %v143 = vpack.c.bf16 %v140, %v139
    %v144 = vld [vmem:[#allocation8] sm:$0xff]
    %v145 = vld [vmem:[#allocation8 + $0x8] sm:$0xff]
    %v146 = vld [vmem:[#allocation8 + $0x10] sm:$0xff]
    %v147 = vld [vmem:[#allocation8 + $0x18] sm:$0xff]
    %v148 = vld [vmem:[#allocation8 + $0x20] sm:$0xff]
    %v149 = vld [vmem:[#allocation8 + $0x28] sm:$0xff]
    %v150 = vld [vmem:[#allocation8 + $0x30] sm:$0xff]
    %v151 = vld [vmem:[#allocation8 + $0x38] sm:$0xff]
    %v152 = vld [vmem:[#allocation8 + $0x40] sm:$0xff]
    %v153 = vld [vmem:[#allocation8 + $0x48] sm:$0xff]
    %v154 = vld [vmem:[#allocation8 + $0x50] sm:$0xff]
    %v155 = vld [vmem:[#allocation8 + $0x58] sm:$0xff]
    %v156 = vld [vmem:[#allocation8 + $0x60] sm:$0xff]
    %v157 = vld [vmem:[#allocation8 + $0x68] sm:$0xff]
    %v158 = vld [vmem:[#allocation8 + $0x70] sm:$0xff]
    %v159 = vld [vmem:[#allocation8 + $0x78] sm:$0xff]
    %v160 = vld [vmem:[#allocation8 + $0x80] sm:$0xff]
    %v161 = vld [vmem:[#allocation8 + $0x88] sm:$0xff]
    %v162 = vld [vmem:[#allocation8 + $0x90] sm:$0xff]
    %v163 = vld [vmem:[#allocation8 + $0x98] sm:$0xff]
    %v164 = vld [vmem:[#allocation8 + $0xa0] sm:$0xff]
    %v165 = vld [vmem:[#allocation8 + $0xa8] sm:$0xff]
    %v166 = vld [vmem:[#allocation8 + $0xb0] sm:$0xff]
    %v167 = vld [vmem:[#allocation8 + $0xb8] sm:$0xff]
    %v168 = vld [vmem:[#allocation8 + $0xc0] sm:$0xff]
    %v169 = vld [vmem:[#allocation8 + $0xc8] sm:$0xff]
    %v170 = vld [vmem:[#allocation8 + $0xd0] sm:$0xff]
    %v171 = vld [vmem:[#allocation8 + $0xd8] sm:$0xff]
    %v172 = vld [vmem:[#allocation8 + $0xe0] sm:$0xff]
    %v173 = vld [vmem:[#allocation8 + $0xe8] sm:$0xff]
    %v174 = vld [vmem:[#allocation8 + $0xf0] sm:$0xff]
    %v175 = vld [vmem:[#allocation8 + $0xf8] sm:$0xff]
    %v208 = vunpack.c.l.b16 %v144
    %v209 = vunpack.c.h.b16 %v144
    %v210 = vunpack.c.l.b16 %v145
    %v211 = vunpack.c.h.b16 %v145
    %v212 = vunpack.c.l.b16 %v146
    %v213 = vunpack.c.h.b16 %v146
    %v214 = vunpack.c.l.b16 %v147
    %v215 = vunpack.c.h.b16 %v147
    %v216 = vunpack.c.l.b16 %v148
    %v217 = vunpack.c.h.b16 %v148
    %v218 = vunpack.c.l.b16 %v149
    %v219 = vunpack.c.h.b16 %v149
    %v220 = vunpack.c.l.b16 %v150
    %v221 = vunpack.c.h.b16 %v150
    %v222 = vunpack.c.l.b16 %v151
    %v223 = vunpack.c.h.b16 %v151
    %v224 = vunpack.c.l.b16 %v152
    %v225 = vunpack.c.h.b16 %v152
    %v226 = vunpack.c.l.b16 %v153
    %v227 = vunpack.c.h.b16 %v153
    %v228 = vunpack.c.l.b16 %v154
    %v229 = vunpack.c.h.b16 %v154
    %v230 = vunpack.c.l.b16 %v155
    %v231 = vunpack.c.h.b16 %v155
    %v232 = vunpack.c.l.b16 %v156
    %v233 = vunpack.c.h.b16 %v156
    %v234 = vunpack.c.l.b16 %v157
    %v235 = vunpack.c.h.b16 %v157
    %v236 = vunpack.c.l.b16 %v158
    %v237 = vunpack.c.h.b16 %v158
    %v238 = vunpack.c.l.b16 %v159
    %v239 = vunpack.c.h.b16 %v159
    %v240 = vunpack.c.l.b16 %v160
    %v241 = vunpack.c.h.b16 %v160
    %v242 = vunpack.c.l.b16 %v161
    %v243 = vunpack.c.h.b16 %v161
    %v244 = vunpack.c.l.b16 %v162
    %v245 = vunpack.c.h.b16 %v162
    %v246 = vunpack.c.l.b16 %v163
    %v247 = vunpack.c.h.b16 %v163
    %v248 = vunpack.c.l.b16 %v164
    %v249 = vunpack.c.h.b16 %v164
    %v250 = vunpack.c.l.b16 %v165
    %v251 = vunpack.c.h.b16 %v165
    %v252 = vunpack.c.l.b16 %v166
    %v253 = vunpack.c.h.b16 %v166
    %v254 = vunpack.c.l.b16 %v167
    %v255 = vunpack.c.h.b16 %v167
    %v256 = vunpack.c.l.b16 %v168
    %v257 = vunpack.c.h.b16 %v168
    %v258 = vunpack.c.l.b16 %v169
    %v259 = vunpack.c.h.b16 %v169
    %v260 = vunpack.c.l.b16 %v170
    %v261 = vunpack.c.h.b16 %v170
    %v262 = vunpack.c.l.b16 %v171
    %v263 = vunpack.c.h.b16 %v171
    %v264 = vunpack.c.l.b16 %v172
    %v265 = vunpack.c.h.b16 %v172
    %v266 = vunpack.c.l.b16 %v173
    %v267 = vunpack.c.h.b16 %v173
    %v268 = vunpack.c.l.b16 %v174
    %v269 = vunpack.c.h.b16 %v174
    %v270 = vunpack.c.l.b16 %v175
    %v271 = vunpack.c.h.b16 %v175
    %v272 = vpack.c.b16 %v212, %v208
    %v273 = vpack.c.b16 %v213, %v209
    %v274 = vpack.c.b16 %v214, %v210
    %v275 = vpack.c.b16 %v215, %v211
    %v276 = vpack.c.b16 %v220, %v216
    %v277 = vpack.c.b16 %v221, %v217
    %v278 = vpack.c.b16 %v222, %v218
    %v279 = vpack.c.b16 %v223, %v219
    %v280 = vpack.c.b16 %v228, %v224
    %v281 = vpack.c.b16 %v229, %v225
    %v282 = vpack.c.b16 %v230, %v226
    %v283 = vpack.c.b16 %v231, %v227
    %v284 = vpack.c.b16 %v236, %v232
    %v285 = vpack.c.b16 %v237, %v233
    %v286 = vpack.c.b16 %v238, %v234
    %v287 = vpack.c.b16 %v239, %v235
    %v288 = vpack.c.b16 %v244, %v240
    %v289 = vpack.c.b16 %v245, %v241
    %v290 = vpack.c.b16 %v246, %v242
    %v291 = vpack.c.b16 %v247, %v243
    %v292 = vpack.c.b16 %v252, %v248
    %v293 = vpack.c.b16 %v253, %v249
    %v294 = vpack.c.b16 %v254, %v250
    %v295 = vpack.c.b16 %v255, %v251
    %v296 = vpack.c.b16 %v260, %v256
    %v297 = vpack.c.b16 %v261, %v257
    %v298 = vpack.c.b16 %v262, %v258
    %v299 = vpack.c.b16 %v263, %v259
    %v300 = vpack.c.b16 %v268, %v264
    %v301 = vpack.c.b16 %v269, %v265
    %v302 = vpack.c.b16 %v270, %v266
    %v303 = vpack.c.b16 %v271, %v267
    %336 = vmatprep.subr.bf16.mxu0 %v273
    %337 = vmatpush1.bf16.msra.mxu0 %v272
    %338 = vmatprep.subr.bf16.mxu0 %v277
    %339 = vmatpush1.bf16.msra.mxu0 %v276
    %340 = vmatprep.subr.bf16.mxu0 %v281
    %341 = vmatpush1.bf16.msra.mxu0 %v280
    %342 = vmatprep.subr.bf16.mxu0 %v285
    %343 = vmatpush1.bf16.msra.mxu0 %v284
    %344 = vmatprep.subr.bf16.mxu0 %v289
    %345 = vmatpush1.bf16.msra.mxu0 %v288
    %346 = vmatprep.subr.bf16.mxu0 %v293
    %347 = vmatpush1.bf16.msra.mxu0 %v292
    %348 = vmatprep.subr.bf16.mxu0 %v297
    %349 = vmatpush1.bf16.msra.mxu0 %v296
    %350 = vmatprep.subr.bf16.mxu0 %v301
    %351 = vmatpush1.bf16.msra.mxu0 %v300
    %352 = vmatprep.subr.bf16.mxu0 0
    %353 = vmatpush1.bf16.msra.mxu0 0
    %354 = vmatprep.subr.bf16.mxu0 0
    %355 = vmatpush1.bf16.msra.mxu0 0
    %356 = vmatprep.subr.bf16.mxu0 0
    %357 = vmatpush1.bf16.msra.mxu0 0
    %358 = vmatprep.subr.bf16.mxu0 0
    %359 = vmatpush1.bf16.msra.mxu0 0
    %360 = vmatprep.subr.bf16.mxu0 0
    %361 = vmatpush1.bf16.msra.mxu0 0
    %362 = vmatprep.subr.bf16.mxu0 0
    %363 = vmatpush1.bf16.msra.mxu0 0
    %364 = vmatprep.subr.bf16.mxu0 0
    %365 = vmatpush1.bf16.msra.mxu0 0
    %366 = vmatprep.subr.bf16.mxu0 0
    %367 = vmatpush1.bf16.msra.mxu0 0
    %368 = vmatprep.mubr.bf16.mxu0 0
    %369 = vmatmul.mubr.bf16.gmra.mrb[0].mxu0 %v141
    %v370 = vpop.f32.mrb[0].mxu0
    %v371 = vadd.f32 0.0, %v370
    %v372 = vpop.f32.mrb[0].mxu0
    %v373 = vadd.f32 0.0, %v372
    %v374 = vpop.f32.mrb[0].mxu0
    %v375 = vadd.f32 0.0, %v374
    %v376 = vpop.f32.mrb[0].mxu0
    %v377 = vadd.f32 0.0, %v376
    %378 = vmatprep.mubr.bf16.mxu0 0
    %379 = vmatmul.mubr.bf16.gmra.mrb[0].mxu0 %v142
    %v380 = vpop.f32.mrb[0].mxu0
    %v381 = vadd.f32 0.0, %v380
    %v382 = vpop.f32.mrb[0].mxu0
    %v383 = vadd.f32 0.0, %v382
    %v384 = vpop.f32.mrb[0].mxu0
    %v385 = vadd.f32 0.0, %v384
    %v386 = vpop.f32.mrb[0].mxu0
    %v387 = vadd.f32 0.0, %v386
    %388 = vmatprep.mubr.bf16.mxu0 0
    %389 = vmatmul.mubr.bf16.gmra.mrb[0].mxu0 %v143
    %v390 = vpop.f32.mrb[0].mxu0
    %v391 = vadd.f32 0.0, %v390
    %v392 = vpop.f32.mrb[0].mxu0
    %v393 = vadd.f32 0.0, %v392
    %v394 = vpop.f32.mrb[0].mxu0
    %v395 = vadd.f32 0.0, %v394
    %v396 = vpop.f32.mrb[0].mxu0
    %v397 = vadd.f32 0.0, %v396
    %398 = vdwg.mxu0
    %399 = vmatprep.subr.bf16.mxu0 %v275
    %400 = vmatpush1.bf16.msra.mxu0 %v274
    %401 = vmatprep.subr.bf16.mxu0 %v279
    %402 = vmatpush1.bf16.msra.mxu0 %v278
    %403 = vmatprep.subr.bf16.mxu0 %v283
    %404 = vmatpush1.bf16.msra.mxu0 %v282
    %405 = vmatprep.subr.bf16.mxu0 %v287
    %406 = vmatpush1.bf16.msra.mxu0 %v286
    %407 = vmatprep.subr.bf16.mxu0 %v291
    %408 = vmatpush1.bf16.msra.mxu0 %v290
    %409 = vmatprep.subr.bf16.mxu0 %v295
    %410 = vmatpush1.bf16.msra.mxu0 %v294
    %411 = vmatprep.subr.bf16.mxu0 %v299
    %412 = vmatpush1.bf16.msra.mxu0 %v298
    %413 = vmatprep.subr.bf16.mxu0 %v303
    %414 = vmatpush1.bf16.msra.mxu0 %v302
    %415 = vmatprep.subr.bf16.mxu0 0
    %416 = vmatpush1.bf16.msra.mxu0 0
    %417 = vmatprep.subr.bf16.mxu0 0
    %418 = vmatpush1.bf16.msra.mxu0 0
    %419 = vmatprep.subr.bf16.mxu0 0
    %420 = vmatpush1.bf16.msra.mxu0 0
    %421 = vmatprep.subr.bf16.mxu0 0
    %422 = vmatpush1.bf16.msra.mxu0 0
    %423 = vmatprep.subr.bf16.mxu0 0
    %424 = vmatpush1.bf16.msra.mxu0 0
    %425 = vmatprep.subr.bf16.mxu0 0
    %426 = vmatpush1.bf16.msra.mxu0 0
    %427 = vmatprep.subr.bf16.mxu0 0
    %428 = vmatpush1.bf16.msra.mxu0 0
    %429 = vmatprep.subr.bf16.mxu0 0
    %430 = vmatpush1.bf16.msra.mxu0 0
    %431 = vmatprep.mubr.bf16.mxu0 0
    %432 = vmatmul.mubr.bf16.gmra.mrb[0].mxu0 %v141
    %v433 = vpop.f32.mrb[0].mxu0
    %v434 = vadd.f32 0.0, %v433
    %v435 = vpop.f32.mrb[0].mxu0
    %v436 = vadd.f32 0.0, %v435
    %v437 = vpop.f32.mrb[0].mxu0
    %v438 = vadd.f32 0.0, %v437
    %v439 = vpop.f32.mrb[0].mxu0
    %v440 = vadd.f32 0.0, %v439
    %441 = vmatprep.mubr.bf16.mxu0 0
    %442 = vmatmul.mubr.bf16.gmra.mrb[0].mxu0 %v142
    %v443 = vpop.f32.mrb[0].mxu0
    %v444 = vadd.f32 0.0, %v443
    %v445 = vpop.f32.mrb[0].mxu0
    %v446 = vadd.f32 0.0, %v445
    %v447 = vpop.f32.mrb[0].mxu0
    %v448 = vadd.f32 0.0, %v447
    %v449 = vpop.f32.mrb[0].mxu0
    %v450 = vadd.f32 0.0, %v449
    %451 = vmatprep.mubr.bf16.mxu0 0
    %452 = vmatmul.mubr.bf16.gmra.mrb[0].mxu0 %v143
    %v453 = vpop.f32.mrb[0].mxu0
    %v454 = vadd.f32 0.0, %v453
    %v455 = vpop.f32.mrb[0].mxu0
    %v456 = vadd.f32 0.0, %v455
    %v457 = vpop.f32.mrb[0].mxu0
    %v458 = vadd.f32 0.0, %v457
    %v459 = vpop.f32.mrb[0].mxu0
    %v460 = vadd.f32 0.0, %v459
    %461 = vdwg.mxu0
    %462 = vst [vmem:[#allocation3] sm:$0xff] %v371
    %463 = vst [vmem:[#allocation3 + $0x8] sm:$0xff] %v373
    %464 = vst [vmem:[#allocation3 + $0x10] sm:$0xff] %v434
    %465 = vst [vmem:[#allocation3 + $0x18] sm:$0xff] %v436
    %466 = vst [vmem:[#allocation3 + $0x20] sm:$0xff] %v375
    %467 = vst [vmem:[#allocation3 + $0x28] sm:$0xff] %v377
    %468 = vst [vmem:[#allocation3 + $0x30] sm:$0xff] %v438
    %469 = vst [vmem:[#allocation3 + $0x38] sm:$0xff] %v440
    %470 = vst [vmem:[#allocation3 + $0x40] sm:$0xff] %v381
    %471 = vst [vmem:[#allocation3 + $0x48] sm:$0xff] %v383
    %472 = vst [vmem:[#allocation3 + $0x50] sm:$0xff] %v444
    %473 = vst [vmem:[#allocation3 + $0x58] sm:$0xff] %v446
    %474 = vst [vmem:[#allocation3 + $0x60] sm:$0xff] %v385
    %475 = vst [vmem:[#allocation3 + $0x68] sm:$0xff] %v387
    %476 = vst [vmem:[#allocation3 + $0x70] sm:$0xff] %v448
    %477 = vst [vmem:[#allocation3 + $0x78] sm:$0xff] %v450
    %478 = vst [vmem:[#allocation3 + $0x80] sm:$0xff] %v391
    %479 = vst [vmem:[#allocation3 + $0x88] sm:$0xff] %v393
    %480 = vst [vmem:[#allocation3 + $0x90] sm:$0xff] %v454
    %481 = vst [vmem:[#allocation3 + $0x98] sm:$0xff] %v456
    %482 = vst [vmem:[#allocation3 + $0xa0] sm:$0xff] %v395
    %483 = vst [vmem:[#allocation3 + $0xa8] sm:$0xff] %v397
    %484 = vst [vmem:[#allocation3 + $0xb0] sm:$0xff] %v458
    %485 = vst [vmem:[#allocation3 + $0xb8] sm:$0xff] %v460
    %v486 = vld [vmem:[#allocation3] sm:$0xff]
    %v487 = vld [vmem:[#allocation3 + $0x8] sm:$0xff]
    %v488 = vld [vmem:[#allocation3 + $0x10] sm:$0xff]
    %v489 = vld [vmem:[#allocation3 + $0x18] sm:$0xff]
    %s490 = scalar_lea.vmem [#allocation8], 512
    %v491 = vld [vmem:[%s490] sm:$0xff]
    %v492 = vld [vmem:[%s490 + $0x8] sm:$0xff]
    %v493 = vld [vmem:[%s490 + $0x10] sm:$0xff]
    %v494 = vld [vmem:[%s490 + $0x18] sm:$0xff]
    %v495 = vld [vmem:[%s490 + $0x20] sm:$0xff]
    %v496 = vld [vmem:[%s490 + $0x28] sm:$0xff]
    %v497 = vld [vmem:[%s490 + $0x30] sm:$0xff]
    %v498 = vld [vmem:[%s490 + $0x38] sm:$0xff]
    %v499 = vld [vmem:[%s490 + $0x40] sm:$0xff]
    %v500 = vld [vmem:[%s490 + $0x48] sm:$0xff]
    %v501 = vld [vmem:[%s490 + $0x50] sm:$0xff]
    %v502 = vld [vmem:[%s490 + $0x58] sm:$0xff]
    %v503 = vld [vmem:[%s490 + $0x60] sm:$0xff]
    %v504 = vld [vmem:[%s490 + $0x68] sm:$0xff]
    %v505 = vld [vmem:[%s490 + $0x70] sm:$0xff]
    %v506 = vld [vmem:[%s490 + $0x78] sm:$0xff]
    %v507 = vld [vmem:[%s490 + $0x80] sm:$0xff]
    %v508 = vld [vmem:[%s490 + $0x88] sm:$0xff]
    %v509 = vld [vmem:[%s490 + $0x90] sm:$0xff]
    %v510 = vld [vmem:[%s490 + $0x98] sm:$0xff]
    %v511 = vld [vmem:[%s490 + $0xa0] sm:$0xff]
    %v512 = vld [vmem:[%s490 + $0xa8] sm:$0xff]
    %v513 = vld [vmem:[%s490 + $0xb0] sm:$0xff]
    %v514 = vld [vmem:[%s490 + $0xb8] sm:$0xff]
    %v515 = vld [vmem:[%s490 + $0xc0] sm:$0xff]
    %v516 = vld [vmem:[%s490 + $0xc8] sm:$0xff]
    %v517 = vld [vmem:[%s490 + $0xd0] sm:$0xff]
    %v518 = vld [vmem:[%s490 + $0xd8] sm:$0xff]
    %v519 = vld [vmem:[%s490 + $0xe0] sm:$0xff]
    %v520 = vld [vmem:[%s490 + $0xe8] sm:$0xff]
    %v521 = vld [vmem:[%s490 + $0xf0] sm:$0xff]
    %v522 = vld [vmem:[%s490 + $0xf8] sm:$0xff]
    %v555 = vunpack.c.l.b16 %v491
    %v556 = vunpack.c.h.b16 %v491
    %v557 = vunpack.c.l.b16 %v492
    %v558 = vunpack.c.h.b16 %v492
    %v559 = vunpack.c.l.b16 %v493
    %v560 = vunpack.c.h.b16 %v493
    %v561 = vunpack.c.l.b16 %v494
    %v562 = vunpack.c.h.b16 %v494
    %v563 = vunpack.c.l.b16 %v495
    %v564 = vunpack.c.h.b16 %v495
    %v565 = vunpack.c.l.b16 %v496
    %v566 = vunpack.c.h.b16 %v496
    %v567 = vunpack.c.l.b16 %v497
    %v568 = vunpack.c.h.b16 %v497
    %v569 = vunpack.c.l.b16 %v498
    %v570 = vunpack.c.h.b16 %v498
    %v571 = vunpack.c.l.b16 %v499
    %v572 = vunpack.c.h.b16 %v499
    %v573 = vunpack.c.l.b16 %v500
    %v574 = vunpack.c.h.b16 %v500
    %v575 = vunpack.c.l.b16 %v501
    %v576 = vunpack.c.h.b16 %v501
    %v577 = vunpack.c.l.b16 %v502
    %v578 = vunpack.c.h.b16 %v502
    %v579 = vunpack.c.l.b16 %v503
    %v580 = vunpack.c.h.b16 %v503
    %v581 = vunpack.c.l.b16 %v504
    %v582 = vunpack.c.h.b16 %v504
    %v583 = vunpack.c.l.b16 %v505
    %v584 = vunpack.c.h.b16 %v505
    %v585 = vunpack.c.l.b16 %v506
    %v586 = vunpack.c.h.b16 %v506
    %v587 = vunpack.c.l.b16 %v507
    %v588 = vunpack.c.h.b16 %v507
    %v589 = vunpack.c.l.b16 %v508
    %v590 = vunpack.c.h.b16 %v508
    %v591 = vunpack.c.l.b16 %v509
    %v592 = vunpack.c.h.b16 %v509
    %v593 = vunpack.c.l.b16 %v510
    %v594 = vunpack.c.h.b16 %v510
    %v595 = vunpack.c.l.b16 %v511
    %v596 = vunpack.c.h.b16 %v511
    %v597 = vunpack.c.l.b16 %v512
    %v598 = vunpack.c.h.b16 %v512
    %v599 = vunpack.c.l.b16 %v513
    %v600 = vunpack.c.h.b16 %v513
    %v601 = vunpack.c.l.b16 %v514
    %v602 = vunpack.c.h.b16 %v514
    %v603 = vunpack.c.l.b16 %v515
    %v604 = vunpack.c.h.b16 %v515
    %v605 = vunpack.c.l.b16 %v516
    %v606 = vunpack.c.h.b16 %v516
    %v607 = vunpack.c.l.b16 %v517
    %v608 = vunpack.c.h.b16 %v517
    %v609 = vunpack.c.l.b16 %v518
    %v610 = vunpack.c.h.b16 %v518
    %v611 = vunpack.c.l.b16 %v519
    %v612 = vunpack.c.h.b16 %v519
    %v613 = vunpack.c.l.b16 %v520
    %v614 = vunpack.c.h.b16 %v520
    %v615 = vunpack.c.l.b16 %v521
    %v616 = vunpack.c.h.b16 %v521
    %v617 = vunpack.c.l.b16 %v522
    %v618 = vunpack.c.h.b16 %v522
    %v619 = vpack.c.b16 %v559, %v555
    %v620 = vpack.c.b16 %v560, %v556
    %v621 = vpack.c.b16 %v561, %v557
    %v622 = vpack.c.b16 %v562, %v558
    %v623 = vpack.c.b16 %v567, %v563
    %v624 = vpack.c.b16 %v568, %v564
    %v625 = vpack.c.b16 %v569, %v565
    %v626 = vpack.c.b16 %v570, %v566
    %v627 = vpack.c.b16 %v575, %v571
    %v628 = vpack.c.b16 %v576, %v572
    %v629 = vpack.c.b16 %v577, %v573
    %v630 = vpack.c.b16 %v578, %v574
    %v631 = vpack.c.b16 %v583, %v579
    %v632 = vpack.c.b16 %v584, %v580
    %v633 = vpack.c.b16 %v585, %v581
    %v634 = vpack.c.b16 %v586, %v582
    %v635 = vpack.c.b16 %v591, %v587
    %v636 = vpack.c.b16 %v592, %v588
    %v637 = vpack.c.b16 %v593, %v589
    %v638 = vpack.c.b16 %v594, %v590
    %v639 = vpack.c.b16 %v599, %v595
    %v640 = vpack.c.b16 %v600, %v596
    %v641 = vpack.c.b16 %v601, %v597
    %v642 = vpack.c.b16 %v602, %v598
    %v643 = vpack.c.b16 %v607, %v603
    %v644 = vpack.c.b16 %v608, %v604
    %v645 = vpack.c.b16 %v609, %v605
    %v646 = vpack.c.b16 %v610, %v606
    %v647 = vpack.c.b16 %v615, %v611
    %v648 = vpack.c.b16 %v616, %v612
    %v649 = vpack.c.b16 %v617, %v613
    %v650 = vpack.c.b16 %v618, %v614
    %683 = vmatprep.subr.bf16.mxu0 %v620
    %684 = vmatpush1.bf16.msra.mxu0 %v619
    %685 = vmatprep.subr.bf16.mxu0 %v624
    %686 = vmatpush1.bf16.msra.mxu0 %v623
    %687 = vmatprep.subr.bf16.mxu0 %v628
    %688 = vmatpush1.bf16.msra.mxu0 %v627
    %689 = vmatprep.subr.bf16.mxu0 %v632
    %690 = vmatpush1.bf16.msra.mxu0 %v631
    %691 = vmatprep.subr.bf16.mxu0 %v636
    %692 = vmatpush1.bf16.msra.mxu0 %v635
    %693 = vmatprep.subr.bf16.mxu0 %v640
    %694 = vmatpush1.bf16.msra.mxu0 %v639
    %695 = vmatprep.subr.bf16.mxu0 %v644
    %696 = vmatpush1.bf16.msra.mxu0 %v643
    %697 = vmatprep.subr.bf16.mxu0 %v648
    %698 = vmatpush1.bf16.msra.mxu0 %v647
    %699 = vmatprep.subr.bf16.mxu0 0
    %700 = vmatpush1.bf16.msra.mxu0 0
    %701 = vmatprep.subr.bf16.mxu0 0
    %702 = vmatpush1.bf16.msra.mxu0 0
    %703 = vmatprep.subr.bf16.mxu0 0
    %704 = vmatpush1.bf16.msra.mxu0 0
    %705 = vmatprep.subr.bf16.mxu0 0
    %706 = vmatpush1.bf16.msra.mxu0 0
    %707 = vmatprep.subr.bf16.mxu0 0
    %708 = vmatpush1.bf16.msra.mxu0 0
    %709 = vmatprep.subr.bf16.mxu0 0
    %710 = vmatpush1.bf16.msra.mxu0 0
    %711 = vmatprep.subr.bf16.mxu0 0
    %712 = vmatpush1.bf16.msra.mxu0 0
    %713 = vmatprep.subr.bf16.mxu0 0
    %714 = vmatpush1.bf16.msra.mxu0 0
    %715 = vmatprep.mubr.bf16.mxu0 0
    %716 = vmatmul.mubr.bf16.gmra.mrb[0].mxu0 0
    %v717 = vpop.f32.mrb[0].mxu0
    %v718 = vadd.f32 0.0, %v717
    %v719 = vpop.f32.mrb[0].mxu0
    %v720 = vadd.f32 0.0, %v719
    %v721 = vpop.f32.mrb[0].mxu0
    %v722 = vpop.f32.mrb[0].mxu0
    %723 = vdwg.mxu0
    %724 = vmatprep.subr.bf16.mxu0 %v622
    %725 = vmatpush1.bf16.msra.mxu0 %v621
    %726 = vmatprep.subr.bf16.mxu0 %v626
    %727 = vmatpush1.bf16.msra.mxu0 %v625
    %728 = vmatprep.subr.bf16.mxu0 %v630
    %729 = vmatpush1.bf16.msra.mxu0 %v629
    %730 = vmatprep.subr.bf16.mxu0 %v634
    %731 = vmatpush1.bf16.msra.mxu0 %v633
    %732 = vmatprep.subr.bf16.mxu0 %v638
    %733 = vmatpush1.bf16.msra.mxu0 %v637
    %734 = vmatprep.subr.bf16.mxu0 %v642
    %735 = vmatpush1.bf16.msra.mxu0 %v641
    %736 = vmatprep.subr.bf16.mxu0 %v646
    %737 = vmatpush1.bf16.msra.mxu0 %v645
    %738 = vmatprep.subr.bf16.mxu0 %v650
    %739 = vmatpush1.bf16.msra.mxu0 %v649
    %740 = vmatprep.subr.bf16.mxu0 0
    %741 = vmatpush1.bf16.msra.mxu0 0
    %742 = vmatprep.subr.bf16.mxu0 0
    %743 = vmatpush1.bf16.msra.mxu0 0
    %744 = vmatprep.subr.bf16.mxu0 0
    %745 = vmatpush1.bf16.msra.mxu0 0
    %746 = vmatprep.subr.bf16.mxu0 0
    %747 = vmatpush1.bf16.msra.mxu0 0
    %748 = vmatprep.subr.bf16.mxu0 0
    %749 = vmatpush1.bf16.msra.mxu0 0
    %750 = vmatprep.subr.bf16.mxu0 0
    %751 = vmatpush1.bf16.msra.mxu0 0
    %752 = vmatprep.subr.bf16.mxu0 0
    %753 = vmatpush1.bf16.msra.mxu0 0
    %754 = vmatprep.subr.bf16.mxu0 0
    %755 = vmatpush1.bf16.msra.mxu0 0
    %756 = vmatprep.mubr.bf16.mxu0 0
    %757 = vmatmul.mubr.bf16.gmra.mrb[0].mxu0 0
    %v758 = vpop.f32.mrb[0].mxu0
    %v759 = vadd.f32 0.0, %v758
    %v760 = vpop.f32.mrb[0].mxu0
    %v761 = vadd.f32 0.0, %v760
    %v762 = vpop.f32.mrb[0].mxu0
    %v763 = vpop.f32.mrb[0].mxu0
    %764 = vdwg.mxu0
    %v765 = vadd.f32 %v486, %v718
    %v766 = vadd.f32 %v487, %v720
    %v767 = vadd.f32 %v488, %v759
    %v768 = vadd.f32 %v489, %v761
    %v769 = vld [vmem:[%s4] sm:$0xff]
    %v770 = vld [vmem:[%s4 + $0x8] sm:$0xff]
    %v771 = vld [vmem:[%s4 + $0x10] sm:$0xff]
    %v772 = vld [vmem:[%s4 + $0x18] sm:$0xff]
    %v773 = vadd.f32 %v765, %v769
    %v774 = vadd.f32 %v766, %v770
    %v775 = vadd.f32 %v767, %v771
    %v776 = vadd.f32 %v768, %v772
    %v777 = vxor.u32 %v773, 2147483648
    %v778 = vmul.f32 %v777, 1.442695
    %v779 = vpow.pop %v778
    %v780 = vadd.f32 %v779, 1.0
    %v781 = vrcp.pop %v780
    %v782 = vmul.f32 1.0, %v781
    %v783 = vxor.u32 %v774, 2147483648
    %v784 = vmul.f32 %v783, 1.442695
    %v785 = vpow.pop %v784
    %v786 = vadd.f32 %v785, 1.0
    %v787 = vrcp.pop %v786
    %v788 = vmul.f32 1.0, %v787
    %v789 = vtanh.pop %v775
    %v790 = vxor.u32 %v776, 2147483648
    %v791 = vmul.f32 %v790, 1.442695
    %v792 = vpow.pop %v791
    %v793 = vadd.f32 %v792, 1.0
    %v794 = vrcp.pop %v793
    %v795 = vmul.f32 1.0, %v794
    %v796 = vmul.f32 %v788, 0.0
    %v797 = vmul.f32 %v782, %v789
    %v798 = vadd.f32 %v796, %v797
    %v799 = vtanh.pop %v798
    %v800 = vmul.f32 %v795, %v799
    %v801 = vpack.c.bf16 %v800, %v800
    %s802 = scalar_lea.vmem [#allocation8], 256
    %v803 = vld [vmem:[%s802] sm:$0xff]
    %v804 = vld [vmem:[%s802 + $0x8] sm:$0xff]
    %v805 = vld [vmem:[%s802 + $0x10] sm:$0xff]
    %v806 = vld [vmem:[%s802 + $0x18] sm:$0xff]
    %v807 = vld [vmem:[%s802 + $0x20] sm:$0xff]
    %v808 = vld [vmem:[%s802 + $0x28] sm:$0xff]
    %v809 = vld [vmem:[%s802 + $0x30] sm:$0xff]
    %v810 = vld [vmem:[%s802 + $0x38] sm:$0xff]
    %v811 = vld [vmem:[%s802 + $0x40] sm:$0xff]
    %v812 = vld [vmem:[%s802 + $0x48] sm:$0xff]
    %v813 = vld [vmem:[%s802 + $0x50] sm:$0xff]
    %v814 = vld [vmem:[%s802 + $0x58] sm:$0xff]
    %v815 = vld [vmem:[%s802 + $0x60] sm:$0xff]
    %v816 = vld [vmem:[%s802 + $0x68] sm:$0xff]
    %v817 = vld [vmem:[%s802 + $0x70] sm:$0xff]
    %v818 = vld [vmem:[%s802 + $0x78] sm:$0xff]
    %v819 = vld [vmem:[%s802 + $0x80] sm:$0xff]
    %v820 = vld [vmem:[%s802 + $0x88] sm:$0xff]
    %v821 = vld [vmem:[%s802 + $0x90] sm:$0xff]
    %v822 = vld [vmem:[%s802 + $0x98] sm:$0xff]
    %v823 = vld [vmem:[%s802 + $0xa0] sm:$0xff]
    %v824 = vld [vmem:[%s802 + $0xa8] sm:$0xff]
    %v825 = vld [vmem:[%s802 + $0xb0] sm:$0xff]
    %v826 = vld [vmem:[%s802 + $0xb8] sm:$0xff]
    %v827 = vld [vmem:[%s802 + $0xc0] sm:$0xff]
    %v828 = vld [vmem:[%s802 + $0xc8] sm:$0xff]
    %v829 = vld [vmem:[%s802 + $0xd0] sm:$0xff]
    %v830 = vld [vmem:[%s802 + $0xd8] sm:$0xff]
    %v831 = vld [vmem:[%s802 + $0xe0] sm:$0xff]
    %v832 = vld [vmem:[%s802 + $0xe8] sm:$0xff]
    %v833 = vld [vmem:[%s802 + $0xf0] sm:$0xff]
    %v834 = vld [vmem:[%s802 + $0xf8] sm:$0xff]
    %s835 = scalar_lea.vmem [#allocation8], 768
    %v836 = vld [vmem:[%s835] sm:$0xff]
    %v837 = vld [vmem:[%s835 + $0x8] sm:$0xff]
    %v838 = vld [vmem:[%s835 + $0x10] sm:$0xff]
    %v839 = vld [vmem:[%s835 + $0x18] sm:$0xff]
    %v840 = vld [vmem:[%s835 + $0x20] sm:$0xff]
    %v841 = vld [vmem:[%s835 + $0x28] sm:$0xff]
    %v842 = vld [vmem:[%s835 + $0x30] sm:$0xff]
    %v843 = vld [vmem:[%s835 + $0x38] sm:$0xff]
    %v844 = vld [vmem:[%s835 + $0x40] sm:$0xff]
    %v845 = vld [vmem:[%s835 + $0x48] sm:$0xff]
    %v846 = vld [vmem:[%s835 + $0x50] sm:$0xff]
    %v847 = vld [vmem:[%s835 + $0x58] sm:$0xff]
    %v848 = vld [vmem:[%s835 + $0x60] sm:$0xff]
    %v849 = vld [vmem:[%s835 + $0x68] sm:$0xff]
    %v850 = vld [vmem:[%s835 + $0x70] sm:$0xff]
    %v851 = vld [vmem:[%s835 + $0x78] sm:$0xff]
    %v852 = vld [vmem:[%s835 + $0x80] sm:$0xff]
    %v853 = vld [vmem:[%s835 + $0x88] sm:$0xff]
    %v854 = vld [vmem:[%s835 + $0x90] sm:$0xff]
    %v855 = vld [vmem:[%s835 + $0x98] sm:$0xff]
    %v856 = vld [vmem:[%s835 + $0xa0] sm:$0xff]
    %v857 = vld [vmem:[%s835 + $0xa8] sm:$0xff]
    %v858 = vld [vmem:[%s835 + $0xb0] sm:$0xff]
    %v859 = vld [vmem:[%s835 + $0xb8] sm:$0xff]
    %v860 = vld [vmem:[%s835 + $0xc0] sm:$0xff]
    %v861 = vld [vmem:[%s835 + $0xc8] sm:$0xff]
    %v862 = vld [vmem:[%s835 + $0xd0] sm:$0xff]
    %v863 = vld [vmem:[%s835 + $0xd8] sm:$0xff]
    %v864 = vld [vmem:[%s835 + $0xe0] sm:$0xff]
    %v865 = vld [vmem:[%s835 + $0xe8] sm:$0xff]
    %v866 = vld [vmem:[%s835 + $0xf0] sm:$0xff]
    %v867 = vld [vmem:[%s835 + $0xf8] sm:$0xff]
    %v900 = vunpack.c.l.b16 %v836
    %v901 = vunpack.c.h.b16 %v836
    %v902 = vunpack.c.l.b16 %v837
    %v903 = vunpack.c.h.b16 %v837
    %v904 = vunpack.c.l.b16 %v838
    %v905 = vunpack.c.h.b16 %v838
    %v906 = vunpack.c.l.b16 %v839
    %v907 = vunpack.c.h.b16 %v839
    %v908 = vunpack.c.l.b16 %v840
    %v909 = vunpack.c.h.b16 %v840
    %v910 = vunpack.c.l.b16 %v841
    %v911 = vunpack.c.h.b16 %v841
    %v912 = vunpack.c.l.b16 %v842
    %v913 = vunpack.c.h.b16 %v842
    %v914 = vunpack.c.l.b16 %v843
    %v915 = vunpack.c.h.b16 %v843
    %v916 = vunpack.c.l.b16 %v844
    %v917 = vunpack.c.h.b16 %v844
    %v918 = vunpack.c.l.b16 %v845
    %v919 = vunpack.c.h.b16 %v845
    %v920 = vunpack.c.l.b16 %v846
    %v921 = vunpack.c.h.b16 %v846
    %v922 = vunpack.c.l.b16 %v847
    %v923 = vunpack.c.h.b16 %v847
    %v924 = vunpack.c.l.b16 %v848
    %v925 = vunpack.c.h.b16 %v848
    %v926 = vunpack.c.l.b16 %v849
    %v927 = vunpack.c.h.b16 %v849
    %v928 = vunpack.c.l.b16 %v850
    %v929 = vunpack.c.h.b16 %v850
    %v930 = vunpack.c.l.b16 %v851
    %v931 = vunpack.c.h.b16 %v851
    %v932 = vunpack.c.l.b16 %v852
    %v933 = vunpack.c.h.b16 %v852
    %v934 = vunpack.c.l.b16 %v853
    %v935 = vunpack.c.h.b16 %v853
    %v936 = vunpack.c.l.b16 %v854
    %v937 = vunpack.c.h.b16 %v854
    %v938 = vunpack.c.l.b16 %v855
    %v939 = vunpack.c.h.b16 %v855
    %v940 = vunpack.c.l.b16 %v856
    %v941 = vunpack.c.h.b16 %v856
    %v942 = vunpack.c.l.b16 %v857
    %v943 = vunpack.c.h.b16 %v857
    %v944 = vunpack.c.l.b16 %v858
    %v945 = vunpack.c.h.b16 %v858
    %v946 = vunpack.c.l.b16 %v859
    %v947 = vunpack.c.h.b16 %v859
    %v948 = vunpack.c.l.b16 %v860
    %v949 = vunpack.c.h.b16 %v860
    %v950 = vunpack.c.l.b16 %v861
    %v951 = vunpack.c.h.b16 %v861
    %v952 = vunpack.c.l.b16 %v862
    %v953 = vunpack.c.h.b16 %v862
    %v954 = vunpack.c.l.b16 %v863
    %v955 = vunpack.c.h.b16 %v863
    %v956 = vunpack.c.l.b16 %v864
    %v957 = vunpack.c.h.b16 %v864
    %v958 = vunpack.c.l.b16 %v865
    %v959 = vunpack.c.h.b16 %v865
    %v960 = vunpack.c.l.b16 %v866
    %v961 = vunpack.c.h.b16 %v866
    %v962 = vunpack.c.l.b16 %v867
    %v963 = vunpack.c.h.b16 %v867
    %v964 = vpack.c.b16 %v904, %v900
    %v965 = vpack.c.b16 %v905, %v901
    %v966 = vpack.c.b16 %v906, %v902
    %v967 = vpack.c.b16 %v907, %v903
    %v968 = vpack.c.b16 %v912, %v908
    %v969 = vpack.c.b16 %v913, %v909
    %v970 = vpack.c.b16 %v914, %v910
    %v971 = vpack.c.b16 %v915, %v911
    %v972 = vpack.c.b16 %v920, %v916
    %v973 = vpack.c.b16 %v921, %v917
    %v974 = vpack.c.b16 %v922, %v918
    %v975 = vpack.c.b16 %v923, %v919
    %v976 = vpack.c.b16 %v928, %v924
    %v977 = vpack.c.b16 %v929, %v925
    %v978 = vpack.c.b16 %v930, %v926
    %v979 = vpack.c.b16 %v931, %v927
    %v980 = vpack.c.b16 %v936, %v932
    %v981 = vpack.c.b16 %v937, %v933
    %v982 = vpack.c.b16 %v938, %v934
    %v983 = vpack.c.b16 %v939, %v935
    %v984 = vpack.c.b16 %v944, %v940
    %v985 = vpack.c.b16 %v945, %v941
    %v986 = vpack.c.b16 %v946, %v942
    %v987 = vpack.c.b16 %v947, %v943
    %v988 = vpack.c.b16 %v952, %v948
    %v989 = vpack.c.b16 %v953, %v949
    %v990 = vpack.c.b16 %v954, %v950
    %v991 = vpack.c.b16 %v955, %v951
    %v992 = vpack.c.b16 %v960, %v956
    %v993 = vpack.c.b16 %v961, %v957
    %v994 = vpack.c.b16 %v962, %v958
    %v995 = vpack.c.b16 %v963, %v959
    %1028 = vmatprep.subr.bf16.mxu0 %v965
    %1029 = vmatpush1.bf16.msra.mxu0 %v964
    %1030 = vmatprep.subr.bf16.mxu0 %v969
    %1031 = vmatpush1.bf16.msra.mxu0 %v968
    %1032 = vmatprep.subr.bf16.mxu0 %v973
    %1033 = vmatpush1.bf16.msra.mxu0 %v972
    %1034 = vmatprep.subr.bf16.mxu0 %v977
    %1035 = vmatpush1.bf16.msra.mxu0 %v976
    %1036 = vmatprep.subr.bf16.mxu0 %v981
    %1037 = vmatpush1.bf16.msra.mxu0 %v980
    %1038 = vmatprep.subr.bf16.mxu0 %v985
    %1039 = vmatpush1.bf16.msra.mxu0 %v984
    %1040 = vmatprep.subr.bf16.mxu0 %v989
    %1041 = vmatpush1.bf16.msra.mxu0 %v988
    %1042 = vmatprep.subr.bf16.mxu0 %v993
    %1043 = vmatpush1.bf16.msra.mxu0 %v992
    %1044 = vmatprep.subr.bf16.mxu0 0
    %1045 = vmatpush1.bf16.msra.mxu0 0
    %1046 = vmatprep.subr.bf16.mxu0 0
    %1047 = vmatpush1.bf16.msra.mxu0 0
    %1048 = vmatprep.subr.bf16.mxu0 0
    %1049 = vmatpush1.bf16.msra.mxu0 0
    %1050 = vmatprep.subr.bf16.mxu0 0
    %1051 = vmatpush1.bf16.msra.mxu0 0
    %1052 = vmatprep.subr.bf16.mxu0 0
    %1053 = vmatpush1.bf16.msra.mxu0 0
    %1054 = vmatprep.subr.bf16.mxu0 0
    %1055 = vmatpush1.bf16.msra.mxu0 0
    %1056 = vmatprep.subr.bf16.mxu0 0
    %1057 = vmatpush1.bf16.msra.mxu0 0
    %1058 = vmatprep.subr.bf16.mxu0 0
    %1059 = vmatpush1.bf16.msra.mxu0 0
    %1060 = vmatprep.mubr.bf16.mxu0 0
    %1061 = vmatmul.mubr.bf16.gmra.mrb[0].mxu0 0
    %v1062 = vpop.f32.mrb[0].mxu0
    %v1063 = vadd.f32 0.0, %v1062
    %v1064 = vpop.f32.mrb[0].mxu0
    %v1065 = vadd.f32 0.0, %v1064
    %v1066 = vpop.f32.mrb[0].mxu0
    %v1067 = vpop.f32.mrb[0].mxu0
    %1068 = vdwg.mxu0
    %1069 = vmatprep.subr.bf16.mxu0 %v967
    %1070 = vmatpush1.bf16.msra.mxu0 %v966
    %1071 = vmatprep.subr.bf16.mxu0 %v971
    %1072 = vmatpush1.bf16.msra.mxu0 %v970
    %1073 = vmatprep.subr.bf16.mxu0 %v975
    %1074 = vmatpush1.bf16.msra.mxu0 %v974
    %1075 = vmatprep.subr.bf16.mxu0 %v979
    %1076 = vmatpush1.bf16.msra.mxu0 %v978
    %1077 = vmatprep.subr.bf16.mxu0 %v983
    %1078 = vmatpush1.bf16.msra.mxu0 %v982
    %1079 = vmatprep.subr.bf16.mxu0 %v987
    %1080 = vmatpush1.bf16.msra.mxu0 %v986
    %1081 = vmatprep.subr.bf16.mxu0 %v991
    %1082 = vmatpush1.bf16.msra.mxu0 %v990
    %1083 = vmatprep.subr.bf16.mxu0 %v995
    %1084 = vmatpush1.bf16.msra.mxu0 %v994
    %1085 = vmatprep.subr.bf16.mxu0 0
    %1086 = vmatpush1.bf16.msra.mxu0 0
    %1087 = vmatprep.subr.bf16.mxu0 0
    %1088 = vmatpush1.bf16.msra.mxu0 0
    %1089 = vmatprep.subr.bf16.mxu0 0
    %1090 = vmatpush1.bf16.msra.mxu0 0
    %1091 = vmatprep.subr.bf16.mxu0 0
    %1092 = vmatpush1.bf16.msra.mxu0 0
    %1093 = vmatprep.subr.bf16.mxu0 0
    %1094 = vmatpush1.bf16.msra.mxu0 0
    %1095 = vmatprep.subr.bf16.mxu0 0
    %1096 = vmatpush1.bf16.msra.mxu0 0
    %1097 = vmatprep.subr.bf16.mxu0 0
    %1098 = vmatpush1.bf16.msra.mxu0 0
    %1099 = vmatprep.subr.bf16.mxu0 0
    %1100 = vmatpush1.bf16.msra.mxu0 0
    %1101 = vmatprep.mubr.bf16.mxu0 0
    %1102 = vmatmul.mubr.bf16.gmra.mrb[0].mxu0 0
    %v1103 = vpop.f32.mrb[0].mxu0
    %v1104 = vadd.f32 0.0, %v1103
    %v1105 = vpop.f32.mrb[0].mxu0
    %v1106 = vadd.f32 0.0, %v1105
    %v1107 = vpop.f32.mrb[0].mxu0
    %v1108 = vpop.f32.mrb[0].mxu0
    %1109 = vdwg.mxu0
    %v1142 = vunpack.c.l.b16 %v803
    %v1143 = vunpack.c.h.b16 %v803
    %v1144 = vunpack.c.l.b16 %v804
    %v1145 = vunpack.c.h.b16 %v804
    %v1146 = vunpack.c.l.b16 %v805
    %v1147 = vunpack.c.h.b16 %v805
    %v1148 = vunpack.c.l.b16 %v806
    %v1149 = vunpack.c.h.b16 %v806
    %v1150 = vunpack.c.l.b16 %v807
    %v1151 = vunpack.c.h.b16 %v807
    %v1152 = vunpack.c.l.b16 %v808
    %v1153 = vunpack.c.h.b16 %v808
    %v1154 = vunpack.c.l.b16 %v809
    %v1155 = vunpack.c.h.b16 %v809
    %v1156 = vunpack.c.l.b16 %v810
    %v1157 = vunpack.c.h.b16 %v810
    %v1158 = vunpack.c.l.b16 %v811
    %v1159 = vunpack.c.h.b16 %v811
    %v1160 = vunpack.c.l.b16 %v812
    %v1161 = vunpack.c.h.b16 %v812
    %v1162 = vunpack.c.l.b16 %v813
    %v1163 = vunpack.c.h.b16 %v813
    %v1164 = vunpack.c.l.b16 %v814
    %v1165 = vunpack.c.h.b16 %v814
    %v1166 = vunpack.c.l.b16 %v815
    %v1167 = vunpack.c.h.b16 %v815
    %v1168 = vunpack.c.l.b16 %v816
    %v1169 = vunpack.c.h.b16 %v816
    %v1170 = vunpack.c.l.b16 %v817
    %v1171 = vunpack.c.h.b16 %v817
    %v1172 = vunpack.c.l.b16 %v818
    %v1173 = vunpack.c.h.b16 %v818
    %v1174 = vunpack.c.l.b16 %v819
    %v1175 = vunpack.c.h.b16 %v819
    %v1176 = vunpack.c.l.b16 %v820
    %v1177 = vunpack.c.h.b16 %v820
    %v1178 = vunpack.c.l.b16 %v821
    %v1179 = vunpack.c.h.b16 %v821
    %v1180 = vunpack.c.l.b16 %v822
    %v1181 = vunpack.c.h.b16 %v822
    %v1182 = vunpack.c.l.b16 %v823
    %v1183 = vunpack.c.h.b16 %v823
    %v1184 = vunpack.c.l.b16 %v824
    %v1185 = vunpack.c.h.b16 %v824
    %v1186 = vunpack.c.l.b16 %v825
    %v1187 = vunpack.c.h.b16 %v825
    %v1188 = vunpack.c.l.b16 %v826
    %v1189 = vunpack.c.h.b16 %v826
    %v1190 = vunpack.c.l.b16 %v827
    %v1191 = vunpack.c.h.b16 %v827
    %v1192 = vunpack.c.l.b16 %v828
    %v1193 = vunpack.c.h.b16 %v828
    %v1194 = vunpack.c.l.b16 %v829
    %v1195 = vunpack.c.h.b16 %v829
    %v1196 = vunpack.c.l.b16 %v830
    %v1197 = vunpack.c.h.b16 %v830
    %v1198 = vunpack.c.l.b16 %v831
    %v1199 = vunpack.c.h.b16 %v831
    %v1200 = vunpack.c.l.b16 %v832
    %v1201 = vunpack.c.h.b16 %v832
    %v1202 = vunpack.c.l.b16 %v833
    %v1203 = vunpack.c.h.b16 %v833
    %v1204 = vunpack.c.l.b16 %v834
    %v1205 = vunpack.c.h.b16 %v834
    %v1206 = vpack.c.b16 %v1146, %v1142
    %v1207 = vpack.c.b16 %v1147, %v1143
    %v1208 = vpack.c.b16 %v1148, %v1144
    %v1209 = vpack.c.b16 %v1149, %v1145
    %v1210 = vpack.c.b16 %v1154, %v1150
    %v1211 = vpack.c.b16 %v1155, %v1151
    %v1212 = vpack.c.b16 %v1156, %v1152
    %v1213 = vpack.c.b16 %v1157, %v1153
    %v1214 = vpack.c.b16 %v1162, %v1158
    %v1215 = vpack.c.b16 %v1163, %v1159
    %v1216 = vpack.c.b16 %v1164, %v1160
    %v1217 = vpack.c.b16 %v1165, %v1161
    %v1218 = vpack.c.b16 %v1170, %v1166
    %v1219 = vpack.c.b16 %v1171, %v1167
    %v1220 = vpack.c.b16 %v1172, %v1168
    %v1221 = vpack.c.b16 %v1173, %v1169
    %v1222 = vpack.c.b16 %v1178, %v1174
    %v1223 = vpack.c.b16 %v1179, %v1175
    %v1224 = vpack.c.b16 %v1180, %v1176
    %v1225 = vpack.c.b16 %v1181, %v1177
    %v1226 = vpack.c.b16 %v1186, %v1182
    %v1227 = vpack.c.b16 %v1187, %v1183
    %v1228 = vpack.c.b16 %v1188, %v1184
    %v1229 = vpack.c.b16 %v1189, %v1185
    %v1230 = vpack.c.b16 %v1194, %v1190
    %v1231 = vpack.c.b16 %v1195, %v1191
    %v1232 = vpack.c.b16 %v1196, %v1192
    %v1233 = vpack.c.b16 %v1197, %v1193
    %v1234 = vpack.c.b16 %v1202, %v1198
    %v1235 = vpack.c.b16 %v1203, %v1199
    %v1236 = vpack.c.b16 %v1204, %v1200
    %v1237 = vpack.c.b16 %v1205, %v1201
    %1270 = vmatprep.subr.bf16.mxu0 %v1207
    %1271 = vmatpush1.bf16.msra.mxu0 %v1206
    %1272 = vmatprep.subr.bf16.mxu0 %v1211
    %1273 = vmatpush1.bf16.msra.mxu0 %v1210
    %1274 = vmatprep.subr.bf16.mxu0 %v1215
    %1275 = vmatpush1.bf16.msra.mxu0 %v1214
    %1276 = vmatprep.subr.bf16.mxu0 %v1219
    %1277 = vmatpush1.bf16.msra.mxu0 %v1218
    %1278 = vmatprep.subr.bf16.mxu0 %v1223
    %1279 = vmatpush1.bf16.msra.mxu0 %v1222
    %1280 = vmatprep.subr.bf16.mxu0 %v1227
    %1281 = vmatpush1.bf16.msra.mxu0 %v1226
    %1282 = vmatprep.subr.bf16.mxu0 %v1231
    %1283 = vmatpush1.bf16.msra.mxu0 %v1230
    %1284 = vmatprep.subr.bf16.mxu0 %v1235
    %1285 = vmatpush1.bf16.msra.mxu0 %v1234
    %1286 = vmatprep.subr.bf16.mxu0 0
    %1287 = vmatpush1.bf16.msra.mxu0 0
    %1288 = vmatprep.subr.bf16.mxu0 0
    %1289 = vmatpush1.bf16.msra.mxu0 0
    %1290 = vmatprep.subr.bf16.mxu0 0
    %1291 = vmatpush1.bf16.msra.mxu0 0
    %1292 = vmatprep.subr.bf16.mxu0 0
    %1293 = vmatpush1.bf16.msra.mxu0 0
    %1294 = vmatprep.subr.bf16.mxu0 0
    %1295 = vmatpush1.bf16.msra.mxu0 0
    %1296 = vmatprep.subr.bf16.mxu0 0
    %1297 = vmatpush1.bf16.msra.mxu0 0
    %1298 = vmatprep.subr.bf16.mxu0 0
    %1299 = vmatpush1.bf16.msra.mxu0 0
    %1300 = vmatprep.subr.bf16.mxu0 0
    %1301 = vmatpush1.bf16.msra.mxu0 0
    %1302 = vmatprep.mubr.bf16.mxu0 0
    %1303 = vmatmul.mubr.bf16.gmra.mrb[0].mxu0 %v801
    %v1304 = vpop.f32.mrb[0].mxu0
    %v1305 = vadd.f32 %v1063, %v1304
    %v1306 = vpop.f32.mrb[0].mxu0
    %v1307 = vadd.f32 %v1065, %v1306
    %v1308 = vpop.f32.mrb[0].mxu0
    %v1309 = vpop.f32.mrb[0].mxu0
    %1310 = vdwg.mxu0
    %1311 = vmatprep.subr.bf16.mxu0 %v1209
    %1312 = vmatpush1.bf16.msra.mxu0 %v1208
    %1313 = vmatprep.subr.bf16.mxu0 %v1213
    %1314 = vmatpush1.bf16.msra.mxu0 %v1212
    %1315 = vmatprep.subr.bf16.mxu0 %v1217
    %1316 = vmatpush1.bf16.msra.mxu0 %v1216
    %1317 = vmatprep.subr.bf16.mxu0 %v1221
    %1318 = vmatpush1.bf16.msra.mxu0 %v1220
    %1319 = vmatprep.subr.bf16.mxu0 %v1225
    %1320 = vmatpush1.bf16.msra.mxu0 %v1224
    %1321 = vmatprep.subr.bf16.mxu0 %v1229
    %1322 = vmatpush1.bf16.msra.mxu0 %v1228
    %1323 = vmatprep.subr.bf16.mxu0 %v1233
    %1324 = vmatpush1.bf16.msra.mxu0 %v1232
    %1325 = vmatprep.subr.bf16.mxu0 %v1237
    %1326 = vmatpush1.bf16.msra.mxu0 %v1236
    %1327 = vmatprep.subr.bf16.mxu0 0
    %1328 = vmatpush1.bf16.msra.mxu0 0
    %1329 = vmatprep.subr.bf16.mxu0 0
    %1330 = vmatpush1.bf16.msra.mxu0 0
    %1331 = vmatprep.subr.bf16.mxu0 0
    %1332 = vmatpush1.bf16.msra.mxu0 0
    %1333 = vmatprep.subr.bf16.mxu0 0
    %1334 = vmatpush1.bf16.msra.mxu0 0
    %1335 = vmatprep.subr.bf16.mxu0 0
    %1336 = vmatpush1.bf16.msra.mxu0 0
    %1337 = vmatprep.subr.bf16.mxu0 0
    %1338 = vmatpush1.bf16.msra.mxu0 0
    %1339 = vmatprep.subr.bf16.mxu0 0
    %1340 = vmatpush1.bf16.msra.mxu0 0
    %1341 = vmatprep.subr.bf16.mxu0 0
    %1342 = vmatpush1.bf16.msra.mxu0 0
    %1343 = vmatprep.mubr.bf16.mxu0 0
    %1344 = vmatmul.mubr.bf16.gmra.mrb[0].mxu0 %v801
    %v1345 = vpop.f32.mrb[0].mxu0
    %v1346 = vadd.f32 %v1104, %v1345
    %v1347 = vpop.f32.mrb[0].mxu0
    %v1348 = vadd.f32 %v1106, %v1347
    %v1349 = vpop.f32.mrb[0].mxu0
    %v1350 = vpop.f32.mrb[0].mxu0
    %1351 = vdwg.mxu0
    %s1352 = scalar_lea.vmem %s4, 32
    %v1353 = vld [vmem:[%s1352] sm:$0xff]
    %v1354 = vld [vmem:[%s1352 + $0x8] sm:$0xff]
    %v1355 = vld [vmem:[%s1352 + $0x10] sm:$0xff]
    %v1356 = vld [vmem:[%s1352 + $0x18] sm:$0xff]
    %v1357 = vadd.f32 %v1305, %v1353
    %v1358 = vadd.f32 %v1307, %v1354
    %v1359 = vadd.f32 %v1346, %v1355
    %v1360 = vadd.f32 %v1348, %v1356
    %v1361 = vxor.u32 %v1357, 2147483648
    %v1362 = vmul.f32 %v1361, 1.442695
    %v1363 = vpow.pop %v1362
    %v1364 = vadd.f32 %v1363, 1.0
    %v1365 = vrcp.pop %v1364
    %v1366 = vmul.f32 1.0, %v1365
    %v1367 = vxor.u32 %v1358, 2147483648
    %v1368 = vmul.f32 %v1367, 1.442695
    %v1369 = vpow.pop %v1368
    %v1370 = vadd.f32 %v1369, 1.0
    %v1371 = vrcp.pop %v1370
    %v1372 = vmul.f32 1.0, %v1371
    %v1373 = vtanh.pop %v1359
    %v1374 = vxor.u32 %v1360, 2147483648
    %v1375 = vmul.f32 %v1374, 1.442695
    %v1376 = vpow.pop %v1375
    %v1377 = vadd.f32 %v1376, 1.0
    %v1378 = vrcp.pop %v1377
    %v1379 = vmul.f32 1.0, %v1378
    %v1380 = vmul.f32 %v1372, 0.0
    %v1381 = vmul.f32 %v1366, %v1373
    %v1382 = vadd.f32 %v1380, %v1381
    %v1383 = vtanh.pop %v1382
    %v1384 = vmul.f32 %v1379, %v1383
    %v1385 = vld [vmem:[#allocation3 + $0x20] sm:$0xff]
    %v1386 = vld [vmem:[#allocation3 + $0x28] sm:$0xff]
    %v1387 = vld [vmem:[#allocation3 + $0x30] sm:$0xff]
    %v1388 = vld [vmem:[#allocation3 + $0x38] sm:$0xff]
    %1389 = vmatprep.subr.bf16.mxu0 %v620
    %1390 = vmatpush1.bf16.msra.mxu0 %v619
    %1391 = vmatprep.subr.bf16.mxu0 %v624
    %1392 = vmatpush1.bf16.msra.mxu0 %v623
    %1393 = vmatprep.subr.bf16.mxu0 %v628
    %1394 = vmatpush1.bf16.msra.mxu0 %v627
    %1395 = vmatprep.subr.bf16.mxu0 %v632
    %1396 = vmatpush1.bf16.msra.mxu0 %v631
    %1397 = vmatprep.subr.bf16.mxu0 %v636
    %1398 = vmatpush1.bf16.msra.mxu0 %v635
    %1399 = vmatprep.subr.bf16.mxu0 %v640
    %1400 = vmatpush1.bf16.msra.mxu0 %v639
    %1401 = vmatprep.subr.bf16.mxu0 %v644
    %1402 = vmatpush1.bf16.msra.mxu0 %v643
    %1403 = vmatprep.subr.bf16.mxu0 %v648
    %1404 = vmatpush1.bf16.msra.mxu0 %v647
    %1405 = vmatprep.subr.bf16.mxu0 0
    %1406 = vmatpush1.bf16.msra.mxu0 0
    %1407 = vmatprep.subr.bf16.mxu0 0
    %1408 = vmatpush1.bf16.msra.mxu0 0
    %1409 = vmatprep.subr.bf16.mxu0 0
    %1410 = vmatpush1.bf16.msra.mxu0 0
    %1411 = vmatprep.subr.bf16.mxu0 0
    %1412 = vmatpush1.bf16.msra.mxu0 0
    %1413 = vmatprep.subr.bf16.mxu0 0
    %1414 = vmatpush1.bf16.msra.mxu0 0
    %1415 = vmatprep.subr.bf16.mxu0 0
    %1416 = vmatpush1.bf16.msra.mxu0 0
    %1417 = vmatprep.subr.bf16.mxu0 0
    %1418 = vmatpush1.bf16.msra.mxu0 0
    %1419 = vmatprep.subr.bf16.mxu0 0
    %1420 = vmatpush1.bf16.msra.mxu0 0
    %1421 = vmatprep.mubr.bf16.mxu0 0
    %1422 = vmatmul.mubr.bf16.gmra.mrb[0].mxu0 %v801
    %v1423 = vpop.f32.mrb[0].mxu0
    %v1424 = vadd.f32 0.0, %v1423
    %v1425 = vpop.f32.mrb[0].mxu0
    %v1426 = vadd.f32 0.0, %v1425
    %v1427 = vpop.f32.mrb[0].mxu0
    %v1428 = vpop.f32.mrb[0].mxu0
    %1429 = vdwg.mxu0
    %1430 = vmatprep.subr.bf16.mxu0 %v622
    %1431 = vmatpush1.bf16.msra.mxu0 %v621
    %1432 = vmatprep.subr.bf16.mxu0 %v626
    %1433 = vmatpush1.bf16.msra.mxu0 %v625
    %1434 = vmatprep.subr.bf16.mxu0 %v630
    %1435 = vmatpush1.bf16.msra.mxu0 %v629
    %1436 = vmatprep.subr.bf16.mxu0 %v634
    %1437 = vmatpush1.bf16.msra.mxu0 %v633
    %1438 = vmatprep.subr.bf16.mxu0 %v638
    %1439 = vmatpush1.bf16.msra.mxu0 %v637
    %1440 = vmatprep.subr.bf16.mxu0 %v642
    %1441 = vmatpush1.bf16.msra.mxu0 %v641
    %1442 = vmatprep.subr.bf16.mxu0 %v646
    %1443 = vmatpush1.bf16.msra.mxu0 %v645
    %1444 = vmatprep.subr.bf16.mxu0 %v650
    %1445 = vmatpush1.bf16.msra.mxu0 %v649
    %1446 = vmatprep.subr.bf16.mxu0 0
    %1447 = vmatpush1.bf16.msra.mxu0 0
    %1448 = vmatprep.subr.bf16.mxu0 0
    %1449 = vmatpush1.bf16.msra.mxu0 0
    %1450 = vmatprep.subr.bf16.mxu0 0
    %1451 = vmatpush1.bf16.msra.mxu0 0
    %1452 = vmatprep.subr.bf16.mxu0 0
    %1453 = vmatpush1.bf16.msra.mxu0 0
    %1454 = vmatprep.subr.bf16.mxu0 0
    %1455 = vmatpush1.bf16.msra.mxu0 0
    %1456 = vmatprep.subr.bf16.mxu0 0
    %1457 = vmatpush1.bf16.msra.mxu0 0
    %1458 = vmatprep.subr.bf16.mxu0 0
    %1459 = vmatpush1.bf16.msra.mxu0 0
    %1460 = vmatprep.subr.bf16.mxu0 0
    %1461 = vmatpush1.bf16.msra.mxu0 0
    %1462 = vmatprep.mubr.bf16.mxu0 0
    %1463 = vmatmul.mubr.bf16.gmra.mrb[0].mxu0 %v801
    %v1464 = vpop.f32.mrb[0].mxu0
    %v1465 = vadd.f32 0.0, %v1464
    %v1466 = vpop.f32.mrb[0].mxu0
    %v1467 = vadd.f32 0.0, %v1466
    %v1468 = vpop.f32.mrb[0].mxu0
    %v1469 = vpop.f32.mrb[0].mxu0
    %1470 = vdwg.mxu0
    %v1471 = vadd.f32 %v1385, %v1424
    %v1472 = vadd.f32 %v1386, %v1426
    %v1473 = vadd.f32 %v1387, %v1465
    %v1474 = vadd.f32 %v1388, %v1467
    %v1475 = vadd.f32 %v1471, %v769
    %v1476 = vadd.f32 %v1472, %v770
    %v1477 = vadd.f32 %v1473, %v771
    %v1478 = vadd.f32 %v1474, %v772
    %v1479 = vxor.u32 %v1475, 2147483648
    %v1480 = vmul.f32 %v1479, 1.442695
    %v1481 = vpow.pop %v1480
    %v1482 = vadd.f32 %v1481, 1.0
    %v1483 = vrcp.pop %v1482
    %v1484 = vmul.f32 1.0, %v1483
    %v1485 = vxor.u32 %v1476, 2147483648
    %v1486 = vmul.f32 %v1485, 1.442695
    %v1487 = vpow.pop %v1486
    %v1488 = vadd.f32 %v1487, 1.0
    %v1489 = vrcp.pop %v1488
    %v1490 = vmul.f32 1.0, %v1489
    %v1491 = vtanh.pop %v1477
    %v1492 = vxor.u32 %v1478, 2147483648
    %v1493 = vmul.f32 %v1492, 1.442695
    %v1494 = vpow.pop %v1493
    %v1495 = vadd.f32 %v1494, 1.0
    %v1496 = vrcp.pop %v1495
    %v1497 = vmul.f32 1.0, %v1496
    %v1498 = vmul.f32 %v1490, %v798
    %v1499 = vmul.f32 %v1484, %v1491
    %v1500 = vadd.f32 %v1498, %v1499
    %v1501 = vtanh.pop %v1500
    %v1502 = vmul.f32 %v1497, %v1501
    %v1503 = vpack.c.bf16 %v1502, %v1502
    %v1504 = vpack.c.bf16 %v1384, %v1384
    %1505 = vmatprep.subr.bf16.mxu0 %v965
    %1506 = vmatpush1.bf16.msra.mxu0 %v964
    %1507 = vmatprep.subr.bf16.mxu0 %v969
    %1508 = vmatpush1.bf16.msra.mxu0 %v968
    %1509 = vmatprep.subr.bf16.mxu0 %v973
    %1510 = vmatpush1.bf16.msra.mxu0 %v972
    %1511 = vmatprep.subr.bf16.mxu0 %v977
    %1512 = vmatpush1.bf16.msra.mxu0 %v976
    %1513 = vmatprep.subr.bf16.mxu0 %v981
    %1514 = vmatpush1.bf16.msra.mxu0 %v980
    %1515 = vmatprep.subr.bf16.mxu0 %v985
    %1516 = vmatpush1.bf16.msra.mxu0 %v984
    %1517 = vmatprep.subr.bf16.mxu0 %v989
    %1518 = vmatpush1.bf16.msra.mxu0 %v988
    %1519 = vmatprep.subr.bf16.mxu0 %v993
    %1520 = vmatpush1.bf16.msra.mxu0 %v992
    %1521 = vmatprep.subr.bf16.mxu0 0
    %1522 = vmatpush1.bf16.msra.mxu0 0
    %1523 = vmatprep.subr.bf16.mxu0 0
    %1524 = vmatpush1.bf16.msra.mxu0 0
    %1525 = vmatprep.subr.bf16.mxu0 0
    %1526 = vmatpush1.bf16.msra.mxu0 0
    %1527 = vmatprep.subr.bf16.mxu0 0
    %1528 = vmatpush1.bf16.msra.mxu0 0
    %1529 = vmatprep.subr.bf16.mxu0 0
    %1530 = vmatpush1.bf16.msra.mxu0 0
    %1531 = vmatprep.subr.bf16.mxu0 0
    %1532 = vmatpush1.bf16.msra.mxu0 0
    %1533 = vmatprep.subr.bf16.mxu0 0
    %1534 = vmatpush1.bf16.msra.mxu0 0
    %1535 = vmatprep.subr.bf16.mxu0 0
    %1536 = vmatpush1.bf16.msra.mxu0 0
    %1537 = vmatprep.mubr.bf16.mxu0 0
    %1538 = vmatmul.mubr.bf16.gmra.mrb[0].mxu0 %v1504
    %v1539 = vpop.f32.mrb[0].mxu0
    %v1540 = vadd.f32 0.0, %v1539
    %v1541 = vpop.f32.mrb[0].mxu0
    %v1542 = vadd.f32 0.0, %v1541
    %v1543 = vpop.f32.mrb[0].mxu0
    %v1544 = vpop.f32.mrb[0].mxu0
    %1545 = vdwg.mxu0
    %1546 = vmatprep.subr.bf16.mxu0 %v967
    %1547 = vmatpush1.bf16.msra.mxu0 %v966
    %1548 = vmatprep.subr.bf16.mxu0 %v971
    %1549 = vmatpush1.bf16.msra.mxu0 %v970
    %1550 = vmatprep.subr.bf16.mxu0 %v975
    %1551 = vmatpush1.bf16.msra.mxu0 %v974
    %1552 = vmatprep.subr.bf16.mxu0 %v979
    %1553 = vmatpush1.bf16.msra.mxu0 %v978
    %1554 = vmatprep.subr.bf16.mxu0 %v983
    %1555 = vmatpush1.bf16.msra.mxu0 %v982
    %1556 = vmatprep.subr.bf16.mxu0 %v987
    %1557 = vmatpush1.bf16.msra.mxu0 %v986
    %1558 = vmatprep.subr.bf16.mxu0 %v991
    %1559 = vmatpush1.bf16.msra.mxu0 %v990
    %1560 = vmatprep.subr.bf16.mxu0 %v995
    %1561 = vmatpush1.bf16.msra.mxu0 %v994
    %1562 = vmatprep.subr.bf16.mxu0 0
    %1563 = vmatpush1.bf16.msra.mxu0 0
    %1564 = vmatprep.subr.bf16.mxu0 0
    %1565 = vmatpush1.bf16.msra.mxu0 0
    %1566 = vmatprep.subr.bf16.mxu0 0
    %1567 = vmatpush1.bf16.msra.mxu0 0
    %1568 = vmatprep.subr.bf16.mxu0 0
    %1569 = vmatpush1.bf16.msra.mxu0 0
    %1570 = vmatprep.subr.bf16.mxu0 0
    %1571 = vmatpush1.bf16.msra.mxu0 0
    %1572 = vmatprep.subr.bf16.mxu0 0
    %1573 = vmatpush1.bf16.msra.mxu0 0
    %1574 = vmatprep.subr.bf16.mxu0 0
    %1575 = vmatpush1.bf16.msra.mxu0 0
    %1576 = vmatprep.subr.bf16.mxu0 0
    %1577 = vmatpush1.bf16.msra.mxu0 0
    %1578 = vmatprep.mubr.bf16.mxu0 0
    %1579 = vmatmul.mubr.bf16.gmra.mrb[0].mxu0 %v1504
    %v1580 = vpop.f32.mrb[0].mxu0
    %v1581 = vadd.f32 0.0, %v1580
    %v1582 = vpop.f32.mrb[0].mxu0
    %v1583 = vadd.f32 0.0, %v1582
    %v1584 = vpop.f32.mrb[0].mxu0
    %v1585 = vpop.f32.mrb[0].mxu0
    %1586 = vdwg.mxu0
    %1587 = vmatprep.subr.bf16.mxu0 %v1207
    %1588 = vmatpush1.bf16.msra.mxu0 %v1206
    %1589 = vmatprep.subr.bf16.mxu0 %v1211
    %1590 = vmatpush1.bf16.msra.mxu0 %v1210
    %1591 = vmatprep.subr.bf16.mxu0 %v1215
    %1592 = vmatpush1.bf16.msra.mxu0 %v1214
    %1593 = vmatprep.subr.bf16.mxu0 %v1219
    %1594 = vmatpush1.bf16.msra.mxu0 %v1218
    %1595 = vmatprep.subr.bf16.mxu0 %v1223
    %1596 = vmatpush1.bf16.msra.mxu0 %v1222
    %1597 = vmatprep.subr.bf16.mxu0 %v1227
    %1598 = vmatpush1.bf16.msra.mxu0 %v1226
    %1599 = vmatprep.subr.bf16.mxu0 %v1231
    %1600 = vmatpush1.bf16.msra.mxu0 %v1230
    %1601 = vmatprep.subr.bf16.mxu0 %v1235
    %1602 = vmatpush1.bf16.msra.mxu0 %v1234
    %1603 = vmatprep.subr.bf16.mxu0 0
    %1604 = vmatpush1.bf16.msra.mxu0 0
    %1605 = vmatprep.subr.bf16.mxu0 0
    %1606 = vmatpush1.bf16.msra.mxu0 0
    %1607 = vmatprep.subr.bf16.mxu0 0
    %1608 = vmatpush1.bf16.msra.mxu0 0
    %1609 = vmatprep.subr.bf16.mxu0 0
    %1610 = vmatpush1.bf16.msra.mxu0 0
    %1611 = vmatprep.subr.bf16.mxu0 0
    %1612 = vmatpush1.bf16.msra.mxu0 0
    %1613 = vmatprep.subr.bf16.mxu0 0
    %1614 = vmatpush1.bf16.msra.mxu0 0
    %1615 = vmatprep.subr.bf16.mxu0 0
    %1616 = vmatpush1.bf16.msra.mxu0 0
    %1617 = vmatprep.subr.bf16.mxu0 0
    %1618 = vmatpush1.bf16.msra.mxu0 0
    %1619 = vmatprep.mubr.bf16.mxu0 0
    %1620 = vmatmul.mubr.bf16.gmra.mrb[0].mxu0 %v1503
    %v1621 = vpop.f32.mrb[0].mxu0
    %v1622 = vadd.f32 %v1540, %v1621
    %v1623 = vpop.f32.mrb[0].mxu0
    %v1624 = vadd.f32 %v1542, %v1623
    %v1625 = vpop.f32.mrb[0].mxu0
    %v1626 = vpop.f32.mrb[0].mxu0
    %1627 = vdwg.mxu0
    %1628 = vmatprep.subr.bf16.mxu0 %v1209
    %1629 = vmatpush1.bf16.msra.mxu0 %v1208
    %1630 = vmatprep.subr.bf16.mxu0 %v1213
    %1631 = vmatpush1.bf16.msra.mxu0 %v1212
    %1632 = vmatprep.subr.bf16.mxu0 %v1217
    %1633 = vmatpush1.bf16.msra.mxu0 %v1216
    %1634 = vmatprep.subr.bf16.mxu0 %v1221
    %1635 = vmatpush1.bf16.msra.mxu0 %v1220
    %1636 = vmatprep.subr.bf16.mxu0 %v1225
    %1637 = vmatpush1.bf16.msra.mxu0 %v1224
    %1638 = vmatprep.subr.bf16.mxu0 %v1229
    %1639 = vmatpush1.bf16.msra.mxu0 %v1228
    %1640 = vmatprep.subr.bf16.mxu0 %v1233
    %1641 = vmatpush1.bf16.msra.mxu0 %v1232
    %1642 = vmatprep.subr.bf16.mxu0 %v1237
    %1643 = vmatpush1.bf16.msra.mxu0 %v1236
    %1644 = vmatprep.subr.bf16.mxu0 0
    %1645 = vmatpush1.bf16.msra.mxu0 0
    %1646 = vmatprep.subr.bf16.mxu0 0
    %1647 = vmatpush1.bf16.msra.mxu0 0
    %1648 = vmatprep.subr.bf16.mxu0 0
    %1649 = vmatpush1.bf16.msra.mxu0 0
    %1650 = vmatprep.subr.bf16.mxu0 0
    %1651 = vmatpush1.bf16.msra.mxu0 0
    %1652 = vmatprep.subr.bf16.mxu0 0
    %1653 = vmatpush1.bf16.msra.mxu0 0
    %1654 = vmatprep.subr.bf16.mxu0 0
    %1655 = vmatpush1.bf16.msra.mxu0 0
    %1656 = vmatprep.subr.bf16.mxu0 0
    %1657 = vmatpush1.bf16.msra.mxu0 0
    %1658 = vmatprep.subr.bf16.mxu0 0
    %1659 = vmatpush1.bf16.msra.mxu0 0
    %1660 = vmatprep.mubr.bf16.mxu0 0
    %1661 = vmatmul.mubr.bf16.gmra.mrb[0].mxu0 %v1503
    %v1662 = vpop.f32.mrb[0].mxu0
    %v1663 = vadd.f32 %v1581, %v1662
    %v1664 = vpop.f32.mrb[0].mxu0
    %v1665 = vadd.f32 %v1583, %v1664
    %v1666 = vpop.f32.mrb[0].mxu0
    %v1667 = vpop.f32.mrb[0].mxu0
    %1668 = vdwg.mxu0
    %v1669 = vadd.f32 %v1622, %v1353
    %v1670 = vadd.f32 %v1624, %v1354
    %v1671 = vadd.f32 %v1663, %v1355
    %v1672 = vadd.f32 %v1665, %v1356
    %v1673 = vxor.u32 %v1669, 2147483648
    %v1674 = vmul.f32 %v1673, 1.442695
    %v1675 = vpow.pop %v1674
    %v1676 = vadd.f32 %v1675, 1.0
    %v1677 = vrcp.pop %v1676
    %v1678 = vmul.f32 1.0, %v1677
    %v1679 = vxor.u32 %v1670, 2147483648
    %v1680 = vmul.f32 %v1679, 1.442695
    %v1681 = vpow.pop %v1680
    %v1682 = vadd.f32 %v1681, 1.0
    %v1683 = vrcp.pop %v1682
    %v1684 = vmul.f32 1.0, %v1683
    %v1685 = vtanh.pop %v1671
    %v1686 = vxor.u32 %v1672, 2147483648
    %v1687 = vmul.f32 %v1686, 1.442695
    %v1688 = vpow.pop %v1687
    %v1689 = vadd.f32 %v1688, 1.0
    %v1690 = vrcp.pop %v1689
    %v1691 = vmul.f32 1.0, %v1690
    %v1692 = vmul.f32 %v1684, %v1382
    %v1693 = vmul.f32 %v1678, %v1685
    %v1694 = vadd.f32 %v1692, %v1693
    %v1695 = vtanh.pop %v1694
    %v1696 = vmul.f32 %v1691, %v1695
    %v1697 = vld [vmem:[#allocation3 + $0x40] sm:$0xff]
    %v1698 = vld [vmem:[#allocation3 + $0x48] sm:$0xff]
    %v1699 = vld [vmem:[#allocation3 + $0x50] sm:$0xff]
    %v1700 = vld [vmem:[#allocation3 + $0x58] sm:$0xff]
    %1701 = vmatprep.subr.bf16.mxu0 %v620
    %1702 = vmatpush1.bf16.msra.mxu0 %v619
    %1703 = vmatprep.subr.bf16.mxu0 %v624
    %1704 = vmatpush1.bf16.msra.mxu0 %v623
    %1705 = vmatprep.subr.bf16.mxu0 %v628
    %1706 = vmatpush1.bf16.msra.mxu0 %v627
    %1707 = vmatprep.subr.bf16.mxu0 %v632
    %1708 = vmatpush1.bf16.msra.mxu0 %v631
    %1709 = vmatprep.subr.bf16.mxu0 %v636
    %1710 = vmatpush1.bf16.msra.mxu0 %v635
    %1711 = vmatprep.subr.bf16.mxu0 %v640
    %1712 = vmatpush1.bf16.msra.mxu0 %v639
    %1713 = vmatprep.subr.bf16.mxu0 %v644
    %1714 = vmatpush1.bf16.msra.mxu0 %v643
    %1715 = vmatprep.subr.bf16.mxu0 %v648
    %1716 = vmatpush1.bf16.msra.mxu0 %v647
    %1717 = vmatprep.subr.bf16.mxu0 0
    %1718 = vmatpush1.bf16.msra.mxu0 0
    %1719 = vmatprep.subr.bf16.mxu0 0
    %1720 = vmatpush1.bf16.msra.mxu0 0
    %1721 = vmatprep.subr.bf16.mxu0 0
    %1722 = vmatpush1.bf16.msra.mxu0 0
    %1723 = vmatprep.subr.bf16.mxu0 0
    %1724 = vmatpush1.bf16.msra.mxu0 0
    %1725 = vmatprep.subr.bf16.mxu0 0
    %1726 = vmatpush1.bf16.msra.mxu0 0
    %1727 = vmatprep.subr.bf16.mxu0 0
    %1728 = vmatpush1.bf16.msra.mxu0 0
    %1729 = vmatprep.subr.bf16.mxu0 0
    %1730 = vmatpush1.bf16.msra.mxu0 0
    %1731 = vmatprep.subr.bf16.mxu0 0
    %1732 = vmatpush1.bf16.msra.mxu0 0
    %1733 = vmatprep.mubr.bf16.mxu0 0
    %1734 = vmatmul.mubr.bf16.gmra.mrb[0].mxu0 %v1503
    %v1735 = vpop.f32.mrb[0].mxu0
    %v1736 = vadd.f32 0.0, %v1735
    %v1737 = vpop.f32.mrb[0].mxu0
    %v1738 = vadd.f32 0.0, %v1737
    %v1739 = vpop.f32.mrb[0].mxu0
    %v1740 = vpop.f32.mrb[0].mxu0
    %1741 = vdwg.mxu0
    %1742 = vmatprep.subr.bf16.mxu0 %v622
    %1743 = vmatpush1.bf16.msra.mxu0 %v621
    %1744 = vmatprep.subr.bf16.mxu0 %v626
    %1745 = vmatpush1.bf16.msra.mxu0 %v625
    %1746 = vmatprep.subr.bf16.mxu0 %v630
    %1747 = vmatpush1.bf16.msra.mxu0 %v629
    %1748 = vmatprep.subr.bf16.mxu0 %v634
    %1749 = vmatpush1.bf16.msra.mxu0 %v633
    %1750 = vmatprep.subr.bf16.mxu0 %v638
    %1751 = vmatpush1.bf16.msra.mxu0 %v637
    %1752 = vmatprep.subr.bf16.mxu0 %v642
    %1753 = vmatpush1.bf16.msra.mxu0 %v641
    %1754 = vmatprep.subr.bf16.mxu0 %v646
    %1755 = vmatpush1.bf16.msra.mxu0 %v645
    %1756 = vmatprep.subr.bf16.mxu0 %v650
    %1757 = vmatpush1.bf16.msra.mxu0 %v649
    %1758 = vmatprep.subr.bf16.mxu0 0
    %1759 = vmatpush1.bf16.msra.mxu0 0
    %1760 = vmatprep.subr.bf16.mxu0 0
    %1761 = vmatpush1.bf16.msra.mxu0 0
    %1762 = vmatprep.subr.bf16.mxu0 0
    %1763 = vmatpush1.bf16.msra.mxu0 0
    %1764 = vmatprep.subr.bf16.mxu0 0
    %1765 = vmatpush1.bf16.msra.mxu0 0
    %1766 = vmatprep.subr.bf16.mxu0 0
    %1767 = vmatpush1.bf16.msra.mxu0 0
    %1768 = vmatprep.subr.bf16.mxu0 0
    %1769 = vmatpush1.bf16.msra.mxu0 0
    %1770 = vmatprep.subr.bf16.mxu0 0
    %1771 = vmatpush1.bf16.msra.mxu0 0
    %1772 = vmatprep.subr.bf16.mxu0 0
    %1773 = vmatpush1.bf16.msra.mxu0 0
    %1774 = vmatprep.mubr.bf16.mxu0 0
    %1775 = vmatmul.mubr.bf16.gmra.mrb[0].mxu0 %v1503
    %v1776 = vpop.f32.mrb[0].mxu0
    %v1777 = vadd.f32 0.0, %v1776
    %v1778 = vpop.f32.mrb[0].mxu0
    %v1779 = vadd.f32 0.0, %v1778
    %v1780 = vpop.f32.mrb[0].mxu0
    %v1781 = vpop.f32.mrb[0].mxu0
    %1782 = vdwg.mxu0
    %v1783 = vadd.f32 %v1697, %v1736
    %v1784 = vadd.f32 %v1698, %v1738
    %v1785 = vadd.f32 %v1699, %v1777
    %v1786 = vadd.f32 %v1700, %v1779
    %v1787 = vadd.f32 %v1783, %v769
    %v1788 = vadd.f32 %v1784, %v770
    %v1789 = vadd.f32 %v1785, %v771
    %v1790 = vadd.f32 %v1786, %v772
    %v1791 = vxor.u32 %v1787, 2147483648
    %v1792 = vmul.f32 %v1791, 1.442695
    %v1793 = vpow.pop %v1792
    %v1794 = vadd.f32 %v1793, 1.0
    %v1795 = vrcp.pop %v1794
    %v1796 = vmul.f32 1.0, %v1795
    %v1797 = vxor.u32 %v1788, 2147483648
    %v1798 = vmul.f32 %v1797, 1.442695
    %v1799 = vpow.pop %v1798
    %v1800 = vadd.f32 %v1799, 1.0
    %v1801 = vrcp.pop %v1800
    %v1802 = vmul.f32 1.0, %v1801
    %v1803 = vtanh.pop %v1789
    %v1804 = vxor.u32 %v1790, 2147483648
    %v1805 = vmul.f32 %v1804, 1.442695
    %v1806 = vpow.pop %v1805
    %v1807 = vadd.f32 %v1806, 1.0
    %v1808 = vrcp.pop %v1807
    %v1809 = vmul.f32 1.0, %v1808
    %v1810 = vmul.f32 %v1802, %v1500
    %v1811 = vmul.f32 %v1796, %v1803
    %v1812 = vadd.f32 %v1810, %v1811
    %v1813 = vtanh.pop %v1812
    %v1814 = vmul.f32 %v1809, %v1813
    %v1815 = vpack.c.bf16 %v1814, %v1814
    %v1816 = vpack.c.bf16 %v1696, %v1696
    %1817 = vmatprep.subr.bf16.mxu0 %v965
    %1818 = vmatpush1.bf16.msra.mxu0 %v964
    %1819 = vmatprep.subr.bf16.mxu0 %v969
    %1820 = vmatpush1.bf16.msra.mxu0 %v968
    %1821 = vmatprep.subr.bf16.mxu0 %v973
    %1822 = vmatpush1.bf16.msra.mxu0 %v972
    %1823 = vmatprep.subr.bf16.mxu0 %v977
    %1824 = vmatpush1.bf16.msra.mxu0 %v976
    %1825 = vmatprep.subr.bf16.mxu0 %v981
    %1826 = vmatpush1.bf16.msra.mxu0 %v980
    %1827 = vmatprep.subr.bf16.mxu0 %v985
    %1828 = vmatpush1.bf16.msra.mxu0 %v984
    %1829 = vmatprep.subr.bf16.mxu0 %v989
    %1830 = vmatpush1.bf16.msra.mxu0 %v988
    %1831 = vmatprep.subr.bf16.mxu0 %v993
    %1832 = vmatpush1.bf16.msra.mxu0 %v992
    %1833 = vmatprep.subr.bf16.mxu0 0
    %1834 = vmatpush1.bf16.msra.mxu0 0
    %1835 = vmatprep.subr.bf16.mxu0 0
    %1836 = vmatpush1.bf16.msra.mxu0 0
    %1837 = vmatprep.subr.bf16.mxu0 0
    %1838 = vmatpush1.bf16.msra.mxu0 0
    %1839 = vmatprep.subr.bf16.mxu0 0
    %1840 = vmatpush1.bf16.msra.mxu0 0
    %1841 = vmatprep.subr.bf16.mxu0 0
    %1842 = vmatpush1.bf16.msra.mxu0 0
    %1843 = vmatprep.subr.bf16.mxu0 0
    %1844 = vmatpush1.bf16.msra.mxu0 0
    %1845 = vmatprep.subr.bf16.mxu0 0
    %1846 = vmatpush1.bf16.msra.mxu0 0
    %1847 = vmatprep.subr.bf16.mxu0 0
    %1848 = vmatpush1.bf16.msra.mxu0 0
    %1849 = vmatprep.mubr.bf16.mxu0 0
    %1850 = vmatmul.mubr.bf16.gmra.mrb[0].mxu0 %v1816
    %v1851 = vpop.f32.mrb[0].mxu0
    %v1852 = vadd.f32 0.0, %v1851
    %v1853 = vpop.f32.mrb[0].mxu0
    %v1854 = vadd.f32 0.0, %v1853
    %v1855 = vpop.f32.mrb[0].mxu0
    %v1856 = vpop.f32.mrb[0].mxu0
    %1857 = vdwg.mxu0
    %1858 = vmatprep.subr.bf16.mxu0 %v967
    %1859 = vmatpush1.bf16.msra.mxu0 %v966
    %1860 = vmatprep.subr.bf16.mxu0 %v971
    %1861 = vmatpush1.bf16.msra.mxu0 %v970
    %1862 = vmatprep.subr.bf16.mxu0 %v975
    %1863 = vmatpush1.bf16.msra.mxu0 %v974
    %1864 = vmatprep.subr.bf16.mxu0 %v979
    %1865 = vmatpush1.bf16.msra.mxu0 %v978
    %1866 = vmatprep.subr.bf16.mxu0 %v983
    %1867 = vmatpush1.bf16.msra.mxu0 %v982
    %1868 = vmatprep.subr.bf16.mxu0 %v987
    %1869 = vmatpush1.bf16.msra.mxu0 %v986
    %1870 = vmatprep.subr.bf16.mxu0 %v991
    %1871 = vmatpush1.bf16.msra.mxu0 %v990
    %1872 = vmatprep.subr.bf16.mxu0 %v995
    %1873 = vmatpush1.bf16.msra.mxu0 %v994
    %1874 = vmatprep.subr.bf16.mxu0 0
    %1875 = vmatpush1.bf16.msra.mxu0 0
    %1876 = vmatprep.subr.bf16.mxu0 0
    %1877 = vmatpush1.bf16.msra.mxu0 0
    %1878 = vmatprep.subr.bf16.mxu0 0
    %1879 = vmatpush1.bf16.msra.mxu0 0
    %1880 = vmatprep.subr.bf16.mxu0 0
    %1881 = vmatpush1.bf16.msra.mxu0 0
    %1882 = vmatprep.subr.bf16.mxu0 0
    %1883 = vmatpush1.bf16.msra.mxu0 0
    %1884 = vmatprep.subr.bf16.mxu0 0
    %1885 = vmatpush1.bf16.msra.mxu0 0
    %1886 = vmatprep.subr.bf16.mxu0 0
    %1887 = vmatpush1.bf16.msra.mxu0 0
    %1888 = vmatprep.subr.bf16.mxu0 0
    %1889 = vmatpush1.bf16.msra.mxu0 0
    %1890 = vmatprep.mubr.bf16.mxu0 0
    %1891 = vmatmul.mubr.bf16.gmra.mrb[0].mxu0 %v1816
    %v1892 = vpop.f32.mrb[0].mxu0
    %v1893 = vadd.f32 0.0, %v1892
    %v1894 = vpop.f32.mrb[0].mxu0
    %v1895 = vadd.f32 0.0, %v1894
    %v1896 = vpop.f32.mrb[0].mxu0
    %v1897 = vpop.f32.mrb[0].mxu0
    %1898 = vdwg.mxu0
    %1899 = vmatprep.subr.bf16.mxu0 %v1207
    %1900 = vmatpush1.bf16.msra.mxu0 %v1206
    %1901 = vmatprep.subr.bf16.mxu0 %v1211
    %1902 = vmatpush1.bf16.msra.mxu0 %v1210
    %1903 = vmatprep.subr.bf16.mxu0 %v1215
    %1904 = vmatpush1.bf16.msra.mxu0 %v1214
    %1905 = vmatprep.subr.bf16.mxu0 %v1219
    %1906 = vmatpush1.bf16.msra.mxu0 %v1218
    %1907 = vmatprep.subr.bf16.mxu0 %v1223
    %1908 = vmatpush1.bf16.msra.mxu0 %v1222
    %1909 = vmatprep.subr.bf16.mxu0 %v1227
    %1910 = vmatpush1.bf16.msra.mxu0 %v1226
    %1911 = vmatprep.subr.bf16.mxu0 %v1231
    %1912 = vmatpush1.bf16.msra.mxu0 %v1230
    %1913 = vmatprep.subr.bf16.mxu0 %v1235
    %1914 = vmatpush1.bf16.msra.mxu0 %v1234
    %1915 = vmatprep.subr.bf16.mxu0 0
    %1916 = vmatpush1.bf16.msra.mxu0 0
    %1917 = vmatprep.subr.bf16.mxu0 0
    %1918 = vmatpush1.bf16.msra.mxu0 0
    %1919 = vmatprep.subr.bf16.mxu0 0
    %1920 = vmatpush1.bf16.msra.mxu0 0
    %1921 = vmatprep.subr.bf16.mxu0 0
    %1922 = vmatpush1.bf16.msra.mxu0 0
    %1923 = vmatprep.subr.bf16.mxu0 0
    %1924 = vmatpush1.bf16.msra.mxu0 0
    %1925 = vmatprep.subr.bf16.mxu0 0
    %1926 = vmatpush1.bf16.msra.mxu0 0
    %1927 = vmatprep.subr.bf16.mxu0 0
    %1928 = vmatpush1.bf16.msra.mxu0 0
    %1929 = vmatprep.subr.bf16.mxu0 0
    %1930 = vmatpush1.bf16.msra.mxu0 0
    %1931 = vmatprep.mubr.bf16.mxu0 0
    %1932 = vmatmul.mubr.bf16.gmra.mrb[0].mxu0 %v1815
    %v1933 = vpop.f32.mrb[0].mxu0
    %v1934 = vadd.f32 %v1852, %v1933
    %v1935 = vpop.f32.mrb[0].mxu0
    %v1936 = vadd.f32 %v1854, %v1935
    %v1937 = vpop.f32.mrb[0].mxu0
    %v1938 = vpop.f32.mrb[0].mxu0
    %1939 = vdwg.mxu0
    %1940 = vmatprep.subr.bf16.mxu0 %v1209
    %1941 = vmatpush1.bf16.msra.mxu0 %v1208
    %1942 = vmatprep.subr.bf16.mxu0 %v1213
    %1943 = vmatpush1.bf16.msra.mxu0 %v1212
    %1944 = vmatprep.subr.bf16.mxu0 %v1217
    %1945 = vmatpush1.bf16.msra.mxu0 %v1216
    %1946 = vmatprep.subr.bf16.mxu0 %v1221
    %1947 = vmatpush1.bf16.msra.mxu0 %v1220
    %1948 = vmatprep.subr.bf16.mxu0 %v1225
    %1949 = vmatpush1.bf16.msra.mxu0 %v1224
    %1950 = vmatprep.subr.bf16.mxu0 %v1229
    %1951 = vmatpush1.bf16.msra.mxu0 %v1228
    %1952 = vmatprep.subr.bf16.mxu0 %v1233
    %1953 = vmatpush1.bf16.msra.mxu0 %v1232
    %1954 = vmatprep.subr.bf16.mxu0 %v1237
    %1955 = vmatpush1.bf16.msra.mxu0 %v1236
    %1956 = vmatprep.subr.bf16.mxu0 0
    %1957 = vmatpush1.bf16.msra.mxu0 0
    %1958 = vmatprep.subr.bf16.mxu0 0
    %1959 = vmatpush1.bf16.msra.mxu0 0
    %1960 = vmatprep.subr.bf16.mxu0 0
    %1961 = vmatpush1.bf16.msra.mxu0 0
    %1962 = vmatprep.subr.bf16.mxu0 0
    %1963 = vmatpush1.bf16.msra.mxu0 0
    %1964 = vmatprep.subr.bf16.mxu0 0
    %1965 = vmatpush1.bf16.msra.mxu0 0
    %1966 = vmatprep.subr.bf16.mxu0 0
    %1967 = vmatpush1.bf16.msra.mxu0 0
    %1968 = vmatprep.subr.bf16.mxu0 0
    %1969 = vmatpush1.bf16.msra.mxu0 0
    %1970 = vmatprep.subr.bf16.mxu0 0
    %1971 = vmatpush1.bf16.msra.mxu0 0
    %1972 = vmatprep.mubr.bf16.mxu0 0
    %1973 = vmatmul.mubr.bf16.gmra.mrb[0].mxu0 %v1815
    %v1974 = vpop.f32.mrb[0].mxu0
    %v1975 = vadd.f32 %v1893, %v1974
    %v1976 = vpop.f32.mrb[0].mxu0
    %v1977 = vadd.f32 %v1895, %v1976
    %v1978 = vpop.f32.mrb[0].mxu0
    %v1979 = vpop.f32.mrb[0].mxu0
    %1980 = vdwg.mxu0
    %v1981 = vadd.f32 %v1934, %v1353
    %v1982 = vadd.f32 %v1936, %v1354
    %v1983 = vadd.f32 %v1975, %v1355
    %v1984 = vadd.f32 %v1977, %v1356
    %v1985 = vxor.u32 %v1981, 2147483648
    %v1986 = vmul.f32 %v1985, 1.442695
    %v1987 = vpow.pop %v1986
    %v1988 = vadd.f32 %v1987, 1.0
    %v1989 = vrcp.pop %v1988
    %v1990 = vmul.f32 1.0, %v1989
    %v1991 = vxor.u32 %v1982, 2147483648
    %v1992 = vmul.f32 %v1991, 1.442695
    %v1993 = vpow.pop %v1992
    %v1994 = vadd.f32 %v1993, 1.0
    %v1995 = vrcp.pop %v1994
    %v1996 = vmul.f32 1.0, %v1995
    %v1997 = vtanh.pop %v1983
    %v1998 = vxor.u32 %v1984, 2147483648
    %v1999 = vmul.f32 %v1998, 1.442695
    %v2000 = vpow.pop %v1999
    %v2001 = vadd.f32 %v2000, 1.0
    %v2002 = vrcp.pop %v2001
    %v2003 = vmul.f32 1.0, %v2002
    %v2004 = vmul.f32 %v1996, %v1694
    %v2005 = vmul.f32 %v1990, %v1997
    %v2006 = vadd.f32 %v2004, %v2005
    %v2007 = vtanh.pop %v2006
    %v2008 = vmul.f32 %v2003, %v2007
    %v2009 = vld [vmem:[#allocation3 + $0x60] sm:$0xff]
    %v2010 = vld [vmem:[#allocation3 + $0x68] sm:$0xff]
    %v2011 = vld [vmem:[#allocation3 + $0x70] sm:$0xff]
    %v2012 = vld [vmem:[#allocation3 + $0x78] sm:$0xff]
    %2013 = vmatprep.subr.bf16.mxu0 %v620
    %2014 = vmatpush1.bf16.msra.mxu0 %v619
    %2015 = vmatprep.subr.bf16.mxu0 %v624
    %2016 = vmatpush1.bf16.msra.mxu0 %v623
    %2017 = vmatprep.subr.bf16.mxu0 %v628
    %2018 = vmatpush1.bf16.msra.mxu0 %v627
    %2019 = vmatprep.subr.bf16.mxu0 %v632
    %2020 = vmatpush1.bf16.msra.mxu0 %v631
    %2021 = vmatprep.subr.bf16.mxu0 %v636
    %2022 = vmatpush1.bf16.msra.mxu0 %v635
    %2023 = vmatprep.subr.bf16.mxu0 %v640
    %2024 = vmatpush1.bf16.msra.mxu0 %v639
    %2025 = vmatprep.subr.bf16.mxu0 %v644
    %2026 = vmatpush1.bf16.msra.mxu0 %v643
    %2027 = vmatprep.subr.bf16.mxu0 %v648
    %2028 = vmatpush1.bf16.msra.mxu0 %v647
    %2029 = vmatprep.subr.bf16.mxu0 0
    %2030 = vmatpush1.bf16.msra.mxu0 0
    %2031 = vmatprep.subr.bf16.mxu0 0
    %2032 = vmatpush1.bf16.msra.mxu0 0
    %2033 = vmatprep.subr.bf16.mxu0 0
    %2034 = vmatpush1.bf16.msra.mxu0 0
    %2035 = vmatprep.subr.bf16.mxu0 0
    %2036 = vmatpush1.bf16.msra.mxu0 0
    %2037 = vmatprep.subr.bf16.mxu0 0
    %2038 = vmatpush1.bf16.msra.mxu0 0
    %2039 = vmatprep.subr.bf16.mxu0 0
    %2040 = vmatpush1.bf16.msra.mxu0 0
    %2041 = vmatprep.subr.bf16.mxu0 0
    %2042 = vmatpush1.bf16.msra.mxu0 0
    %2043 = vmatprep.subr.bf16.mxu0 0
    %2044 = vmatpush1.bf16.msra.mxu0 0
    %2045 = vmatprep.mubr.bf16.mxu0 0
    %2046 = vmatmul.mubr.bf16.gmra.mrb[0].mxu0 %v1815
    %v2047 = vpop.f32.mrb[0].mxu0
    %v2048 = vadd.f32 0.0, %v2047
    %v2049 = vpop.f32.mrb[0].mxu0
    %v2050 = vadd.f32 0.0, %v2049
    %v2051 = vpop.f32.mrb[0].mxu0
    %v2052 = vpop.f32.mrb[0].mxu0
    %2053 = vdwg.mxu0
    %2054 = vmatprep.subr.bf16.mxu0 %v622
    %2055 = vmatpush1.bf16.msra.mxu0 %v621
    %2056 = vmatprep.subr.bf16.mxu0 %v626
    %2057 = vmatpush1.bf16.msra.mxu0 %v625
    %2058 = vmatprep.subr.bf16.mxu0 %v630
    %2059 = vmatpush1.bf16.msra.mxu0 %v629
    %2060 = vmatprep.subr.bf16.mxu0 %v634
    %2061 = vmatpush1.bf16.msra.mxu0 %v633
    %2062 = vmatprep.subr.bf16.mxu0 %v638
    %2063 = vmatpush1.bf16.msra.mxu0 %v637
    %2064 = vmatprep.subr.bf16.mxu0 %v642
    %2065 = vmatpush1.bf16.msra.mxu0 %v641
    %2066 = vmatprep.subr.bf16.mxu0 %v646
    %2067 = vmatpush1.bf16.msra.mxu0 %v645
    %2068 = vmatprep.subr.bf16.mxu0 %v650
    %2069 = vmatpush1.bf16.msra.mxu0 %v649
    %2070 = vmatprep.subr.bf16.mxu0 0
    %2071 = vmatpush1.bf16.msra.mxu0 0
    %2072 = vmatprep.subr.bf16.mxu0 0
    %2073 = vmatpush1.bf16.msra.mxu0 0
    %2074 = vmatprep.subr.bf16.mxu0 0
    %2075 = vmatpush1.bf16.msra.mxu0 0
    %2076 = vmatprep.subr.bf16.mxu0 0
    %2077 = vmatpush1.bf16.msra.mxu0 0
    %2078 = vmatprep.subr.bf16.mxu0 0
    %2079 = vmatpush1.bf16.msra.mxu0 0
    %2080 = vmatprep.subr.bf16.mxu0 0
    %2081 = vmatpush1.bf16.msra.mxu0 0
    %2082 = vmatprep.subr.bf16.mxu0 0
    %2083 = vmatpush1.bf16.msra.mxu0 0
    %2084 = vmatprep.subr.bf16.mxu0 0
    %2085 = vmatpush1.bf16.msra.mxu0 0
    %2086 = vmatprep.mubr.bf16.mxu0 0
    %2087 = vmatmul.mubr.bf16.gmra.mrb[0].mxu0 %v1815
    %v2088 = vpop.f32.mrb[0].mxu0
    %v2089 = vadd.f32 0.0, %v2088
    %v2090 = vpop.f32.mrb[0].mxu0
    %v2091 = vadd.f32 0.0, %v2090
    %v2092 = vpop.f32.mrb[0].mxu0
    %v2093 = vpop.f32.mrb[0].mxu0
    %2094 = vdwg.mxu0
    %v2095 = vadd.f32 %v2009, %v2048
    %v2096 = vadd.f32 %v2010, %v2050
    %v2097 = vadd.f32 %v2011, %v2089
    %v2098 = vadd.f32 %v2012, %v2091
    %v2099 = vadd.f32 %v2095, %v769
    %v2100 = vadd.f32 %v2096, %v770
    %v2101 = vadd.f32 %v2097, %v771
    %v2102 = vadd.f32 %v2098, %v772
    %v2103 = vxor.u32 %v2099, 2147483648
    %v2104 = vmul.f32 %v2103, 1.442695
    %v2105 = vpow.pop %v2104
    %v2106 = vadd.f32 %v2105, 1.0
    %v2107 = vrcp.pop %v2106
    %v2108 = vmul.f32 1.0, %v2107
    %v2109 = vxor.u32 %v2100, 2147483648
    %v2110 = vmul.f32 %v2109, 1.442695
    %v2111 = vpow.pop %v2110
    %v2112 = vadd.f32 %v2111, 1.0
    %v2113 = vrcp.pop %v2112
    %v2114 = vmul.f32 1.0, %v2113
    %v2115 = vtanh.pop %v2101
    %v2116 = vxor.u32 %v2102, 2147483648
    %v2117 = vmul.f32 %v2116, 1.442695
    %v2118 = vpow.pop %v2117
    %v2119 = vadd.f32 %v2118, 1.0
    %v2120 = vrcp.pop %v2119
    %v2121 = vmul.f32 1.0, %v2120
    %v2122 = vmul.f32 %v2114, %v1812
    %v2123 = vmul.f32 %v2108, %v2115
    %v2124 = vadd.f32 %v2122, %v2123
    %v2125 = vtanh.pop %v2124
    %v2126 = vmul.f32 %v2121, %v2125
    %v2127 = vpack.c.bf16 %v2126, %v2126
    %v2128 = vpack.c.bf16 %v2008, %v2008
    %2129 = vmatprep.subr.bf16.mxu0 %v965
    %2130 = vmatpush1.bf16.msra.mxu0 %v964
    %2131 = vmatprep.subr.bf16.mxu0 %v969
    %2132 = vmatpush1.bf16.msra.mxu0 %v968
    %2133 = vmatprep.subr.bf16.mxu0 %v973
    %2134 = vmatpush1.bf16.msra.mxu0 %v972
    %2135 = vmatprep.subr.bf16.mxu0 %v977
    %2136 = vmatpush1.bf16.msra.mxu0 %v976
    %2137 = vmatprep.subr.bf16.mxu0 %v981
    %2138 = vmatpush1.bf16.msra.mxu0 %v980
    %2139 = vmatprep.subr.bf16.mxu0 %v985
    %2140 = vmatpush1.bf16.msra.mxu0 %v984
    %2141 = vmatprep.subr.bf16.mxu0 %v989
    %2142 = vmatpush1.bf16.msra.mxu0 %v988
    %2143 = vmatprep.subr.bf16.mxu0 %v993
    %2144 = vmatpush1.bf16.msra.mxu0 %v992
    %2145 = vmatprep.subr.bf16.mxu0 0
    %2146 = vmatpush1.bf16.msra.mxu0 0
    %2147 = vmatprep.subr.bf16.mxu0 0
    %2148 = vmatpush1.bf16.msra.mxu0 0
    %2149 = vmatprep.subr.bf16.mxu0 0
    %2150 = vmatpush1.bf16.msra.mxu0 0
    %2151 = vmatprep.subr.bf16.mxu0 0
    %2152 = vmatpush1.bf16.msra.mxu0 0
    %2153 = vmatprep.subr.bf16.mxu0 0
    %2154 = vmatpush1.bf16.msra.mxu0 0
    %2155 = vmatprep.subr.bf16.mxu0 0
    %2156 = vmatpush1.bf16.msra.mxu0 0
    %2157 = vmatprep.subr.bf16.mxu0 0
    %2158 = vmatpush1.bf16.msra.mxu0 0
    %2159 = vmatprep.subr.bf16.mxu0 0
    %2160 = vmatpush1.bf16.msra.mxu0 0
    %2161 = vmatprep.mubr.bf16.mxu0 0
    %2162 = vmatmul.mubr.bf16.gmra.mrb[0].mxu0 %v2128
    %v2163 = vpop.f32.mrb[0].mxu0
    %v2164 = vadd.f32 0.0, %v2163
    %v2165 = vpop.f32.mrb[0].mxu0
    %v2166 = vadd.f32 0.0, %v2165
    %v2167 = vpop.f32.mrb[0].mxu0
    %v2168 = vpop.f32.mrb[0].mxu0
    %2169 = vdwg.mxu0
    %2170 = vmatprep.subr.bf16.mxu0 %v967
    %2171 = vmatpush1.bf16.msra.mxu0 %v966
    %2172 = vmatprep.subr.bf16.mxu0 %v971
    %2173 = vmatpush1.bf16.msra.mxu0 %v970
    %2174 = vmatprep.subr.bf16.mxu0 %v975
    %2175 = vmatpush1.bf16.msra.mxu0 %v974
    %2176 = vmatprep.subr.bf16.mxu0 %v979
    %2177 = vmatpush1.bf16.msra.mxu0 %v978
    %2178 = vmatprep.subr.bf16.mxu0 %v983
    %2179 = vmatpush1.bf16.msra.mxu0 %v982
    %2180 = vmatprep.subr.bf16.mxu0 %v987
    %2181 = vmatpush1.bf16.msra.mxu0 %v986
    %2182 = vmatprep.subr.bf16.mxu0 %v991
    %2183 = vmatpush1.bf16.msra.mxu0 %v990
    %2184 = vmatprep.subr.bf16.mxu0 %v995
    %2185 = vmatpush1.bf16.msra.mxu0 %v994
    %2186 = vmatprep.subr.bf16.mxu0 0
    %2187 = vmatpush1.bf16.msra.mxu0 0
    %2188 = vmatprep.subr.bf16.mxu0 0
    %2189 = vmatpush1.bf16.msra.mxu0 0
    %2190 = vmatprep.subr.bf16.mxu0 0
    %2191 = vmatpush1.bf16.msra.mxu0 0
    %2192 = vmatprep.subr.bf16.mxu0 0
    %2193 = vmatpush1.bf16.msra.mxu0 0
    %2194 = vmatprep.subr.bf16.mxu0 0
    %2195 = vmatpush1.bf16.msra.mxu0 0
    %2196 = vmatprep.subr.bf16.mxu0 0
    %2197 = vmatpush1.bf16.msra.mxu0 0
    %2198 = vmatprep.subr.bf16.mxu0 0
    %2199 = vmatpush1.bf16.msra.mxu0 0
    %2200 = vmatprep.subr.bf16.mxu0 0
    %2201 = vmatpush1.bf16.msra.mxu0 0
    %2202 = vmatprep.mubr.bf16.mxu0 0
    %2203 = vmatmul.mubr.bf16.gmra.mrb[0].mxu0 %v2128
    %v2204 = vpop.f32.mrb[0].mxu0
    %v2205 = vadd.f32 0.0, %v2204
    %v2206 = vpop.f32.mrb[0].mxu0
    %v2207 = vadd.f32 0.0, %v2206
    %v2208 = vpop.f32.mrb[0].mxu0
    %v2209 = vpop.f32.mrb[0].mxu0
    %2210 = vdwg.mxu0
    %2211 = vmatprep.subr.bf16.mxu0 %v1207
    %2212 = vmatpush1.bf16.msra.mxu0 %v1206
    %2213 = vmatprep.subr.bf16.mxu0 %v1211
    %2214 = vmatpush1.bf16.msra.mxu0 %v1210
    %2215 = vmatprep.subr.bf16.mxu0 %v1215
    %2216 = vmatpush1.bf16.msra.mxu0 %v1214
    %2217 = vmatprep.subr.bf16.mxu0 %v1219
    %2218 = vmatpush1.bf16.msra.mxu0 %v1218
    %2219 = vmatprep.subr.bf16.mxu0 %v1223
    %2220 = vmatpush1.bf16.msra.mxu0 %v1222
    %2221 = vmatprep.subr.bf16.mxu0 %v1227
    %2222 = vmatpush1.bf16.msra.mxu0 %v1226
    %2223 = vmatprep.subr.bf16.mxu0 %v1231
    %2224 = vmatpush1.bf16.msra.mxu0 %v1230
    %2225 = vmatprep.subr.bf16.mxu0 %v1235
    %2226 = vmatpush1.bf16.msra.mxu0 %v1234
    %2227 = vmatprep.subr.bf16.mxu0 0
    %2228 = vmatpush1.bf16.msra.mxu0 0
    %2229 = vmatprep.subr.bf16.mxu0 0
    %2230 = vmatpush1.bf16.msra.mxu0 0
    %2231 = vmatprep.subr.bf16.mxu0 0
    %2232 = vmatpush1.bf16.msra.mxu0 0
    %2233 = vmatprep.subr.bf16.mxu0 0
    %2234 = vmatpush1.bf16.msra.mxu0 0
    %2235 = vmatprep.subr.bf16.mxu0 0
    %2236 = vmatpush1.bf16.msra.mxu0 0
    %2237 = vmatprep.subr.bf16.mxu0 0
    %2238 = vmatpush1.bf16.msra.mxu0 0
    %2239 = vmatprep.subr.bf16.mxu0 0
    %2240 = vmatpush1.bf16.msra.mxu0 0
    %2241 = vmatprep.subr.bf16.mxu0 0
    %2242 = vmatpush1.bf16.msra.mxu0 0
    %2243 = vmatprep.mubr.bf16.mxu0 0
    %2244 = vmatmul.mubr.bf16.gmra.mrb[0].mxu0 %v2127
    %v2245 = vpop.f32.mrb[0].mxu0
    %v2246 = vadd.f32 %v2164, %v2245
    %v2247 = vpop.f32.mrb[0].mxu0
    %v2248 = vadd.f32 %v2166, %v2247
    %v2249 = vpop.f32.mrb[0].mxu0
    %v2250 = vpop.f32.mrb[0].mxu0
    %2251 = vdwg.mxu0
    %2252 = vmatprep.subr.bf16.mxu0 %v1209
    %2253 = vmatpush1.bf16.msra.mxu0 %v1208
    %2254 = vmatprep.subr.bf16.mxu0 %v1213
    %2255 = vmatpush1.bf16.msra.mxu0 %v1212
    %2256 = vmatprep.subr.bf16.mxu0 %v1217
    %2257 = vmatpush1.bf16.msra.mxu0 %v1216
    %2258 = vmatprep.subr.bf16.mxu0 %v1221
    %2259 = vmatpush1.bf16.msra.mxu0 %v1220
    %2260 = vmatprep.subr.bf16.mxu0 %v1225
    %2261 = vmatpush1.bf16.msra.mxu0 %v1224
    %2262 = vmatprep.subr.bf16.mxu0 %v1229
    %2263 = vmatpush1.bf16.msra.mxu0 %v1228
    %2264 = vmatprep.subr.bf16.mxu0 %v1233
    %2265 = vmatpush1.bf16.msra.mxu0 %v1232
    %2266 = vmatprep.subr.bf16.mxu0 %v1237
    %2267 = vmatpush1.bf16.msra.mxu0 %v1236
    %2268 = vmatprep.subr.bf16.mxu0 0
    %2269 = vmatpush1.bf16.msra.mxu0 0
    %2270 = vmatprep.subr.bf16.mxu0 0
    %2271 = vmatpush1.bf16.msra.mxu0 0
    %2272 = vmatprep.subr.bf16.mxu0 0
    %2273 = vmatpush1.bf16.msra.mxu0 0
    %2274 = vmatprep.subr.bf16.mxu0 0
    %2275 = vmatpush1.bf16.msra.mxu0 0
    %2276 = vmatprep.subr.bf16.mxu0 0
    %2277 = vmatpush1.bf16.msra.mxu0 0
    %2278 = vmatprep.subr.bf16.mxu0 0
    %2279 = vmatpush1.bf16.msra.mxu0 0
    %2280 = vmatprep.subr.bf16.mxu0 0
    %2281 = vmatpush1.bf16.msra.mxu0 0
    %2282 = vmatprep.subr.bf16.mxu0 0
    %2283 = vmatpush1.bf16.msra.mxu0 0
    %2284 = vmatprep.mubr.bf16.mxu0 0
    %2285 = vmatmul.mubr.bf16.gmra.mrb[0].mxu0 %v2127
    %v2286 = vpop.f32.mrb[0].mxu0
    %v2287 = vadd.f32 %v2205, %v2286
    %v2288 = vpop.f32.mrb[0].mxu0
    %v2289 = vadd.f32 %v2207, %v2288
    %v2290 = vpop.f32.mrb[0].mxu0
    %v2291 = vpop.f32.mrb[0].mxu0
    %2292 = vdwg.mxu0
    %v2293 = vadd.f32 %v2246, %v1353
    %v2294 = vadd.f32 %v2248, %v1354
    %v2295 = vadd.f32 %v2287, %v1355
    %v2296 = vadd.f32 %v2289, %v1356
    %v2297 = vxor.u32 %v2293, 2147483648
    %v2298 = vmul.f32 %v2297, 1.442695
    %v2299 = vpow.pop %v2298
    %v2300 = vadd.f32 %v2299, 1.0
    %v2301 = vrcp.pop %v2300
    %v2302 = vmul.f32 1.0, %v2301
    %v2303 = vxor.u32 %v2294, 2147483648
    %v2304 = vmul.f32 %v2303, 1.442695
    %v2305 = vpow.pop %v2304
    %v2306 = vadd.f32 %v2305, 1.0
    %v2307 = vrcp.pop %v2306
    %v2308 = vmul.f32 1.0, %v2307
    %v2309 = vtanh.pop %v2295
    %v2310 = vxor.u32 %v2296, 2147483648
    %v2311 = vmul.f32 %v2310, 1.442695
    %v2312 = vpow.pop %v2311
    %v2313 = vadd.f32 %v2312, 1.0
    %v2314 = vrcp.pop %v2313
    %v2315 = vmul.f32 1.0, %v2314
    %v2316 = vmul.f32 %v2308, %v2006
    %v2317 = vmul.f32 %v2302, %v2309
    %v2318 = vadd.f32 %v2316, %v2317
    %v2319 = vtanh.pop %v2318
    %v2320 = vmul.f32 %v2315, %v2319
    %v2321 = vld [vmem:[#allocation3 + $0x80] sm:$0xff]
    %v2322 = vld [vmem:[#allocation3 + $0x88] sm:$0xff]
    %v2323 = vld [vmem:[#allocation3 + $0x90] sm:$0xff]
    %v2324 = vld [vmem:[#allocation3 + $0x98] sm:$0xff]
    %2325 = vmatprep.subr.bf16.mxu0 %v620
    %2326 = vmatpush1.bf16.msra.mxu0 %v619
    %2327 = vmatprep.subr.bf16.mxu0 %v624
    %2328 = vmatpush1.bf16.msra.mxu0 %v623
    %2329 = vmatprep.subr.bf16.mxu0 %v628
    %2330 = vmatpush1.bf16.msra.mxu0 %v627
    %2331 = vmatprep.subr.bf16.mxu0 %v632
    %2332 = vmatpush1.bf16.msra.mxu0 %v631
    %2333 = vmatprep.subr.bf16.mxu0 %v636
    %2334 = vmatpush1.bf16.msra.mxu0 %v635
    %2335 = vmatprep.subr.bf16.mxu0 %v640
    %2336 = vmatpush1.bf16.msra.mxu0 %v639
    %2337 = vmatprep.subr.bf16.mxu0 %v644
    %2338 = vmatpush1.bf16.msra.mxu0 %v643
    %2339 = vmatprep.subr.bf16.mxu0 %v648
    %2340 = vmatpush1.bf16.msra.mxu0 %v647
    %2341 = vmatprep.subr.bf16.mxu0 0
    %2342 = vmatpush1.bf16.msra.mxu0 0
    %2343 = vmatprep.subr.bf16.mxu0 0
    %2344 = vmatpush1.bf16.msra.mxu0 0
    %2345 = vmatprep.subr.bf16.mxu0 0
    %2346 = vmatpush1.bf16.msra.mxu0 0
    %2347 = vmatprep.subr.bf16.mxu0 0
    %2348 = vmatpush1.bf16.msra.mxu0 0
    %2349 = vmatprep.subr.bf16.mxu0 0
    %2350 = vmatpush1.bf16.msra.mxu0 0
    %2351 = vmatprep.subr.bf16.mxu0 0
    %2352 = vmatpush1.bf16.msra.mxu0 0
    %2353 = vmatprep.subr.bf16.mxu0 0
    %2354 = vmatpush1.bf16.msra.mxu0 0
    %2355 = vmatprep.subr.bf16.mxu0 0
    %2356 = vmatpush1.bf16.msra.mxu0 0
    %2357 = vmatprep.mubr.bf16.mxu0 0
    %2358 = vmatmul.mubr.bf16.gmra.mrb[0].mxu0 %v2127
    %v2359 = vpop.f32.mrb[0].mxu0
    %v2360 = vadd.f32 0.0, %v2359
    %v2361 = vpop.f32.mrb[0].mxu0
    %v2362 = vadd.f32 0.0, %v2361
    %v2363 = vpop.f32.mrb[0].mxu0
    %v2364 = vpop.f32.mrb[0].mxu0
    %2365 = vdwg.mxu0
    %2366 = vmatprep.subr.bf16.mxu0 %v622
    %2367 = vmatpush1.bf16.msra.mxu0 %v621
    %2368 = vmatprep.subr.bf16.mxu0 %v626
    %2369 = vmatpush1.bf16.msra.mxu0 %v625
    %2370 = vmatprep.subr.bf16.mxu0 %v630
    %2371 = vmatpush1.bf16.msra.mxu0 %v629
    %2372 = vmatprep.subr.bf16.mxu0 %v634
    %2373 = vmatpush1.bf16.msra.mxu0 %v633
    %2374 = vmatprep.subr.bf16.mxu0 %v638
    %2375 = vmatpush1.bf16.msra.mxu0 %v637
    %2376 = vmatprep.subr.bf16.mxu0 %v642
    %2377 = vmatpush1.bf16.msra.mxu0 %v641
    %2378 = vmatprep.subr.bf16.mxu0 %v646
    %2379 = vmatpush1.bf16.msra.mxu0 %v645
    %2380 = vmatprep.subr.bf16.mxu0 %v650
    %2381 = vmatpush1.bf16.msra.mxu0 %v649
    %2382 = vmatprep.subr.bf16.mxu0 0
    %2383 = vmatpush1.bf16.msra.mxu0 0
    %2384 = vmatprep.subr.bf16.mxu0 0
    %2385 = vmatpush1.bf16.msra.mxu0 0
    %2386 = vmatprep.subr.bf16.mxu0 0
    %2387 = vmatpush1.bf16.msra.mxu0 0
    %2388 = vmatprep.subr.bf16.mxu0 0
    %2389 = vmatpush1.bf16.msra.mxu0 0
    %2390 = vmatprep.subr.bf16.mxu0 0
    %2391 = vmatpush1.bf16.msra.mxu0 0
    %2392 = vmatprep.subr.bf16.mxu0 0
    %2393 = vmatpush1.bf16.msra.mxu0 0
    %2394 = vmatprep.subr.bf16.mxu0 0
    %2395 = vmatpush1.bf16.msra.mxu0 0
    %2396 = vmatprep.subr.bf16.mxu0 0
    %2397 = vmatpush1.bf16.msra.mxu0 0
    %2398 = vmatprep.mubr.bf16.mxu0 0
    %2399 = vmatmul.mubr.bf16.gmra.mrb[0].mxu0 %v2127
    %v2400 = vpop.f32.mrb[0].mxu0
    %v2401 = vadd.f32 0.0, %v2400
    %v2402 = vpop.f32.mrb[0].mxu0
    %v2403 = vadd.f32 0.0, %v2402
    %v2404 = vpop.f32.mrb[0].mxu0
    %v2405 = vpop.f32.mrb[0].mxu0
    %2406 = vdwg.mxu0
    %v2407 = vadd.f32 %v2321, %v2360
    %v2408 = vadd.f32 %v2322, %v2362
    %v2409 = vadd.f32 %v2323, %v2401
    %v2410 = vadd.f32 %v2324, %v2403
    %v2411 = vadd.f32 %v2407, %v769
    %v2412 = vadd.f32 %v2408, %v770
    %v2413 = vadd.f32 %v2409, %v771
    %v2414 = vadd.f32 %v2410, %v772
    %v2415 = vxor.u32 %v2411, 2147483648
    %v2416 = vmul.f32 %v2415, 1.442695
    %v2417 = vpow.pop %v2416
    %v2418 = vadd.f32 %v2417, 1.0
    %v2419 = vrcp.pop %v2418
    %v2420 = vmul.f32 1.0, %v2419
    %v2421 = vxor.u32 %v2412, 2147483648
    %v2422 = vmul.f32 %v2421, 1.442695
    %v2423 = vpow.pop %v2422
    %v2424 = vadd.f32 %v2423, 1.0
    %v2425 = vrcp.pop %v2424
    %v2426 = vmul.f32 1.0, %v2425
    %v2427 = vtanh.pop %v2413
    %v2428 = vxor.u32 %v2414, 2147483648
    %v2429 = vmul.f32 %v2428, 1.442695
    %v2430 = vpow.pop %v2429
    %v2431 = vadd.f32 %v2430, 1.0
    %v2432 = vrcp.pop %v2431
    %v2433 = vmul.f32 1.0, %v2432
    %v2434 = vmul.f32 %v2426, %v2124
    %v2435 = vmul.f32 %v2420, %v2427
    %v2436 = vadd.f32 %v2434, %v2435
    %v2437 = vtanh.pop %v2436
    %v2438 = vmul.f32 %v2433, %v2437
    %v2439 = vpack.c.bf16 %v2438, %v2438
    %v2440 = vpack.c.bf16 %v2320, %v2320
    %2441 = vmatprep.subr.bf16.mxu0 %v965
    %2442 = vmatpush1.bf16.msra.mxu0 %v964
    %2443 = vmatprep.subr.bf16.mxu0 %v969
    %2444 = vmatpush1.bf16.msra.mxu0 %v968
    %2445 = vmatprep.subr.bf16.mxu0 %v973
    %2446 = vmatpush1.bf16.msra.mxu0 %v972
    %2447 = vmatprep.subr.bf16.mxu0 %v977
    %2448 = vmatpush1.bf16.msra.mxu0 %v976
    %2449 = vmatprep.subr.bf16.mxu0 %v981
    %2450 = vmatpush1.bf16.msra.mxu0 %v980
    %2451 = vmatprep.subr.bf16.mxu0 %v985
    %2452 = vmatpush1.bf16.msra.mxu0 %v984
    %2453 = vmatprep.subr.bf16.mxu0 %v989
    %2454 = vmatpush1.bf16.msra.mxu0 %v988
    %2455 = vmatprep.subr.bf16.mxu0 %v993
    %2456 = vmatpush1.bf16.msra.mxu0 %v992
    %2457 = vmatprep.subr.bf16.mxu0 0
    %2458 = vmatpush1.bf16.msra.mxu0 0
    %2459 = vmatprep.subr.bf16.mxu0 0
    %2460 = vmatpush1.bf16.msra.mxu0 0
    %2461 = vmatprep.subr.bf16.mxu0 0
    %2462 = vmatpush1.bf16.msra.mxu0 0
    %2463 = vmatprep.subr.bf16.mxu0 0
    %2464 = vmatpush1.bf16.msra.mxu0 0
    %2465 = vmatprep.subr.bf16.mxu0 0
    %2466 = vmatpush1.bf16.msra.mxu0 0
    %2467 = vmatprep.subr.bf16.mxu0 0
    %2468 = vmatpush1.bf16.msra.mxu0 0
    %2469 = vmatprep.subr.bf16.mxu0 0
    %2470 = vmatpush1.bf16.msra.mxu0 0
    %2471 = vmatprep.subr.bf16.mxu0 0
    %2472 = vmatpush1.bf16.msra.mxu0 0
    %2473 = vmatprep.mubr.bf16.mxu0 0
    %2474 = vmatmul.mubr.bf16.gmra.mrb[0].mxu0 %v2440
    %v2475 = vpop.f32.mrb[0].mxu0
    %v2476 = vadd.f32 0.0, %v2475
    %v2477 = vpop.f32.mrb[0].mxu0
    %v2478 = vadd.f32 0.0, %v2477
    %v2479 = vpop.f32.mrb[0].mxu0
    %v2480 = vpop.f32.mrb[0].mxu0
    %2481 = vdwg.mxu0
    %2482 = vmatprep.subr.bf16.mxu0 %v967
    %2483 = vmatpush1.bf16.msra.mxu0 %v966
    %2484 = vmatprep.subr.bf16.mxu0 %v971
    %2485 = vmatpush1.bf16.msra.mxu0 %v970
    %2486 = vmatprep.subr.bf16.mxu0 %v975
    %2487 = vmatpush1.bf16.msra.mxu0 %v974
    %2488 = vmatprep.subr.bf16.mxu0 %v979
    %2489 = vmatpush1.bf16.msra.mxu0 %v978
    %2490 = vmatprep.subr.bf16.mxu0 %v983
    %2491 = vmatpush1.bf16.msra.mxu0 %v982
    %2492 = vmatprep.subr.bf16.mxu0 %v987
    %2493 = vmatpush1.bf16.msra.mxu0 %v986
    %2494 = vmatprep.subr.bf16.mxu0 %v991
    %2495 = vmatpush1.bf16.msra.mxu0 %v990
    %2496 = vmatprep.subr.bf16.mxu0 %v995
    %2497 = vmatpush1.bf16.msra.mxu0 %v994
    %2498 = vmatprep.subr.bf16.mxu0 0
    %2499 = vmatpush1.bf16.msra.mxu0 0
    %2500 = vmatprep.subr.bf16.mxu0 0
    %2501 = vmatpush1.bf16.msra.mxu0 0
    %2502 = vmatprep.subr.bf16.mxu0 0
    %2503 = vmatpush1.bf16.msra.mxu0 0
    %2504 = vmatprep.subr.bf16.mxu0 0
    %2505 = vmatpush1.bf16.msra.mxu0 0
    %2506 = vmatprep.subr.bf16.mxu0 0
    %2507 = vmatpush1.bf16.msra.mxu0 0
    %2508 = vmatprep.subr.bf16.mxu0 0
    %2509 = vmatpush1.bf16.msra.mxu0 0
    %2510 = vmatprep.subr.bf16.mxu0 0
    %2511 = vmatpush1.bf16.msra.mxu0 0
    %2512 = vmatprep.subr.bf16.mxu0 0
    %2513 = vmatpush1.bf16.msra.mxu0 0
    %2514 = vmatprep.mubr.bf16.mxu0 0
    %2515 = vmatmul.mubr.bf16.gmra.mrb[0].mxu0 %v2440
    %v2516 = vpop.f32.mrb[0].mxu0
    %v2517 = vadd.f32 0.0, %v2516
    %v2518 = vpop.f32.mrb[0].mxu0
    %v2519 = vadd.f32 0.0, %v2518
    %v2520 = vpop.f32.mrb[0].mxu0
    %v2521 = vpop.f32.mrb[0].mxu0
    %2522 = vdwg.mxu0
    %2523 = vmatprep.subr.bf16.mxu0 %v1207
    %2524 = vmatpush1.bf16.msra.mxu0 %v1206
    %2525 = vmatprep.subr.bf16.mxu0 %v1211
    %2526 = vmatpush1.bf16.msra.mxu0 %v1210
    %2527 = vmatprep.subr.bf16.mxu0 %v1215
    %2528 = vmatpush1.bf16.msra.mxu0 %v1214
    %2529 = vmatprep.subr.bf16.mxu0 %v1219
    %2530 = vmatpush1.bf16.msra.mxu0 %v1218
    %2531 = vmatprep.subr.bf16.mxu0 %v1223
    %2532 = vmatpush1.bf16.msra.mxu0 %v1222
    %2533 = vmatprep.subr.bf16.mxu0 %v1227
    %2534 = vmatpush1.bf16.msra.mxu0 %v1226
    %2535 = vmatprep.subr.bf16.mxu0 %v1231
    %2536 = vmatpush1.bf16.msra.mxu0 %v1230
    %2537 = vmatprep.subr.bf16.mxu0 %v1235
    %2538 = vmatpush1.bf16.msra.mxu0 %v1234
    %2539 = vmatprep.subr.bf16.mxu0 0
    %2540 = vmatpush1.bf16.msra.mxu0 0
    %2541 = vmatprep.subr.bf16.mxu0 0
    %2542 = vmatpush1.bf16.msra.mxu0 0
    %2543 = vmatprep.subr.bf16.mxu0 0
    %2544 = vmatpush1.bf16.msra.mxu0 0
    %2545 = vmatprep.subr.bf16.mxu0 0
    %2546 = vmatpush1.bf16.msra.mxu0 0
    %2547 = vmatprep.subr.bf16.mxu0 0
    %2548 = vmatpush1.bf16.msra.mxu0 0
    %2549 = vmatprep.subr.bf16.mxu0 0
    %2550 = vmatpush1.bf16.msra.mxu0 0
    %2551 = vmatprep.subr.bf16.mxu0 0
    %2552 = vmatpush1.bf16.msra.mxu0 0
    %2553 = vmatprep.subr.bf16.mxu0 0
    %2554 = vmatpush1.bf16.msra.mxu0 0
    %2555 = vmatprep.mubr.bf16.mxu0 0
    %2556 = vmatmul.mubr.bf16.gmra.mrb[0].mxu0 %v2439
    %v2557 = vpop.f32.mrb[0].mxu0
    %v2558 = vadd.f32 %v2476, %v2557
    %v2559 = vpop.f32.mrb[0].mxu0
    %v2560 = vadd.f32 %v2478, %v2559
    %v2561 = vpop.f32.mrb[0].mxu0
    %v2562 = vpop.f32.mrb[0].mxu0
    %2563 = vdwg.mxu0
    %2564 = vmatprep.subr.bf16.mxu0 %v1209
    %2565 = vmatpush1.bf16.msra.mxu0 %v1208
    %2566 = vmatprep.subr.bf16.mxu0 %v1213
    %2567 = vmatpush1.bf16.msra.mxu0 %v1212
    %2568 = vmatprep.subr.bf16.mxu0 %v1217
    %2569 = vmatpush1.bf16.msra.mxu0 %v1216
    %2570 = vmatprep.subr.bf16.mxu0 %v1221
    %2571 = vmatpush1.bf16.msra.mxu0 %v1220
    %2572 = vmatprep.subr.bf16.mxu0 %v1225
    %2573 = vmatpush1.bf16.msra.mxu0 %v1224
    %2574 = vmatprep.subr.bf16.mxu0 %v1229
    %2575 = vmatpush1.bf16.msra.mxu0 %v1228
    %2576 = vmatprep.subr.bf16.mxu0 %v1233
    %2577 = vmatpush1.bf16.msra.mxu0 %v1232
    %2578 = vmatprep.subr.bf16.mxu0 %v1237
    %2579 = vmatpush1.bf16.msra.mxu0 %v1236
    %2580 = vmatprep.subr.bf16.mxu0 0
    %2581 = vmatpush1.bf16.msra.mxu0 0
    %2582 = vmatprep.subr.bf16.mxu0 0
    %2583 = vmatpush1.bf16.msra.mxu0 0
    %2584 = vmatprep.subr.bf16.mxu0 0
    %2585 = vmatpush1.bf16.msra.mxu0 0
    %2586 = vmatprep.subr.bf16.mxu0 0
    %2587 = vmatpush1.bf16.msra.mxu0 0
    %2588 = vmatprep.subr.bf16.mxu0 0
    %2589 = vmatpush1.bf16.msra.mxu0 0
    %2590 = vmatprep.subr.bf16.mxu0 0
    %2591 = vmatpush1.bf16.msra.mxu0 0
    %2592 = vmatprep.subr.bf16.mxu0 0
    %2593 = vmatpush1.bf16.msra.mxu0 0
    %2594 = vmatprep.subr.bf16.mxu0 0
    %2595 = vmatpush1.bf16.msra.mxu0 0
    %2596 = vmatprep.mubr.bf16.mxu0 0
    %2597 = vmatmul.mubr.bf16.gmra.mrb[0].mxu0 %v2439
    %v2598 = vpop.f32.mrb[0].mxu0
    %v2599 = vadd.f32 %v2517, %v2598
    %v2600 = vpop.f32.mrb[0].mxu0
    %v2601 = vadd.f32 %v2519, %v2600
    %v2602 = vpop.f32.mrb[0].mxu0
    %v2603 = vpop.f32.mrb[0].mxu0
    %2604 = vdwg.mxu0
    %v2605 = vadd.f32 %v2558, %v1353
    %v2606 = vadd.f32 %v2560, %v1354
    %v2607 = vadd.f32 %v2599, %v1355
    %v2608 = vadd.f32 %v2601, %v1356
    %v2609 = vxor.u32 %v2605, 2147483648
    %v2610 = vmul.f32 %v2609, 1.442695
    %v2611 = vpow.pop %v2610
    %v2612 = vadd.f32 %v2611, 1.0
    %v2613 = vrcp.pop %v2612
    %v2614 = vmul.f32 1.0, %v2613
    %v2615 = vxor.u32 %v2606, 2147483648
    %v2616 = vmul.f32 %v2615, 1.442695
    %v2617 = vpow.pop %v2616
    %v2618 = vadd.f32 %v2617, 1.0
    %v2619 = vrcp.pop %v2618
    %v2620 = vmul.f32 1.0, %v2619
    %v2621 = vtanh.pop %v2607
    %v2622 = vxor.u32 %v2608, 2147483648
    %v2623 = vmul.f32 %v2622, 1.442695
    %v2624 = vpow.pop %v2623
    %v2625 = vadd.f32 %v2624, 1.0
    %v2626 = vrcp.pop %v2625
    %v2627 = vmul.f32 1.0, %v2626
    %v2628 = vmul.f32 %v2620, %v2318
    %v2629 = vmul.f32 %v2614, %v2621
    %v2630 = vadd.f32 %v2628, %v2629
    %v2631 = vtanh.pop %v2630
    %v2632 = vmul.f32 %v2627, %v2631
    %v2633 = vld [vmem:[#allocation3 + $0xa0] sm:$0xff]
    %v2634 = vld [vmem:[#allocation3 + $0xa8] sm:$0xff]
    %v2635 = vld [vmem:[#allocation3 + $0xb0] sm:$0xff]
    %v2636 = vld [vmem:[#allocation3 + $0xb8] sm:$0xff]
    %2637 = vmatprep.subr.bf16.mxu0 %v620
    %2638 = vmatpush1.bf16.msra.mxu0 %v619
    %2639 = vmatprep.subr.bf16.mxu0 %v624
    %2640 = vmatpush1.bf16.msra.mxu0 %v623
    %2641 = vmatprep.subr.bf16.mxu0 %v628
    %2642 = vmatpush1.bf16.msra.mxu0 %v627
    %2643 = vmatprep.subr.bf16.mxu0 %v632
    %2644 = vmatpush1.bf16.msra.mxu0 %v631
    %2645 = vmatprep.subr.bf16.mxu0 %v636
    %2646 = vmatpush1.bf16.msra.mxu0 %v635
    %2647 = vmatprep.subr.bf16.mxu0 %v640
    %2648 = vmatpush1.bf16.msra.mxu0 %v639
    %2649 = vmatprep.subr.bf16.mxu0 %v644
    %2650 = vmatpush1.bf16.msra.mxu0 %v643
    %2651 = vmatprep.subr.bf16.mxu0 %v648
    %2652 = vmatpush1.bf16.msra.mxu0 %v647
    %2653 = vmatprep.subr.bf16.mxu0 0
    %2654 = vmatpush1.bf16.msra.mxu0 0
    %2655 = vmatprep.subr.bf16.mxu0 0
    %2656 = vmatpush1.bf16.msra.mxu0 0
    %2657 = vmatprep.subr.bf16.mxu0 0
    %2658 = vmatpush1.bf16.msra.mxu0 0
    %2659 = vmatprep.subr.bf16.mxu0 0
    %2660 = vmatpush1.bf16.msra.mxu0 0
    %2661 = vmatprep.subr.bf16.mxu0 0
    %2662 = vmatpush1.bf16.msra.mxu0 0
    %2663 = vmatprep.subr.bf16.mxu0 0
    %2664 = vmatpush1.bf16.msra.mxu0 0
    %2665 = vmatprep.subr.bf16.mxu0 0
    %2666 = vmatpush1.bf16.msra.mxu0 0
    %2667 = vmatprep.subr.bf16.mxu0 0
    %2668 = vmatpush1.bf16.msra.mxu0 0
    %2669 = vmatprep.mubr.bf16.mxu0 0
    %2670 = vmatmul.mubr.bf16.gmra.mrb[0].mxu0 %v2439
    %v2671 = vpop.f32.mrb[0].mxu0
    %v2672 = vadd.f32 0.0, %v2671
    %v2673 = vpop.f32.mrb[0].mxu0
    %v2674 = vadd.f32 0.0, %v2673
    %v2675 = vpop.f32.mrb[0].mxu0
    %v2676 = vpop.f32.mrb[0].mxu0
    %2677 = vdwg.mxu0
    %2678 = vmatprep.subr.bf16.mxu0 %v622
    %2679 = vmatpush1.bf16.msra.mxu0 %v621
    %2680 = vmatprep.subr.bf16.mxu0 %v626
    %2681 = vmatpush1.bf16.msra.mxu0 %v625
    %2682 = vmatprep.subr.bf16.mxu0 %v630
    %2683 = vmatpush1.bf16.msra.mxu0 %v629
    %2684 = vmatprep.subr.bf16.mxu0 %v634
    %2685 = vmatpush1.bf16.msra.mxu0 %v633
    %2686 = vmatprep.subr.bf16.mxu0 %v638
    %2687 = vmatpush1.bf16.msra.mxu0 %v637
    %2688 = vmatprep.subr.bf16.mxu0 %v642
    %2689 = vmatpush1.bf16.msra.mxu0 %v641
    %2690 = vmatprep.subr.bf16.mxu0 %v646
    %2691 = vmatpush1.bf16.msra.mxu0 %v645
    %2692 = vmatprep.subr.bf16.mxu0 %v650
    %2693 = vmatpush1.bf16.msra.mxu0 %v649
    %2694 = vmatprep.subr.bf16.mxu0 0
    %2695 = vmatpush1.bf16.msra.mxu0 0
    %2696 = vmatprep.subr.bf16.mxu0 0
    %2697 = vmatpush1.bf16.msra.mxu0 0
    %2698 = vmatprep.subr.bf16.mxu0 0
    %2699 = vmatpush1.bf16.msra.mxu0 0
    %2700 = vmatprep.subr.bf16.mxu0 0
    %2701 = vmatpush1.bf16.msra.mxu0 0
    %2702 = vmatprep.subr.bf16.mxu0 0
    %2703 = vmatpush1.bf16.msra.mxu0 0
    %2704 = vmatprep.subr.bf16.mxu0 0
    %2705 = vmatpush1.bf16.msra.mxu0 0
    %2706 = vmatprep.subr.bf16.mxu0 0
    %2707 = vmatpush1.bf16.msra.mxu0 0
    %2708 = vmatprep.subr.bf16.mxu0 0
    %2709 = vmatpush1.bf16.msra.mxu0 0
    %2710 = vmatprep.mubr.bf16.mxu0 0
    %2711 = vmatmul.mubr.bf16.gmra.mrb[0].mxu0 %v2439
    %v2712 = vpop.f32.mrb[0].mxu0
    %v2713 = vadd.f32 0.0, %v2712
    %v2714 = vpop.f32.mrb[0].mxu0
    %v2715 = vadd.f32 0.0, %v2714
    %v2716 = vpop.f32.mrb[0].mxu0
    %v2717 = vpop.f32.mrb[0].mxu0
    %2718 = vdwg.mxu0
    %v2719 = vadd.f32 %v2633, %v2672
    %v2720 = vadd.f32 %v2634, %v2674
    %v2721 = vadd.f32 %v2635, %v2713
    %v2722 = vadd.f32 %v2636, %v2715
    %v2723 = vadd.f32 %v2719, %v769
    %v2724 = vadd.f32 %v2720, %v770
    %v2725 = vadd.f32 %v2721, %v771
    %v2726 = vadd.f32 %v2722, %v772
    %v2727 = vxor.u32 %v2723, 2147483648
    %v2728 = vmul.f32 %v2727, 1.442695
    %v2729 = vpow.pop %v2728
    %v2730 = vadd.f32 %v2729, 1.0
    %v2731 = vrcp.pop %v2730
    %v2732 = vmul.f32 1.0, %v2731
    %v2733 = vxor.u32 %v2724, 2147483648
    %v2734 = vmul.f32 %v2733, 1.442695
    %v2735 = vpow.pop %v2734
    %v2736 = vadd.f32 %v2735, 1.0
    %v2737 = vrcp.pop %v2736
    %v2738 = vmul.f32 1.0, %v2737
    %v2739 = vtanh.pop %v2725
    %v2740 = vxor.u32 %v2726, 2147483648
    %v2741 = vmul.f32 %v2740, 1.442695
    %v2742 = vpow.pop %v2741
    %v2743 = vadd.f32 %v2742, 1.0
    %v2744 = vrcp.pop %v2743
    %v2745 = vmul.f32 1.0, %v2744
    %v2746 = vmul.f32 %v2738, %v2436
    %v2747 = vmul.f32 %v2732, %v2739
    %v2748 = vadd.f32 %v2746, %v2747
    %v2749 = vtanh.pop %v2748
    %v2750 = vmul.f32 %v2745, %v2749
    %v2751 = vpack.c.bf16 %v2750, %v2750
    %v2752 = vpack.c.bf16 %v2632, %v2632
    %2753 = vmatprep.subr.bf16.mxu0 %v965
    %2754 = vmatpush1.bf16.msra.mxu0 %v964
    %2755 = vmatprep.subr.bf16.mxu0 %v969
    %2756 = vmatpush1.bf16.msra.mxu0 %v968
    %2757 = vmatprep.subr.bf16.mxu0 %v973
    %2758 = vmatpush1.bf16.msra.mxu0 %v972
    %2759 = vmatprep.subr.bf16.mxu0 %v977
    %2760 = vmatpush1.bf16.msra.mxu0 %v976
    %2761 = vmatprep.subr.bf16.mxu0 %v981
    %2762 = vmatpush1.bf16.msra.mxu0 %v980
    %2763 = vmatprep.subr.bf16.mxu0 %v985
    %2764 = vmatpush1.bf16.msra.mxu0 %v984
    %2765 = vmatprep.subr.bf16.mxu0 %v989
    %2766 = vmatpush1.bf16.msra.mxu0 %v988
    %2767 = vmatprep.subr.bf16.mxu0 %v993
    %2768 = vmatpush1.bf16.msra.mxu0 %v992
    %2769 = vmatprep.subr.bf16.mxu0 0
    %2770 = vmatpush1.bf16.msra.mxu0 0
    %2771 = vmatprep.subr.bf16.mxu0 0
    %2772 = vmatpush1.bf16.msra.mxu0 0
    %2773 = vmatprep.subr.bf16.mxu0 0
    %2774 = vmatpush1.bf16.msra.mxu0 0
    %2775 = vmatprep.subr.bf16.mxu0 0
    %2776 = vmatpush1.bf16.msra.mxu0 0
    %2777 = vmatprep.subr.bf16.mxu0 0
    %2778 = vmatpush1.bf16.msra.mxu0 0
    %2779 = vmatprep.subr.bf16.mxu0 0
    %2780 = vmatpush1.bf16.msra.mxu0 0
    %2781 = vmatprep.subr.bf16.mxu0 0
    %2782 = vmatpush1.bf16.msra.mxu0 0
    %2783 = vmatprep.subr.bf16.mxu0 0
    %2784 = vmatpush1.bf16.msra.mxu0 0
    %2785 = vmatprep.mubr.bf16.mxu0 0
    %2786 = vmatmul.mubr.bf16.gmra.mrb[0].mxu0 %v2752
    %v2787 = vpop.f32.mrb[0].mxu0
    %v2788 = vadd.f32 0.0, %v2787
    %v2789 = vpop.f32.mrb[0].mxu0
    %v2790 = vadd.f32 0.0, %v2789
    %v2791 = vpop.f32.mrb[0].mxu0
    %v2792 = vpop.f32.mrb[0].mxu0
    %2793 = vdwg.mxu0
    %2794 = vmatprep.subr.bf16.mxu0 %v967
    %2795 = vmatpush1.bf16.msra.mxu0 %v966
    %2796 = vmatprep.subr.bf16.mxu0 %v971
    %2797 = vmatpush1.bf16.msra.mxu0 %v970
    %2798 = vmatprep.subr.bf16.mxu0 %v975
    %2799 = vmatpush1.bf16.msra.mxu0 %v974
    %2800 = vmatprep.subr.bf16.mxu0 %v979
    %2801 = vmatpush1.bf16.msra.mxu0 %v978
    %2802 = vmatprep.subr.bf16.mxu0 %v983
    %2803 = vmatpush1.bf16.msra.mxu0 %v982
    %2804 = vmatprep.subr.bf16.mxu0 %v987
    %2805 = vmatpush1.bf16.msra.mxu0 %v986
    %2806 = vmatprep.subr.bf16.mxu0 %v991
    %2807 = vmatpush1.bf16.msra.mxu0 %v990
    %2808 = vmatprep.subr.bf16.mxu0 %v995
    %2809 = vmatpush1.bf16.msra.mxu0 %v994
    %2810 = vmatprep.subr.bf16.mxu0 0
    %2811 = vmatpush1.bf16.msra.mxu0 0
    %2812 = vmatprep.subr.bf16.mxu0 0
    %2813 = vmatpush1.bf16.msra.mxu0 0
    %2814 = vmatprep.subr.bf16.mxu0 0
    %2815 = vmatpush1.bf16.msra.mxu0 0
    %2816 = vmatprep.subr.bf16.mxu0 0
    %2817 = vmatpush1.bf16.msra.mxu0 0
    %2818 = vmatprep.subr.bf16.mxu0 0
    %2819 = vmatpush1.bf16.msra.mxu0 0
    %2820 = vmatprep.subr.bf16.mxu0 0
    %2821 = vmatpush1.bf16.msra.mxu0 0
    %2822 = vmatprep.subr.bf16.mxu0 0
    %2823 = vmatpush1.bf16.msra.mxu0 0
    %2824 = vmatprep.subr.bf16.mxu0 0
    %2825 = vmatpush1.bf16.msra.mxu0 0
    %2826 = vmatprep.mubr.bf16.mxu0 0
    %2827 = vmatmul.mubr.bf16.gmra.mrb[0].mxu0 %v2752
    %v2828 = vpop.f32.mrb[0].mxu0
    %v2829 = vadd.f32 0.0, %v2828
    %v2830 = vpop.f32.mrb[0].mxu0
    %v2831 = vadd.f32 0.0, %v2830
    %v2832 = vpop.f32.mrb[0].mxu0
    %v2833 = vpop.f32.mrb[0].mxu0
    %2834 = vdwg.mxu0
    %2835 = vmatprep.subr.bf16.mxu0 %v1207
    %2836 = vmatpush1.bf16.msra.mxu0 %v1206
    %2837 = vmatprep.subr.bf16.mxu0 %v1211
    %2838 = vmatpush1.bf16.msra.mxu0 %v1210
    %2839 = vmatprep.subr.bf16.mxu0 %v1215
    %2840 = vmatpush1.bf16.msra.mxu0 %v1214
    %2841 = vmatprep.subr.bf16.mxu0 %v1219
    %2842 = vmatpush1.bf16.msra.mxu0 %v1218
    %2843 = vmatprep.subr.bf16.mxu0 %v1223
    %2844 = vmatpush1.bf16.msra.mxu0 %v1222
    %2845 = vmatprep.subr.bf16.mxu0 %v1227
    %2846 = vmatpush1.bf16.msra.mxu0 %v1226
    %2847 = vmatprep.subr.bf16.mxu0 %v1231
    %2848 = vmatpush1.bf16.msra.mxu0 %v1230
    %2849 = vmatprep.subr.bf16.mxu0 %v1235
    %2850 = vmatpush1.bf16.msra.mxu0 %v1234
    %2851 = vmatprep.subr.bf16.mxu0 0
    %2852 = vmatpush1.bf16.msra.mxu0 0
    %2853 = vmatprep.subr.bf16.mxu0 0
    %2854 = vmatpush1.bf16.msra.mxu0 0
    %2855 = vmatprep.subr.bf16.mxu0 0
    %2856 = vmatpush1.bf16.msra.mxu0 0
    %2857 = vmatprep.subr.bf16.mxu0 0
    %2858 = vmatpush1.bf16.msra.mxu0 0
    %2859 = vmatprep.subr.bf16.mxu0 0
    %2860 = vmatpush1.bf16.msra.mxu0 0
    %2861 = vmatprep.subr.bf16.mxu0 0
    %2862 = vmatpush1.bf16.msra.mxu0 0
    %2863 = vmatprep.subr.bf16.mxu0 0
    %2864 = vmatpush1.bf16.msra.mxu0 0
    %2865 = vmatprep.subr.bf16.mxu0 0
    %2866 = vmatpush1.bf16.msra.mxu0 0
    %2867 = vmatprep.mubr.bf16.mxu0 0
    %2868 = vmatmul.mubr.bf16.gmra.mrb[0].mxu0 %v2751
    %v2869 = vpop.f32.mrb[0].mxu0
    %v2870 = vadd.f32 %v2788, %v2869
    %v2871 = vpop.f32.mrb[0].mxu0
    %v2872 = vadd.f32 %v2790, %v2871
    %v2873 = vpop.f32.mrb[0].mxu0
    %v2874 = vpop.f32.mrb[0].mxu0
    %2875 = vdwg.mxu0
    %2876 = vmatprep.subr.bf16.mxu0 %v1209
    %2877 = vmatpush1.bf16.msra.mxu0 %v1208
    %2878 = vmatprep.subr.bf16.mxu0 %v1213
    %2879 = vmatpush1.bf16.msra.mxu0 %v1212
    %2880 = vmatprep.subr.bf16.mxu0 %v1217
    %2881 = vmatpush1.bf16.msra.mxu0 %v1216
    %2882 = vmatprep.subr.bf16.mxu0 %v1221
    %2883 = vmatpush1.bf16.msra.mxu0 %v1220
    %2884 = vmatprep.subr.bf16.mxu0 %v1225
    %2885 = vmatpush1.bf16.msra.mxu0 %v1224
    %2886 = vmatprep.subr.bf16.mxu0 %v1229
    %2887 = vmatpush1.bf16.msra.mxu0 %v1228
    %2888 = vmatprep.subr.bf16.mxu0 %v1233
    %2889 = vmatpush1.bf16.msra.mxu0 %v1232
    %2890 = vmatprep.subr.bf16.mxu0 %v1237
    %2891 = vmatpush1.bf16.msra.mxu0 %v1236
    %2892 = vmatprep.subr.bf16.mxu0 0
    %2893 = vmatpush1.bf16.msra.mxu0 0
    %2894 = vmatprep.subr.bf16.mxu0 0
    %2895 = vmatpush1.bf16.msra.mxu0 0
    %2896 = vmatprep.subr.bf16.mxu0 0
    %2897 = vmatpush1.bf16.msra.mxu0 0
    %2898 = vmatprep.subr.bf16.mxu0 0
    %2899 = vmatpush1.bf16.msra.mxu0 0
    %2900 = vmatprep.subr.bf16.mxu0 0
    %2901 = vmatpush1.bf16.msra.mxu0 0
    %2902 = vmatprep.subr.bf16.mxu0 0
    %2903 = vmatpush1.bf16.msra.mxu0 0
    %2904 = vmatprep.subr.bf16.mxu0 0
    %2905 = vmatpush1.bf16.msra.mxu0 0
    %2906 = vmatprep.subr.bf16.mxu0 0
    %2907 = vmatpush1.bf16.msra.mxu0 0
    %2908 = vmatprep.mubr.bf16.mxu0 0
    %2909 = vmatmul.mubr.bf16.gmra.mrb[0].mxu0 %v2751
    %v2910 = vpop.f32.mrb[0].mxu0
    %v2911 = vadd.f32 %v2829, %v2910
    %v2912 = vpop.f32.mrb[0].mxu0
    %v2913 = vadd.f32 %v2831, %v2912
    %v2914 = vpop.f32.mrb[0].mxu0
    %v2915 = vpop.f32.mrb[0].mxu0
    %2916 = vdwg.mxu0
    %v2917 = vadd.f32 %v2870, %v1353
    %v2918 = vadd.f32 %v2872, %v1354
    %v2919 = vadd.f32 %v2911, %v1355
    %v2920 = vadd.f32 %v2913, %v1356
    %v2921 = vxor.u32 %v2917, 2147483648
    %v2922 = vmul.f32 %v2921, 1.442695
    %v2923 = vpow.pop %v2922
    %v2924 = vadd.f32 %v2923, 1.0
    %v2925 = vrcp.pop %v2924
    %v2926 = vmul.f32 1.0, %v2925
    %v2927 = vxor.u32 %v2918, 2147483648
    %v2928 = vmul.f32 %v2927, 1.442695
    %v2929 = vpow.pop %v2928
    %v2930 = vadd.f32 %v2929, 1.0
    %v2931 = vrcp.pop %v2930
    %v2932 = vmul.f32 1.0, %v2931
    %v2933 = vtanh.pop %v2919
    %v2934 = vxor.u32 %v2920, 2147483648
    %v2935 = vmul.f32 %v2934, 1.442695
    %v2936 = vpow.pop %v2935
    %v2937 = vadd.f32 %v2936, 1.0
    %v2938 = vrcp.pop %v2937
    %v2939 = vmul.f32 1.0, %v2938
    %v2940 = vmul.f32 %v2932, %v2630
    %v2941 = vmul.f32 %v2926, %v2933
    %v2942 = vadd.f32 %v2940, %v2941
    %v2943 = vtanh.pop %v2942
    %v2944 = vmul.f32 %v2939, %v2943
    %s2945 = smul.u32 4, 4
    %s2946 = smul.u32 %s2945, 16
    %s2947 = smul.u32 %s2946, 4
    %s2948 = sshll.u32 %s2947, 4
    %2949 = dma.done [#allocation5], %s2948
    %v2950 = vld [vmem:[%s2] sm:$0xff]
    %v2951 = vld [vmem:[%s2 + $0x8] sm:$0xff]
    %v2952 = vld [vmem:[%s2 + $0x10] sm:$0xff]
    %v2953 = vld [vmem:[%s2 + $0x18] sm:$0xff]
    %v2954 = vld [vmem:[%s2 + $0x20] sm:$0xff]
    %v2955 = vld [vmem:[%s2 + $0x28] sm:$0xff]
    %v2956 = vld [vmem:[%s2 + $0x30] sm:$0xff]
    %v2957 = vld [vmem:[%s2 + $0x38] sm:$0xff]
    %2958 = vset.pattern.permute.xlu0 0
    %2959 = vperm.xlu0 %2958, %v2950
    %v2960 = vpop.permute.xlu0 %2959
    %2961 = vset.pattern.permute.xlu0 0
    %2962 = vperm.xlu0 %2961, %v2951
    %v2963 = vpop.permute.xlu0 %2962
    %2964 = vset.pattern.permute.xlu0 0
    %2965 = vperm.xlu0 %2964, %v2952
    %v2966 = vpop.permute.xlu0 %2965
    %2967 = vset.pattern.permute.xlu0 0
    %2968 = vperm.xlu0 %2967, %v2953
    %v2969 = vpop.permute.xlu0 %2968
    %2970 = vset.pattern.permute.xlu0 0
    %2971 = vperm.xlu0 %2970, %v2954
    %v2972 = vpop.permute.xlu0 %2971
    %2973 = vset.pattern.permute.xlu0 0
    %2974 = vperm.xlu0 %2973, %v2955
    %v2975 = vpop.permute.xlu0 %2974
    %2976 = vset.pattern.permute.xlu0 0
    %2977 = vperm.xlu0 %2976, %v2956
    %v2978 = vpop.permute.xlu0 %2977
    %2979 = vset.pattern.permute.xlu0 0
    %2980 = vperm.xlu0 %2979, %v2957
    %v2981 = vpop.permute.xlu0 %2980
    %vm2982 = vcmp.eq.s32.totalorder %v98, %v2960
    %vm2983 = vcmp.eq.s32.totalorder %v98, %v2963
    %vm2984 = vcmp.eq.s32.totalorder %v98, %v2966
    %vm2985 = vcmp.eq.s32.totalorder %v98, %v2969
    %vm2986 = vcmp.eq.s32.totalorder %v98, %v2972
    %vm2987 = vcmp.eq.s32.totalorder %v98, %v2975
    %vm2988 = vcmp.eq.s32.totalorder %v98, %v2978
    %vm2989 = vcmp.eq.s32.totalorder %v98, %v2981
    %v2990 = vsel %vm2982, 1, 0
    %v2991 = vsel %vm2983, 1, 0
    %v2992 = vsel %vm2984, 1, 0
    %v2993 = vsel %vm2985, 1, 0
    %v2994 = vsel %vm2986, 1, 0
    %v2995 = vsel %vm2987, 1, 0
    %v2996 = vsel %vm2988, 1, 0
    %v2997 = vsel %vm2989, 1, 0
    %v2998 = vcvt.s32.f32 %v2990
    %v2999 = vcvt.s32.f32 %v2991
    %v3000 = vcvt.s32.f32 %v2992
    %v3001 = vcvt.s32.f32 %v2993
    %v3002 = vcvt.s32.f32 %v2994
    %v3003 = vcvt.s32.f32 %v2995
    %v3004 = vcvt.s32.f32 %v2996
    %v3005 = vcvt.s32.f32 %v2997
    %v3006 = vpack.c.bf16 %v2999, %v2998
    %v3007 = vpack.c.bf16 %v3001, %v3000
    %v3008 = vpack.c.bf16 %v3003, %v3002
    %v3009 = vpack.c.bf16 %v3005, %v3004
    %v3010 = vld [vmem:[#allocation2] sm:$0xff]
    %v3011 = vld [vmem:[#allocation2 + $0x8] sm:$0xff]
    %v3012 = vld [vmem:[#allocation2 + $0x10] sm:$0xff]
    %v3013 = vld [vmem:[#allocation2 + $0x18] sm:$0xff]
    %v3014 = vld [vmem:[#allocation2 + $0x20] sm:$0xff]
    %v3015 = vld [vmem:[#allocation2 + $0x28] sm:$0xff]
    %v3016 = vld [vmem:[#allocation2 + $0x30] sm:$0xff]
    %v3017 = vld [vmem:[#allocation2 + $0x38] sm:$0xff]
    %v3018 = vld [vmem:[#allocation2 + $0x40] sm:$0xff]
    %v3019 = vld [vmem:[#allocation2 + $0x48] sm:$0xff]
    %v3020 = vld [vmem:[#allocation2 + $0x50] sm:$0xff]
    %v3021 = vld [vmem:[#allocation2 + $0x58] sm:$0xff]
    %v3022 = vld [vmem:[#allocation2 + $0x60] sm:$0xff]
    %v3023 = vld [vmem:[#allocation2 + $0x68] sm:$0xff]
    %v3024 = vld [vmem:[#allocation2 + $0x70] sm:$0xff]
    %v3025 = vld [vmem:[#allocation2 + $0x78] sm:$0xff]
    %v3026 = vld [vmem:[#allocation2 + $0x80] sm:$0xff]
    %v3027 = vld [vmem:[#allocation2 + $0x88] sm:$0xff]
    %v3028 = vld [vmem:[#allocation2 + $0x90] sm:$0xff]
    %v3029 = vld [vmem:[#allocation2 + $0x98] sm:$0xff]
    %v3030 = vld [vmem:[#allocation2 + $0xa0] sm:$0xff]
    %v3031 = vld [vmem:[#allocation2 + $0xa8] sm:$0xff]
    %v3032 = vld [vmem:[#allocation2 + $0xb0] sm:$0xff]
    %v3033 = vld [vmem:[#allocation2 + $0xb8] sm:$0xff]
    %v3034 = vld [vmem:[#allocation2 + $0xc0] sm:$0xff]
    %v3035 = vld [vmem:[#allocation2 + $0xc8] sm:$0xff]
    %v3036 = vld [vmem:[#allocation2 + $0xd0] sm:$0xff]
    %v3037 = vld [vmem:[#allocation2 + $0xd8] sm:$0xff]
    %v3038 = vld [vmem:[#allocation2 + $0xe0] sm:$0xff]
    %v3039 = vld [vmem:[#allocation2 + $0xe8] sm:$0xff]
    %v3040 = vld [vmem:[#allocation2 + $0xf0] sm:$0xff]
    %v3041 = vld [vmem:[#allocation2 + $0xf8] sm:$0xff]
    %3042 = vmatprep.subr.bf16.mxu0 %v3011
    %3043 = vmatpush1.bf16.msra.mxu0 %v3010
    %3044 = vmatprep.subr.bf16.mxu0 %v3015
    %3045 = vmatpush1.bf16.msra.mxu0 %v3014
    %3046 = vmatprep.subr.bf16.mxu0 %v3019
    %3047 = vmatpush1.bf16.msra.mxu0 %v3018
    %3048 = vmatprep.subr.bf16.mxu0 %v3023
    %3049 = vmatpush1.bf16.msra.mxu0 %v3022
    %3050 = vmatprep.subr.bf16.mxu0 %v3027
    %3051 = vmatpush1.bf16.msra.mxu0 %v3026
    %3052 = vmatprep.subr.bf16.mxu0 %v3031
    %3053 = vmatpush1.bf16.msra.mxu0 %v3030
    %3054 = vmatprep.subr.bf16.mxu0 %v3035
    %3055 = vmatpush1.bf16.msra.mxu0 %v3034
    %3056 = vmatprep.subr.bf16.mxu0 %v3039
    %3057 = vmatpush1.bf16.msra.mxu0 %v3038
    %3058 = vmatprep.subr.bf16.mxu0 0
    %3059 = vmatpush1.bf16.msra.mxu0 0
    %3060 = vmatprep.subr.bf16.mxu0 0
    %3061 = vmatpush1.bf16.msra.mxu0 0
    %3062 = vmatprep.subr.bf16.mxu0 0
    %3063 = vmatpush1.bf16.msra.mxu0 0
    %3064 = vmatprep.subr.bf16.mxu0 0
    %3065 = vmatpush1.bf16.msra.mxu0 0
    %3066 = vmatprep.subr.bf16.mxu0 0
    %3067 = vmatpush1.bf16.msra.mxu0 0
    %3068 = vmatprep.subr.bf16.mxu0 0
    %3069 = vmatpush1.bf16.msra.mxu0 0
    %3070 = vmatprep.subr.bf16.mxu0 0
    %3071 = vmatpush1.bf16.msra.mxu0 0
    %3072 = vmatprep.subr.bf16.mxu0 0
    %3073 = vmatpush1.bf16.msra.mxu0 0
    %3074 = vmatprep.mubr.bf16.mxu0 0
    %3075 = vmatmul.mubr.bf16.gmra.mrb[0].mxu0 %v3006
    %v3076 = vpop.f32.mrb[0].mxu0
    %v3077 = vadd.f32 0.0, %v3076
    %v3078 = vpop.f32.mrb[0].mxu0
    %v3079 = vadd.f32 0.0, %v3078
    %v3080 = vpop.f32.mrb[0].mxu0
    %v3081 = vadd.f32 0.0, %v3080
    %v3082 = vpop.f32.mrb[0].mxu0
    %v3083 = vadd.f32 0.0, %v3082
    %3084 = vmatprep.mubr.bf16.mxu0 0
    %3085 = vmatmul.mubr.bf16.gmra.mrb[0].mxu0 %v3007
    %v3086 = vpop.f32.mrb[0].mxu0
    %v3087 = vadd.f32 0.0, %v3086
    %v3088 = vpop.f32.mrb[0].mxu0
    %v3089 = vadd.f32 0.0, %v3088
    %v3090 = vpop.f32.mrb[0].mxu0
    %v3091 = vadd.f32 0.0, %v3090
    %v3092 = vpop.f32.mrb[0].mxu0
    %v3093 = vadd.f32 0.0, %v3092
    %3094 = vmatprep.mubr.bf16.mxu0 0
    %3095 = vmatmul.mubr.bf16.gmra.mrb[0].mxu0 %v3008
    %v3096 = vpop.f32.mrb[0].mxu0
    %v3097 = vadd.f32 0.0, %v3096
    %v3098 = vpop.f32.mrb[0].mxu0
    %v3099 = vadd.f32 0.0, %v3098
    %v3100 = vpop.f32.mrb[0].mxu0
    %v3101 = vadd.f32 0.0, %v3100
    %v3102 = vpop.f32.mrb[0].mxu0
    %v3103 = vadd.f32 0.0, %v3102
    %3104 = vmatprep.mubr.bf16.mxu0 0
    %3105 = vmatmul.mubr.bf16.gmra.mrb[0].mxu0 %v3009
    %v3106 = vpop.f32.mrb[0].mxu0
    %v3107 = vadd.f32 0.0, %v3106
    %v3108 = vpop.f32.mrb[0].mxu0
    %v3109 = vadd.f32 0.0, %v3108
    %v3110 = vpop.f32.mrb[0].mxu0
    %v3111 = vadd.f32 0.0, %v3110
    %v3112 = vpop.f32.mrb[0].mxu0
    %v3113 = vadd.f32 0.0, %v3112
    %3114 = vdwg.mxu0
    %3115 = vmatprep.subr.bf16.mxu0 %v3013
    %3116 = vmatpush1.bf16.msra.mxu0 %v3012
    %3117 = vmatprep.subr.bf16.mxu0 %v3017
    %3118 = vmatpush1.bf16.msra.mxu0 %v3016
    %3119 = vmatprep.subr.bf16.mxu0 %v3021
    %3120 = vmatpush1.bf16.msra.mxu0 %v3020
    %3121 = vmatprep.subr.bf16.mxu0 %v3025
    %3122 = vmatpush1.bf16.msra.mxu0 %v3024
    %3123 = vmatprep.subr.bf16.mxu0 %v3029
    %3124 = vmatpush1.bf16.msra.mxu0 %v3028
    %3125 = vmatprep.subr.bf16.mxu0 %v3033
    %3126 = vmatpush1.bf16.msra.mxu0 %v3032
    %3127 = vmatprep.subr.bf16.mxu0 %v3037
    %3128 = vmatpush1.bf16.msra.mxu0 %v3036
    %3129 = vmatprep.subr.bf16.mxu0 %v3041
    %3130 = vmatpush1.bf16.msra.mxu0 %v3040
    %3131 = vmatprep.subr.bf16.mxu0 0
    %3132 = vmatpush1.bf16.msra.mxu0 0
    %3133 = vmatprep.subr.bf16.mxu0 0
    %3134 = vmatpush1.bf16.msra.mxu0 0
    %3135 = vmatprep.subr.bf16.mxu0 0
    %3136 = vmatpush1.bf16.msra.mxu0 0
    %3137 = vmatprep.subr.bf16.mxu0 0
    %3138 = vmatpush1.bf16.msra.mxu0 0
    %3139 = vmatprep.subr.bf16.mxu0 0
    %3140 = vmatpush1.bf16.msra.mxu0 0
    %3141 = vmatprep.subr.bf16.mxu0 0
    %3142 = vmatpush1.bf16.msra.mxu0 0
    %3143 = vmatprep.subr.bf16.mxu0 0
    %3144 = vmatpush1.bf16.msra.mxu0 0
    %3145 = vmatprep.subr.bf16.mxu0 0
    %3146 = vmatpush1.bf16.msra.mxu0 0
    %3147 = vmatprep.mubr.bf16.mxu0 0
    %3148 = vmatmul.mubr.bf16.gmra.mrb[0].mxu0 %v3006
    %v3149 = vpop.f32.mrb[0].mxu0
    %v3150 = vadd.f32 0.0, %v3149
    %v3151 = vpop.f32.mrb[0].mxu0
    %v3152 = vadd.f32 0.0, %v3151
    %v3153 = vpop.f32.mrb[0].mxu0
    %v3154 = vadd.f32 0.0, %v3153
    %v3155 = vpop.f32.mrb[0].mxu0
    %v3156 = vadd.f32 0.0, %v3155
    %3157 = vmatprep.mubr.bf16.mxu0 0
    %3158 = vmatmul.mubr.bf16.gmra.mrb[0].mxu0 %v3007
    %v3159 = vpop.f32.mrb[0].mxu0
    %v3160 = vadd.f32 0.0, %v3159
    %v3161 = vpop.f32.mrb[0].mxu0
    %v3162 = vadd.f32 0.0, %v3161
    %v3163 = vpop.f32.mrb[0].mxu0
    %v3164 = vadd.f32 0.0, %v3163
    %v3165 = vpop.f32.mrb[0].mxu0
    %v3166 = vadd.f32 0.0, %v3165
    %3167 = vmatprep.mubr.bf16.mxu0 0
    %3168 = vmatmul.mubr.bf16.gmra.mrb[0].mxu0 %v3008
    %v3169 = vpop.f32.mrb[0].mxu0
    %v3170 = vadd.f32 0.0, %v3169
    %v3171 = vpop.f32.mrb[0].mxu0
    %v3172 = vadd.f32 0.0, %v3171
    %v3173 = vpop.f32.mrb[0].mxu0
    %v3174 = vadd.f32 0.0, %v3173
    %v3175 = vpop.f32.mrb[0].mxu0
    %v3176 = vadd.f32 0.0, %v3175
    %3177 = vmatprep.mubr.bf16.mxu0 0
    %3178 = vmatmul.mubr.bf16.gmra.mrb[0].mxu0 %v3009
    %v3179 = vpop.f32.mrb[0].mxu0
    %v3180 = vadd.f32 0.0, %v3179
    %v3181 = vpop.f32.mrb[0].mxu0
    %v3182 = vadd.f32 0.0, %v3181
    %v3183 = vpop.f32.mrb[0].mxu0
    %v3184 = vadd.f32 0.0, %v3183
    %v3185 = vpop.f32.mrb[0].mxu0
    %v3186 = vadd.f32 0.0, %v3185
    %3187 = vdwg.mxu0
    %3188 = vst [vmem:[#allocation4] sm:$0xff] %v3077
    %3189 = vst [vmem:[#allocation4 + $0x8] sm:$0xff] %v3079
    %3190 = vst [vmem:[#allocation4 + $0x10] sm:$0xff] %v3150
    %3191 = vst [vmem:[#allocation4 + $0x18] sm:$0xff] %v3152
    %3192 = vst [vmem:[#allocation4 + $0x20] sm:$0xff] %v3081
    %3193 = vst [vmem:[#allocation4 + $0x28] sm:$0xff] %v3083
    %3194 = vst [vmem:[#allocation4 + $0x30] sm:$0xff] %v3154
    %3195 = vst [vmem:[#allocation4 + $0x38] sm:$0xff] %v3156
    %3196 = vst [vmem:[#allocation4 + $0x40] sm:$0xff] %v3087
    %3197 = vst [vmem:[#allocation4 + $0x48] sm:$0xff] %v3089
    %3198 = vst [vmem:[#allocation4 + $0x50] sm:$0xff] %v3160
    %3199 = vst [vmem:[#allocation4 + $0x58] sm:$0xff] %v3162
    %3200 = vst [vmem:[#allocation4 + $0x60] sm:$0xff] %v3091
    %3201 = vst [vmem:[#allocation4 + $0x68] sm:$0xff] %v3093
    %3202 = vst [vmem:[#allocation4 + $0x70] sm:$0xff] %v3164
    %3203 = vst [vmem:[#allocation4 + $0x78] sm:$0xff] %v3166
    %3204 = vst [vmem:[#allocation4 + $0x80] sm:$0xff] %v3097
    %3205 = vst [vmem:[#allocation4 + $0x88] sm:$0xff] %v3099
    %3206 = vst [vmem:[#allocation4 + $0x90] sm:$0xff] %v3170
    %3207 = vst [vmem:[#allocation4 + $0x98] sm:$0xff] %v3172
    %3208 = vst [vmem:[#allocation4 + $0xa0] sm:$0xff] %v3101
    %3209 = vst [vmem:[#allocation4 + $0xa8] sm:$0xff] %v3103
    %3210 = vst [vmem:[#allocation4 + $0xb0] sm:$0xff] %v3174
    %3211 = vst [vmem:[#allocation4 + $0xb8] sm:$0xff] %v3176
    %3212 = vst [vmem:[#allocation4 + $0xc0] sm:$0xff] %v3107
    %3213 = vst [vmem:[#allocation4 + $0xc8] sm:$0xff] %v3109
    %3214 = vst [vmem:[#allocation4 + $0xd0] sm:$0xff] %v3180
    %3215 = vst [vmem:[#allocation4 + $0xd8] sm:$0xff] %v3182
    %3216 = vst [vmem:[#allocation4 + $0xe0] sm:$0xff] %v3111
    %3217 = vst [vmem:[#allocation4 + $0xe8] sm:$0xff] %v3113
    %3218 = vst [vmem:[#allocation4 + $0xf0] sm:$0xff] %v3184
    %3219 = vst [vmem:[#allocation4 + $0xf8] sm:$0xff] %v3186
    %3220 = vst [vmem:[#allocation13] sm:$0xff] 0.0
    %v3221 = vld [vmem:[#allocation4] sm:$0xff]
    %v3222 = vld [vmem:[#allocation4 + $0x8] sm:$0xff]
    %v3223 = vld [vmem:[#allocation4 + $0x10] sm:$0xff]
    %v3224 = vld [vmem:[#allocation4 + $0x18] sm:$0xff]
    %s3225 = scalar_lea.vmem [#allocation2], 512
    %v3226 = vld [vmem:[%s3225] sm:$0xff]
    %v3227 = vld [vmem:[%s3225 + $0x8] sm:$0xff]
    %v3228 = vld [vmem:[%s3225 + $0x10] sm:$0xff]
    %v3229 = vld [vmem:[%s3225 + $0x18] sm:$0xff]
    %v3230 = vld [vmem:[%s3225 + $0x20] sm:$0xff]
    %v3231 = vld [vmem:[%s3225 + $0x28] sm:$0xff]
    %v3232 = vld [vmem:[%s3225 + $0x30] sm:$0xff]
    %v3233 = vld [vmem:[%s3225 + $0x38] sm:$0xff]
    %v3234 = vld [vmem:[%s3225 + $0x40] sm:$0xff]
    %v3235 = vld [vmem:[%s3225 + $0x48] sm:$0xff]
    %v3236 = vld [vmem:[%s3225 + $0x50] sm:$0xff]
    %v3237 = vld [vmem:[%s3225 + $0x58] sm:$0xff]
    %v3238 = vld [vmem:[%s3225 + $0x60] sm:$0xff]
    %v3239 = vld [vmem:[%s3225 + $0x68] sm:$0xff]
    %v3240 = vld [vmem:[%s3225 + $0x70] sm:$0xff]
    %v3241 = vld [vmem:[%s3225 + $0x78] sm:$0xff]
    %v3242 = vld [vmem:[%s3225 + $0x80] sm:$0xff]
    %v3243 = vld [vmem:[%s3225 + $0x88] sm:$0xff]
    %v3244 = vld [vmem:[%s3225 + $0x90] sm:$0xff]
    %v3245 = vld [vmem:[%s3225 + $0x98] sm:$0xff]
    %v3246 = vld [vmem:[%s3225 + $0xa0] sm:$0xff]
    %v3247 = vld [vmem:[%s3225 + $0xa8] sm:$0xff]
    %v3248 = vld [vmem:[%s3225 + $0xb0] sm:$0xff]
    %v3249 = vld [vmem:[%s3225 + $0xb8] sm:$0xff]
    %v3250 = vld [vmem:[%s3225 + $0xc0] sm:$0xff]
    %v3251 = vld [vmem:[%s3225 + $0xc8] sm:$0xff]
    %v3252 = vld [vmem:[%s3225 + $0xd0] sm:$0xff]
    %v3253 = vld [vmem:[%s3225 + $0xd8] sm:$0xff]
    %v3254 = vld [vmem:[%s3225 + $0xe0] sm:$0xff]
    %v3255 = vld [vmem:[%s3225 + $0xe8] sm:$0xff]
    %v3256 = vld [vmem:[%s3225 + $0xf0] sm:$0xff]
    %v3257 = vld [vmem:[%s3225 + $0xf8] sm:$0xff]
    %3258 = vmatprep.subr.bf16.mxu0 %v3227
    %3259 = vmatpush1.bf16.msra.mxu0 %v3226
    %3260 = vmatprep.subr.bf16.mxu0 %v3231
    %3261 = vmatpush1.bf16.msra.mxu0 %v3230
    %3262 = vmatprep.subr.bf16.mxu0 %v3235
    %3263 = vmatpush1.bf16.msra.mxu0 %v3234
    %3264 = vmatprep.subr.bf16.mxu0 %v3239
    %3265 = vmatpush1.bf16.msra.mxu0 %v3238
    %3266 = vmatprep.subr.bf16.mxu0 %v3243
    %3267 = vmatpush1.bf16.msra.mxu0 %v3242
    %3268 = vmatprep.subr.bf16.mxu0 %v3247
    %3269 = vmatpush1.bf16.msra.mxu0 %v3246
    %3270 = vmatprep.subr.bf16.mxu0 %v3251
    %3271 = vmatpush1.bf16.msra.mxu0 %v3250
    %3272 = vmatprep.subr.bf16.mxu0 %v3255
    %3273 = vmatpush1.bf16.msra.mxu0 %v3254
    %3274 = vmatprep.subr.bf16.mxu0 0
    %3275 = vmatpush1.bf16.msra.mxu0 0
    %3276 = vmatprep.subr.bf16.mxu0 0
    %3277 = vmatpush1.bf16.msra.mxu0 0
    %3278 = vmatprep.subr.bf16.mxu0 0
    %3279 = vmatpush1.bf16.msra.mxu0 0
    %3280 = vmatprep.subr.bf16.mxu0 0
    %3281 = vmatpush1.bf16.msra.mxu0 0
    %3282 = vmatprep.subr.bf16.mxu0 0
    %3283 = vmatpush1.bf16.msra.mxu0 0
    %3284 = vmatprep.subr.bf16.mxu0 0
    %3285 = vmatpush1.bf16.msra.mxu0 0
    %3286 = vmatprep.subr.bf16.mxu0 0
    %3287 = vmatpush1.bf16.msra.mxu0 0
    %3288 = vmatprep.subr.bf16.mxu0 0
    %3289 = vmatpush1.bf16.msra.mxu0 0
    %3290 = vmatprep.mubr.bf16.mxu0 0
    %3291 = vmatmul.mubr.bf16.gmra.mrb[0].mxu0 %v2751
    %v3292 = vpop.f32.mrb[0].mxu0
    %v3293 = vadd.f32 0.0, %v3292
    %v3294 = vpop.f32.mrb[0].mxu0
    %v3295 = vadd.f32 0.0, %v3294
    %v3296 = vpop.f32.mrb[0].mxu0
    %v3297 = vpop.f32.mrb[0].mxu0
    %3298 = vdwg.mxu0
    %3299 = vmatprep.subr.bf16.mxu0 %v3229
    %3300 = vmatpush1.bf16.msra.mxu0 %v3228
    %3301 = vmatprep.subr.bf16.mxu0 %v3233
    %3302 = vmatpush1.bf16.msra.mxu0 %v3232
    %3303 = vmatprep.subr.bf16.mxu0 %v3237
    %3304 = vmatpush1.bf16.msra.mxu0 %v3236
    %3305 = vmatprep.subr.bf16.mxu0 %v3241
    %3306 = vmatpush1.bf16.msra.mxu0 %v3240
    %3307 = vmatprep.subr.bf16.mxu0 %v3245
    %3308 = vmatpush1.bf16.msra.mxu0 %v3244
    %3309 = vmatprep.subr.bf16.mxu0 %v3249
    %3310 = vmatpush1.bf16.msra.mxu0 %v3248
    %3311 = vmatprep.subr.bf16.mxu0 %v3253
    %3312 = vmatpush1.bf16.msra.mxu0 %v3252
    %3313 = vmatprep.subr.bf16.mxu0 %v3257
    %3314 = vmatpush1.bf16.msra.mxu0 %v3256
    %3315 = vmatprep.subr.bf16.mxu0 0
    %3316 = vmatpush1.bf16.msra.mxu0 0
    %3317 = vmatprep.subr.bf16.mxu0 0
    %3318 = vmatpush1.bf16.msra.mxu0 0
    %3319 = vmatprep.subr.bf16.mxu0 0
    %3320 = vmatpush1.bf16.msra.mxu0 0
    %3321 = vmatprep.subr.bf16.mxu0 0
    %3322 = vmatpush1.bf16.msra.mxu0 0
    %3323 = vmatprep.subr.bf16.mxu0 0
    %3324 = vmatpush1.bf16.msra.mxu0 0
    %3325 = vmatprep.subr.bf16.mxu0 0
    %3326 = vmatpush1.bf16.msra.mxu0 0
    %3327 = vmatprep.subr.bf16.mxu0 0
    %3328 = vmatpush1.bf16.msra.mxu0 0
    %3329 = vmatprep.subr.bf16.mxu0 0
    %3330 = vmatpush1.bf16.msra.mxu0 0
    %3331 = vmatprep.mubr.bf16.mxu0 0
    %3332 = vmatmul.mubr.bf16.gmra.mrb[0].mxu0 %v2751
    %v3333 = vpop.f32.mrb[0].mxu0
    %v3334 = vadd.f32 0.0, %v3333
    %v3335 = vpop.f32.mrb[0].mxu0
    %v3336 = vadd.f32 0.0, %v3335
    %v3337 = vpop.f32.mrb[0].mxu0
    %v3338 = vpop.f32.mrb[0].mxu0
    %3339 = vdwg.mxu0
    %v3340 = vadd.f32 %v3221, %v3293
    %v3341 = vadd.f32 %v3222, %v3295
    %v3342 = vadd.f32 %v3223, %v3334
    %v3343 = vadd.f32 %v3224, %v3336
    %v3344 = vld [vmem:[%s6] sm:$0xff]
    %v3345 = vld [vmem:[%s6 + $0x8] sm:$0xff]
    %v3346 = vld [vmem:[%s6 + $0x10] sm:$0xff]
    %v3347 = vld [vmem:[%s6 + $0x18] sm:$0xff]
    %v3348 = vadd.f32 %v3340, %v3344
    %v3349 = vadd.f32 %v3341, %v3345
    %v3350 = vadd.f32 %v3342, %v3346
    %v3351 = vadd.f32 %v3343, %v3347
    %v3352 = vxor.u32 %v3348, 2147483648
    %v3353 = vmul.f32 %v3352, 1.442695
    %v3354 = vpow.pop %v3353
    %v3355 = vadd.f32 %v3354, 1.0
    %v3356 = vrcp.pop %v3355
    %v3357 = vmul.f32 1.0, %v3356
    %v3358 = vxor.u32 %v3349, 2147483648
    %v3359 = vmul.f32 %v3358, 1.442695
    %v3360 = vpow.pop %v3359
    %v3361 = vadd.f32 %v3360, 1.0
    %v3362 = vrcp.pop %v3361
    %v3363 = vmul.f32 1.0, %v3362
    %v3364 = vtanh.pop %v3350
    %v3365 = vxor.u32 %v3351, 2147483648
    %v3366 = vmul.f32 %v3365, 1.442695
    %v3367 = vpow.pop %v3366
    %v3368 = vadd.f32 %v3367, 1.0
    %v3369 = vrcp.pop %v3368
    %v3370 = vmul.f32 1.0, %v3369
    %v3371 = vmul.f32 %v3363, %v2748
    %v3372 = vmul.f32 %v3357, %v3364
    %v3373 = vadd.f32 %v3371, %v3372
    %v3374 = vtanh.pop %v3373
    %v3375 = vmul.f32 %v3370, %v3374
    %v3376 = vpack.c.bf16 %v3375, %v3375
    %s3377 = scalar_lea.vmem [#allocation2], 256
    %v3378 = vld [vmem:[%s3377] sm:$0xff]
    %v3379 = vld [vmem:[%s3377 + $0x8] sm:$0xff]
    %v3380 = vld [vmem:[%s3377 + $0x10] sm:$0xff]
    %v3381 = vld [vmem:[%s3377 + $0x18] sm:$0xff]
    %v3382 = vld [vmem:[%s3377 + $0x20] sm:$0xff]
    %v3383 = vld [vmem:[%s3377 + $0x28] sm:$0xff]
    %v3384 = vld [vmem:[%s3377 + $0x30] sm:$0xff]
    %v3385 = vld [vmem:[%s3377 + $0x38] sm:$0xff]
    %v3386 = vld [vmem:[%s3377 + $0x40] sm:$0xff]
    %v3387 = vld [vmem:[%s3377 + $0x48] sm:$0xff]
    %v3388 = vld [vmem:[%s3377 + $0x50] sm:$0xff]
    %v3389 = vld [vmem:[%s3377 + $0x58] sm:$0xff]
    %v3390 = vld [vmem:[%s3377 + $0x60] sm:$0xff]
    %v3391 = vld [vmem:[%s3377 + $0x68] sm:$0xff]
    %v3392 = vld [vmem:[%s3377 + $0x70] sm:$0xff]
    %v3393 = vld [vmem:[%s3377 + $0x78] sm:$0xff]
    %v3394 = vld [vmem:[%s3377 + $0x80] sm:$0xff]
    %v3395 = vld [vmem:[%s3377 + $0x88] sm:$0xff]
    %v3396 = vld [vmem:[%s3377 + $0x90] sm:$0xff]
    %v3397 = vld [vmem:[%s3377 + $0x98] sm:$0xff]
    %v3398 = vld [vmem:[%s3377 + $0xa0] sm:$0xff]
    %v3399 = vld [vmem:[%s3377 + $0xa8] sm:$0xff]
    %v3400 = vld [vmem:[%s3377 + $0xb0] sm:$0xff]
    %v3401 = vld [vmem:[%s3377 + $0xb8] sm:$0xff]
    %v3402 = vld [vmem:[%s3377 + $0xc0] sm:$0xff]
    %v3403 = vld [vmem:[%s3377 + $0xc8] sm:$0xff]
    %v3404 = vld [vmem:[%s3377 + $0xd0] sm:$0xff]
    %v3405 = vld [vmem:[%s3377 + $0xd8] sm:$0xff]
    %v3406 = vld [vmem:[%s3377 + $0xe0] sm:$0xff]
    %v3407 = vld [vmem:[%s3377 + $0xe8] sm:$0xff]
    %v3408 = vld [vmem:[%s3377 + $0xf0] sm:$0xff]
    %v3409 = vld [vmem:[%s3377 + $0xf8] sm:$0xff]
    %v3410 = vpack.c.bf16 %v2944, %v2944
    %s3411 = scalar_lea.vmem [#allocation2], 768
    %v3412 = vld [vmem:[%s3411] sm:$0xff]
    %v3413 = vld [vmem:[%s3411 + $0x8] sm:$0xff]
    %v3414 = vld [vmem:[%s3411 + $0x10] sm:$0xff]
    %v3415 = vld [vmem:[%s3411 + $0x18] sm:$0xff]
    %v3416 = vld [vmem:[%s3411 + $0x20] sm:$0xff]
    %v3417 = vld [vmem:[%s3411 + $0x28] sm:$0xff]
    %v3418 = vld [vmem:[%s3411 + $0x30] sm:$0xff]
    %v3419 = vld [vmem:[%s3411 + $0x38] sm:$0xff]
    %v3420 = vld [vmem:[%s3411 + $0x40] sm:$0xff]
    %v3421 = vld [vmem:[%s3411 + $0x48] sm:$0xff]
    %v3422 = vld [vmem:[%s3411 + $0x50] sm:$0xff]
    %v3423 = vld [vmem:[%s3411 + $0x58] sm:$0xff]
    %v3424 = vld [vmem:[%s3411 + $0x60] sm:$0xff]
    %v3425 = vld [vmem:[%s3411 + $0x68] sm:$0xff]
    %v3426 = vld [vmem:[%s3411 + $0x70] sm:$0xff]
    %v3427 = vld [vmem:[%s3411 + $0x78] sm:$0xff]
    %v3428 = vld [vmem:[%s3411 + $0x80] sm:$0xff]
    %v3429 = vld [vmem:[%s3411 + $0x88] sm:$0xff]
    %v3430 = vld [vmem:[%s3411 + $0x90] sm:$0xff]
    %v3431 = vld [vmem:[%s3411 + $0x98] sm:$0xff]
    %v3432 = vld [vmem:[%s3411 + $0xa0] sm:$0xff]
    %v3433 = vld [vmem:[%s3411 + $0xa8] sm:$0xff]
    %v3434 = vld [vmem:[%s3411 + $0xb0] sm:$0xff]
    %v3435 = vld [vmem:[%s3411 + $0xb8] sm:$0xff]
    %v3436 = vld [vmem:[%s3411 + $0xc0] sm:$0xff]
    %v3437 = vld [vmem:[%s3411 + $0xc8] sm:$0xff]
    %v3438 = vld [vmem:[%s3411 + $0xd0] sm:$0xff]
    %v3439 = vld [vmem:[%s3411 + $0xd8] sm:$0xff]
    %v3440 = vld [vmem:[%s3411 + $0xe0] sm:$0xff]
    %v3441 = vld [vmem:[%s3411 + $0xe8] sm:$0xff]
    %v3442 = vld [vmem:[%s3411 + $0xf0] sm:$0xff]
    %v3443 = vld [vmem:[%s3411 + $0xf8] sm:$0xff]
    %3444 = vmatprep.subr.bf16.mxu0 %v3413
    %3445 = vmatpush1.bf16.msra.mxu0 %v3412
    %3446 = vmatprep.subr.bf16.mxu0 %v3417
    %3447 = vmatpush1.bf16.msra.mxu0 %v3416
    %3448 = vmatprep.subr.bf16.mxu0 %v3421
    %3449 = vmatpush1.bf16.msra.mxu0 %v3420
    %3450 = vmatprep.subr.bf16.mxu0 %v3425
    %3451 = vmatpush1.bf16.msra.mxu0 %v3424
    %3452 = vmatprep.subr.bf16.mxu0 %v3429
    %3453 = vmatpush1.bf16.msra.mxu0 %v3428
    %3454 = vmatprep.subr.bf16.mxu0 %v3433
    %3455 = vmatpush1.bf16.msra.mxu0 %v3432
    %3456 = vmatprep.subr.bf16.mxu0 %v3437
    %3457 = vmatpush1.bf16.msra.mxu0 %v3436
    %3458 = vmatprep.subr.bf16.mxu0 %v3441
    %3459 = vmatpush1.bf16.msra.mxu0 %v3440
    %3460 = vmatprep.subr.bf16.mxu0 0
    %3461 = vmatpush1.bf16.msra.mxu0 0
    %3462 = vmatprep.subr.bf16.mxu0 0
    %3463 = vmatpush1.bf16.msra.mxu0 0
    %3464 = vmatprep.subr.bf16.mxu0 0
    %3465 = vmatpush1.bf16.msra.mxu0 0
    %3466 = vmatprep.subr.bf16.mxu0 0
    %3467 = vmatpush1.bf16.msra.mxu0 0
    %3468 = vmatprep.subr.bf16.mxu0 0
    %3469 = vmatpush1.bf16.msra.mxu0 0
    %3470 = vmatprep.subr.bf16.mxu0 0
    %3471 = vmatpush1.bf16.msra.mxu0 0
    %3472 = vmatprep.subr.bf16.mxu0 0
    %3473 = vmatpush1.bf16.msra.mxu0 0
    %3474 = vmatprep.subr.bf16.mxu0 0
    %3475 = vmatpush1.bf16.msra.mxu0 0
    %3476 = vmatprep.mubr.bf16.mxu0 0
    %3477 = vmatmul.mubr.bf16.gmra.mrb[0].mxu0 %v3410
    %v3478 = vpop.f32.mrb[0].mxu0
    %v3479 = vadd.f32 0.0, %v3478
    %v3480 = vpop.f32.mrb[0].mxu0
    %v3481 = vadd.f32 0.0, %v3480
    %v3482 = vpop.f32.mrb[0].mxu0
    %v3483 = vpop.f32.mrb[0].mxu0
    %3484 = vdwg.mxu0
    %3485 = vmatprep.subr.bf16.mxu0 %v3415
    %3486 = vmatpush1.bf16.msra.mxu0 %v3414
    %3487 = vmatprep.subr.bf16.mxu0 %v3419
    %3488 = vmatpush1.bf16.msra.mxu0 %v3418
    %3489 = vmatprep.subr.bf16.mxu0 %v3423
    %3490 = vmatpush1.bf16.msra.mxu0 %v3422
    %3491 = vmatprep.subr.bf16.mxu0 %v3427
    %3492 = vmatpush1.bf16.msra.mxu0 %v3426
    %3493 = vmatprep.subr.bf16.mxu0 %v3431
    %3494 = vmatpush1.bf16.msra.mxu0 %v3430
    %3495 = vmatprep.subr.bf16.mxu0 %v3435
    %3496 = vmatpush1.bf16.msra.mxu0 %v3434
    %3497 = vmatprep.subr.bf16.mxu0 %v3439
    %3498 = vmatpush1.bf16.msra.mxu0 %v3438
    %3499 = vmatprep.subr.bf16.mxu0 %v3443
    %3500 = vmatpush1.bf16.msra.mxu0 %v3442
    %3501 = vmatprep.subr.bf16.mxu0 0
    %3502 = vmatpush1.bf16.msra.mxu0 0
    %3503 = vmatprep.subr.bf16.mxu0 0
    %3504 = vmatpush1.bf16.msra.mxu0 0
    %3505 = vmatprep.subr.bf16.mxu0 0
    %3506 = vmatpush1.bf16.msra.mxu0 0
    %3507 = vmatprep.subr.bf16.mxu0 0
    %3508 = vmatpush1.bf16.msra.mxu0 0
    %3509 = vmatprep.subr.bf16.mxu0 0
    %3510 = vmatpush1.bf16.msra.mxu0 0
    %3511 = vmatprep.subr.bf16.mxu0 0
    %3512 = vmatpush1.bf16.msra.mxu0 0
    %3513 = vmatprep.subr.bf16.mxu0 0
    %3514 = vmatpush1.bf16.msra.mxu0 0
    %3515 = vmatprep.subr.bf16.mxu0 0
    %3516 = vmatpush1.bf16.msra.mxu0 0
    %3517 = vmatprep.mubr.bf16.mxu0 0
    %3518 = vmatmul.mubr.bf16.gmra.mrb[0].mxu0 %v3410
    %v3519 = vpop.f32.mrb[0].mxu0
    %v3520 = vadd.f32 0.0, %v3519
    %v3521 = vpop.f32.mrb[0].mxu0
    %v3522 = vadd.f32 0.0, %v3521
    %v3523 = vpop.f32.mrb[0].mxu0
    %v3524 = vpop.f32.mrb[0].mxu0
    %3525 = vdwg.mxu0
    %3526 = vmatprep.subr.bf16.mxu0 %v3379
    %3527 = vmatpush1.bf16.msra.mxu0 %v3378
    %3528 = vmatprep.subr.bf16.mxu0 %v3383
    %3529 = vmatpush1.bf16.msra.mxu0 %v3382
    %3530 = vmatprep.subr.bf16.mxu0 %v3387
    %3531 = vmatpush1.bf16.msra.mxu0 %v3386
    %3532 = vmatprep.subr.bf16.mxu0 %v3391
    %3533 = vmatpush1.bf16.msra.mxu0 %v3390
    %3534 = vmatprep.subr.bf16.mxu0 %v3395
    %3535 = vmatpush1.bf16.msra.mxu0 %v3394
    %3536 = vmatprep.subr.bf16.mxu0 %v3399
    %3537 = vmatpush1.bf16.msra.mxu0 %v3398
    %3538 = vmatprep.subr.bf16.mxu0 %v3403
    %3539 = vmatpush1.bf16.msra.mxu0 %v3402
    %3540 = vmatprep.subr.bf16.mxu0 %v3407
    %3541 = vmatpush1.bf16.msra.mxu0 %v3406
    %3542 = vmatprep.subr.bf16.mxu0 0
    %3543 = vmatpush1.bf16.msra.mxu0 0
    %3544 = vmatprep.subr.bf16.mxu0 0
    %3545 = vmatpush1.bf16.msra.mxu0 0
    %3546 = vmatprep.subr.bf16.mxu0 0
    %3547 = vmatpush1.bf16.msra.mxu0 0
    %3548 = vmatprep.subr.bf16.mxu0 0
    %3549 = vmatpush1.bf16.msra.mxu0 0
    %3550 = vmatprep.subr.bf16.mxu0 0
    %3551 = vmatpush1.bf16.msra.mxu0 0
    %3552 = vmatprep.subr.bf16.mxu0 0
    %3553 = vmatpush1.bf16.msra.mxu0 0
    %3554 = vmatprep.subr.bf16.mxu0 0
    %3555 = vmatpush1.bf16.msra.mxu0 0
    %3556 = vmatprep.subr.bf16.mxu0 0
    %3557 = vmatpush1.bf16.msra.mxu0 0
    %3558 = vmatprep.mubr.bf16.mxu0 0
    %3559 = vmatmul.mubr.bf16.gmra.mrb[0].mxu0 %v3376
    %v3560 = vpop.f32.mrb[0].mxu0
    %v3561 = vadd.f32 %v3479, %v3560
    %v3562 = vpop.f32.mrb[0].mxu0
    %v3563 = vadd.f32 %v3481, %v3562
    %v3564 = vpop.f32.mrb[0].mxu0
    %v3565 = vpop.f32.mrb[0].mxu0
    %3566 = vdwg.mxu0
    %3567 = vmatprep.subr.bf16.mxu0 %v3381
    %3568 = vmatpush1.bf16.msra.mxu0 %v3380
    %3569 = vmatprep.subr.bf16.mxu0 %v3385
    %3570 = vmatpush1.bf16.msra.mxu0 %v3384
    %3571 = vmatprep.subr.bf16.mxu0 %v3389
    %3572 = vmatpush1.bf16.msra.mxu0 %v3388
    %3573 = vmatprep.subr.bf16.mxu0 %v3393
    %3574 = vmatpush1.bf16.msra.mxu0 %v3392
    %3575 = vmatprep.subr.bf16.mxu0 %v3397
    %3576 = vmatpush1.bf16.msra.mxu0 %v3396
    %3577 = vmatprep.subr.bf16.mxu0 %v3401
    %3578 = vmatpush1.bf16.msra.mxu0 %v3400
    %3579 = vmatprep.subr.bf16.mxu0 %v3405
    %3580 = vmatpush1.bf16.msra.mxu0 %v3404
    %3581 = vmatprep.subr.bf16.mxu0 %v3409
    %3582 = vmatpush1.bf16.msra.mxu0 %v3408
    %3583 = vmatprep.subr.bf16.mxu0 0
    %3584 = vmatpush1.bf16.msra.mxu0 0
    %3585 = vmatprep.subr.bf16.mxu0 0
    %3586 = vmatpush1.bf16.msra.mxu0 0
    %3587 = vmatprep.subr.bf16.mxu0 0
    %3588 = vmatpush1.bf16.msra.mxu0 0
    %3589 = vmatprep.subr.bf16.mxu0 0
    %3590 = vmatpush1.bf16.msra.mxu0 0
    %3591 = vmatprep.subr.bf16.mxu0 0
    %3592 = vmatpush1.bf16.msra.mxu0 0
    %3593 = vmatprep.subr.bf16.mxu0 0
    %3594 = vmatpush1.bf16.msra.mxu0 0
    %3595 = vmatprep.subr.bf16.mxu0 0
    %3596 = vmatpush1.bf16.msra.mxu0 0
    %3597 = vmatprep.subr.bf16.mxu0 0
    %3598 = vmatpush1.bf16.msra.mxu0 0
    %3599 = vmatprep.mubr.bf16.mxu0 0
    %3600 = vmatmul.mubr.bf16.gmra.mrb[0].mxu0 %v3376
    %v3601 = vpop.f32.mrb[0].mxu0
    %v3602 = vadd.f32 %v3520, %v3601
    %v3603 = vpop.f32.mrb[0].mxu0
    %v3604 = vadd.f32 %v3522, %v3603
    %v3605 = vpop.f32.mrb[0].mxu0
    %v3606 = vpop.f32.mrb[0].mxu0
    %3607 = vdwg.mxu0
    %s3608 = scalar_lea.vmem %s6, 32
    %v3609 = vld [vmem:[%s3608] sm:$0xff]
    %v3610 = vld [vmem:[%s3608 + $0x8] sm:$0xff]
    %v3611 = vld [vmem:[%s3608 + $0x10] sm:$0xff]
    %v3612 = vld [vmem:[%s3608 + $0x18] sm:$0xff]
    %v3613 = vadd.f32 %v3561, %v3609
    %v3614 = vadd.f32 %v3563, %v3610
    %v3615 = vadd.f32 %v3602, %v3611
    %v3616 = vadd.f32 %v3604, %v3612
    %v3617 = vxor.u32 %v3613, 2147483648
    %v3618 = vmul.f32 %v3617, 1.442695
    %v3619 = vpow.pop %v3618
    %v3620 = vadd.f32 %v3619, 1.0
    %v3621 = vrcp.pop %v3620
    %v3622 = vmul.f32 1.0, %v3621
    %v3623 = vxor.u32 %v3614, 2147483648
    %v3624 = vmul.f32 %v3623, 1.442695
    %v3625 = vpow.pop %v3624
    %v3626 = vadd.f32 %v3625, 1.0
    %v3627 = vrcp.pop %v3626
    %v3628 = vmul.f32 1.0, %v3627
    %v3629 = vtanh.pop %v3615
    %v3630 = vxor.u32 %v3616, 2147483648
    %v3631 = vmul.f32 %v3630, 1.442695
    %v3632 = vpow.pop %v3631
    %v3633 = vadd.f32 %v3632, 1.0
    %v3634 = vrcp.pop %v3633
    %v3635 = vmul.f32 1.0, %v3634
    %v3636 = vmul.f32 %v3628, %v2942
    %v3637 = vmul.f32 %v3622, %v3629
    %v3638 = vadd.f32 %v3636, %v3637
    %v3639 = vtanh.pop %v3638
    %v3640 = vmul.f32 %v3635, %v3639
    %v3641 = vpack.c.bf16 %v3640, %v3640
    %v3642 = vld [vmem:[#allocation11] sm:$0xf]
    %v3643 = vld [vmem:[#allocation11 + $0x4] sm:$0xf]
    %v3644 = vld [vmem:[#allocation11 + $0x8] sm:$0xf]
    %v3645 = vld [vmem:[#allocation11 + $0xc] sm:$0xf]
    %v3646 = vld [vmem:[#allocation11 + $0x10] sm:$0xf]
    %v3647 = vld [vmem:[#allocation11 + $0x14] sm:$0xf]
    %v3648 = vld [vmem:[#allocation11 + $0x18] sm:$0xf]
    %v3649 = vld [vmem:[#allocation11 + $0x1c] sm:$0xf]
    %v3650 = vld [vmem:[#allocation11 + $0x20] sm:$0xf]
    %v3651 = vld [vmem:[#allocation11 + $0x24] sm:$0xf]
    %v3652 = vld [vmem:[#allocation11 + $0x28] sm:$0xf]
    %v3653 = vld [vmem:[#allocation11 + $0x2c] sm:$0xf]
    %v3654 = vld [vmem:[#allocation11 + $0x30] sm:$0xf]
    %v3655 = vld [vmem:[#allocation11 + $0x34] sm:$0xf]
    %v3656 = vld [vmem:[#allocation11 + $0x38] sm:$0xf]
    %v3657 = vld [vmem:[#allocation11 + $0x3c] sm:$0xf]
    %v3658 = vld [vmem:[%s8] sm:$0xff]
    %v3675 = vunpack.c.l.b16 %v3642
    %v3676 = vunpack.c.l.b16 %v3643
    %v3677 = vunpack.c.l.b16 %v3644
    %v3678 = vunpack.c.l.b16 %v3645
    %v3679 = vunpack.c.l.b16 %v3646
    %v3680 = vunpack.c.l.b16 %v3647
    %v3681 = vunpack.c.l.b16 %v3648
    %v3682 = vunpack.c.l.b16 %v3649
    %v3683 = vunpack.c.l.b16 %v3650
    %v3684 = vunpack.c.l.b16 %v3651
    %v3685 = vunpack.c.l.b16 %v3652
    %v3686 = vunpack.c.l.b16 %v3653
    %v3687 = vunpack.c.l.b16 %v3654
    %v3688 = vunpack.c.l.b16 %v3655
    %v3689 = vunpack.c.l.b16 %v3656
    %v3690 = vunpack.c.l.b16 %v3657
    %v3691 = vpack.c.b16 %v3676, %v3675
    %v3692 = vpack.c.b16 %v3678, %v3677
    %v3693 = vpack.c.b16 %v3680, %v3679
    %v3694 = vpack.c.b16 %v3682, %v3681
    %v3695 = vpack.c.b16 %v3684, %v3683
    %v3696 = vpack.c.b16 %v3686, %v3685
    %v3697 = vpack.c.b16 %v3688, %v3687
    %v3698 = vpack.c.b16 %v3690, %v3689
    %3707 = vmatprep.subr.bf16.mxu0 0
    %3708 = vmatpush1.bf16.msra.mxu0 %v3691
    %3709 = vmatprep.subr.bf16.mxu0 0
    %3710 = vmatpush1.bf16.msra.mxu0 %v3692
    %3711 = vmatprep.subr.bf16.mxu0 0
    %3712 = vmatpush1.bf16.msra.mxu0 %v3693
    %3713 = vmatprep.subr.bf16.mxu0 0
    %3714 = vmatpush1.bf16.msra.mxu0 %v3694
    %3715 = vmatprep.subr.bf16.mxu0 0
    %3716 = vmatpush1.bf16.msra.mxu0 %v3695
    %3717 = vmatprep.subr.bf16.mxu0 0
    %3718 = vmatpush1.bf16.msra.mxu0 %v3696
    %3719 = vmatprep.subr.bf16.mxu0 0
    %3720 = vmatpush1.bf16.msra.mxu0 %v3697
    %3721 = vmatprep.subr.bf16.mxu0 0
    %3722 = vmatpush1.bf16.msra.mxu0 %v3698
    %3723 = vmatprep.subr.bf16.mxu0 0
    %3724 = vmatpush1.bf16.msra.mxu0 0
    %3725 = vmatprep.subr.bf16.mxu0 0
    %3726 = vmatpush1.bf16.msra.mxu0 0
    %3727 = vmatprep.subr.bf16.mxu0 0
    %3728 = vmatpush1.bf16.msra.mxu0 0
    %3729 = vmatprep.subr.bf16.mxu0 0
    %3730 = vmatpush1.bf16.msra.mxu0 0
    %3731 = vmatprep.subr.bf16.mxu0 0
    %3732 = vmatpush1.bf16.msra.mxu0 0
    %3733 = vmatprep.subr.bf16.mxu0 0
    %3734 = vmatpush1.bf16.msra.mxu0 0
    %3735 = vmatprep.subr.bf16.mxu0 0
    %3736 = vmatpush1.bf16.msra.mxu0 0
    %3737 = vmatprep.subr.bf16.mxu0 0
    %3738 = vmatpush1.bf16.msra.mxu0 0
    %3739 = vmatprep.mubr.bf16.mxu0 0
    %3740 = vmatmul.mubr.bf16.gmra.mrb[0].mxu0 %v3641
    %v3741 = vpop.f32.mrb[0].mxu0
    %v3742 = vadd.f32 %v3658, %v3741
    %v3743 = vpop.f32.mrb[0].mxu0
    %v3744 = vpop.f32.mrb[0].mxu0
    %v3745 = vpop.f32.mrb[0].mxu0
    %3746 = vdwg.mxu0
    %s3747 = scalar_lea.vmem [#allocation13], 8
    %3748 = vst [vmem:[%s3747] sm:$0xff] %v3742
    %3749 = vmax.xlane.f32.xlu0 %v3742
    %v3750 = vpop.xlane.xlu0 %3749
    %vm3751 = vcmp.eq.f32.partialorder %v3742, %v3750
    %v3752 = vsel %vm3751, %v98, 128
    %v3753 = vand.u32 %v3752, 65535
    %v3754 = vshra.s32 %v3752, 16
    %v3755 = vcvt.s32.f32 %v3753
    %v3756 = vcvt.s32.f32 %v3754
    %3757 = vmin.xlane.f32.xlu0 %v3756
    %v3758 = vpop.xlane.xlu0 %3757
    %vm3759 = vcmp.eq.f32.partialorder %v3756, %v3758
    %v3760 = vsel %vm3759, %v3755, inf
    %3761 = vmin.xlane.f32.xlu0 %v3760
    %v3762 = vpop.xlane.xlu0 %3761
    %v3763 = vcvt.f32.s32 %v3762
    %v3764 = vcvt.f32.s32 %v3758
    %v3765 = vshll.u32 %v3764, 16
    %v3766 = vadd.s32 %v3765, %v3763
    %vm3767 = vcmp.eq.s32.totalorder %v98, %v3766
    %v3768 = vsel %vm3767, 1, 0
    %v3769 = vcvt.s32.f32 %v3768
    %v3770 = vpack.c.bf16 %v3769, %v3769
    %v3771 = vld [vmem:[#allocation2] sm:$0xff]
    %v3772 = vld [vmem:[#allocation2 + $0x8] sm:$0xff]
    %v3773 = vld [vmem:[#allocation2 + $0x10] sm:$0xff]
    %v3774 = vld [vmem:[#allocation2 + $0x18] sm:$0xff]
    %v3775 = vld [vmem:[#allocation2 + $0x20] sm:$0xff]
    %v3776 = vld [vmem:[#allocation2 + $0x28] sm:$0xff]
    %v3777 = vld [vmem:[#allocation2 + $0x30] sm:$0xff]
    %v3778 = vld [vmem:[#allocation2 + $0x38] sm:$0xff]
    %v3779 = vld [vmem:[#allocation2 + $0x40] sm:$0xff]
    %v3780 = vld [vmem:[#allocation2 + $0x48] sm:$0xff]
    %v3781 = vld [vmem:[#allocation2 + $0x50] sm:$0xff]
    %v3782 = vld [vmem:[#allocation2 + $0x58] sm:$0xff]
    %v3783 = vld [vmem:[#allocation2 + $0x60] sm:$0xff]
    %v3784 = vld [vmem:[#allocation2 + $0x68] sm:$0xff]
    %v3785 = vld [vmem:[#allocation2 + $0x70] sm:$0xff]
    %v3786 = vld [vmem:[#allocation2 + $0x78] sm:$0xff]
    %v3787 = vld [vmem:[#allocation2 + $0x80] sm:$0xff]
    %v3788 = vld [vmem:[#allocation2 + $0x88] sm:$0xff]
    %v3789 = vld [vmem:[#allocation2 + $0x90] sm:$0xff]
    %v3790 = vld [vmem:[#allocation2 + $0x98] sm:$0xff]
    %v3791 = vld [vmem:[#allocation2 + $0xa0] sm:$0xff]
    %v3792 = vld [vmem:[#allocation2 + $0xa8] sm:$0xff]
    %v3793 = vld [vmem:[#allocation2 + $0xb0] sm:$0xff]
    %v3794 = vld [vmem:[#allocation2 + $0xb8] sm:$0xff]
    %v3795 = vld [vmem:[#allocation2 + $0xc0] sm:$0xff]
    %v3796 = vld [vmem:[#allocation2 + $0xc8] sm:$0xff]
    %v3797 = vld [vmem:[#allocation2 + $0xd0] sm:$0xff]
    %v3798 = vld [vmem:[#allocation2 + $0xd8] sm:$0xff]
    %v3799 = vld [vmem:[#allocation2 + $0xe0] sm:$0xff]
    %v3800 = vld [vmem:[#allocation2 + $0xe8] sm:$0xff]
    %v3801 = vld [vmem:[#allocation2 + $0xf0] sm:$0xff]
    %v3802 = vld [vmem:[#allocation2 + $0xf8] sm:$0xff]
    %3803 = vmatprep.subr.bf16.mxu0 %v3772
    %3804 = vmatpush1.bf16.msra.mxu0 %v3771
    %3805 = vmatprep.subr.bf16.mxu0 %v3776
    %3806 = vmatpush1.bf16.msra.mxu0 %v3775
    %3807 = vmatprep.subr.bf16.mxu0 %v3780
    %3808 = vmatpush1.bf16.msra.mxu0 %v3779
    %3809 = vmatprep.subr.bf16.mxu0 %v3784
    %3810 = vmatpush1.bf16.msra.mxu0 %v3783
    %3811 = vmatprep.subr.bf16.mxu0 %v3788
    %3812 = vmatpush1.bf16.msra.mxu0 %v3787
    %3813 = vmatprep.subr.bf16.mxu0 %v3792
    %3814 = vmatpush1.bf16.msra.mxu0 %v3791
    %3815 = vmatprep.subr.bf16.mxu0 %v3796
    %3816 = vmatpush1.bf16.msra.mxu0 %v3795
    %3817 = vmatprep.subr.bf16.mxu0 %v3800
    %3818 = vmatpush1.bf16.msra.mxu0 %v3799
    %3819 = vmatprep.subr.bf16.mxu0 0
    %3820 = vmatpush1.bf16.msra.mxu0 0
    %3821 = vmatprep.subr.bf16.mxu0 0
    %3822 = vmatpush1.bf16.msra.mxu0 0
    %3823 = vmatprep.subr.bf16.mxu0 0
    %3824 = vmatpush1.bf16.msra.mxu0 0
    %3825 = vmatprep.subr.bf16.mxu0 0
    %3826 = vmatpush1.bf16.msra.mxu0 0
    %3827 = vmatprep.subr.bf16.mxu0 0
    %3828 = vmatpush1.bf16.msra.mxu0 0
    %3829 = vmatprep.subr.bf16.mxu0 0
    %3830 = vmatpush1.bf16.msra.mxu0 0
    %3831 = vmatprep.subr.bf16.mxu0 0
    %3832 = vmatpush1.bf16.msra.mxu0 0
    %3833 = vmatprep.subr.bf16.mxu0 0
    %3834 = vmatpush1.bf16.msra.mxu0 0
    %3835 = vmatprep.mubr.bf16.mxu0 0
    %3836 = vmatmul.mubr.bf16.gmra.mrb[0].mxu0 %v3770
    %v3837 = vpop.f32.mrb[0].mxu0
    %v3838 = vadd.f32 0.0, %v3837
    %v3839 = vpop.f32.mrb[0].mxu0
    %v3840 = vadd.f32 0.0, %v3839
    %v3841 = vpop.f32.mrb[0].mxu0
    %v3842 = vpop.f32.mrb[0].mxu0
    %3843 = vdwg.mxu0
    %3844 = vmatprep.subr.bf16.mxu0 %v3774
    %3845 = vmatpush1.bf16.msra.mxu0 %v3773
    %3846 = vmatprep.subr.bf16.mxu0 %v3778
    %3847 = vmatpush1.bf16.msra.mxu0 %v3777
    %3848 = vmatprep.subr.bf16.mxu0 %v3782
    %3849 = vmatpush1.bf16.msra.mxu0 %v3781
    %3850 = vmatprep.subr.bf16.mxu0 %v3786
    %3851 = vmatpush1.bf16.msra.mxu0 %v3785
    %3852 = vmatprep.subr.bf16.mxu0 %v3790
    %3853 = vmatpush1.bf16.msra.mxu0 %v3789
    %3854 = vmatprep.subr.bf16.mxu0 %v3794
    %3855 = vmatpush1.bf16.msra.mxu0 %v3793
    %3856 = vmatprep.subr.bf16.mxu0 %v3798
    %3857 = vmatpush1.bf16.msra.mxu0 %v3797
    %3858 = vmatprep.subr.bf16.mxu0 %v3802
    %3859 = vmatpush1.bf16.msra.mxu0 %v3801
    %3860 = vmatprep.subr.bf16.mxu0 0
    %3861 = vmatpush1.bf16.msra.mxu0 0
    %3862 = vmatprep.subr.bf16.mxu0 0
    %3863 = vmatpush1.bf16.msra.mxu0 0
    %3864 = vmatprep.subr.bf16.mxu0 0
    %3865 = vmatpush1.bf16.msra.mxu0 0
    %3866 = vmatprep.subr.bf16.mxu0 0
    %3867 = vmatpush1.bf16.msra.mxu0 0
    %3868 = vmatprep.subr.bf16.mxu0 0
    %3869 = vmatpush1.bf16.msra.mxu0 0
    %3870 = vmatprep.subr.bf16.mxu0 0
    %3871 = vmatpush1.bf16.msra.mxu0 0
    %3872 = vmatprep.subr.bf16.mxu0 0
    %3873 = vmatpush1.bf16.msra.mxu0 0
    %3874 = vmatprep.subr.bf16.mxu0 0
    %3875 = vmatpush1.bf16.msra.mxu0 0
    %3876 = vmatprep.mubr.bf16.mxu0 0
    %3877 = vmatmul.mubr.bf16.gmra.mrb[0].mxu0 %v3770
    %v3878 = vpop.f32.mrb[0].mxu0
    %v3879 = vadd.f32 0.0, %v3878
    %v3880 = vpop.f32.mrb[0].mxu0
    %v3881 = vadd.f32 0.0, %v3880
    %v3882 = vpop.f32.mrb[0].mxu0
    %v3883 = vpop.f32.mrb[0].mxu0
    %3884 = vdwg.mxu0
    %v3885 = vld [vmem:[#allocation4 + $0x20] sm:$0xff]
    %v3886 = vld [vmem:[#allocation4 + $0x28] sm:$0xff]
    %v3887 = vld [vmem:[#allocation4 + $0x30] sm:$0xff]
    %v3888 = vld [vmem:[#allocation4 + $0x38] sm:$0xff]
    %s3889 = sld [smem:[#allocation7 + $0x1]]
    %p3890 = scmp.eq.s32.totalorder %s3889, 1
    %s3891 = scalar_select %p3890, 1, 0
    %v3892 = vstv %s3891
    %vm3893 = vcmp.eq.s32.totalorder %v3892, 1
    %v3894 = vsel %vm3893, %v3885, %v3838
    %v3895 = vsel %vm3893, %v3886, %v3840
    %v3896 = vsel %vm3893, %v3887, %v3879
    %v3897 = vsel %vm3893, %v3888, %v3881
    %v3898 = vld [vmem:[%s3225] sm:$0xff]
    %v3899 = vld [vmem:[%s3225 + $0x8] sm:$0xff]
    %v3900 = vld [vmem:[%s3225 + $0x10] sm:$0xff]
    %v3901 = vld [vmem:[%s3225 + $0x18] sm:$0xff]
    %v3902 = vld [vmem:[%s3225 + $0x20] sm:$0xff]
    %v3903 = vld [vmem:[%s3225 + $0x28] sm:$0xff]
    %v3904 = vld [vmem:[%s3225 + $0x30] sm:$0xff]
    %v3905 = vld [vmem:[%s3225 + $0x38] sm:$0xff]
    %v3906 = vld [vmem:[%s3225 + $0x40] sm:$0xff]
    %v3907 = vld [vmem:[%s3225 + $0x48] sm:$0xff]
    %v3908 = vld [vmem:[%s3225 + $0x50] sm:$0xff]
    %v3909 = vld [vmem:[%s3225 + $0x58] sm:$0xff]
    %v3910 = vld [vmem:[%s3225 + $0x60] sm:$0xff]
    %v3911 = vld [vmem:[%s3225 + $0x68] sm:$0xff]
    %v3912 = vld [vmem:[%s3225 + $0x70] sm:$0xff]
    %v3913 = vld [vmem:[%s3225 + $0x78] sm:$0xff]
    %v3914 = vld [vmem:[%s3225 + $0x80] sm:$0xff]
    %v3915 = vld [vmem:[%s3225 + $0x88] sm:$0xff]
    %v3916 = vld [vmem:[%s3225 + $0x90] sm:$0xff]
    %v3917 = vld [vmem:[%s3225 + $0x98] sm:$0xff]
    %v3918 = vld [vmem:[%s3225 + $0xa0] sm:$0xff]
    %v3919 = vld [vmem:[%s3225 + $0xa8] sm:$0xff]
    %v3920 = vld [vmem:[%s3225 + $0xb0] sm:$0xff]
    %v3921 = vld [vmem:[%s3225 + $0xb8] sm:$0xff]
    %v3922 = vld [vmem:[%s3225 + $0xc0] sm:$0xff]
    %v3923 = vld [vmem:[%s3225 + $0xc8] sm:$0xff]
    %v3924 = vld [vmem:[%s3225 + $0xd0] sm:$0xff]
    %v3925 = vld [vmem:[%s3225 + $0xd8] sm:$0xff]
    %v3926 = vld [vmem:[%s3225 + $0xe0] sm:$0xff]
    %v3927 = vld [vmem:[%s3225 + $0xe8] sm:$0xff]
    %v3928 = vld [vmem:[%s3225 + $0xf0] sm:$0xff]
    %v3929 = vld [vmem:[%s3225 + $0xf8] sm:$0xff]
    %3930 = vmatprep.subr.bf16.mxu0 %v3899
    %3931 = vmatpush1.bf16.msra.mxu0 %v3898
    %3932 = vmatprep.subr.bf16.mxu0 %v3903
    %3933 = vmatpush1.bf16.msra.mxu0 %v3902
    %3934 = vmatprep.subr.bf16.mxu0 %v3907
    %3935 = vmatpush1.bf16.msra.mxu0 %v3906
    %3936 = vmatprep.subr.bf16.mxu0 %v3911
    %3937 = vmatpush1.bf16.msra.mxu0 %v3910
    %3938 = vmatprep.subr.bf16.mxu0 %v3915
    %3939 = vmatpush1.bf16.msra.mxu0 %v3914
    %3940 = vmatprep.subr.bf16.mxu0 %v3919
    %3941 = vmatpush1.bf16.msra.mxu0 %v3918
    %3942 = vmatprep.subr.bf16.mxu0 %v3923
    %3943 = vmatpush1.bf16.msra.mxu0 %v3922
    %3944 = vmatprep.subr.bf16.mxu0 %v3927
    %3945 = vmatpush1.bf16.msra.mxu0 %v3926
    %3946 = vmatprep.subr.bf16.mxu0 0
    %3947 = vmatpush1.bf16.msra.mxu0 0
    %3948 = vmatprep.subr.bf16.mxu0 0
    %3949 = vmatpush1.bf16.msra.mxu0 0
    %3950 = vmatprep.subr.bf16.mxu0 0
    %3951 = vmatpush1.bf16.msra.mxu0 0
    %3952 = vmatprep.subr.bf16.mxu0 0
    %3953 = vmatpush1.bf16.msra.mxu0 0
    %3954 = vmatprep.subr.bf16.mxu0 0
    %3955 = vmatpush1.bf16.msra.mxu0 0
    %3956 = vmatprep.subr.bf16.mxu0 0
    %3957 = vmatpush1.bf16.msra.mxu0 0
    %3958 = vmatprep.subr.bf16.mxu0 0
    %3959 = vmatpush1.bf16.msra.mxu0 0
    %3960 = vmatprep.subr.bf16.mxu0 0
    %3961 = vmatpush1.bf16.msra.mxu0 0
    %3962 = vmatprep.mubr.bf16.mxu0 0
    %3963 = vmatmul.mubr.bf16.gmra.mrb[0].mxu0 %v3376
    %v3964 = vpop.f32.mrb[0].mxu0
    %v3965 = vadd.f32 0.0, %v3964
    %v3966 = vpop.f32.mrb[0].mxu0
    %v3967 = vadd.f32 0.0, %v3966
    %v3968 = vpop.f32.mrb[0].mxu0
    %v3969 = vpop.f32.mrb[0].mxu0
    %3970 = vdwg.mxu0
    %3971 = vmatprep.subr.bf16.mxu0 %v3901
    %3972 = vmatpush1.bf16.msra.mxu0 %v3900
    %3973 = vmatprep.subr.bf16.mxu0 %v3905
    %3974 = vmatpush1.bf16.msra.mxu0 %v3904
    %3975 = vmatprep.subr.bf16.mxu0 %v3909
    %3976 = vmatpush1.bf16.msra.mxu0 %v3908
    %3977 = vmatprep.subr.bf16.mxu0 %v3913
    %3978 = vmatpush1.bf16.msra.mxu0 %v3912
    %3979 = vmatprep.subr.bf16.mxu0 %v3917
    %3980 = vmatpush1.bf16.msra.mxu0 %v3916
    %3981 = vmatprep.subr.bf16.mxu0 %v3921
    %3982 = vmatpush1.bf16.msra.mxu0 %v3920
    %3983 = vmatprep.subr.bf16.mxu0 %v3925
    %3984 = vmatpush1.bf16.msra.mxu0 %v3924
    %3985 = vmatprep.subr.bf16.mxu0 %v3929
    %3986 = vmatpush1.bf16.msra.mxu0 %v3928
    %3987 = vmatprep.subr.bf16.mxu0 0
    %3988 = vmatpush1.bf16.msra.mxu0 0
    %3989 = vmatprep.subr.bf16.mxu0 0
    %3990 = vmatpush1.bf16.msra.mxu0 0
    %3991 = vmatprep.subr.bf16.mxu0 0
    %3992 = vmatpush1.bf16.msra.mxu0 0
    %3993 = vmatprep.subr.bf16.mxu0 0
    %3994 = vmatpush1.bf16.msra.mxu0 0
    %3995 = vmatprep.subr.bf16.mxu0 0
    %3996 = vmatpush1.bf16.msra.mxu0 0
    %3997 = vmatprep.subr.bf16.mxu0 0
    %3998 = vmatpush1.bf16.msra.mxu0 0
    %3999 = vmatprep.subr.bf16.mxu0 0
    %4000 = vmatpush1.bf16.msra.mxu0 0
    %4001 = vmatprep.subr.bf16.mxu0 0
    %4002 = vmatpush1.bf16.msra.mxu0 0
    %4003 = vmatprep.mubr.bf16.mxu0 0
    %4004 = vmatmul.mubr.bf16.gmra.mrb[0].mxu0 %v3376
    %v4005 = vpop.f32.mrb[0].mxu0
    %v4006 = vadd.f32 0.0, %v4005
    %v4007 = vpop.f32.mrb[0].mxu0
    %v4008 = vadd.f32 0.0, %v4007
    %v4009 = vpop.f32.mrb[0].mxu0
    %v4010 = vpop.f32.mrb[0].mxu0
    %4011 = vdwg.mxu0
    %v4012 = vadd.f32 %v3894, %v3965
    %v4013 = vadd.f32 %v3895, %v3967
    %v4014 = vadd.f32 %v3896, %v4006
    %v4015 = vadd.f32 %v3897, %v4008
    %v4016 = vld [vmem:[%s6] sm:$0xff]
    %v4017 = vld [vmem:[%s6 + $0x8] sm:$0xff]
    %v4018 = vld [vmem:[%s6 + $0x10] sm:$0xff]
    %v4019 = vld [vmem:[%s6 + $0x18] sm:$0xff]
    %v4020 = vadd.f32 %v4012, %v4016
    %v4021 = vadd.f32 %v4013, %v4017
    %v4022 = vadd.f32 %v4014, %v4018
    %v4023 = vadd.f32 %v4015, %v4019
    %v4024 = vxor.u32 %v4020, 2147483648
    %v4025 = vmul.f32 %v4024, 1.442695
    %v4026 = vpow.pop %v4025
    %v4027 = vadd.f32 %v4026, 1.0
    %v4028 = vrcp.pop %v4027
    %v4029 = vmul.f32 1.0, %v4028
    %v4030 = vxor.u32 %v4021, 2147483648
    %v4031 = vmul.f32 %v4030, 1.442695
    %v4032 = vpow.pop %v4031
    %v4033 = vadd.f32 %v4032, 1.0
    %v4034 = vrcp.pop %v4033
    %v4035 = vmul.f32 1.0, %v4034
    %v4036 = vtanh.pop %v4022
    %v4037 = vxor.u32 %v4023, 2147483648
    %v4038 = vmul.f32 %v4037, 1.442695
    %v4039 = vpow.pop %v4038
    %v4040 = vadd.f32 %v4039, 1.0
    %v4041 = vrcp.pop %v4040
    %v4042 = vmul.f32 1.0, %v4041
    %v4043 = vmul.f32 %v4035, %v3373
    %v4044 = vmul.f32 %v4029, %v4036
    %v4045 = vadd.f32 %v4043, %v4044
    %v4046 = vtanh.pop %v4045
    %v4047 = vmul.f32 %v4042, %v4046
    %v4048 = vpack.c.bf16 %v4047, %v4047
    %v4049 = vld [vmem:[%s3377] sm:$0xff]
    %v4050 = vld [vmem:[%s3377 + $0x8] sm:$0xff]
    %v4051 = vld [vmem:[%s3377 + $0x10] sm:$0xff]
    %v4052 = vld [vmem:[%s3377 + $0x18] sm:$0xff]
    %v4053 = vld [vmem:[%s3377 + $0x20] sm:$0xff]
    %v4054 = vld [vmem:[%s3377 + $0x28] sm:$0xff]
    %v4055 = vld [vmem:[%s3377 + $0x30] sm:$0xff]
    %v4056 = vld [vmem:[%s3377 + $0x38] sm:$0xff]
    %v4057 = vld [vmem:[%s3377 + $0x40] sm:$0xff]
    %v4058 = vld [vmem:[%s3377 + $0x48] sm:$0xff]
    %v4059 = vld [vmem:[%s3377 + $0x50] sm:$0xff]
    %v4060 = vld [vmem:[%s3377 + $0x58] sm:$0xff]
    %v4061 = vld [vmem:[%s3377 + $0x60] sm:$0xff]
    %v4062 = vld [vmem:[%s3377 + $0x68] sm:$0xff]
    %v4063 = vld [vmem:[%s3377 + $0x70] sm:$0xff]
    %v4064 = vld [vmem:[%s3377 + $0x78] sm:$0xff]
    %v4065 = vld [vmem:[%s3377 + $0x80] sm:$0xff]
    %v4066 = vld [vmem:[%s3377 + $0x88] sm:$0xff]
    %v4067 = vld [vmem:[%s3377 + $0x90] sm:$0xff]
    %v4068 = vld [vmem:[%s3377 + $0x98] sm:$0xff]
    %v4069 = vld [vmem:[%s3377 + $0xa0] sm:$0xff]
    %v4070 = vld [vmem:[%s3377 + $0xa8] sm:$0xff]
    %v4071 = vld [vmem:[%s3377 + $0xb0] sm:$0xff]
    %v4072 = vld [vmem:[%s3377 + $0xb8] sm:$0xff]
    %v4073 = vld [vmem:[%s3377 + $0xc0] sm:$0xff]
    %v4074 = vld [vmem:[%s3377 + $0xc8] sm:$0xff]
    %v4075 = vld [vmem:[%s3377 + $0xd0] sm:$0xff]
    %v4076 = vld [vmem:[%s3377 + $0xd8] sm:$0xff]
    %v4077 = vld [vmem:[%s3377 + $0xe0] sm:$0xff]
    %v4078 = vld [vmem:[%s3377 + $0xe8] sm:$0xff]
    %v4079 = vld [vmem:[%s3377 + $0xf0] sm:$0xff]
    %v4080 = vld [vmem:[%s3377 + $0xf8] sm:$0xff]
    %v4081 = vld [vmem:[%s3411] sm:$0xff]
    %v4082 = vld [vmem:[%s3411 + $0x8] sm:$0xff]
    %v4083 = vld [vmem:[%s3411 + $0x10] sm:$0xff]
    %v4084 = vld [vmem:[%s3411 + $0x18] sm:$0xff]
    %v4085 = vld [vmem:[%s3411 + $0x20] sm:$0xff]
    %v4086 = vld [vmem:[%s3411 + $0x28] sm:$0xff]
    %v4087 = vld [vmem:[%s3411 + $0x30] sm:$0xff]
    %v4088 = vld [vmem:[%s3411 + $0x38] sm:$0xff]
    %v4089 = vld [vmem:[%s3411 + $0x40] sm:$0xff]
    %v4090 = vld [vmem:[%s3411 + $0x48] sm:$0xff]
    %v4091 = vld [vmem:[%s3411 + $0x50] sm:$0xff]
    %v4092 = vld [vmem:[%s3411 + $0x58] sm:$0xff]
    %v4093 = vld [vmem:[%s3411 + $0x60] sm:$0xff]
    %v4094 = vld [vmem:[%s3411 + $0x68] sm:$0xff]
    %v4095 = vld [vmem:[%s3411 + $0x70] sm:$0xff]
    %v4096 = vld [vmem:[%s3411 + $0x78] sm:$0xff]
    %v4097 = vld [vmem:[%s3411 + $0x80] sm:$0xff]
    %v4098 = vld [vmem:[%s3411 + $0x88] sm:$0xff]
    %v4099 = vld [vmem:[%s3411 + $0x90] sm:$0xff]
    %v4100 = vld [vmem:[%s3411 + $0x98] sm:$0xff]
    %v4101 = vld [vmem:[%s3411 + $0xa0] sm:$0xff]
    %v4102 = vld [vmem:[%s3411 + $0xa8] sm:$0xff]
    %v4103 = vld [vmem:[%s3411 + $0xb0] sm:$0xff]
    %v4104 = vld [vmem:[%s3411 + $0xb8] sm:$0xff]
    %v4105 = vld [vmem:[%s3411 + $0xc0] sm:$0xff]
    %v4106 = vld [vmem:[%s3411 + $0xc8] sm:$0xff]
    %v4107 = vld [vmem:[%s3411 + $0xd0] sm:$0xff]
    %v4108 = vld [vmem:[%s3411 + $0xd8] sm:$0xff]
    %v4109 = vld [vmem:[%s3411 + $0xe0] sm:$0xff]
    %v4110 = vld [vmem:[%s3411 + $0xe8] sm:$0xff]
    %v4111 = vld [vmem:[%s3411 + $0xf0] sm:$0xff]
    %v4112 = vld [vmem:[%s3411 + $0xf8] sm:$0xff]
    %4113 = vmatprep.subr.bf16.mxu0 %v4082
    %4114 = vmatpush1.bf16.msra.mxu0 %v4081
    %4115 = vmatprep.subr.bf16.mxu0 %v4086
    %4116 = vmatpush1.bf16.msra.mxu0 %v4085
    %4117 = vmatprep.subr.bf16.mxu0 %v4090
    %4118 = vmatpush1.bf16.msra.mxu0 %v4089
    %4119 = vmatprep.subr.bf16.mxu0 %v4094
    %4120 = vmatpush1.bf16.msra.mxu0 %v4093
    %4121 = vmatprep.subr.bf16.mxu0 %v4098
    %4122 = vmatpush1.bf16.msra.mxu0 %v4097
    %4123 = vmatprep.subr.bf16.mxu0 %v4102
    %4124 = vmatpush1.bf16.msra.mxu0 %v4101
    %4125 = vmatprep.subr.bf16.mxu0 %v4106
    %4126 = vmatpush1.bf16.msra.mxu0 %v4105
    %4127 = vmatprep.subr.bf16.mxu0 %v4110
    %4128 = vmatpush1.bf16.msra.mxu0 %v4109
    %4129 = vmatprep.subr.bf16.mxu0 0
    %4130 = vmatpush1.bf16.msra.mxu0 0
    %4131 = vmatprep.subr.bf16.mxu0 0
    %4132 = vmatpush1.bf16.msra.mxu0 0
    %4133 = vmatprep.subr.bf16.mxu0 0
    %4134 = vmatpush1.bf16.msra.mxu0 0
    %4135 = vmatprep.subr.bf16.mxu0 0
    %4136 = vmatpush1.bf16.msra.mxu0 0
    %4137 = vmatprep.subr.bf16.mxu0 0
    %4138 = vmatpush1.bf16.msra.mxu0 0
    %4139 = vmatprep.subr.bf16.mxu0 0
    %4140 = vmatpush1.bf16.msra.mxu0 0
    %4141 = vmatprep.subr.bf16.mxu0 0
    %4142 = vmatpush1.bf16.msra.mxu0 0
    %4143 = vmatprep.subr.bf16.mxu0 0
    %4144 = vmatpush1.bf16.msra.mxu0 0
    %4145 = vmatprep.mubr.bf16.mxu0 0
    %4146 = vmatmul.mubr.bf16.gmra.mrb[0].mxu0 %v3641
    %v4147 = vpop.f32.mrb[0].mxu0
    %v4148 = vadd.f32 0.0, %v4147
    %v4149 = vpop.f32.mrb[0].mxu0
    %v4150 = vadd.f32 0.0, %v4149
    %v4151 = vpop.f32.mrb[0].mxu0
    %v4152 = vpop.f32.mrb[0].mxu0
    %4153 = vdwg.mxu0
    %4154 = vmatprep.subr.bf16.mxu0 %v4084
    %4155 = vmatpush1.bf16.msra.mxu0 %v4083
    %4156 = vmatprep.subr.bf16.mxu0 %v4088
    %4157 = vmatpush1.bf16.msra.mxu0 %v4087
    %4158 = vmatprep.subr.bf16.mxu0 %v4092
    %4159 = vmatpush1.bf16.msra.mxu0 %v4091
    %4160 = vmatprep.subr.bf16.mxu0 %v4096
    %4161 = vmatpush1.bf16.msra.mxu0 %v4095
    %4162 = vmatprep.subr.bf16.mxu0 %v4100
    %4163 = vmatpush1.bf16.msra.mxu0 %v4099
    %4164 = vmatprep.subr.bf16.mxu0 %v4104
    %4165 = vmatpush1.bf16.msra.mxu0 %v4103
    %4166 = vmatprep.subr.bf16.mxu0 %v4108
    %4167 = vmatpush1.bf16.msra.mxu0 %v4107
    %4168 = vmatprep.subr.bf16.mxu0 %v4112
    %4169 = vmatpush1.bf16.msra.mxu0 %v4111
    %4170 = vmatprep.subr.bf16.mxu0 0
    %4171 = vmatpush1.bf16.msra.mxu0 0
    %4172 = vmatprep.subr.bf16.mxu0 0
    %4173 = vmatpush1.bf16.msra.mxu0 0
    %4174 = vmatprep.subr.bf16.mxu0 0
    %4175 = vmatpush1.bf16.msra.mxu0 0
    %4176 = vmatprep.subr.bf16.mxu0 0
    %4177 = vmatpush1.bf16.msra.mxu0 0
    %4178 = vmatprep.subr.bf16.mxu0 0
    %4179 = vmatpush1.bf16.msra.mxu0 0
    %4180 = vmatprep.subr.bf16.mxu0 0
    %4181 = vmatpush1.bf16.msra.mxu0 0
    %4182 = vmatprep.subr.bf16.mxu0 0
    %4183 = vmatpush1.bf16.msra.mxu0 0
    %4184 = vmatprep.subr.bf16.mxu0 0
    %4185 = vmatpush1.bf16.msra.mxu0 0
    %4186 = vmatprep.mubr.bf16.mxu0 0
    %4187 = vmatmul.mubr.bf16.gmra.mrb[0].mxu0 %v3641
    %v4188 = vpop.f32.mrb[0].mxu0
    %v4189 = vadd.f32 0.0, %v4188
    %v4190 = vpop.f32.mrb[0].mxu0
    %v4191 = vadd.f32 0.0, %v4190
    %v4192 = vpop.f32.mrb[0].mxu0
    %v4193 = vpop.f32.mrb[0].mxu0
    %4194 = vdwg.mxu0
    %4195 = vmatprep.subr.bf16.mxu0 %v4050
    %4196 = vmatpush1.bf16.msra.mxu0 %v4049
    %4197 = vmatprep.subr.bf16.mxu0 %v4054
    %4198 = vmatpush1.bf16.msra.mxu0 %v4053
    %4199 = vmatprep.subr.bf16.mxu0 %v4058
    %4200 = vmatpush1.bf16.msra.mxu0 %v4057
    %4201 = vmatprep.subr.bf16.mxu0 %v4062
    %4202 = vmatpush1.bf16.msra.mxu0 %v4061
    %4203 = vmatprep.subr.bf16.mxu0 %v4066
    %4204 = vmatpush1.bf16.msra.mxu0 %v4065
    %4205 = vmatprep.subr.bf16.mxu0 %v4070
    %4206 = vmatpush1.bf16.msra.mxu0 %v4069
    %4207 = vmatprep.subr.bf16.mxu0 %v4074
    %4208 = vmatpush1.bf16.msra.mxu0 %v4073
    %4209 = vmatprep.subr.bf16.mxu0 %v4078
    %4210 = vmatpush1.bf16.msra.mxu0 %v4077
    %4211 = vmatprep.subr.bf16.mxu0 0
    %4212 = vmatpush1.bf16.msra.mxu0 0
    %4213 = vmatprep.subr.bf16.mxu0 0
    %4214 = vmatpush1.bf16.msra.mxu0 0
    %4215 = vmatprep.subr.bf16.mxu0 0
    %4216 = vmatpush1.bf16.msra.mxu0 0
    %4217 = vmatprep.subr.bf16.mxu0 0
    %4218 = vmatpush1.bf16.msra.mxu0 0
    %4219 = vmatprep.subr.bf16.mxu0 0
    %4220 = vmatpush1.bf16.msra.mxu0 0
    %4221 = vmatprep.subr.bf16.mxu0 0
    %4222 = vmatpush1.bf16.msra.mxu0 0
    %4223 = vmatprep.subr.bf16.mxu0 0
    %4224 = vmatpush1.bf16.msra.mxu0 0
    %4225 = vmatprep.subr.bf16.mxu0 0
    %4226 = vmatpush1.bf16.msra.mxu0 0
    %4227 = vmatprep.mubr.bf16.mxu0 0
    %4228 = vmatmul.mubr.bf16.gmra.mrb[0].mxu0 %v4048
    %v4229 = vpop.f32.mrb[0].mxu0
    %v4230 = vadd.f32 %v4148, %v4229
    %v4231 = vpop.f32.mrb[0].mxu0
    %v4232 = vadd.f32 %v4150, %v4231
    %v4233 = vpop.f32.mrb[0].mxu0
    %v4234 = vpop.f32.mrb[0].mxu0
    %4235 = vdwg.mxu0
    %4236 = vmatprep.subr.bf16.mxu0 %v4052
    %4237 = vmatpush1.bf16.msra.mxu0 %v4051
    %4238 = vmatprep.subr.bf16.mxu0 %v4056
    %4239 = vmatpush1.bf16.msra.mxu0 %v4055
    %4240 = vmatprep.subr.bf16.mxu0 %v4060
    %4241 = vmatpush1.bf16.msra.mxu0 %v4059
    %4242 = vmatprep.subr.bf16.mxu0 %v4064
    %4243 = vmatpush1.bf16.msra.mxu0 %v4063
    %4244 = vmatprep.subr.bf16.mxu0 %v4068
    %4245 = vmatpush1.bf16.msra.mxu0 %v4067
    %4246 = vmatprep.subr.bf16.mxu0 %v4072
    %4247 = vmatpush1.bf16.msra.mxu0 %v4071
    %4248 = vmatprep.subr.bf16.mxu0 %v4076
    %4249 = vmatpush1.bf16.msra.mxu0 %v4075
    %4250 = vmatprep.subr.bf16.mxu0 %v4080
    %4251 = vmatpush1.bf16.msra.mxu0 %v4079
    %4252 = vmatprep.subr.bf16.mxu0 0
    %4253 = vmatpush1.bf16.msra.mxu0 0
    %4254 = vmatprep.subr.bf16.mxu0 0
    %4255 = vmatpush1.bf16.msra.mxu0 0
    %4256 = vmatprep.subr.bf16.mxu0 0
    %4257 = vmatpush1.bf16.msra.mxu0 0
    %4258 = vmatprep.subr.bf16.mxu0 0
    %4259 = vmatpush1.bf16.msra.mxu0 0
    %4260 = vmatprep.subr.bf16.mxu0 0
    %4261 = vmatpush1.bf16.msra.mxu0 0
    %4262 = vmatprep.subr.bf16.mxu0 0
    %4263 = vmatpush1.bf16.msra.mxu0 0
    %4264 = vmatprep.subr.bf16.mxu0 0
    %4265 = vmatpush1.bf16.msra.mxu0 0
    %4266 = vmatprep.subr.bf16.mxu0 0
    %4267 = vmatpush1.bf16.msra.mxu0 0
    %4268 = vmatprep.mubr.bf16.mxu0 0
    %4269 = vmatmul.mubr.bf16.gmra.mrb[0].mxu0 %v4048
    %v4270 = vpop.f32.mrb[0].mxu0
    %v4271 = vadd.f32 %v4189, %v4270
    %v4272 = vpop.f32.mrb[0].mxu0
    %v4273 = vadd.f32 %v4191, %v4272
    %v4274 = vpop.f32.mrb[0].mxu0
    %v4275 = vpop.f32.mrb[0].mxu0
    %4276 = vdwg.mxu0
    %v4277 = vld [vmem:[%s3608] sm:$0xff]
    %v4278 = vld [vmem:[%s3608 + $0x8] sm:$0xff]
    %v4279 = vld [vmem:[%s3608 + $0x10] sm:$0xff]
    %v4280 = vld [vmem:[%s3608 + $0x18] sm:$0xff]
    %v4281 = vadd.f32 %v4230, %v4277
    %v4282 = vadd.f32 %v4232, %v4278
    %v4283 = vadd.f32 %v4271, %v4279
    %v4284 = vadd.f32 %v4273, %v4280
    %v4285 = vxor.u32 %v4281, 2147483648
    %v4286 = vmul.f32 %v4285, 1.442695
    %v4287 = vpow.pop %v4286
    %v4288 = vadd.f32 %v4287, 1.0
    %v4289 = vrcp.pop %v4288
    %v4290 = vmul.f32 1.0, %v4289
    %v4291 = vxor.u32 %v4282, 2147483648
    %v4292 = vmul.f32 %v4291, 1.442695
    %v4293 = vpow.pop %v4292
    %v4294 = vadd.f32 %v4293, 1.0
    %v4295 = vrcp.pop %v4294
    %v4296 = vmul.f32 1.0, %v4295
    %v4297 = vtanh.pop %v4283
    %v4298 = vxor.u32 %v4284, 2147483648
    %v4299 = vmul.f32 %v4298, 1.442695
    %v4300 = vpow.pop %v4299
    %v4301 = vadd.f32 %v4300, 1.0
    %v4302 = vrcp.pop %v4301
    %v4303 = vmul.f32 1.0, %v4302
    %v4304 = vmul.f32 %v4296, %v3638
    %v4305 = vmul.f32 %v4290, %v4297
    %v4306 = vadd.f32 %v4304, %v4305
    %v4307 = vtanh.pop %v4306
    %v4308 = vmul.f32 %v4303, %v4307
    %v4309 = vpack.c.bf16 %v4308, %v4308
    %v4310 = vld [vmem:[#allocation11] sm:$0xf]
    %v4311 = vld [vmem:[#allocation11 + $0x4] sm:$0xf]
    %v4312 = vld [vmem:[#allocation11 + $0x8] sm:$0xf]
    %v4313 = vld [vmem:[#allocation11 + $0xc] sm:$0xf]
    %v4314 = vld [vmem:[#allocation11 + $0x10] sm:$0xf]
    %v4315 = vld [vmem:[#allocation11 + $0x14] sm:$0xf]
    %v4316 = vld [vmem:[#allocation11 + $0x18] sm:$0xf]
    %v4317 = vld [vmem:[#allocation11 + $0x1c] sm:$0xf]
    %v4318 = vld [vmem:[#allocation11 + $0x20] sm:$0xf]
    %v4319 = vld [vmem:[#allocation11 + $0x24] sm:$0xf]
    %v4320 = vld [vmem:[#allocation11 + $0x28] sm:$0xf]
    %v4321 = vld [vmem:[#allocation11 + $0x2c] sm:$0xf]
    %v4322 = vld [vmem:[#allocation11 + $0x30] sm:$0xf]
    %v4323 = vld [vmem:[#allocation11 + $0x34] sm:$0xf]
    %v4324 = vld [vmem:[#allocation11 + $0x38] sm:$0xf]
    %v4325 = vld [vmem:[#allocation11 + $0x3c] sm:$0xf]
    %v4326 = vld [vmem:[%s8] sm:$0xff]
    %v4343 = vunpack.c.l.b16 %v4310
    %v4344 = vunpack.c.l.b16 %v4311
    %v4345 = vunpack.c.l.b16 %v4312
    %v4346 = vunpack.c.l.b16 %v4313
    %v4347 = vunpack.c.l.b16 %v4314
    %v4348 = vunpack.c.l.b16 %v4315
    %v4349 = vunpack.c.l.b16 %v4316
    %v4350 = vunpack.c.l.b16 %v4317
    %v4351 = vunpack.c.l.b16 %v4318
    %v4352 = vunpack.c.l.b16 %v4319
    %v4353 = vunpack.c.l.b16 %v4320
    %v4354 = vunpack.c.l.b16 %v4321
    %v4355 = vunpack.c.l.b16 %v4322
    %v4356 = vunpack.c.l.b16 %v4323
    %v4357 = vunpack.c.l.b16 %v4324
    %v4358 = vunpack.c.l.b16 %v4325
    %v4359 = vpack.c.b16 %v4344, %v4343
    %v4360 = vpack.c.b16 %v4346, %v4345
    %v4361 = vpack.c.b16 %v4348, %v4347
    %v4362 = vpack.c.b16 %v4350, %v4349
    %v4363 = vpack.c.b16 %v4352, %v4351
    %v4364 = vpack.c.b16 %v4354, %v4353
    %v4365 = vpack.c.b16 %v4356, %v4355
    %v4366 = vpack.c.b16 %v4358, %v4357
    %4375 = vmatprep.subr.bf16.mxu0 0
    %4376 = vmatpush1.bf16.msra.mxu0 %v4359
    %4377 = vmatprep.subr.bf16.mxu0 0
    %4378 = vmatpush1.bf16.msra.mxu0 %v4360
    %4379 = vmatprep.subr.bf16.mxu0 0
    %4380 = vmatpush1.bf16.msra.mxu0 %v4361
    %4381 = vmatprep.subr.bf16.mxu0 0
    %4382 = vmatpush1.bf16.msra.mxu0 %v4362
    %4383 = vmatprep.subr.bf16.mxu0 0
    %4384 = vmatpush1.bf16.msra.mxu0 %v4363
    %4385 = vmatprep.subr.bf16.mxu0 0
    %4386 = vmatpush1.bf16.msra.mxu0 %v4364
    %4387 = vmatprep.subr.bf16.mxu0 0
    %4388 = vmatpush1.bf16.msra.mxu0 %v4365
    %4389 = vmatprep.subr.bf16.mxu0 0
    %4390 = vmatpush1.bf16.msra.mxu0 %v4366
    %4391 = vmatprep.subr.bf16.mxu0 0
    %4392 = vmatpush1.bf16.msra.mxu0 0
    %4393 = vmatprep.subr.bf16.mxu0 0
    %4394 = vmatpush1.bf16.msra.mxu0 0
    %4395 = vmatprep.subr.bf16.mxu0 0
    %4396 = vmatpush1.bf16.msra.mxu0 0
    %4397 = vmatprep.subr.bf16.mxu0 0
    %4398 = vmatpush1.bf16.msra.mxu0 0
    %4399 = vmatprep.subr.bf16.mxu0 0
    %4400 = vmatpush1.bf16.msra.mxu0 0
    %4401 = vmatprep.subr.bf16.mxu0 0
    %4402 = vmatpush1.bf16.msra.mxu0 0
    %4403 = vmatprep.subr.bf16.mxu0 0
    %4404 = vmatpush1.bf16.msra.mxu0 0
    %4405 = vmatprep.subr.bf16.mxu0 0
    %4406 = vmatpush1.bf16.msra.mxu0 0
    %4407 = vmatprep.mubr.bf16.mxu0 0
    %4408 = vmatmul.mubr.bf16.gmra.mrb[0].mxu0 %v4309
    %v4409 = vpop.f32.mrb[0].mxu0
    %v4410 = vadd.f32 %v4326, %v4409
    %v4411 = vpop.f32.mrb[0].mxu0
    %v4412 = vpop.f32.mrb[0].mxu0
    %v4413 = vpop.f32.mrb[0].mxu0
    %4414 = vdwg.mxu0
    %s4415 = scalar_lea.vmem [#allocation13], 16
    %4416 = vst [vmem:[%s4415] sm:$0xff] %v4410
    %4417 = vmax.xlane.f32.xlu0 %v4410
    %v4418 = vpop.xlane.xlu0 %4417
    %vm4419 = vcmp.eq.f32.partialorder %v4410, %v4418
    %v4420 = vsel %vm4419, %v98, 128
    %v4421 = vand.u32 %v4420, 65535
    %v4422 = vshra.s32 %v4420, 16
    %v4423 = vcvt.s32.f32 %v4421
    %v4424 = vcvt.s32.f32 %v4422
    %4425 = vmin.xlane.f32.xlu0 %v4424
    %v4426 = vpop.xlane.xlu0 %4425
    %vm4427 = vcmp.eq.f32.partialorder %v4424, %v4426
    %v4428 = vsel %vm4427, %v4423, inf
    %4429 = vmin.xlane.f32.xlu0 %v4428
    %v4430 = vpop.xlane.xlu0 %4429
    %v4431 = vcvt.f32.s32 %v4430
    %v4432 = vcvt.f32.s32 %v4426
    %v4433 = vshll.u32 %v4432, 16
    %v4434 = vadd.s32 %v4433, %v4431
    %vm4435 = vcmp.eq.s32.totalorder %v98, %v4434
    %v4436 = vsel %vm4435, 1, 0
    %v4437 = vcvt.s32.f32 %v4436
    %v4438 = vpack.c.bf16 %v4437, %v4437
    %v4439 = vld [vmem:[#allocation2] sm:$0xff]
    %v4440 = vld [vmem:[#allocation2 + $0x8] sm:$0xff]
    %v4441 = vld [vmem:[#allocation2 + $0x10] sm:$0xff]
    %v4442 = vld [vmem:[#allocation2 + $0x18] sm:$0xff]
    %v4443 = vld [vmem:[#allocation2 + $0x20] sm:$0xff]
    %v4444 = vld [vmem:[#allocation2 + $0x28] sm:$0xff]
    %v4445 = vld [vmem:[#allocation2 + $0x30] sm:$0xff]
    %v4446 = vld [vmem:[#allocation2 + $0x38] sm:$0xff]
    %v4447 = vld [vmem:[#allocation2 + $0x40] sm:$0xff]
    %v4448 = vld [vmem:[#allocation2 + $0x48] sm:$0xff]
    %v4449 = vld [vmem:[#allocation2 + $0x50] sm:$0xff]
    %v4450 = vld [vmem:[#allocation2 + $0x58] sm:$0xff]
    %v4451 = vld [vmem:[#allocation2 + $0x60] sm:$0xff]
    %v4452 = vld [vmem:[#allocation2 + $0x68] sm:$0xff]
    %v4453 = vld [vmem:[#allocation2 + $0x70] sm:$0xff]
    %v4454 = vld [vmem:[#allocation2 + $0x78] sm:$0xff]
    %v4455 = vld [vmem:[#allocation2 + $0x80] sm:$0xff]
    %v4456 = vld [vmem:[#allocation2 + $0x88] sm:$0xff]
    %v4457 = vld [vmem:[#allocation2 + $0x90] sm:$0xff]
    %v4458 = vld [vmem:[#allocation2 + $0x98] sm:$0xff]
    %v4459 = vld [vmem:[#allocation2 + $0xa0] sm:$0xff]
    %v4460 = vld [vmem:[#allocation2 + $0xa8] sm:$0xff]
    %v4461 = vld [vmem:[#allocation2 + $0xb0] sm:$0xff]
    %v4462 = vld [vmem:[#allocation2 + $0xb8] sm:$0xff]
    %v4463 = vld [vmem:[#allocation2 + $0xc0] sm:$0xff]
    %v4464 = vld [vmem:[#allocation2 + $0xc8] sm:$0xff]
    %v4465 = vld [vmem:[#allocation2 + $0xd0] sm:$0xff]
    %v4466 = vld [vmem:[#allocation2 + $0xd8] sm:$0xff]
    %v4467 = vld [vmem:[#allocation2 + $0xe0] sm:$0xff]
    %v4468 = vld [vmem:[#allocation2 + $0xe8] sm:$0xff]
    %v4469 = vld [vmem:[#allocation2 + $0xf0] sm:$0xff]
    %v4470 = vld [vmem:[#allocation2 + $0xf8] sm:$0xff]
    %4471 = vmatprep.subr.bf16.mxu0 %v4440
    %4472 = vmatpush1.bf16.msra.mxu0 %v4439
    %4473 = vmatprep.subr.bf16.mxu0 %v4444
    %4474 = vmatpush1.bf16.msra.mxu0 %v4443
    %4475 = vmatprep.subr.bf16.mxu0 %v4448
    %4476 = vmatpush1.bf16.msra.mxu0 %v4447
    %4477 = vmatprep.subr.bf16.mxu0 %v4452
    %4478 = vmatpush1.bf16.msra.mxu0 %v4451
    %4479 = vmatprep.subr.bf16.mxu0 %v4456
    %4480 = vmatpush1.bf16.msra.mxu0 %v4455
    %4481 = vmatprep.subr.bf16.mxu0 %v4460
    %4482 = vmatpush1.bf16.msra.mxu0 %v4459
    %4483 = vmatprep.subr.bf16.mxu0 %v4464
    %4484 = vmatpush1.bf16.msra.mxu0 %v4463
    %4485 = vmatprep.subr.bf16.mxu0 %v4468
    %4486 = vmatpush1.bf16.msra.mxu0 %v4467
    %4487 = vmatprep.subr.bf16.mxu0 0
    %4488 = vmatpush1.bf16.msra.mxu0 0
    %4489 = vmatprep.subr.bf16.mxu0 0
    %4490 = vmatpush1.bf16.msra.mxu0 0
    %4491 = vmatprep.subr.bf16.mxu0 0
    %4492 = vmatpush1.bf16.msra.mxu0 0
    %4493 = vmatprep.subr.bf16.mxu0 0
    %4494 = vmatpush1.bf16.msra.mxu0 0
    %4495 = vmatprep.subr.bf16.mxu0 0
    %4496 = vmatpush1.bf16.msra.mxu0 0
    %4497 = vmatprep.subr.bf16.mxu0 0
    %4498 = vmatpush1.bf16.msra.mxu0 0
    %4499 = vmatprep.subr.bf16.mxu0 0
    %4500 = vmatpush1.bf16.msra.mxu0 0
    %4501 = vmatprep.subr.bf16.mxu0 0
    %4502 = vmatpush1.bf16.msra.mxu0 0
    %4503 = vmatprep.mubr.bf16.mxu0 0
    %4504 = vmatmul.mubr.bf16.gmra.mrb[0].mxu0 %v4438
    %v4505 = vpop.f32.mrb[0].mxu0
    %v4506 = vadd.f32 0.0, %v4505
    %v4507 = vpop.f32.mrb[0].mxu0
    %v4508 = vadd.f32 0.0, %v4507
    %v4509 = vpop.f32.mrb[0].mxu0
    %v4510 = vpop.f32.mrb[0].mxu0
    %4511 = vdwg.mxu0
    %4512 = vmatprep.subr.bf16.mxu0 %v4442
    %4513 = vmatpush1.bf16.msra.mxu0 %v4441
    %4514 = vmatprep.subr.bf16.mxu0 %v4446
    %4515 = vmatpush1.bf16.msra.mxu0 %v4445
    %4516 = vmatprep.subr.bf16.mxu0 %v4450
    %4517 = vmatpush1.bf16.msra.mxu0 %v4449
    %4518 = vmatprep.subr.bf16.mxu0 %v4454
    %4519 = vmatpush1.bf16.msra.mxu0 %v4453
    %4520 = vmatprep.subr.bf16.mxu0 %v4458
    %4521 = vmatpush1.bf16.msra.mxu0 %v4457
    %4522 = vmatprep.subr.bf16.mxu0 %v4462
    %4523 = vmatpush1.bf16.msra.mxu0 %v4461
    %4524 = vmatprep.subr.bf16.mxu0 %v4466
    %4525 = vmatpush1.bf16.msra.mxu0 %v4465
    %4526 = vmatprep.subr.bf16.mxu0 %v4470
    %4527 = vmatpush1.bf16.msra.mxu0 %v4469
    %4528 = vmatprep.subr.bf16.mxu0 0
    %4529 = vmatpush1.bf16.msra.mxu0 0
    %4530 = vmatprep.subr.bf16.mxu0 0
    %4531 = vmatpush1.bf16.msra.mxu0 0
    %4532 = vmatprep.subr.bf16.mxu0 0
    %4533 = vmatpush1.bf16.msra.mxu0 0
    %4534 = vmatprep.subr.bf16.mxu0 0
    %4535 = vmatpush1.bf16.msra.mxu0 0
    %4536 = vmatprep.subr.bf16.mxu0 0
    %4537 = vmatpush1.bf16.msra.mxu0 0
    %4538 = vmatprep.subr.bf16.mxu0 0
    %4539 = vmatpush1.bf16.msra.mxu0 0
    %4540 = vmatprep.subr.bf16.mxu0 0
    %4541 = vmatpush1.bf16.msra.mxu0 0
    %4542 = vmatprep.subr.bf16.mxu0 0
    %4543 = vmatpush1.bf16.msra.mxu0 0
    %4544 = vmatprep.mubr.bf16.mxu0 0
    %4545 = vmatmul.mubr.bf16.gmra.mrb[0].mxu0 %v4438
    %v4546 = vpop.f32.mrb[0].mxu0
    %v4547 = vadd.f32 0.0, %v4546
    %v4548 = vpop.f32.mrb[0].mxu0
    %v4549 = vadd.f32 0.0, %v4548
    %v4550 = vpop.f32.mrb[0].mxu0
    %v4551 = vpop.f32.mrb[0].mxu0
    %4552 = vdwg.mxu0
    %v4553 = vld [vmem:[#allocation4 + $0x40] sm:$0xff]
    %v4554 = vld [vmem:[#allocation4 + $0x48] sm:$0xff]
    %v4555 = vld [vmem:[#allocation4 + $0x50] sm:$0xff]
    %v4556 = vld [vmem:[#allocation4 + $0x58] sm:$0xff]
    %s4557 = sld [smem:[#allocation7 + $0x2]]
    %p4558 = scmp.eq.s32.totalorder %s4557, 1
    %s4559 = scalar_select %p4558, 1, 0
    %v4560 = vstv %s4559
    %vm4561 = vcmp.eq.s32.totalorder %v4560, 1
    %v4562 = vsel %vm4561, %v4553, %v4506
    %v4563 = vsel %vm4561, %v4554, %v4508
    %v4564 = vsel %vm4561, %v4555, %v4547
    %v4565 = vsel %vm4561, %v4556, %v4549
    %v4566 = vld [vmem:[%s3225] sm:$0xff]
    %v4567 = vld [vmem:[%s3225 + $0x8] sm:$0xff]
    %v4568 = vld [vmem:[%s3225 + $0x10] sm:$0xff]
    %v4569 = vld [vmem:[%s3225 + $0x18] sm:$0xff]
    %v4570 = vld [vmem:[%s3225 + $0x20] sm:$0xff]
    %v4571 = vld [vmem:[%s3225 + $0x28] sm:$0xff]
    %v4572 = vld [vmem:[%s3225 + $0x30] sm:$0xff]
    %v4573 = vld [vmem:[%s3225 + $0x38] sm:$0xff]
    %v4574 = vld [vmem:[%s3225 + $0x40] sm:$0xff]
    %v4575 = vld [vmem:[%s3225 + $0x48] sm:$0xff]
    %v4576 = vld [vmem:[%s3225 + $0x50] sm:$0xff]
    %v4577 = vld [vmem:[%s3225 + $0x58] sm:$0xff]
    %v4578 = vld [vmem:[%s3225 + $0x60] sm:$0xff]
    %v4579 = vld [vmem:[%s3225 + $0x68] sm:$0xff]
    %v4580 = vld [vmem:[%s3225 + $0x70] sm:$0xff]
    %v4581 = vld [vmem:[%s3225 + $0x78] sm:$0xff]
    %v4582 = vld [vmem:[%s3225 + $0x80] sm:$0xff]
    %v4583 = vld [vmem:[%s3225 + $0x88] sm:$0xff]
    %v4584 = vld [vmem:[%s3225 + $0x90] sm:$0xff]
    %v4585 = vld [vmem:[%s3225 + $0x98] sm:$0xff]
    %v4586 = vld [vmem:[%s3225 + $0xa0] sm:$0xff]
    %v4587 = vld [vmem:[%s3225 + $0xa8] sm:$0xff]
    %v4588 = vld [vmem:[%s3225 + $0xb0] sm:$0xff]
    %v4589 = vld [vmem:[%s3225 + $0xb8] sm:$0xff]
    %v4590 = vld [vmem:[%s3225 + $0xc0] sm:$0xff]
    %v4591 = vld [vmem:[%s3225 + $0xc8] sm:$0xff]
    %v4592 = vld [vmem:[%s3225 + $0xd0] sm:$0xff]
    %v4593 = vld [vmem:[%s3225 + $0xd8] sm:$0xff]
    %v4594 = vld [vmem:[%s3225 + $0xe0] sm:$0xff]
    %v4595 = vld [vmem:[%s3225 + $0xe8] sm:$0xff]
    %v4596 = vld [vmem:[%s3225 + $0xf0] sm:$0xff]
    %v4597 = vld [vmem:[%s3225 + $0xf8] sm:$0xff]
    %4598 = vmatprep.subr.bf16.mxu0 %v4567
    %4599 = vmatpush1.bf16.msra.mxu0 %v4566
    %4600 = vmatprep.subr.bf16.mxu0 %v4571
    %4601 = vmatpush1.bf16.msra.mxu0 %v4570
    %4602 = vmatprep.subr.bf16.mxu0 %v4575
    %4603 = vmatpush1.bf16.msra.mxu0 %v4574
    %4604 = vmatprep.subr.bf16.mxu0 %v4579
    %4605 = vmatpush1.bf16.msra.mxu0 %v4578
    %4606 = vmatprep.subr.bf16.mxu0 %v4583
    %4607 = vmatpush1.bf16.msra.mxu0 %v4582
    %4608 = vmatprep.subr.bf16.mxu0 %v4587
    %4609 = vmatpush1.bf16.msra.mxu0 %v4586
    %4610 = vmatprep.subr.bf16.mxu0 %v4591
    %4611 = vmatpush1.bf16.msra.mxu0 %v4590
    %4612 = vmatprep.subr.bf16.mxu0 %v4595
    %4613 = vmatpush1.bf16.msra.mxu0 %v4594
    %4614 = vmatprep.subr.bf16.mxu0 0
    %4615 = vmatpush1.bf16.msra.mxu0 0
    %4616 = vmatprep.subr.bf16.mxu0 0
    %4617 = vmatpush1.bf16.msra.mxu0 0
    %4618 = vmatprep.subr.bf16.mxu0 0
    %4619 = vmatpush1.bf16.msra.mxu0 0
    %4620 = vmatprep.subr.bf16.mxu0 0
    %4621 = vmatpush1.bf16.msra.mxu0 0
    %4622 = vmatprep.subr.bf16.mxu0 0
    %4623 = vmatpush1.bf16.msra.mxu0 0
    %4624 = vmatprep.subr.bf16.mxu0 0
    %4625 = vmatpush1.bf16.msra.mxu0 0
    %4626 = vmatprep.subr.bf16.mxu0 0
    %4627 = vmatpush1.bf16.msra.mxu0 0
    %4628 = vmatprep.subr.bf16.mxu0 0
    %4629 = vmatpush1.bf16.msra.mxu0 0
    %4630 = vmatprep.mubr.bf16.mxu0 0
    %4631 = vmatmul.mubr.bf16.gmra.mrb[0].mxu0 %v4048
    %v4632 = vpop.f32.mrb[0].mxu0
    %v4633 = vadd.f32 0.0, %v4632
    %v4634 = vpop.f32.mrb[0].mxu0
    %v4635 = vadd.f32 0.0, %v4634
    %v4636 = vpop.f32.mrb[0].mxu0
    %v4637 = vpop.f32.mrb[0].mxu0
    %4638 = vdwg.mxu0
    %4639 = vmatprep.subr.bf16.mxu0 %v4569
    %4640 = vmatpush1.bf16.msra.mxu0 %v4568
    %4641 = vmatprep.subr.bf16.mxu0 %v4573
    %4642 = vmatpush1.bf16.msra.mxu0 %v4572
    %4643 = vmatprep.subr.bf16.mxu0 %v4577
    %4644 = vmatpush1.bf16.msra.mxu0 %v4576
    %4645 = vmatprep.subr.bf16.mxu0 %v4581
    %4646 = vmatpush1.bf16.msra.mxu0 %v4580
    %4647 = vmatprep.subr.bf16.mxu0 %v4585
    %4648 = vmatpush1.bf16.msra.mxu0 %v4584
    %4649 = vmatprep.subr.bf16.mxu0 %v4589
    %4650 = vmatpush1.bf16.msra.mxu0 %v4588
    %4651 = vmatprep.subr.bf16.mxu0 %v4593
    %4652 = vmatpush1.bf16.msra.mxu0 %v4592
    %4653 = vmatprep.subr.bf16.mxu0 %v4597
    %4654 = vmatpush1.bf16.msra.mxu0 %v4596
    %4655 = vmatprep.subr.bf16.mxu0 0
    %4656 = vmatpush1.bf16.msra.mxu0 0
    %4657 = vmatprep.subr.bf16.mxu0 0
    %4658 = vmatpush1.bf16.msra.mxu0 0
    %4659 = vmatprep.subr.bf16.mxu0 0
    %4660 = vmatpush1.bf16.msra.mxu0 0
    %4661 = vmatprep.subr.bf16.mxu0 0
    %4662 = vmatpush1.bf16.msra.mxu0 0
    %4663 = vmatprep.subr.bf16.mxu0 0
    %4664 = vmatpush1.bf16.msra.mxu0 0
    %4665 = vmatprep.subr.bf16.mxu0 0
    %4666 = vmatpush1.bf16.msra.mxu0 0
    %4667 = vmatprep.subr.bf16.mxu0 0
    %4668 = vmatpush1.bf16.msra.mxu0 0
    %4669 = vmatprep.subr.bf16.mxu0 0
    %4670 = vmatpush1.bf16.msra.mxu0 0
    %4671 = vmatprep.mubr.bf16.mxu0 0
    %4672 = vmatmul.mubr.bf16.gmra.mrb[0].mxu0 %v4048
    %v4673 = vpop.f32.mrb[0].mxu0
    %v4674 = vadd.f32 0.0, %v4673
    %v4675 = vpop.f32.mrb[0].mxu0
    %v4676 = vadd.f32 0.0, %v4675
    %v4677 = vpop.f32.mrb[0].mxu0
    %v4678 = vpop.f32.mrb[0].mxu0
    %4679 = vdwg.mxu0
    %v4680 = vadd.f32 %v4562, %v4633
    %v4681 = vadd.f32 %v4563, %v4635
    %v4682 = vadd.f32 %v4564, %v4674
    %v4683 = vadd.f32 %v4565, %v4676
    %v4684 = vld [vmem:[%s6] sm:$0xff]
    %v4685 = vld [vmem:[%s6 + $0x8] sm:$0xff]
    %v4686 = vld [vmem:[%s6 + $0x10] sm:$0xff]
    %v4687 = vld [vmem:[%s6 + $0x18] sm:$0xff]
    %v4688 = vadd.f32 %v4680, %v4684
    %v4689 = vadd.f32 %v4681, %v4685
    %v4690 = vadd.f32 %v4682, %v4686
    %v4691 = vadd.f32 %v4683, %v4687
    %v4692 = vxor.u32 %v4688, 2147483648
    %v4693 = vmul.f32 %v4692, 1.442695
    %v4694 = vpow.pop %v4693
    %v4695 = vadd.f32 %v4694, 1.0
    %v4696 = vrcp.pop %v4695
    %v4697 = vmul.f32 1.0, %v4696
    %v4698 = vxor.u32 %v4689, 2147483648
    %v4699 = vmul.f32 %v4698, 1.442695
    %v4700 = vpow.pop %v4699
    %v4701 = vadd.f32 %v4700, 1.0
    %v4702 = vrcp.pop %v4701
    %v4703 = vmul.f32 1.0, %v4702
    %v4704 = vtanh.pop %v4690
    %v4705 = vxor.u32 %v4691, 2147483648
    %v4706 = vmul.f32 %v4705, 1.442695
    %v4707 = vpow.pop %v4706
    %v4708 = vadd.f32 %v4707, 1.0
    %v4709 = vrcp.pop %v4708
    %v4710 = vmul.f32 1.0, %v4709
    %v4711 = vmul.f32 %v4703, %v4045
    %v4712 = vmul.f32 %v4697, %v4704
    %v4713 = vadd.f32 %v4711, %v4712
    %v4714 = vtanh.pop %v4713
    %v4715 = vmul.f32 %v4710, %v4714
    %v4716 = vpack.c.bf16 %v4715, %v4715
    %v4717 = vld [vmem:[%s3377] sm:$0xff]
    %v4718 = vld [vmem:[%s3377 + $0x8] sm:$0xff]
    %v4719 = vld [vmem:[%s3377 + $0x10] sm:$0xff]
    %v4720 = vld [vmem:[%s3377 + $0x18] sm:$0xff]
    %v4721 = vld [vmem:[%s3377 + $0x20] sm:$0xff]
    %v4722 = vld [vmem:[%s3377 + $0x28] sm:$0xff]
    %v4723 = vld [vmem:[%s3377 + $0x30] sm:$0xff]
    %v4724 = vld [vmem:[%s3377 + $0x38] sm:$0xff]
    %v4725 = vld [vmem:[%s3377 + $0x40] sm:$0xff]
    %v4726 = vld [vmem:[%s3377 + $0x48] sm:$0xff]
    %v4727 = vld [vmem:[%s3377 + $0x50] sm:$0xff]
    %v4728 = vld [vmem:[%s3377 + $0x58] sm:$0xff]
    %v4729 = vld [vmem:[%s3377 + $0x60] sm:$0xff]
    %v4730 = vld [vmem:[%s3377 + $0x68] sm:$0xff]
    %v4731 = vld [vmem:[%s3377 + $0x70] sm:$0xff]
    %v4732 = vld [vmem:[%s3377 + $0x78] sm:$0xff]
    %v4733 = vld [vmem:[%s3377 + $0x80] sm:$0xff]
    %v4734 = vld [vmem:[%s3377 + $0x88] sm:$0xff]
    %v4735 = vld [vmem:[%s3377 + $0x90] sm:$0xff]
    %v4736 = vld [vmem:[%s3377 + $0x98] sm:$0xff]
    %v4737 = vld [vmem:[%s3377 + $0xa0] sm:$0xff]
    %v4738 = vld [vmem:[%s3377 + $0xa8] sm:$0xff]
    %v4739 = vld [vmem:[%s3377 + $0xb0] sm:$0xff]
    %v4740 = vld [vmem:[%s3377 + $0xb8] sm:$0xff]
    %v4741 = vld [vmem:[%s3377 + $0xc0] sm:$0xff]
    %v4742 = vld [vmem:[%s3377 + $0xc8] sm:$0xff]
    %v4743 = vld [vmem:[%s3377 + $0xd0] sm:$0xff]
    %v4744 = vld [vmem:[%s3377 + $0xd8] sm:$0xff]
    %v4745 = vld [vmem:[%s3377 + $0xe0] sm:$0xff]
    %v4746 = vld [vmem:[%s3377 + $0xe8] sm:$0xff]
    %v4747 = vld [vmem:[%s3377 + $0xf0] sm:$0xff]
    %v4748 = vld [vmem:[%s3377 + $0xf8] sm:$0xff]
    %v4749 = vld [vmem:[%s3411] sm:$0xff]
    %v4750 = vld [vmem:[%s3411 + $0x8] sm:$0xff]
    %v4751 = vld [vmem:[%s3411 + $0x10] sm:$0xff]
    %v4752 = vld [vmem:[%s3411 + $0x18] sm:$0xff]
    %v4753 = vld [vmem:[%s3411 + $0x20] sm:$0xff]
    %v4754 = vld [vmem:[%s3411 + $0x28] sm:$0xff]
    %v4755 = vld [vmem:[%s3411 + $0x30] sm:$0xff]
    %v4756 = vld [vmem:[%s3411 + $0x38] sm:$0xff]
    %v4757 = vld [vmem:[%s3411 + $0x40] sm:$0xff]
    %v4758 = vld [vmem:[%s3411 + $0x48] sm:$0xff]
    %v4759 = vld [vmem:[%s3411 + $0x50] sm:$0xff]
    %v4760 = vld [vmem:[%s3411 + $0x58] sm:$0xff]
    %v4761 = vld [vmem:[%s3411 + $0x60] sm:$0xff]
    %v4762 = vld [vmem:[%s3411 + $0x68] sm:$0xff]
    %v4763 = vld [vmem:[%s3411 + $0x70] sm:$0xff]
    %v4764 = vld [vmem:[%s3411 + $0x78] sm:$0xff]
    %v4765 = vld [vmem:[%s3411 + $0x80] sm:$0xff]
    %v4766 = vld [vmem:[%s3411 + $0x88] sm:$0xff]
    %v4767 = vld [vmem:[%s3411 + $0x90] sm:$0xff]
    %v4768 = vld [vmem:[%s3411 + $0x98] sm:$0xff]
    %v4769 = vld [vmem:[%s3411 + $0xa0] sm:$0xff]
    %v4770 = vld [vmem:[%s3411 + $0xa8] sm:$0xff]
    %v4771 = vld [vmem:[%s3411 + $0xb0] sm:$0xff]
    %v4772 = vld [vmem:[%s3411 + $0xb8] sm:$0xff]
    %v4773 = vld [vmem:[%s3411 + $0xc0] sm:$0xff]
    %v4774 = vld [vmem:[%s3411 + $0xc8] sm:$0xff]
    %v4775 = vld [vmem:[%s3411 + $0xd0] sm:$0xff]
    %v4776 = vld [vmem:[%s3411 + $0xd8] sm:$0xff]
    %v4777 = vld [vmem:[%s3411 + $0xe0] sm:$0xff]
    %v4778 = vld [vmem:[%s3411 + $0xe8] sm:$0xff]
    %v4779 = vld [vmem:[%s3411 + $0xf0] sm:$0xff]
    %v4780 = vld [vmem:[%s3411 + $0xf8] sm:$0xff]
    %4781 = vmatprep.subr.bf16.mxu0 %v4750
    %4782 = vmatpush1.bf16.msra.mxu0 %v4749
    %4783 = vmatprep.subr.bf16.mxu0 %v4754
    %4784 = vmatpush1.bf16.msra.mxu0 %v4753
    %4785 = vmatprep.subr.bf16.mxu0 %v4758
    %4786 = vmatpush1.bf16.msra.mxu0 %v4757
    %4787 = vmatprep.subr.bf16.mxu0 %v4762
    %4788 = vmatpush1.bf16.msra.mxu0 %v4761
    %4789 = vmatprep.subr.bf16.mxu0 %v4766
    %4790 = vmatpush1.bf16.msra.mxu0 %v4765
    %4791 = vmatprep.subr.bf16.mxu0 %v4770
    %4792 = vmatpush1.bf16.msra.mxu0 %v4769
    %4793 = vmatprep.subr.bf16.mxu0 %v4774
    %4794 = vmatpush1.bf16.msra.mxu0 %v4773
    %4795 = vmatprep.subr.bf16.mxu0 %v4778
    %4796 = vmatpush1.bf16.msra.mxu0 %v4777
    %4797 = vmatprep.subr.bf16.mxu0 0
    %4798 = vmatpush1.bf16.msra.mxu0 0
    %4799 = vmatprep.subr.bf16.mxu0 0
    %4800 = vmatpush1.bf16.msra.mxu0 0
    %4801 = vmatprep.subr.bf16.mxu0 0
    %4802 = vmatpush1.bf16.msra.mxu0 0
    %4803 = vmatprep.subr.bf16.mxu0 0
    %4804 = vmatpush1.bf16.msra.mxu0 0
    %4805 = vmatprep.subr.bf16.mxu0 0
    %4806 = vmatpush1.bf16.msra.mxu0 0
    %4807 = vmatprep.subr.bf16.mxu0 0
    %4808 = vmatpush1.bf16.msra.mxu0 0
    %4809 = vmatprep.subr.bf16.mxu0 0
    %4810 = vmatpush1.bf16.msra.mxu0 0
    %4811 = vmatprep.subr.bf16.mxu0 0
    %4812 = vmatpush1.bf16.msra.mxu0 0
    %4813 = vmatprep.mubr.bf16.mxu0 0
    %4814 = vmatmul.mubr.bf16.gmra.mrb[0].mxu0 %v4309
    %v4815 = vpop.f32.mrb[0].mxu0
    %v4816 = vadd.f32 0.0, %v4815
    %v4817 = vpop.f32.mrb[0].mxu0
    %v4818 = vadd.f32 0.0, %v4817
    %v4819 = vpop.f32.mrb[0].mxu0
    %v4820 = vpop.f32.mrb[0].mxu0
    %4821 = vdwg.mxu0
    %4822 = vmatprep.subr.bf16.mxu0 %v4752
    %4823 = vmatpush1.bf16.msra.mxu0 %v4751
    %4824 = vmatprep.subr.bf16.mxu0 %v4756
    %4825 = vmatpush1.bf16.msra.mxu0 %v4755
    %4826 = vmatprep.subr.bf16.mxu0 %v4760
    %4827 = vmatpush1.bf16.msra.mxu0 %v4759
    %4828 = vmatprep.subr.bf16.mxu0 %v4764
    %4829 = vmatpush1.bf16.msra.mxu0 %v4763
    %4830 = vmatprep.subr.bf16.mxu0 %v4768
    %4831 = vmatpush1.bf16.msra.mxu0 %v4767
    %4832 = vmatprep.subr.bf16.mxu0 %v4772
    %4833 = vmatpush1.bf16.msra.mxu0 %v4771
    %4834 = vmatprep.subr.bf16.mxu0 %v4776
    %4835 = vmatpush1.bf16.msra.mxu0 %v4775
    %4836 = vmatprep.subr.bf16.mxu0 %v4780
    %4837 = vmatpush1.bf16.msra.mxu0 %v4779
    %4838 = vmatprep.subr.bf16.mxu0 0
    %4839 = vmatpush1.bf16.msra.mxu0 0
    %4840 = vmatprep.subr.bf16.mxu0 0
    %4841 = vmatpush1.bf16.msra.mxu0 0
    %4842 = vmatprep.subr.bf16.mxu0 0
    %4843 = vmatpush1.bf16.msra.mxu0 0
    %4844 = vmatprep.subr.bf16.mxu0 0
    %4845 = vmatpush1.bf16.msra.mxu0 0
    %4846 = vmatprep.subr.bf16.mxu0 0
    %4847 = vmatpush1.bf16.msra.mxu0 0
    %4848 = vmatprep.subr.bf16.mxu0 0
    %4849 = vmatpush1.bf16.msra.mxu0 0
    %4850 = vmatprep.subr.bf16.mxu0 0
    %4851 = vmatpush1.bf16.msra.mxu0 0
    %4852 = vmatprep.subr.bf16.mxu0 0
    %4853 = vmatpush1.bf16.msra.mxu0 0
    %4854 = vmatprep.mubr.bf16.mxu0 0
    %4855 = vmatmul.mubr.bf16.gmra.mrb[0].mxu0 %v4309
    %v4856 = vpop.f32.mrb[0].mxu0
    %v4857 = vadd.f32 0.0, %v4856
    %v4858 = vpop.f32.mrb[0].mxu0
    %v4859 = vadd.f32 0.0, %v4858
    %v4860 = vpop.f32.mrb[0].mxu0
    %v4861 = vpop.f32.mrb[0].mxu0
    %4862 = vdwg.mxu0
    %4863 = vmatprep.subr.bf16.mxu0 %v4718
    %4864 = vmatpush1.bf16.msra.mxu0 %v4717
    %4865 = vmatprep.subr.bf16.mxu0 %v4722
    %4866 = vmatpush1.bf16.msra.mxu0 %v4721
    %4867 = vmatprep.subr.bf16.mxu0 %v4726
    %4868 = vmatpush1.bf16.msra.mxu0 %v4725
    %4869 = vmatprep.subr.bf16.mxu0 %v4730
    %4870 = vmatpush1.bf16.msra.mxu0 %v4729
    %4871 = vmatprep.subr.bf16.mxu0 %v4734
    %4872 = vmatpush1.bf16.msra.mxu0 %v4733
    %4873 = vmatprep.subr.bf16.mxu0 %v4738
    %4874 = vmatpush1.bf16.msra.mxu0 %v4737
    %4875 = vmatprep.subr.bf16.mxu0 %v4742
    %4876 = vmatpush1.bf16.msra.mxu0 %v4741
    %4877 = vmatprep.subr.bf16.mxu0 %v4746
    %4878 = vmatpush1.bf16.msra.mxu0 %v4745
    %4879 = vmatprep.subr.bf16.mxu0 0
    %4880 = vmatpush1.bf16.msra.mxu0 0
    %4881 = vmatprep.subr.bf16.mxu0 0
    %4882 = vmatpush1.bf16.msra.mxu0 0
    %4883 = vmatprep.subr.bf16.mxu0 0
    %4884 = vmatpush1.bf16.msra.mxu0 0
    %4885 = vmatprep.subr.bf16.mxu0 0
    %4886 = vmatpush1.bf16.msra.mxu0 0
    %4887 = vmatprep.subr.bf16.mxu0 0
    %4888 = vmatpush1.bf16.msra.mxu0 0
    %4889 = vmatprep.subr.bf16.mxu0 0
    %4890 = vmatpush1.bf16.msra.mxu0 0
    %4891 = vmatprep.subr.bf16.mxu0 0
    %4892 = vmatpush1.bf16.msra.mxu0 0
    %4893 = vmatprep.subr.bf16.mxu0 0
    %4894 = vmatpush1.bf16.msra.mxu0 0
    %4895 = vmatprep.mubr.bf16.mxu0 0
    %4896 = vmatmul.mubr.bf16.gmra.mrb[0].mxu0 %v4716
    %v4897 = vpop.f32.mrb[0].mxu0
    %v4898 = vadd.f32 %v4816, %v4897
    %v4899 = vpop.f32.mrb[0].mxu0
    %v4900 = vadd.f32 %v4818, %v4899
    %v4901 = vpop.f32.mrb[0].mxu0
    %v4902 = vpop.f32.mrb[0].mxu0
    %4903 = vdwg.mxu0
    %4904 = vmatprep.subr.bf16.mxu0 %v4720
    %4905 = vmatpush1.bf16.msra.mxu0 %v4719
    %4906 = vmatprep.subr.bf16.mxu0 %v4724
    %4907 = vmatpush1.bf16.msra.mxu0 %v4723
    %4908 = vmatprep.subr.bf16.mxu0 %v4728
    %4909 = vmatpush1.bf16.msra.mxu0 %v4727
    %4910 = vmatprep.subr.bf16.mxu0 %v4732
    %4911 = vmatpush1.bf16.msra.mxu0 %v4731
    %4912 = vmatprep.subr.bf16.mxu0 %v4736
    %4913 = vmatpush1.bf16.msra.mxu0 %v4735
    %4914 = vmatprep.subr.bf16.mxu0 %v4740
    %4915 = vmatpush1.bf16.msra.mxu0 %v4739
    %4916 = vmatprep.subr.bf16.mxu0 %v4744
    %4917 = vmatpush1.bf16.msra.mxu0 %v4743
    %4918 = vmatprep.subr.bf16.mxu0 %v4748
    %4919 = vmatpush1.bf16.msra.mxu0 %v4747
    %4920 = vmatprep.subr.bf16.mxu0 0
    %4921 = vmatpush1.bf16.msra.mxu0 0
    %4922 = vmatprep.subr.bf16.mxu0 0
    %4923 = vmatpush1.bf16.msra.mxu0 0
    %4924 = vmatprep.subr.bf16.mxu0 0
    %4925 = vmatpush1.bf16.msra.mxu0 0
    %4926 = vmatprep.subr.bf16.mxu0 0
    %4927 = vmatpush1.bf16.msra.mxu0 0
    %4928 = vmatprep.subr.bf16.mxu0 0
    %4929 = vmatpush1.bf16.msra.mxu0 0
    %4930 = vmatprep.subr.bf16.mxu0 0
    %4931 = vmatpush1.bf16.msra.mxu0 0
    %4932 = vmatprep.subr.bf16.mxu0 0
    %4933 = vmatpush1.bf16.msra.mxu0 0
    %4934 = vmatprep.subr.bf16.mxu0 0
    %4935 = vmatpush1.bf16.msra.mxu0 0
    %4936 = vmatprep.mubr.bf16.mxu0 0
    %4937 = vmatmul.mubr.bf16.gmra.mrb[0].mxu0 %v4716
    %v4938 = vpop.f32.mrb[0].mxu0
    %v4939 = vadd.f32 %v4857, %v4938
    %v4940 = vpop.f32.mrb[0].mxu0
    %v4941 = vadd.f32 %v4859, %v4940
    %v4942 = vpop.f32.mrb[0].mxu0
    %v4943 = vpop.f32.mrb[0].mxu0
    %4944 = vdwg.mxu0
    %v4945 = vld [vmem:[%s3608] sm:$0xff]
    %v4946 = vld [vmem:[%s3608 + $0x8] sm:$0xff]
    %v4947 = vld [vmem:[%s3608 + $0x10] sm:$0xff]
    %v4948 = vld [vmem:[%s3608 + $0x18] sm:$0xff]
    %v4949 = vadd.f32 %v4898, %v4945
    %v4950 = vadd.f32 %v4900, %v4946
    %v4951 = vadd.f32 %v4939, %v4947
    %v4952 = vadd.f32 %v4941, %v4948
    %v4953 = vxor.u32 %v4949, 2147483648
    %v4954 = vmul.f32 %v4953, 1.442695
    %v4955 = vpow.pop %v4954
    %v4956 = vadd.f32 %v4955, 1.0
    %v4957 = vrcp.pop %v4956
    %v4958 = vmul.f32 1.0, %v4957
    %v4959 = vxor.u32 %v4950, 2147483648
    %v4960 = vmul.f32 %v4959, 1.442695
    %v4961 = vpow.pop %v4960
    %v4962 = vadd.f32 %v4961, 1.0
    %v4963 = vrcp.pop %v4962
    %v4964 = vmul.f32 1.0, %v4963
    %v4965 = vtanh.pop %v4951
    %v4966 = vxor.u32 %v4952, 2147483648
    %v4967 = vmul.f32 %v4966, 1.442695
    %v4968 = vpow.pop %v4967
    %v4969 = vadd.f32 %v4968, 1.0
    %v4970 = vrcp.pop %v4969
    %v4971 = vmul.f32 1.0, %v4970
    %v4972 = vmul.f32 %v4964, %v4306
    %v4973 = vmul.f32 %v4958, %v4965
    %v4974 = vadd.f32 %v4972, %v4973
    %v4975 = vtanh.pop %v4974
    %v4976 = vmul.f32 %v4971, %v4975
    %v4977 = vpack.c.bf16 %v4976, %v4976
    %v4978 = vld [vmem:[#allocation11] sm:$0xf]
    %v4979 = vld [vmem:[#allocation11 + $0x4] sm:$0xf]
    %v4980 = vld [vmem:[#allocation11 + $0x8] sm:$0xf]
    %v4981 = vld [vmem:[#allocation11 + $0xc] sm:$0xf]
    %v4982 = vld [vmem:[#allocation11 + $0x10] sm:$0xf]
    %v4983 = vld [vmem:[#allocation11 + $0x14] sm:$0xf]
    %v4984 = vld [vmem:[#allocation11 + $0x18] sm:$0xf]
    %v4985 = vld [vmem:[#allocation11 + $0x1c] sm:$0xf]
    %v4986 = vld [vmem:[#allocation11 + $0x20] sm:$0xf]
    %v4987 = vld [vmem:[#allocation11 + $0x24] sm:$0xf]
    %v4988 = vld [vmem:[#allocation11 + $0x28] sm:$0xf]
    %v4989 = vld [vmem:[#allocation11 + $0x2c] sm:$0xf]
    %v4990 = vld [vmem:[#allocation11 + $0x30] sm:$0xf]
    %v4991 = vld [vmem:[#allocation11 + $0x34] sm:$0xf]
    %v4992 = vld [vmem:[#allocation11 + $0x38] sm:$0xf]
    %v4993 = vld [vmem:[#allocation11 + $0x3c] sm:$0xf]
    %v4994 = vld [vmem:[%s8] sm:$0xff]
    %v5011 = vunpack.c.l.b16 %v4978
    %v5012 = vunpack.c.l.b16 %v4979
    %v5013 = vunpack.c.l.b16 %v4980
    %v5014 = vunpack.c.l.b16 %v4981
    %v5015 = vunpack.c.l.b16 %v4982
    %v5016 = vunpack.c.l.b16 %v4983
    %v5017 = vunpack.c.l.b16 %v4984
    %v5018 = vunpack.c.l.b16 %v4985
    %v5019 = vunpack.c.l.b16 %v4986
    %v5020 = vunpack.c.l.b16 %v4987
    %v5021 = vunpack.c.l.b16 %v4988
    %v5022 = vunpack.c.l.b16 %v4989
    %v5023 = vunpack.c.l.b16 %v4990
    %v5024 = vunpack.c.l.b16 %v4991
    %v5025 = vunpack.c.l.b16 %v4992
    %v5026 = vunpack.c.l.b16 %v4993
    %v5027 = vpack.c.b16 %v5012, %v5011
    %v5028 = vpack.c.b16 %v5014, %v5013
    %v5029 = vpack.c.b16 %v5016, %v5015
    %v5030 = vpack.c.b16 %v5018, %v5017
    %v5031 = vpack.c.b16 %v5020, %v5019
    %v5032 = vpack.c.b16 %v5022, %v5021
    %v5033 = vpack.c.b16 %v5024, %v5023
    %v5034 = vpack.c.b16 %v5026, %v5025
    %5043 = vmatprep.subr.bf16.mxu0 0
    %5044 = vmatpush1.bf16.msra.mxu0 %v5027
    %5045 = vmatprep.subr.bf16.mxu0 0
    %5046 = vmatpush1.bf16.msra.mxu0 %v5028
    %5047 = vmatprep.subr.bf16.mxu0 0
    %5048 = vmatpush1.bf16.msra.mxu0 %v5029
    %5049 = vmatprep.subr.bf16.mxu0 0
    %5050 = vmatpush1.bf16.msra.mxu0 %v5030
    %5051 = vmatprep.subr.bf16.mxu0 0
    %5052 = vmatpush1.bf16.msra.mxu0 %v5031
    %5053 = vmatprep.subr.bf16.mxu0 0
    %5054 = vmatpush1.bf16.msra.mxu0 %v5032
    %5055 = vmatprep.subr.bf16.mxu0 0
    %5056 = vmatpush1.bf16.msra.mxu0 %v5033
    %5057 = vmatprep.subr.bf16.mxu0 0
    %5058 = vmatpush1.bf16.msra.mxu0 %v5034
    %5059 = vmatprep.subr.bf16.mxu0 0
    %5060 = vmatpush1.bf16.msra.mxu0 0
    %5061 = vmatprep.subr.bf16.mxu0 0
    %5062 = vmatpush1.bf16.msra.mxu0 0
    %5063 = vmatprep.subr.bf16.mxu0 0
    %5064 = vmatpush1.bf16.msra.mxu0 0
    %5065 = vmatprep.subr.bf16.mxu0 0
    %5066 = vmatpush1.bf16.msra.mxu0 0
    %5067 = vmatprep.subr.bf16.mxu0 0
    %5068 = vmatpush1.bf16.msra.mxu0 0
    %5069 = vmatprep.subr.bf16.mxu0 0
    %5070 = vmatpush1.bf16.msra.mxu0 0
    %5071 = vmatprep.subr.bf16.mxu0 0
    %5072 = vmatpush1.bf16.msra.mxu0 0
    %5073 = vmatprep.subr.bf16.mxu0 0
    %5074 = vmatpush1.bf16.msra.mxu0 0
    %5075 = vmatprep.mubr.bf16.mxu0 0
    %5076 = vmatmul.mubr.bf16.gmra.mrb[0].mxu0 %v4977
    %v5077 = vpop.f32.mrb[0].mxu0
    %v5078 = vadd.f32 %v4994, %v5077
    %v5079 = vpop.f32.mrb[0].mxu0
    %v5080 = vpop.f32.mrb[0].mxu0
    %v5081 = vpop.f32.mrb[0].mxu0
    %5082 = vdwg.mxu0
    %s5083 = scalar_lea.vmem [#allocation13], 24
    %5084 = vst [vmem:[%s5083] sm:$0xff] %v5078
    %5085 = vmax.xlane.f32.xlu0 %v5078
    %v5086 = vpop.xlane.xlu0 %5085
    %vm5087 = vcmp.eq.f32.partialorder %v5078, %v5086
    %v5088 = vsel %vm5087, %v98, 128
    %v5089 = vand.u32 %v5088, 65535
    %v5090 = vshra.s32 %v5088, 16
    %v5091 = vcvt.s32.f32 %v5089
    %v5092 = vcvt.s32.f32 %v5090
    %5093 = vmin.xlane.f32.xlu0 %v5092
    %v5094 = vpop.xlane.xlu0 %5093
    %vm5095 = vcmp.eq.f32.partialorder %v5092, %v5094
    %v5096 = vsel %vm5095, %v5091, inf
    %5097 = vmin.xlane.f32.xlu0 %v5096
    %v5098 = vpop.xlane.xlu0 %5097
    %v5099 = vcvt.f32.s32 %v5098
    %v5100 = vcvt.f32.s32 %v5094
    %v5101 = vshll.u32 %v5100, 16
    %v5102 = vadd.s32 %v5101, %v5099
    %vm5103 = vcmp.eq.s32.totalorder %v98, %v5102
    %v5104 = vsel %vm5103, 1, 0
    %v5105 = vcvt.s32.f32 %v5104
    %v5106 = vpack.c.bf16 %v5105, %v5105
    %v5107 = vld [vmem:[#allocation2] sm:$0xff]
    %v5108 = vld [vmem:[#allocation2 + $0x8] sm:$0xff]
    %v5109 = vld [vmem:[#allocation2 + $0x10] sm:$0xff]
    %v5110 = vld [vmem:[#allocation2 + $0x18] sm:$0xff]
    %v5111 = vld [vmem:[#allocation2 + $0x20] sm:$0xff]
    %v5112 = vld [vmem:[#allocation2 + $0x28] sm:$0xff]
    %v5113 = vld [vmem:[#allocation2 + $0x30] sm:$0xff]
    %v5114 = vld [vmem:[#allocation2 + $0x38] sm:$0xff]
    %v5115 = vld [vmem:[#allocation2 + $0x40] sm:$0xff]
    %v5116 = vld [vmem:[#allocation2 + $0x48] sm:$0xff]
    %v5117 = vld [vmem:[#allocation2 + $0x50] sm:$0xff]
    %v5118 = vld [vmem:[#allocation2 + $0x58] sm:$0xff]
    %v5119 = vld [vmem:[#allocation2 + $0x60] sm:$0xff]
    %v5120 = vld [vmem:[#allocation2 + $0x68] sm:$0xff]
    %v5121 = vld [vmem:[#allocation2 + $0x70] sm:$0xff]
    %v5122 = vld [vmem:[#allocation2 + $0x78] sm:$0xff]
    %v5123 = vld [vmem:[#allocation2 + $0x80] sm:$0xff]
    %v5124 = vld [vmem:[#allocation2 + $0x88] sm:$0xff]
    %v5125 = vld [vmem:[#allocation2 + $0x90] sm:$0xff]
    %v5126 = vld [vmem:[#allocation2 + $0x98] sm:$0xff]
    %v5127 = vld [vmem:[#allocation2 + $0xa0] sm:$0xff]
    %v5128 = vld [vmem:[#allocation2 + $0xa8] sm:$0xff]
    %v5129 = vld [vmem:[#allocation2 + $0xb0] sm:$0xff]
    %v5130 = vld [vmem:[#allocation2 + $0xb8] sm:$0xff]
    %v5131 = vld [vmem:[#allocation2 + $0xc0] sm:$0xff]
    %v5132 = vld [vmem:[#allocation2 + $0xc8] sm:$0xff]
    %v5133 = vld [vmem:[#allocation2 + $0xd0] sm:$0xff]
    %v5134 = vld [vmem:[#allocation2 + $0xd8] sm:$0xff]
    %v5135 = vld [vmem:[#allocation2 + $0xe0] sm:$0xff]
    %v5136 = vld [vmem:[#allocation2 + $0xe8] sm:$0xff]
    %v5137 = vld [vmem:[#allocation2 + $0xf0] sm:$0xff]
    %v5138 = vld [vmem:[#allocation2 + $0xf8] sm:$0xff]
    %5139 = vmatprep.subr.bf16.mxu0 %v5108
    %5140 = vmatpush1.bf16.msra.mxu0 %v5107
    %5141 = vmatprep.subr.bf16.mxu0 %v5112
    %5142 = vmatpush1.bf16.msra.mxu0 %v5111
    %5143 = vmatprep.subr.bf16.mxu0 %v5116
    %5144 = vmatpush1.bf16.msra.mxu0 %v5115
    %5145 = vmatprep.subr.bf16.mxu0 %v5120
    %5146 = vmatpush1.bf16.msra.mxu0 %v5119
    %5147 = vmatprep.subr.bf16.mxu0 %v5124
    %5148 = vmatpush1.bf16.msra.mxu0 %v5123
    %5149 = vmatprep.subr.bf16.mxu0 %v5128
    %5150 = vmatpush1.bf16.msra.mxu0 %v5127
    %5151 = vmatprep.subr.bf16.mxu0 %v5132
    %5152 = vmatpush1.bf16.msra.mxu0 %v5131
    %5153 = vmatprep.subr.bf16.mxu0 %v5136
    %5154 = vmatpush1.bf16.msra.mxu0 %v5135
    %5155 = vmatprep.subr.bf16.mxu0 0
    %5156 = vmatpush1.bf16.msra.mxu0 0
    %5157 = vmatprep.subr.bf16.mxu0 0
    %5158 = vmatpush1.bf16.msra.mxu0 0
    %5159 = vmatprep.subr.bf16.mxu0 0
    %5160 = vmatpush1.bf16.msra.mxu0 0
    %5161 = vmatprep.subr.bf16.mxu0 0
    %5162 = vmatpush1.bf16.msra.mxu0 0
    %5163 = vmatprep.subr.bf16.mxu0 0
    %5164 = vmatpush1.bf16.msra.mxu0 0
    %5165 = vmatprep.subr.bf16.mxu0 0
    %5166 = vmatpush1.bf16.msra.mxu0 0
    %5167 = vmatprep.subr.bf16.mxu0 0
    %5168 = vmatpush1.bf16.msra.mxu0 0
    %5169 = vmatprep.subr.bf16.mxu0 0
    %5170 = vmatpush1.bf16.msra.mxu0 0
    %5171 = vmatprep.mubr.bf16.mxu0 0
    %5172 = vmatmul.mubr.bf16.gmra.mrb[0].mxu0 %v5106
    %v5173 = vpop.f32.mrb[0].mxu0
    %v5174 = vadd.f32 0.0, %v5173
    %v5175 = vpop.f32.mrb[0].mxu0
    %v5176 = vadd.f32 0.0, %v5175
    %v5177 = vpop.f32.mrb[0].mxu0
    %v5178 = vpop.f32.mrb[0].mxu0
    %5179 = vdwg.mxu0
    %5180 = vmatprep.subr.bf16.mxu0 %v5110
    %5181 = vmatpush1.bf16.msra.mxu0 %v5109
    %5182 = vmatprep.subr.bf16.mxu0 %v5114
    %5183 = vmatpush1.bf16.msra.mxu0 %v5113
    %5184 = vmatprep.subr.bf16.mxu0 %v5118
    %5185 = vmatpush1.bf16.msra.mxu0 %v5117
    %5186 = vmatprep.subr.bf16.mxu0 %v5122
    %5187 = vmatpush1.bf16.msra.mxu0 %v5121
    %5188 = vmatprep.subr.bf16.mxu0 %v5126
    %5189 = vmatpush1.bf16.msra.mxu0 %v5125
    %5190 = vmatprep.subr.bf16.mxu0 %v5130
    %5191 = vmatpush1.bf16.msra.mxu0 %v5129
    %5192 = vmatprep.subr.bf16.mxu0 %v5134
    %5193 = vmatpush1.bf16.msra.mxu0 %v5133
    %5194 = vmatprep.subr.bf16.mxu0 %v5138
    %5195 = vmatpush1.bf16.msra.mxu0 %v5137
    %5196 = vmatprep.subr.bf16.mxu0 0
    %5197 = vmatpush1.bf16.msra.mxu0 0
    %5198 = vmatprep.subr.bf16.mxu0 0
    %5199 = vmatpush1.bf16.msra.mxu0 0
    %5200 = vmatprep.subr.bf16.mxu0 0
    %5201 = vmatpush1.bf16.msra.mxu0 0
    %5202 = vmatprep.subr.bf16.mxu0 0
    %5203 = vmatpush1.bf16.msra.mxu0 0
    %5204 = vmatprep.subr.bf16.mxu0 0
    %5205 = vmatpush1.bf16.msra.mxu0 0
    %5206 = vmatprep.subr.bf16.mxu0 0
    %5207 = vmatpush1.bf16.msra.mxu0 0
    %5208 = vmatprep.subr.bf16.mxu0 0
    %5209 = vmatpush1.bf16.msra.mxu0 0
    %5210 = vmatprep.subr.bf16.mxu0 0
    %5211 = vmatpush1.bf16.msra.mxu0 0
    %5212 = vmatprep.mubr.bf16.mxu0 0
    %5213 = vmatmul.mubr.bf16.gmra.mrb[0].mxu0 %v5106
    %v5214 = vpop.f32.mrb[0].mxu0
    %v5215 = vadd.f32 0.0, %v5214
    %v5216 = vpop.f32.mrb[0].mxu0
    %v5217 = vadd.f32 0.0, %v5216
    %v5218 = vpop.f32.mrb[0].mxu0
    %v5219 = vpop.f32.mrb[0].mxu0
    %5220 = vdwg.mxu0
    %v5221 = vld [vmem:[#allocation4 + $0x60] sm:$0xff]
    %v5222 = vld [vmem:[#allocation4 + $0x68] sm:$0xff]
    %v5223 = vld [vmem:[#allocation4 + $0x70] sm:$0xff]
    %v5224 = vld [vmem:[#allocation4 + $0x78] sm:$0xff]
    %s5225 = sld [smem:[#allocation7 + $0x3]]
    %p5226 = scmp.eq.s32.totalorder %s5225, 1
    %s5227 = scalar_select %p5226, 1, 0
    %v5228 = vstv %s5227
    %vm5229 = vcmp.eq.s32.totalorder %v5228, 1
    %v5230 = vsel %vm5229, %v5221, %v5174
    %v5231 = vsel %vm5229, %v5222, %v5176
    %v5232 = vsel %vm5229, %v5223, %v5215
    %v5233 = vsel %vm5229, %v5224, %v5217
    %v5234 = vld [vmem:[%s3225] sm:$0xff]
    %v5235 = vld [vmem:[%s3225 + $0x8] sm:$0xff]
    %v5236 = vld [vmem:[%s3225 + $0x10] sm:$0xff]
    %v5237 = vld [vmem:[%s3225 + $0x18] sm:$0xff]
    %v5238 = vld [vmem:[%s3225 + $0x20] sm:$0xff]
    %v5239 = vld [vmem:[%s3225 + $0x28] sm:$0xff]
    %v5240 = vld [vmem:[%s3225 + $0x30] sm:$0xff]
    %v5241 = vld [vmem:[%s3225 + $0x38] sm:$0xff]
    %v5242 = vld [vmem:[%s3225 + $0x40] sm:$0xff]
    %v5243 = vld [vmem:[%s3225 + $0x48] sm:$0xff]
    %v5244 = vld [vmem:[%s3225 + $0x50] sm:$0xff]
    %v5245 = vld [vmem:[%s3225 + $0x58] sm:$0xff]
    %v5246 = vld [vmem:[%s3225 + $0x60] sm:$0xff]
    %v5247 = vld [vmem:[%s3225 + $0x68] sm:$0xff]
    %v5248 = vld [vmem:[%s3225 + $0x70] sm:$0xff]
    %v5249 = vld [vmem:[%s3225 + $0x78] sm:$0xff]
    %v5250 = vld [vmem:[%s3225 + $0x80] sm:$0xff]
    %v5251 = vld [vmem:[%s3225 + $0x88] sm:$0xff]
    %v5252 = vld [vmem:[%s3225 + $0x90] sm:$0xff]
    %v5253 = vld [vmem:[%s3225 + $0x98] sm:$0xff]
    %v5254 = vld [vmem:[%s3225 + $0xa0] sm:$0xff]
    %v5255 = vld [vmem:[%s3225 + $0xa8] sm:$0xff]
    %v5256 = vld [vmem:[%s3225 + $0xb0] sm:$0xff]
    %v5257 = vld [vmem:[%s3225 + $0xb8] sm:$0xff]
    %v5258 = vld [vmem:[%s3225 + $0xc0] sm:$0xff]
    %v5259 = vld [vmem:[%s3225 + $0xc8] sm:$0xff]
    %v5260 = vld [vmem:[%s3225 + $0xd0] sm:$0xff]
    %v5261 = vld [vmem:[%s3225 + $0xd8] sm:$0xff]
    %v5262 = vld [vmem:[%s3225 + $0xe0] sm:$0xff]
    %v5263 = vld [vmem:[%s3225 + $0xe8] sm:$0xff]
    %v5264 = vld [vmem:[%s3225 + $0xf0] sm:$0xff]
    %v5265 = vld [vmem:[%s3225 + $0xf8] sm:$0xff]
    %5266 = vmatprep.subr.bf16.mxu0 %v5235
    %5267 = vmatpush1.bf16.msra.mxu0 %v5234
    %5268 = vmatprep.subr.bf16.mxu0 %v5239
    %5269 = vmatpush1.bf16.msra.mxu0 %v5238
    %5270 = vmatprep.subr.bf16.mxu0 %v5243
    %5271 = vmatpush1.bf16.msra.mxu0 %v5242
    %5272 = vmatprep.subr.bf16.mxu0 %v5247
    %5273 = vmatpush1.bf16.msra.mxu0 %v5246
    %5274 = vmatprep.subr.bf16.mxu0 %v5251
    %5275 = vmatpush1.bf16.msra.mxu0 %v5250
    %5276 = vmatprep.subr.bf16.mxu0 %v5255
    %5277 = vmatpush1.bf16.msra.mxu0 %v5254
    %5278 = vmatprep.subr.bf16.mxu0 %v5259
    %5279 = vmatpush1.bf16.msra.mxu0 %v5258
    %5280 = vmatprep.subr.bf16.mxu0 %v5263
    %5281 = vmatpush1.bf16.msra.mxu0 %v5262
    %5282 = vmatprep.subr.bf16.mxu0 0
    %5283 = vmatpush1.bf16.msra.mxu0 0
    %5284 = vmatprep.subr.bf16.mxu0 0
    %5285 = vmatpush1.bf16.msra.mxu0 0
    %5286 = vmatprep.subr.bf16.mxu0 0
    %5287 = vmatpush1.bf16.msra.mxu0 0
    %5288 = vmatprep.subr.bf16.mxu0 0
    %5289 = vmatpush1.bf16.msra.mxu0 0
    %5290 = vmatprep.subr.bf16.mxu0 0
    %5291 = vmatpush1.bf16.msra.mxu0 0
    %5292 = vmatprep.subr.bf16.mxu0 0
    %5293 = vmatpush1.bf16.msra.mxu0 0
    %5294 = vmatprep.subr.bf16.mxu0 0
    %5295 = vmatpush1.bf16.msra.mxu0 0
    %5296 = vmatprep.subr.bf16.mxu0 0
    %5297 = vmatpush1.bf16.msra.mxu0 0
    %5298 = vmatprep.mubr.bf16.mxu0 0
    %5299 = vmatmul.mubr.bf16.gmra.mrb[0].mxu0 %v4716
    %v5300 = vpop.f32.mrb[0].mxu0
    %v5301 = vadd.f32 0.0, %v5300
    %v5302 = vpop.f32.mrb[0].mxu0
    %v5303 = vadd.f32 0.0, %v5302
    %v5304 = vpop.f32.mrb[0].mxu0
    %v5305 = vpop.f32.mrb[0].mxu0
    %5306 = vdwg.mxu0
    %5307 = vmatprep.subr.bf16.mxu0 %v5237
    %5308 = vmatpush1.bf16.msra.mxu0 %v5236
    %5309 = vmatprep.subr.bf16.mxu0 %v5241
    %5310 = vmatpush1.bf16.msra.mxu0 %v5240
    %5311 = vmatprep.subr.bf16.mxu0 %v5245
    %5312 = vmatpush1.bf16.msra.mxu0 %v5244
    %5313 = vmatprep.subr.bf16.mxu0 %v5249
    %5314 = vmatpush1.bf16.msra.mxu0 %v5248
    %5315 = vmatprep.subr.bf16.mxu0 %v5253
    %5316 = vmatpush1.bf16.msra.mxu0 %v5252
    %5317 = vmatprep.subr.bf16.mxu0 %v5257
    %5318 = vmatpush1.bf16.msra.mxu0 %v5256
    %5319 = vmatprep.subr.bf16.mxu0 %v5261
    %5320 = vmatpush1.bf16.msra.mxu0 %v5260
    %5321 = vmatprep.subr.bf16.mxu0 %v5265
    %5322 = vmatpush1.bf16.msra.mxu0 %v5264
    %5323 = vmatprep.subr.bf16.mxu0 0
    %5324 = vmatpush1.bf16.msra.mxu0 0
    %5325 = vmatprep.subr.bf16.mxu0 0
    %5326 = vmatpush1.bf16.msra.mxu0 0
    %5327 = vmatprep.subr.bf16.mxu0 0
    %5328 = vmatpush1.bf16.msra.mxu0 0
    %5329 = vmatprep.subr.bf16.mxu0 0
    %5330 = vmatpush1.bf16.msra.mxu0 0
    %5331 = vmatprep.subr.bf16.mxu0 0
    %5332 = vmatpush1.bf16.msra.mxu0 0
    %5333 = vmatprep.subr.bf16.mxu0 0
    %5334 = vmatpush1.bf16.msra.mxu0 0
    %5335 = vmatprep.subr.bf16.mxu0 0
    %5336 = vmatpush1.bf16.msra.mxu0 0
    %5337 = vmatprep.subr.bf16.mxu0 0
    %5338 = vmatpush1.bf16.msra.mxu0 0
    %5339 = vmatprep.mubr.bf16.mxu0 0
    %5340 = vmatmul.mubr.bf16.gmra.mrb[0].mxu0 %v4716
    %v5341 = vpop.f32.mrb[0].mxu0
    %v5342 = vadd.f32 0.0, %v5341
    %v5343 = vpop.f32.mrb[0].mxu0
    %v5344 = vadd.f32 0.0, %v5343
    %v5345 = vpop.f32.mrb[0].mxu0
    %v5346 = vpop.f32.mrb[0].mxu0
    %5347 = vdwg.mxu0
    %v5348 = vadd.f32 %v5230, %v5301
    %v5349 = vadd.f32 %v5231, %v5303
    %v5350 = vadd.f32 %v5232, %v5342
    %v5351 = vadd.f32 %v5233, %v5344
    %v5352 = vld [vmem:[%s6] sm:$0xff]
    %v5353 = vld [vmem:[%s6 + $0x8] sm:$0xff]
    %v5354 = vld [vmem:[%s6 + $0x10] sm:$0xff]
    %v5355 = vld [vmem:[%s6 + $0x18] sm:$0xff]
    %v5356 = vadd.f32 %v5348, %v5352
    %v5357 = vadd.f32 %v5349, %v5353
    %v5358 = vadd.f32 %v5350, %v5354
    %v5359 = vadd.f32 %v5351, %v5355
    %v5360 = vxor.u32 %v5356, 2147483648
    %v5361 = vmul.f32 %v5360, 1.442695
    %v5362 = vpow.pop %v5361
    %v5363 = vadd.f32 %v5362, 1.0
    %v5364 = vrcp.pop %v5363
    %v5365 = vmul.f32 1.0, %v5364
    %v5366 = vxor.u32 %v5357, 2147483648
    %v5367 = vmul.f32 %v5366, 1.442695
    %v5368 = vpow.pop %v5367
    %v5369 = vadd.f32 %v5368, 1.0
    %v5370 = vrcp.pop %v5369
    %v5371 = vmul.f32 1.0, %v5370
    %v5372 = vtanh.pop %v5358
    %v5373 = vxor.u32 %v5359, 2147483648
    %v5374 = vmul.f32 %v5373, 1.442695
    %v5375 = vpow.pop %v5374
    %v5376 = vadd.f32 %v5375, 1.0
    %v5377 = vrcp.pop %v5376
    %v5378 = vmul.f32 1.0, %v5377
    %v5379 = vmul.f32 %v5371, %v4713
    %v5380 = vmul.f32 %v5365, %v5372
    %v5381 = vadd.f32 %v5379, %v5380
    %v5382 = vtanh.pop %v5381
    %v5383 = vmul.f32 %v5378, %v5382
    %v5384 = vpack.c.bf16 %v5383, %v5383
    %v5385 = vld [vmem:[%s3377] sm:$0xff]
    %v5386 = vld [vmem:[%s3377 + $0x8] sm:$0xff]
    %v5387 = vld [vmem:[%s3377 + $0x10] sm:$0xff]
    %v5388 = vld [vmem:[%s3377 + $0x18] sm:$0xff]
    %v5389 = vld [vmem:[%s3377 + $0x20] sm:$0xff]
    %v5390 = vld [vmem:[%s3377 + $0x28] sm:$0xff]
    %v5391 = vld [vmem:[%s3377 + $0x30] sm:$0xff]
    %v5392 = vld [vmem:[%s3377 + $0x38] sm:$0xff]
    %v5393 = vld [vmem:[%s3377 + $0x40] sm:$0xff]
    %v5394 = vld [vmem:[%s3377 + $0x48] sm:$0xff]
    %v5395 = vld [vmem:[%s3377 + $0x50] sm:$0xff]
    %v5396 = vld [vmem:[%s3377 + $0x58] sm:$0xff]
    %v5397 = vld [vmem:[%s3377 + $0x60] sm:$0xff]
    %v5398 = vld [vmem:[%s3377 + $0x68] sm:$0xff]
    %v5399 = vld [vmem:[%s3377 + $0x70] sm:$0xff]
    %v5400 = vld [vmem:[%s3377 + $0x78] sm:$0xff]
    %v5401 = vld [vmem:[%s3377 + $0x80] sm:$0xff]
    %v5402 = vld [vmem:[%s3377 + $0x88] sm:$0xff]
    %v5403 = vld [vmem:[%s3377 + $0x90] sm:$0xff]
    %v5404 = vld [vmem:[%s3377 + $0x98] sm:$0xff]
    %v5405 = vld [vmem:[%s3377 + $0xa0] sm:$0xff]
    %v5406 = vld [vmem:[%s3377 + $0xa8] sm:$0xff]
    %v5407 = vld [vmem:[%s3377 + $0xb0] sm:$0xff]
    %v5408 = vld [vmem:[%s3377 + $0xb8] sm:$0xff]
    %v5409 = vld [vmem:[%s3377 + $0xc0] sm:$0xff]
    %v5410 = vld [vmem:[%s3377 + $0xc8] sm:$0xff]
    %v5411 = vld [vmem:[%s3377 + $0xd0] sm:$0xff]
    %v5412 = vld [vmem:[%s3377 + $0xd8] sm:$0xff]
    %v5413 = vld [vmem:[%s3377 + $0xe0] sm:$0xff]
    %v5414 = vld [vmem:[%s3377 + $0xe8] sm:$0xff]
    %v5415 = vld [vmem:[%s3377 + $0xf0] sm:$0xff]
    %v5416 = vld [vmem:[%s3377 + $0xf8] sm:$0xff]
    %v5417 = vld [vmem:[%s3411] sm:$0xff]
    %v5418 = vld [vmem:[%s3411 + $0x8] sm:$0xff]
    %v5419 = vld [vmem:[%s3411 + $0x10] sm:$0xff]
    %v5420 = vld [vmem:[%s3411 + $0x18] sm:$0xff]
    %v5421 = vld [vmem:[%s3411 + $0x20] sm:$0xff]
    %v5422 = vld [vmem:[%s3411 + $0x28] sm:$0xff]
    %v5423 = vld [vmem:[%s3411 + $0x30] sm:$0xff]
    %v5424 = vld [vmem:[%s3411 + $0x38] sm:$0xff]
    %v5425 = vld [vmem:[%s3411 + $0x40] sm:$0xff]
    %v5426 = vld [vmem:[%s3411 + $0x48] sm:$0xff]
    %v5427 = vld [vmem:[%s3411 + $0x50] sm:$0xff]
    %v5428 = vld [vmem:[%s3411 + $0x58] sm:$0xff]
    %v5429 = vld [vmem:[%s3411 + $0x60] sm:$0xff]
    %v5430 = vld [vmem:[%s3411 + $0x68] sm:$0xff]
    %v5431 = vld [vmem:[%s3411 + $0x70] sm:$0xff]
    %v5432 = vld [vmem:[%s3411 + $0x78] sm:$0xff]
    %v5433 = vld [vmem:[%s3411 + $0x80] sm:$0xff]
    %v5434 = vld [vmem:[%s3411 + $0x88] sm:$0xff]
    %v5435 = vld [vmem:[%s3411 + $0x90] sm:$0xff]
    %v5436 = vld [vmem:[%s3411 + $0x98] sm:$0xff]
    %v5437 = vld [vmem:[%s3411 + $0xa0] sm:$0xff]
    %v5438 = vld [vmem:[%s3411 + $0xa8] sm:$0xff]
    %v5439 = vld [vmem:[%s3411 + $0xb0] sm:$0xff]
    %v5440 = vld [vmem:[%s3411 + $0xb8] sm:$0xff]
    %v5441 = vld [vmem:[%s3411 + $0xc0] sm:$0xff]
    %v5442 = vld [vmem:[%s3411 + $0xc8] sm:$0xff]
    %v5443 = vld [vmem:[%s3411 + $0xd0] sm:$0xff]
    %v5444 = vld [vmem:[%s3411 + $0xd8] sm:$0xff]
    %v5445 = vld [vmem:[%s3411 + $0xe0] sm:$0xff]
    %v5446 = vld [vmem:[%s3411 + $0xe8] sm:$0xff]
    %v5447 = vld [vmem:[%s3411 + $0xf0] sm:$0xff]
    %v5448 = vld [vmem:[%s3411 + $0xf8] sm:$0xff]
    %5449 = vmatprep.subr.bf16.mxu0 %v5418
    %5450 = vmatpush1.bf16.msra.mxu0 %v5417
    %5451 = vmatprep.subr.bf16.mxu0 %v5422
    %5452 = vmatpush1.bf16.msra.mxu0 %v5421
    %5453 = vmatprep.subr.bf16.mxu0 %v5426
    %5454 = vmatpush1.bf16.msra.mxu0 %v5425
    %5455 = vmatprep.subr.bf16.mxu0 %v5430
    %5456 = vmatpush1.bf16.msra.mxu0 %v5429
    %5457 = vmatprep.subr.bf16.mxu0 %v5434
    %5458 = vmatpush1.bf16.msra.mxu0 %v5433
    %5459 = vmatprep.subr.bf16.mxu0 %v5438
    %5460 = vmatpush1.bf16.msra.mxu0 %v5437
    %5461 = vmatprep.subr.bf16.mxu0 %v5442
    %5462 = vmatpush1.bf16.msra.mxu0 %v5441
    %5463 = vmatprep.subr.bf16.mxu0 %v5446
    %5464 = vmatpush1.bf16.msra.mxu0 %v5445
    %5465 = vmatprep.subr.bf16.mxu0 0
    %5466 = vmatpush1.bf16.msra.mxu0 0
    %5467 = vmatprep.subr.bf16.mxu0 0
    %5468 = vmatpush1.bf16.msra.mxu0 0
    %5469 = vmatprep.subr.bf16.mxu0 0
    %5470 = vmatpush1.bf16.msra.mxu0 0
    %5471 = vmatprep.subr.bf16.mxu0 0
    %5472 = vmatpush1.bf16.msra.mxu0 0
    %5473 = vmatprep.subr.bf16.mxu0 0
    %5474 = vmatpush1.bf16.msra.mxu0 0
    %5475 = vmatprep.subr.bf16.mxu0 0
    %5476 = vmatpush1.bf16.msra.mxu0 0
    %5477 = vmatprep.subr.bf16.mxu0 0
    %5478 = vmatpush1.bf16.msra.mxu0 0
    %5479 = vmatprep.subr.bf16.mxu0 0
    %5480 = vmatpush1.bf16.msra.mxu0 0
    %5481 = vmatprep.mubr.bf16.mxu0 0
    %5482 = vmatmul.mubr.bf16.gmra.mrb[0].mxu0 %v4977
    %v5483 = vpop.f32.mrb[0].mxu0
    %v5484 = vadd.f32 0.0, %v5483
    %v5485 = vpop.f32.mrb[0].mxu0
    %v5486 = vadd.f32 0.0, %v5485
    %v5487 = vpop.f32.mrb[0].mxu0
    %v5488 = vpop.f32.mrb[0].mxu0
    %5489 = vdwg.mxu0
    %5490 = vmatprep.subr.bf16.mxu0 %v5420
    %5491 = vmatpush1.bf16.msra.mxu0 %v5419
    %5492 = vmatprep.subr.bf16.mxu0 %v5424
    %5493 = vmatpush1.bf16.msra.mxu0 %v5423
    %5494 = vmatprep.subr.bf16.mxu0 %v5428
    %5495 = vmatpush1.bf16.msra.mxu0 %v5427
    %5496 = vmatprep.subr.bf16.mxu0 %v5432
    %5497 = vmatpush1.bf16.msra.mxu0 %v5431
    %5498 = vmatprep.subr.bf16.mxu0 %v5436
    %5499 = vmatpush1.bf16.msra.mxu0 %v5435
    %5500 = vmatprep.subr.bf16.mxu0 %v5440
    %5501 = vmatpush1.bf16.msra.mxu0 %v5439
    %5502 = vmatprep.subr.bf16.mxu0 %v5444
    %5503 = vmatpush1.bf16.msra.mxu0 %v5443
    %5504 = vmatprep.subr.bf16.mxu0 %v5448
    %5505 = vmatpush1.bf16.msra.mxu0 %v5447
    %5506 = vmatprep.subr.bf16.mxu0 0
    %5507 = vmatpush1.bf16.msra.mxu0 0
    %5508 = vmatprep.subr.bf16.mxu0 0
    %5509 = vmatpush1.bf16.msra.mxu0 0
    %5510 = vmatprep.subr.bf16.mxu0 0
    %5511 = vmatpush1.bf16.msra.mxu0 0
    %5512 = vmatprep.subr.bf16.mxu0 0
    %5513 = vmatpush1.bf16.msra.mxu0 0
    %5514 = vmatprep.subr.bf16.mxu0 0
    %5515 = vmatpush1.bf16.msra.mxu0 0
    %5516 = vmatprep.subr.bf16.mxu0 0
    %5517 = vmatpush1.bf16.msra.mxu0 0
    %5518 = vmatprep.subr.bf16.mxu0 0
    %5519 = vmatpush1.bf16.msra.mxu0 0
    %5520 = vmatprep.subr.bf16.mxu0 0
    %5521 = vmatpush1.bf16.msra.mxu0 0
    %5522 = vmatprep.mubr.bf16.mxu0 0
    %5523 = vmatmul.mubr.bf16.gmra.mrb[0].mxu0 %v4977
    %v5524 = vpop.f32.mrb[0].mxu0
    %v5525 = vadd.f32 0.0, %v5524
    %v5526 = vpop.f32.mrb[0].mxu0
    %v5527 = vadd.f32 0.0, %v5526
    %v5528 = vpop.f32.mrb[0].mxu0
    %v5529 = vpop.f32.mrb[0].mxu0
    %5530 = vdwg.mxu0
    %5531 = vmatprep.subr.bf16.mxu0 %v5386
    %5532 = vmatpush1.bf16.msra.mxu0 %v5385
    %5533 = vmatprep.subr.bf16.mxu0 %v5390
    %5534 = vmatpush1.bf16.msra.mxu0 %v5389
    %5535 = vmatprep.subr.bf16.mxu0 %v5394
    %5536 = vmatpush1.bf16.msra.mxu0 %v5393
    %5537 = vmatprep.subr.bf16.mxu0 %v5398
    %5538 = vmatpush1.bf16.msra.mxu0 %v5397
    %5539 = vmatprep.subr.bf16.mxu0 %v5402
    %5540 = vmatpush1.bf16.msra.mxu0 %v5401
    %5541 = vmatprep.subr.bf16.mxu0 %v5406
    %5542 = vmatpush1.bf16.msra.mxu0 %v5405
    %5543 = vmatprep.subr.bf16.mxu0 %v5410
    %5544 = vmatpush1.bf16.msra.mxu0 %v5409
    %5545 = vmatprep.subr.bf16.mxu0 %v5414
    %5546 = vmatpush1.bf16.msra.mxu0 %v5413
    %5547 = vmatprep.subr.bf16.mxu0 0
    %5548 = vmatpush1.bf16.msra.mxu0 0
    %5549 = vmatprep.subr.bf16.mxu0 0
    %5550 = vmatpush1.bf16.msra.mxu0 0
    %5551 = vmatprep.subr.bf16.mxu0 0
    %5552 = vmatpush1.bf16.msra.mxu0 0
    %5553 = vmatprep.subr.bf16.mxu0 0
    %5554 = vmatpush1.bf16.msra.mxu0 0
    %5555 = vmatprep.subr.bf16.mxu0 0
    %5556 = vmatpush1.bf16.msra.mxu0 0
    %5557 = vmatprep.subr.bf16.mxu0 0
    %5558 = vmatpush1.bf16.msra.mxu0 0
    %5559 = vmatprep.subr.bf16.mxu0 0
    %5560 = vmatpush1.bf16.msra.mxu0 0
    %5561 = vmatprep.subr.bf16.mxu0 0
    %5562 = vmatpush1.bf16.msra.mxu0 0
    %5563 = vmatprep.mubr.bf16.mxu0 0
    %5564 = vmatmul.mubr.bf16.gmra.mrb[0].mxu0 %v5384
    %v5565 = vpop.f32.mrb[0].mxu0
    %v5566 = vadd.f32 %v5484, %v5565
    %v5567 = vpop.f32.mrb[0].mxu0
    %v5568 = vadd.f32 %v5486, %v5567
    %v5569 = vpop.f32.mrb[0].mxu0
    %v5570 = vpop.f32.mrb[0].mxu0
    %5571 = vdwg.mxu0
    %5572 = vmatprep.subr.bf16.mxu0 %v5388
    %5573 = vmatpush1.bf16.msra.mxu0 %v5387
    %5574 = vmatprep.subr.bf16.mxu0 %v5392
    %5575 = vmatpush1.bf16.msra.mxu0 %v5391
    %5576 = vmatprep.subr.bf16.mxu0 %v5396
    %5577 = vmatpush1.bf16.msra.mxu0 %v5395
    %5578 = vmatprep.subr.bf16.mxu0 %v5400
    %5579 = vmatpush1.bf16.msra.mxu0 %v5399
    %5580 = vmatprep.subr.bf16.mxu0 %v5404
    %5581 = vmatpush1.bf16.msra.mxu0 %v5403
    %5582 = vmatprep.subr.bf16.mxu0 %v5408
    %5583 = vmatpush1.bf16.msra.mxu0 %v5407
    %5584 = vmatprep.subr.bf16.mxu0 %v5412
    %5585 = vmatpush1.bf16.msra.mxu0 %v5411
    %5586 = vmatprep.subr.bf16.mxu0 %v5416
    %5587 = vmatpush1.bf16.msra.mxu0 %v5415
    %5588 = vmatprep.subr.bf16.mxu0 0
    %5589 = vmatpush1.bf16.msra.mxu0 0
    %5590 = vmatprep.subr.bf16.mxu0 0
    %5591 = vmatpush1.bf16.msra.mxu0 0
    %5592 = vmatprep.subr.bf16.mxu0 0
    %5593 = vmatpush1.bf16.msra.mxu0 0
    %5594 = vmatprep.subr.bf16.mxu0 0
    %5595 = vmatpush1.bf16.msra.mxu0 0
    %5596 = vmatprep.subr.bf16.mxu0 0
    %5597 = vmatpush1.bf16.msra.mxu0 0
    %5598 = vmatprep.subr.bf16.mxu0 0
    %5599 = vmatpush1.bf16.msra.mxu0 0
    %5600 = vmatprep.subr.bf16.mxu0 0
    %5601 = vmatpush1.bf16.msra.mxu0 0
    %5602 = vmatprep.subr.bf16.mxu0 0
    %5603 = vmatpush1.bf16.msra.mxu0 0
    %5604 = vmatprep.mubr.bf16.mxu0 0
    %5605 = vmatmul.mubr.bf16.gmra.mrb[0].mxu0 %v5384
    %v5606 = vpop.f32.mrb[0].mxu0
    %v5607 = vadd.f32 %v5525, %v5606
    %v5608 = vpop.f32.mrb[0].mxu0
    %v5609 = vadd.f32 %v5527, %v5608
    %v5610 = vpop.f32.mrb[0].mxu0
    %v5611 = vpop.f32.mrb[0].mxu0
    %5612 = vdwg.mxu0
    %v5613 = vld [vmem:[%s3608] sm:$0xff]
    %v5614 = vld [vmem:[%s3608 + $0x8] sm:$0xff]
    %v5615 = vld [vmem:[%s3608 + $0x10] sm:$0xff]
    %v5616 = vld [vmem:[%s3608 + $0x18] sm:$0xff]
    %v5617 = vadd.f32 %v5566, %v5613
    %v5618 = vadd.f32 %v5568, %v5614
    %v5619 = vadd.f32 %v5607, %v5615
    %v5620 = vadd.f32 %v5609, %v5616
    %v5621 = vxor.u32 %v5617, 2147483648
    %v5622 = vmul.f32 %v5621, 1.442695
    %v5623 = vpow.pop %v5622
    %v5624 = vadd.f32 %v5623, 1.0
    %v5625 = vrcp.pop %v5624
    %v5626 = vmul.f32 1.0, %v5625
    %v5627 = vxor.u32 %v5618, 2147483648
    %v5628 = vmul.f32 %v5627, 1.442695
    %v5629 = vpow.pop %v5628
    %v5630 = vadd.f32 %v5629, 1.0
    %v5631 = vrcp.pop %v5630
    %v5632 = vmul.f32 1.0, %v5631
    %v5633 = vtanh.pop %v5619
    %v5634 = vxor.u32 %v5620, 2147483648
    %v5635 = vmul.f32 %v5634, 1.442695
    %v5636 = vpow.pop %v5635
    %v5637 = vadd.f32 %v5636, 1.0
    %v5638 = vrcp.pop %v5637
    %v5639 = vmul.f32 1.0, %v5638
    %v5640 = vmul.f32 %v5632, %v4974
    %v5641 = vmul.f32 %v5626, %v5633
    %v5642 = vadd.f32 %v5640, %v5641
    %v5643 = vtanh.pop %v5642
    %v5644 = vmul.f32 %v5639, %v5643
    %v5645 = vpack.c.bf16 %v5644, %v5644
    %v5646 = vld [vmem:[#allocation11] sm:$0xf]
    %v5647 = vld [vmem:[#allocation11 + $0x4] sm:$0xf]
    %v5648 = vld [vmem:[#allocation11 + $0x8] sm:$0xf]
    %v5649 = vld [vmem:[#allocation11 + $0xc] sm:$0xf]
    %v5650 = vld [vmem:[#allocation11 + $0x10] sm:$0xf]
    %v5651 = vld [vmem:[#allocation11 + $0x14] sm:$0xf]
    %v5652 = vld [vmem:[#allocation11 + $0x18] sm:$0xf]
    %v5653 = vld [vmem:[#allocation11 + $0x1c] sm:$0xf]
    %v5654 = vld [vmem:[#allocation11 + $0x20] sm:$0xf]
    %v5655 = vld [vmem:[#allocation11 + $0x24] sm:$0xf]
    %v5656 = vld [vmem:[#allocation11 + $0x28] sm:$0xf]
    %v5657 = vld [vmem:[#allocation11 + $0x2c] sm:$0xf]
    %v5658 = vld [vmem:[#allocation11 + $0x30] sm:$0xf]
    %v5659 = vld [vmem:[#allocation11 + $0x34] sm:$0xf]
    %v5660 = vld [vmem:[#allocation11 + $0x38] sm:$0xf]
    %v5661 = vld [vmem:[#allocation11 + $0x3c] sm:$0xf]
    %v5662 = vld [vmem:[%s8] sm:$0xff]
    %v5679 = vunpack.c.l.b16 %v5646
    %v5680 = vunpack.c.l.b16 %v5647
    %v5681 = vunpack.c.l.b16 %v5648
    %v5682 = vunpack.c.l.b16 %v5649
    %v5683 = vunpack.c.l.b16 %v5650
    %v5684 = vunpack.c.l.b16 %v5651
    %v5685 = vunpack.c.l.b16 %v5652
    %v5686 = vunpack.c.l.b16 %v5653
    %v5687 = vunpack.c.l.b16 %v5654
    %v5688 = vunpack.c.l.b16 %v5655
    %v5689 = vunpack.c.l.b16 %v5656
    %v5690 = vunpack.c.l.b16 %v5657
    %v5691 = vunpack.c.l.b16 %v5658
    %v5692 = vunpack.c.l.b16 %v5659
    %v5693 = vunpack.c.l.b16 %v5660
    %v5694 = vunpack.c.l.b16 %v5661
    %v5695 = vpack.c.b16 %v5680, %v5679
    %v5696 = vpack.c.b16 %v5682, %v5681
    %v5697 = vpack.c.b16 %v5684, %v5683
    %v5698 = vpack.c.b16 %v5686, %v5685
    %v5699 = vpack.c.b16 %v5688, %v5687
    %v5700 = vpack.c.b16 %v5690, %v5689
    %v5701 = vpack.c.b16 %v5692, %v5691
    %v5702 = vpack.c.b16 %v5694, %v5693
    %5711 = vmatprep.subr.bf16.mxu0 0
    %5712 = vmatpush1.bf16.msra.mxu0 %v5695
    %5713 = vmatprep.subr.bf16.mxu0 0
    %5714 = vmatpush1.bf16.msra.mxu0 %v5696
    %5715 = vmatprep.subr.bf16.mxu0 0
    %5716 = vmatpush1.bf16.msra.mxu0 %v5697
    %5717 = vmatprep.subr.bf16.mxu0 0
    %5718 = vmatpush1.bf16.msra.mxu0 %v5698
    %5719 = vmatprep.subr.bf16.mxu0 0
    %5720 = vmatpush1.bf16.msra.mxu0 %v5699
    %5721 = vmatprep.subr.bf16.mxu0 0
    %5722 = vmatpush1.bf16.msra.mxu0 %v5700
    %5723 = vmatprep.subr.bf16.mxu0 0
    %5724 = vmatpush1.bf16.msra.mxu0 %v5701
    %5725 = vmatprep.subr.bf16.mxu0 0
    %5726 = vmatpush1.bf16.msra.mxu0 %v5702
    %5727 = vmatprep.subr.bf16.mxu0 0
    %5728 = vmatpush1.bf16.msra.mxu0 0
    %5729 = vmatprep.subr.bf16.mxu0 0
    %5730 = vmatpush1.bf16.msra.mxu0 0
    %5731 = vmatprep.subr.bf16.mxu0 0
    %5732 = vmatpush1.bf16.msra.mxu0 0
    %5733 = vmatprep.subr.bf16.mxu0 0
    %5734 = vmatpush1.bf16.msra.mxu0 0
    %5735 = vmatprep.subr.bf16.mxu0 0
    %5736 = vmatpush1.bf16.msra.mxu0 0
    %5737 = vmatprep.subr.bf16.mxu0 0
    %5738 = vmatpush1.bf16.msra.mxu0 0
    %5739 = vmatprep.subr.bf16.mxu0 0
    %5740 = vmatpush1.bf16.msra.mxu0 0
    %5741 = vmatprep.subr.bf16.mxu0 0
    %5742 = vmatpush1.bf16.msra.mxu0 0
    %5743 = vmatprep.mubr.bf16.mxu0 0
    %5744 = vmatmul.mubr.bf16.gmra.mrb[0].mxu0 %v5645
    %v5745 = vpop.f32.mrb[0].mxu0
    %v5746 = vadd.f32 %v5662, %v5745
    %v5747 = vpop.f32.mrb[0].mxu0
    %v5748 = vpop.f32.mrb[0].mxu0
    %v5749 = vpop.f32.mrb[0].mxu0
    %5750 = vdwg.mxu0
    %s5751 = scalar_lea.vmem [#allocation13], 32
    %5752 = vst [vmem:[%s5751] sm:$0xff] %v5746
    %5753 = vmax.xlane.f32.xlu0 %v5746
    %v5754 = vpop.xlane.xlu0 %5753
    %vm5755 = vcmp.eq.f32.partialorder %v5746, %v5754
    %v5756 = vsel %vm5755, %v98, 128
    %v5757 = vand.u32 %v5756, 65535
    %v5758 = vshra.s32 %v5756, 16
    %v5759 = vcvt.s32.f32 %v5757
    %v5760 = vcvt.s32.f32 %v5758
    %5761 = vmin.xlane.f32.xlu0 %v5760
    %v5762 = vpop.xlane.xlu0 %5761
    %vm5763 = vcmp.eq.f32.partialorder %v5760, %v5762
    %v5764 = vsel %vm5763, %v5759, inf
    %5765 = vmin.xlane.f32.xlu0 %v5764
    %v5766 = vpop.xlane.xlu0 %5765
    %v5767 = vcvt.f32.s32 %v5766
    %v5768 = vcvt.f32.s32 %v5762
    %v5769 = vshll.u32 %v5768, 16
    %v5770 = vadd.s32 %v5769, %v5767
    %vm5771 = vcmp.eq.s32.totalorder %v98, %v5770
    %v5772 = vsel %vm5771, 1, 0
    %v5773 = vcvt.s32.f32 %v5772
    %v5774 = vpack.c.bf16 %v5773, %v5773
    %v5775 = vld [vmem:[#allocation2] sm:$0xff]
    %v5776 = vld [vmem:[#allocation2 + $0x8] sm:$0xff]
    %v5777 = vld [vmem:[#allocation2 + $0x10] sm:$0xff]
    %v5778 = vld [vmem:[#allocation2 + $0x18] sm:$0xff]
    %v5779 = vld [vmem:[#allocation2 + $0x20] sm:$0xff]
    %v5780 = vld [vmem:[#allocation2 + $0x28] sm:$0xff]
    %v5781 = vld [vmem:[#allocation2 + $0x30] sm:$0xff]
    %v5782 = vld [vmem:[#allocation2 + $0x38] sm:$0xff]
    %v5783 = vld [vmem:[#allocation2 + $0x40] sm:$0xff]
    %v5784 = vld [vmem:[#allocation2 + $0x48] sm:$0xff]
    %v5785 = vld [vmem:[#allocation2 + $0x50] sm:$0xff]
    %v5786 = vld [vmem:[#allocation2 + $0x58] sm:$0xff]
    %v5787 = vld [vmem:[#allocation2 + $0x60] sm:$0xff]
    %v5788 = vld [vmem:[#allocation2 + $0x68] sm:$0xff]
    %v5789 = vld [vmem:[#allocation2 + $0x70] sm:$0xff]
    %v5790 = vld [vmem:[#allocation2 + $0x78] sm:$0xff]
    %v5791 = vld [vmem:[#allocation2 + $0x80] sm:$0xff]
    %v5792 = vld [vmem:[#allocation2 + $0x88] sm:$0xff]
    %v5793 = vld [vmem:[#allocation2 + $0x90] sm:$0xff]
    %v5794 = vld [vmem:[#allocation2 + $0x98] sm:$0xff]
    %v5795 = vld [vmem:[#allocation2 + $0xa0] sm:$0xff]
    %v5796 = vld [vmem:[#allocation2 + $0xa8] sm:$0xff]
    %v5797 = vld [vmem:[#allocation2 + $0xb0] sm:$0xff]
    %v5798 = vld [vmem:[#allocation2 + $0xb8] sm:$0xff]
    %v5799 = vld [vmem:[#allocation2 + $0xc0] sm:$0xff]
    %v5800 = vld [vmem:[#allocation2 + $0xc8] sm:$0xff]
    %v5801 = vld [vmem:[#allocation2 + $0xd0] sm:$0xff]
    %v5802 = vld [vmem:[#allocation2 + $0xd8] sm:$0xff]
    %v5803 = vld [vmem:[#allocation2 + $0xe0] sm:$0xff]
    %v5804 = vld [vmem:[#allocation2 + $0xe8] sm:$0xff]
    %v5805 = vld [vmem:[#allocation2 + $0xf0] sm:$0xff]
    %v5806 = vld [vmem:[#allocation2 + $0xf8] sm:$0xff]
    %5807 = vmatprep.subr.bf16.mxu0 %v5776
    %5808 = vmatpush1.bf16.msra.mxu0 %v5775
    %5809 = vmatprep.subr.bf16.mxu0 %v5780
    %5810 = vmatpush1.bf16.msra.mxu0 %v5779
    %5811 = vmatprep.subr.bf16.mxu0 %v5784
    %5812 = vmatpush1.bf16.msra.mxu0 %v5783
    %5813 = vmatprep.subr.bf16.mxu0 %v5788
    %5814 = vmatpush1.bf16.msra.mxu0 %v5787
    %5815 = vmatprep.subr.bf16.mxu0 %v5792
    %5816 = vmatpush1.bf16.msra.mxu0 %v5791
    %5817 = vmatprep.subr.bf16.mxu0 %v5796
    %5818 = vmatpush1.bf16.msra.mxu0 %v5795
    %5819 = vmatprep.subr.bf16.mxu0 %v5800
    %5820 = vmatpush1.bf16.msra.mxu0 %v5799
    %5821 = vmatprep.subr.bf16.mxu0 %v5804
    %5822 = vmatpush1.bf16.msra.mxu0 %v5803
    %5823 = vmatprep.subr.bf16.mxu0 0
    %5824 = vmatpush1.bf16.msra.mxu0 0
    %5825 = vmatprep.subr.bf16.mxu0 0
    %5826 = vmatpush1.bf16.msra.mxu0 0
    %5827 = vmatprep.subr.bf16.mxu0 0
    %5828 = vmatpush1.bf16.msra.mxu0 0
    %5829 = vmatprep.subr.bf16.mxu0 0
    %5830 = vmatpush1.bf16.msra.mxu0 0
    %5831 = vmatprep.subr.bf16.mxu0 0
    %5832 = vmatpush1.bf16.msra.mxu0 0
    %5833 = vmatprep.subr.bf16.mxu0 0
    %5834 = vmatpush1.bf16.msra.mxu0 0
    %5835 = vmatprep.subr.bf16.mxu0 0
    %5836 = vmatpush1.bf16.msra.mxu0 0
    %5837 = vmatprep.subr.bf16.mxu0 0
    %5838 = vmatpush1.bf16.msra.mxu0 0
    %5839 = vmatprep.mubr.bf16.mxu0 0
    %5840 = vmatmul.mubr.bf16.gmra.mrb[0].mxu0 %v5774
    %v5841 = vpop.f32.mrb[0].mxu0
    %v5842 = vadd.f32 0.0, %v5841
    %v5843 = vpop.f32.mrb[0].mxu0
    %v5844 = vadd.f32 0.0, %v5843
    %v5845 = vpop.f32.mrb[0].mxu0
    %v5846 = vpop.f32.mrb[0].mxu0
    %5847 = vdwg.mxu0
    %5848 = vmatprep.subr.bf16.mxu0 %v5778
    %5849 = vmatpush1.bf16.msra.mxu0 %v5777
    %5850 = vmatprep.subr.bf16.mxu0 %v5782
    %5851 = vmatpush1.bf16.msra.mxu0 %v5781
    %5852 = vmatprep.subr.bf16.mxu0 %v5786
    %5853 = vmatpush1.bf16.msra.mxu0 %v5785
    %5854 = vmatprep.subr.bf16.mxu0 %v5790
    %5855 = vmatpush1.bf16.msra.mxu0 %v5789
    %5856 = vmatprep.subr.bf16.mxu0 %v5794
    %5857 = vmatpush1.bf16.msra.mxu0 %v5793
    %5858 = vmatprep.subr.bf16.mxu0 %v5798
    %5859 = vmatpush1.bf16.msra.mxu0 %v5797
    %5860 = vmatprep.subr.bf16.mxu0 %v5802
    %5861 = vmatpush1.bf16.msra.mxu0 %v5801
    %5862 = vmatprep.subr.bf16.mxu0 %v5806
    %5863 = vmatpush1.bf16.msra.mxu0 %v5805
    %5864 = vmatprep.subr.bf16.mxu0 0
    %5865 = vmatpush1.bf16.msra.mxu0 0
    %5866 = vmatprep.subr.bf16.mxu0 0
    %5867 = vmatpush1.bf16.msra.mxu0 0
    %5868 = vmatprep.subr.bf16.mxu0 0
    %5869 = vmatpush1.bf16.msra.mxu0 0
    %5870 = vmatprep.subr.bf16.mxu0 0
    %5871 = vmatpush1.bf16.msra.mxu0 0
    %5872 = vmatprep.subr.bf16.mxu0 0
    %5873 = vmatpush1.bf16.msra.mxu0 0
    %5874 = vmatprep.subr.bf16.mxu0 0
    %5875 = vmatpush1.bf16.msra.mxu0 0
    %5876 = vmatprep.subr.bf16.mxu0 0
    %5877 = vmatpush1.bf16.msra.mxu0 0
    %5878 = vmatprep.subr.bf16.mxu0 0
    %5879 = vmatpush1.bf16.msra.mxu0 0
    %5880 = vmatprep.mubr.bf16.mxu0 0
    %5881 = vmatmul.mubr.bf16.gmra.mrb[0].mxu0 %v5774
    %v5882 = vpop.f32.mrb[0].mxu0
    %v5883 = vadd.f32 0.0, %v5882
    %v5884 = vpop.f32.mrb[0].mxu0
    %v5885 = vadd.f32 0.0, %v5884
    %v5886 = vpop.f32.mrb[0].mxu0
    %v5887 = vpop.f32.mrb[0].mxu0
    %5888 = vdwg.mxu0
    %v5889 = vld [vmem:[#allocation4 + $0x80] sm:$0xff]
    %v5890 = vld [vmem:[#allocation4 + $0x88] sm:$0xff]
    %v5891 = vld [vmem:[#allocation4 + $0x90] sm:$0xff]
    %v5892 = vld [vmem:[#allocation4 + $0x98] sm:$0xff]
    %s5893 = sld [smem:[#allocation7 + $0x4]]
    %p5894 = scmp.eq.s32.totalorder %s5893, 1
    %s5895 = scalar_select %p5894, 1, 0
    %v5896 = vstv %s5895
    %vm5897 = vcmp.eq.s32.totalorder %v5896, 1
    %v5898 = vsel %vm5897, %v5889, %v5842
    %v5899 = vsel %vm5897, %v5890, %v5844
    %v5900 = vsel %vm5897, %v5891, %v5883
    %v5901 = vsel %vm5897, %v5892, %v5885
    %v5902 = vld [vmem:[%s3225] sm:$0xff]
    %v5903 = vld [vmem:[%s3225 + $0x8] sm:$0xff]
    %v5904 = vld [vmem:[%s3225 + $0x10] sm:$0xff]
    %v5905 = vld [vmem:[%s3225 + $0x18] sm:$0xff]
    %v5906 = vld [vmem:[%s3225 + $0x20] sm:$0xff]
    %v5907 = vld [vmem:[%s3225 + $0x28] sm:$0xff]
    %v5908 = vld [vmem:[%s3225 + $0x30] sm:$0xff]
    %v5909 = vld [vmem:[%s3225 + $0x38] sm:$0xff]
    %v5910 = vld [vmem:[%s3225 + $0x40] sm:$0xff]
    %v5911 = vld [vmem:[%s3225 + $0x48] sm:$0xff]
    %v5912 = vld [vmem:[%s3225 + $0x50] sm:$0xff]
    %v5913 = vld [vmem:[%s3225 + $0x58] sm:$0xff]
    %v5914 = vld [vmem:[%s3225 + $0x60] sm:$0xff]
    %v5915 = vld [vmem:[%s3225 + $0x68] sm:$0xff]
    %v5916 = vld [vmem:[%s3225 + $0x70] sm:$0xff]
    %v5917 = vld [vmem:[%s3225 + $0x78] sm:$0xff]
    %v5918 = vld [vmem:[%s3225 + $0x80] sm:$0xff]
    %v5919 = vld [vmem:[%s3225 + $0x88] sm:$0xff]
    %v5920 = vld [vmem:[%s3225 + $0x90] sm:$0xff]
    %v5921 = vld [vmem:[%s3225 + $0x98] sm:$0xff]
    %v5922 = vld [vmem:[%s3225 + $0xa0] sm:$0xff]
    %v5923 = vld [vmem:[%s3225 + $0xa8] sm:$0xff]
    %v5924 = vld [vmem:[%s3225 + $0xb0] sm:$0xff]
    %v5925 = vld [vmem:[%s3225 + $0xb8] sm:$0xff]
    %v5926 = vld [vmem:[%s3225 + $0xc0] sm:$0xff]
    %v5927 = vld [vmem:[%s3225 + $0xc8] sm:$0xff]
    %v5928 = vld [vmem:[%s3225 + $0xd0] sm:$0xff]
    %v5929 = vld [vmem:[%s3225 + $0xd8] sm:$0xff]
    %v5930 = vld [vmem:[%s3225 + $0xe0] sm:$0xff]
    %v5931 = vld [vmem:[%s3225 + $0xe8] sm:$0xff]
    %v5932 = vld [vmem:[%s3225 + $0xf0] sm:$0xff]
    %v5933 = vld [vmem:[%s3225 + $0xf8] sm:$0xff]
    %5934 = vmatprep.subr.bf16.mxu0 %v5903
    %5935 = vmatpush1.bf16.msra.mxu0 %v5902
    %5936 = vmatprep.subr.bf16.mxu0 %v5907
    %5937 = vmatpush1.bf16.msra.mxu0 %v5906
    %5938 = vmatprep.subr.bf16.mxu0 %v5911
    %5939 = vmatpush1.bf16.msra.mxu0 %v5910
    %5940 = vmatprep.subr.bf16.mxu0 %v5915
    %5941 = vmatpush1.bf16.msra.mxu0 %v5914
    %5942 = vmatprep.subr.bf16.mxu0 %v5919
    %5943 = vmatpush1.bf16.msra.mxu0 %v5918
    %5944 = vmatprep.subr.bf16.mxu0 %v5923
    %5945 = vmatpush1.bf16.msra.mxu0 %v5922
    %5946 = vmatprep.subr.bf16.mxu0 %v5927
    %5947 = vmatpush1.bf16.msra.mxu0 %v5926
    %5948 = vmatprep.subr.bf16.mxu0 %v5931
    %5949 = vmatpush1.bf16.msra.mxu0 %v5930
    %5950 = vmatprep.subr.bf16.mxu0 0
    %5951 = vmatpush1.bf16.msra.mxu0 0
    %5952 = vmatprep.subr.bf16.mxu0 0
    %5953 = vmatpush1.bf16.msra.mxu0 0
    %5954 = vmatprep.subr.bf16.mxu0 0
    %5955 = vmatpush1.bf16.msra.mxu0 0
    %5956 = vmatprep.subr.bf16.mxu0 0
    %5957 = vmatpush1.bf16.msra.mxu0 0
    %5958 = vmatprep.subr.bf16.mxu0 0
    %5959 = vmatpush1.bf16.msra.mxu0 0
    %5960 = vmatprep.subr.bf16.mxu0 0
    %5961 = vmatpush1.bf16.msra.mxu0 0
    %5962 = vmatprep.subr.bf16.mxu0 0
    %5963 = vmatpush1.bf16.msra.mxu0 0
    %5964 = vmatprep.subr.bf16.mxu0 0
    %5965 = vmatpush1.bf16.msra.mxu0 0
    %5966 = vmatprep.mubr.bf16.mxu0 0
    %5967 = vmatmul.mubr.bf16.gmra.mrb[0].mxu0 %v5384
    %v5968 = vpop.f32.mrb[0].mxu0
    %v5969 = vadd.f32 0.0, %v5968
    %v5970 = vpop.f32.mrb[0].mxu0
    %v5971 = vadd.f32 0.0, %v5970
    %v5972 = vpop.f32.mrb[0].mxu0
    %v5973 = vpop.f32.mrb[0].mxu0
    %5974 = vdwg.mxu0
    %5975 = vmatprep.subr.bf16.mxu0 %v5905
    %5976 = vmatpush1.bf16.msra.mxu0 %v5904
    %5977 = vmatprep.subr.bf16.mxu0 %v5909
    %5978 = vmatpush1.bf16.msra.mxu0 %v5908
    %5979 = vmatprep.subr.bf16.mxu0 %v5913
    %5980 = vmatpush1.bf16.msra.mxu0 %v5912
    %5981 = vmatprep.subr.bf16.mxu0 %v5917
    %5982 = vmatpush1.bf16.msra.mxu0 %v5916
    %5983 = vmatprep.subr.bf16.mxu0 %v5921
    %5984 = vmatpush1.bf16.msra.mxu0 %v5920
    %5985 = vmatprep.subr.bf16.mxu0 %v5925
    %5986 = vmatpush1.bf16.msra.mxu0 %v5924
    %5987 = vmatprep.subr.bf16.mxu0 %v5929
    %5988 = vmatpush1.bf16.msra.mxu0 %v5928
    %5989 = vmatprep.subr.bf16.mxu0 %v5933
    %5990 = vmatpush1.bf16.msra.mxu0 %v5932
    %5991 = vmatprep.subr.bf16.mxu0 0
    %5992 = vmatpush1.bf16.msra.mxu0 0
    %5993 = vmatprep.subr.bf16.mxu0 0
    %5994 = vmatpush1.bf16.msra.mxu0 0
    %5995 = vmatprep.subr.bf16.mxu0 0
    %5996 = vmatpush1.bf16.msra.mxu0 0
    %5997 = vmatprep.subr.bf16.mxu0 0
    %5998 = vmatpush1.bf16.msra.mxu0 0
    %5999 = vmatprep.subr.bf16.mxu0 0
    %6000 = vmatpush1.bf16.msra.mxu0 0
    %6001 = vmatprep.subr.bf16.mxu0 0
    %6002 = vmatpush1.bf16.msra.mxu0 0
    %6003 = vmatprep.subr.bf16.mxu0 0
    %6004 = vmatpush1.bf16.msra.mxu0 0
    %6005 = vmatprep.subr.bf16.mxu0 0
    %6006 = vmatpush1.bf16.msra.mxu0 0
    %6007 = vmatprep.mubr.bf16.mxu0 0
    %6008 = vmatmul.mubr.bf16.gmra.mrb[0].mxu0 %v5384
    %v6009 = vpop.f32.mrb[0].mxu0
    %v6010 = vadd.f32 0.0, %v6009
    %v6011 = vpop.f32.mrb[0].mxu0
    %v6012 = vadd.f32 0.0, %v6011
    %v6013 = vpop.f32.mrb[0].mxu0
    %v6014 = vpop.f32.mrb[0].mxu0
    %6015 = vdwg.mxu0
    %v6016 = vadd.f32 %v5898, %v5969
    %v6017 = vadd.f32 %v5899, %v5971
    %v6018 = vadd.f32 %v5900, %v6010
    %v6019 = vadd.f32 %v5901, %v6012
    %v6020 = vld [vmem:[%s6] sm:$0xff]
    %v6021 = vld [vmem:[%s6 + $0x8] sm:$0xff]
    %v6022 = vld [vmem:[%s6 + $0x10] sm:$0xff]
    %v6023 = vld [vmem:[%s6 + $0x18] sm:$0xff]
    %v6024 = vadd.f32 %v6016, %v6020
    %v6025 = vadd.f32 %v6017, %v6021
    %v6026 = vadd.f32 %v6018, %v6022
    %v6027 = vadd.f32 %v6019, %v6023
    %v6028 = vxor.u32 %v6024, 2147483648
    %v6029 = vmul.f32 %v6028, 1.442695
    %v6030 = vpow.pop %v6029
    %v6031 = vadd.f32 %v6030, 1.0
    %v6032 = vrcp.pop %v6031
    %v6033 = vmul.f32 1.0, %v6032
    %v6034 = vxor.u32 %v6025, 2147483648
    %v6035 = vmul.f32 %v6034, 1.442695
    %v6036 = vpow.pop %v6035
    %v6037 = vadd.f32 %v6036, 1.0
    %v6038 = vrcp.pop %v6037
    %v6039 = vmul.f32 1.0, %v6038
    %v6040 = vtanh.pop %v6026
    %v6041 = vxor.u32 %v6027, 2147483648
    %v6042 = vmul.f32 %v6041, 1.442695
    %v6043 = vpow.pop %v6042
    %v6044 = vadd.f32 %v6043, 1.0
    %v6045 = vrcp.pop %v6044
    %v6046 = vmul.f32 1.0, %v6045
    %v6047 = vmul.f32 %v6039, %v5381
    %v6048 = vmul.f32 %v6033, %v6040
    %v6049 = vadd.f32 %v6047, %v6048
    %v6050 = vtanh.pop %v6049
    %v6051 = vmul.f32 %v6046, %v6050
    %v6052 = vpack.c.bf16 %v6051, %v6051
    %v6053 = vld [vmem:[%s3377] sm:$0xff]
    %v6054 = vld [vmem:[%s3377 + $0x8] sm:$0xff]
    %v6055 = vld [vmem:[%s3377 + $0x10] sm:$0xff]
    %v6056 = vld [vmem:[%s3377 + $0x18] sm:$0xff]
    %v6057 = vld [vmem:[%s3377 + $0x20] sm:$0xff]
    %v6058 = vld [vmem:[%s3377 + $0x28] sm:$0xff]
    %v6059 = vld [vmem:[%s3377 + $0x30] sm:$0xff]
    %v6060 = vld [vmem:[%s3377 + $0x38] sm:$0xff]
    %v6061 = vld [vmem:[%s3377 + $0x40] sm:$0xff]
    %v6062 = vld [vmem:[%s3377 + $0x48] sm:$0xff]
    %v6063 = vld [vmem:[%s3377 + $0x50] sm:$0xff]
    %v6064 = vld [vmem:[%s3377 + $0x58] sm:$0xff]
    %v6065 = vld [vmem:[%s3377 + $0x60] sm:$0xff]
    %v6066 = vld [vmem:[%s3377 + $0x68] sm:$0xff]
    %v6067 = vld [vmem:[%s3377 + $0x70] sm:$0xff]
    %v6068 = vld [vmem:[%s3377 + $0x78] sm:$0xff]
    %v6069 = vld [vmem:[%s3377 + $0x80] sm:$0xff]
    %v6070 = vld [vmem:[%s3377 + $0x88] sm:$0xff]
    %v6071 = vld [vmem:[%s3377 + $0x90] sm:$0xff]
    %v6072 = vld [vmem:[%s3377 + $0x98] sm:$0xff]
    %v6073 = vld [vmem:[%s3377 + $0xa0] sm:$0xff]
    %v6074 = vld [vmem:[%s3377 + $0xa8] sm:$0xff]
    %v6075 = vld [vmem:[%s3377 + $0xb0] sm:$0xff]
    %v6076 = vld [vmem:[%s3377 + $0xb8] sm:$0xff]
    %v6077 = vld [vmem:[%s3377 + $0xc0] sm:$0xff]
    %v6078 = vld [vmem:[%s3377 + $0xc8] sm:$0xff]
    %v6079 = vld [vmem:[%s3377 + $0xd0] sm:$0xff]
    %v6080 = vld [vmem:[%s3377 + $0xd8] sm:$0xff]
    %v6081 = vld [vmem:[%s3377 + $0xe0] sm:$0xff]
    %v6082 = vld [vmem:[%s3377 + $0xe8] sm:$0xff]
    %v6083 = vld [vmem:[%s3377 + $0xf0] sm:$0xff]
    %v6084 = vld [vmem:[%s3377 + $0xf8] sm:$0xff]
    %v6085 = vld [vmem:[%s3411] sm:$0xff]
    %v6086 = vld [vmem:[%s3411 + $0x8] sm:$0xff]
    %v6087 = vld [vmem:[%s3411 + $0x10] sm:$0xff]
    %v6088 = vld [vmem:[%s3411 + $0x18] sm:$0xff]
    %v6089 = vld [vmem:[%s3411 + $0x20] sm:$0xff]
    %v6090 = vld [vmem:[%s3411 + $0x28] sm:$0xff]
    %v6091 = vld [vmem:[%s3411 + $0x30] sm:$0xff]
    %v6092 = vld [vmem:[%s3411 + $0x38] sm:$0xff]
    %v6093 = vld [vmem:[%s3411 + $0x40] sm:$0xff]
    %v6094 = vld [vmem:[%s3411 + $0x48] sm:$0xff]
    %v6095 = vld [vmem:[%s3411 + $0x50] sm:$0xff]
    %v6096 = vld [vmem:[%s3411 + $0x58] sm:$0xff]
    %v6097 = vld [vmem:[%s3411 + $0x60] sm:$0xff]
    %v6098 = vld [vmem:[%s3411 + $0x68] sm:$0xff]
    %v6099 = vld [vmem:[%s3411 + $0x70] sm:$0xff]
    %v6100 = vld [vmem:[%s3411 + $0x78] sm:$0xff]
    %v6101 = vld [vmem:[%s3411 + $0x80] sm:$0xff]
    %v6102 = vld [vmem:[%s3411 + $0x88] sm:$0xff]
    %v6103 = vld [vmem:[%s3411 + $0x90] sm:$0xff]
    %v6104 = vld [vmem:[%s3411 + $0x98] sm:$0xff]
    %v6105 = vld [vmem:[%s3411 + $0xa0] sm:$0xff]
    %v6106 = vld [vmem:[%s3411 + $0xa8] sm:$0xff]
    %v6107 = vld [vmem:[%s3411 + $0xb0] sm:$0xff]
    %v6108 = vld [vmem:[%s3411 + $0xb8] sm:$0xff]
    %v6109 = vld [vmem:[%s3411 + $0xc0] sm:$0xff]
    %v6110 = vld [vmem:[%s3411 + $0xc8] sm:$0xff]
    %v6111 = vld [vmem:[%s3411 + $0xd0] sm:$0xff]
    %v6112 = vld [vmem:[%s3411 + $0xd8] sm:$0xff]
    %v6113 = vld [vmem:[%s3411 + $0xe0] sm:$0xff]
    %v6114 = vld [vmem:[%s3411 + $0xe8] sm:$0xff]
    %v6115 = vld [vmem:[%s3411 + $0xf0] sm:$0xff]
    %v6116 = vld [vmem:[%s3411 + $0xf8] sm:$0xff]
    %6117 = vmatprep.subr.bf16.mxu0 %v6086
    %6118 = vmatpush1.bf16.msra.mxu0 %v6085
    %6119 = vmatprep.subr.bf16.mxu0 %v6090
    %6120 = vmatpush1.bf16.msra.mxu0 %v6089
    %6121 = vmatprep.subr.bf16.mxu0 %v6094
    %6122 = vmatpush1.bf16.msra.mxu0 %v6093
    %6123 = vmatprep.subr.bf16.mxu0 %v6098
    %6124 = vmatpush1.bf16.msra.mxu0 %v6097
    %6125 = vmatprep.subr.bf16.mxu0 %v6102
    %6126 = vmatpush1.bf16.msra.mxu0 %v6101
    %6127 = vmatprep.subr.bf16.mxu0 %v6106
    %6128 = vmatpush1.bf16.msra.mxu0 %v6105
    %6129 = vmatprep.subr.bf16.mxu0 %v6110
    %6130 = vmatpush1.bf16.msra.mxu0 %v6109
    %6131 = vmatprep.subr.bf16.mxu0 %v6114
    %6132 = vmatpush1.bf16.msra.mxu0 %v6113
    %6133 = vmatprep.subr.bf16.mxu0 0
    %6134 = vmatpush1.bf16.msra.mxu0 0
    %6135 = vmatprep.subr.bf16.mxu0 0
    %6136 = vmatpush1.bf16.msra.mxu0 0
    %6137 = vmatprep.subr.bf16.mxu0 0
    %6138 = vmatpush1.bf16.msra.mxu0 0
    %6139 = vmatprep.subr.bf16.mxu0 0
    %6140 = vmatpush1.bf16.msra.mxu0 0
    %6141 = vmatprep.subr.bf16.mxu0 0
    %6142 = vmatpush1.bf16.msra.mxu0 0
    %6143 = vmatprep.subr.bf16.mxu0 0
    %6144 = vmatpush1.bf16.msra.mxu0 0
    %6145 = vmatprep.subr.bf16.mxu0 0
    %6146 = vmatpush1.bf16.msra.mxu0 0
    %6147 = vmatprep.subr.bf16.mxu0 0
    %6148 = vmatpush1.bf16.msra.mxu0 0
    %6149 = vmatprep.mubr.bf16.mxu0 0
    %6150 = vmatmul.mubr.bf16.gmra.mrb[0].mxu0 %v5645
    %v6151 = vpop.f32.mrb[0].mxu0
    %v6152 = vadd.f32 0.0, %v6151
    %v6153 = vpop.f32.mrb[0].mxu0
    %v6154 = vadd.f32 0.0, %v6153
    %v6155 = vpop.f32.mrb[0].mxu0
    %v6156 = vpop.f32.mrb[0].mxu0
    %6157 = vdwg.mxu0
    %6158 = vmatprep.subr.bf16.mxu0 %v6088
    %6159 = vmatpush1.bf16.msra.mxu0 %v6087
    %6160 = vmatprep.subr.bf16.mxu0 %v6092
    %6161 = vmatpush1.bf16.msra.mxu0 %v6091
    %6162 = vmatprep.subr.bf16.mxu0 %v6096
    %6163 = vmatpush1.bf16.msra.mxu0 %v6095
    %6164 = vmatprep.subr.bf16.mxu0 %v6100
    %6165 = vmatpush1.bf16.msra.mxu0 %v6099
    %6166 = vmatprep.subr.bf16.mxu0 %v6104
    %6167 = vmatpush1.bf16.msra.mxu0 %v6103
    %6168 = vmatprep.subr.bf16.mxu0 %v6108
    %6169 = vmatpush1.bf16.msra.mxu0 %v6107
    %6170 = vmatprep.subr.bf16.mxu0 %v6112
    %6171 = vmatpush1.bf16.msra.mxu0 %v6111
    %6172 = vmatprep.subr.bf16.mxu0 %v6116
    %6173 = vmatpush1.bf16.msra.mxu0 %v6115
    %6174 = vmatprep.subr.bf16.mxu0 0
    %6175 = vmatpush1.bf16.msra.mxu0 0
    %6176 = vmatprep.subr.bf16.mxu0 0
    %6177 = vmatpush1.bf16.msra.mxu0 0
    %6178 = vmatprep.subr.bf16.mxu0 0
    %6179 = vmatpush1.bf16.msra.mxu0 0
    %6180 = vmatprep.subr.bf16.mxu0 0
    %6181 = vmatpush1.bf16.msra.mxu0 0
    %6182 = vmatprep.subr.bf16.mxu0 0
    %6183 = vmatpush1.bf16.msra.mxu0 0
    %6184 = vmatprep.subr.bf16.mxu0 0
    %6185 = vmatpush1.bf16.msra.mxu0 0
    %6186 = vmatprep.subr.bf16.mxu0 0
    %6187 = vmatpush1.bf16.msra.mxu0 0
    %6188 = vmatprep.subr.bf16.mxu0 0
    %6189 = vmatpush1.bf16.msra.mxu0 0
    %6190 = vmatprep.mubr.bf16.mxu0 0
    %6191 = vmatmul.mubr.bf16.gmra.mrb[0].mxu0 %v5645
    %v6192 = vpop.f32.mrb[0].mxu0
    %v6193 = vadd.f32 0.0, %v6192
    %v6194 = vpop.f32.mrb[0].mxu0
    %v6195 = vadd.f32 0.0, %v6194
    %v6196 = vpop.f32.mrb[0].mxu0
    %v6197 = vpop.f32.mrb[0].mxu0
    %6198 = vdwg.mxu0
    %6199 = vmatprep.subr.bf16.mxu0 %v6054
    %6200 = vmatpush1.bf16.msra.mxu0 %v6053
    %6201 = vmatprep.subr.bf16.mxu0 %v6058
    %6202 = vmatpush1.bf16.msra.mxu0 %v6057
    %6203 = vmatprep.subr.bf16.mxu0 %v6062
    %6204 = vmatpush1.bf16.msra.mxu0 %v6061
    %6205 = vmatprep.subr.bf16.mxu0 %v6066
    %6206 = vmatpush1.bf16.msra.mxu0 %v6065
    %6207 = vmatprep.subr.bf16.mxu0 %v6070
    %6208 = vmatpush1.bf16.msra.mxu0 %v6069
    %6209 = vmatprep.subr.bf16.mxu0 %v6074
    %6210 = vmatpush1.bf16.msra.mxu0 %v6073
    %6211 = vmatprep.subr.bf16.mxu0 %v6078
    %6212 = vmatpush1.bf16.msra.mxu0 %v6077
    %6213 = vmatprep.subr.bf16.mxu0 %v6082
    %6214 = vmatpush1.bf16.msra.mxu0 %v6081
    %6215 = vmatprep.subr.bf16.mxu0 0
    %6216 = vmatpush1.bf16.msra.mxu0 0
    %6217 = vmatprep.subr.bf16.mxu0 0
    %6218 = vmatpush1.bf16.msra.mxu0 0
    %6219 = vmatprep.subr.bf16.mxu0 0
    %6220 = vmatpush1.bf16.msra.mxu0 0
    %6221 = vmatprep.subr.bf16.mxu0 0
    %6222 = vmatpush1.bf16.msra.mxu0 0
    %6223 = vmatprep.subr.bf16.mxu0 0
    %6224 = vmatpush1.bf16.msra.mxu0 0
    %6225 = vmatprep.subr.bf16.mxu0 0
    %6226 = vmatpush1.bf16.msra.mxu0 0
    %6227 = vmatprep.subr.bf16.mxu0 0
    %6228 = vmatpush1.bf16.msra.mxu0 0
    %6229 = vmatprep.subr.bf16.mxu0 0
    %6230 = vmatpush1.bf16.msra.mxu0 0
    %6231 = vmatprep.mubr.bf16.mxu0 0
    %6232 = vmatmul.mubr.bf16.gmra.mrb[0].mxu0 %v6052
    %v6233 = vpop.f32.mrb[0].mxu0
    %v6234 = vadd.f32 %v6152, %v6233
    %v6235 = vpop.f32.mrb[0].mxu0
    %v6236 = vadd.f32 %v6154, %v6235
    %v6237 = vpop.f32.mrb[0].mxu0
    %v6238 = vpop.f32.mrb[0].mxu0
    %6239 = vdwg.mxu0
    %6240 = vmatprep.subr.bf16.mxu0 %v6056
    %6241 = vmatpush1.bf16.msra.mxu0 %v6055
    %6242 = vmatprep.subr.bf16.mxu0 %v6060
    %6243 = vmatpush1.bf16.msra.mxu0 %v6059
    %6244 = vmatprep.subr.bf16.mxu0 %v6064
    %6245 = vmatpush1.bf16.msra.mxu0 %v6063
    %6246 = vmatprep.subr.bf16.mxu0 %v6068
    %6247 = vmatpush1.bf16.msra.mxu0 %v6067
    %6248 = vmatprep.subr.bf16.mxu0 %v6072
    %6249 = vmatpush1.bf16.msra.mxu0 %v6071
    %6250 = vmatprep.subr.bf16.mxu0 %v6076
    %6251 = vmatpush1.bf16.msra.mxu0 %v6075
    %6252 = vmatprep.subr.bf16.mxu0 %v6080
    %6253 = vmatpush1.bf16.msra.mxu0 %v6079
    %6254 = vmatprep.subr.bf16.mxu0 %v6084
    %6255 = vmatpush1.bf16.msra.mxu0 %v6083
    %6256 = vmatprep.subr.bf16.mxu0 0
    %6257 = vmatpush1.bf16.msra.mxu0 0
    %6258 = vmatprep.subr.bf16.mxu0 0
    %6259 = vmatpush1.bf16.msra.mxu0 0
    %6260 = vmatprep.subr.bf16.mxu0 0
    %6261 = vmatpush1.bf16.msra.mxu0 0
    %6262 = vmatprep.subr.bf16.mxu0 0
    %6263 = vmatpush1.bf16.msra.mxu0 0
    %6264 = vmatprep.subr.bf16.mxu0 0
    %6265 = vmatpush1.bf16.msra.mxu0 0
    %6266 = vmatprep.subr.bf16.mxu0 0
    %6267 = vmatpush1.bf16.msra.mxu0 0
    %6268 = vmatprep.subr.bf16.mxu0 0
    %6269 = vmatpush1.bf16.msra.mxu0 0
    %6270 = vmatprep.subr.bf16.mxu0 0
    %6271 = vmatpush1.bf16.msra.mxu0 0
    %6272 = vmatprep.mubr.bf16.mxu0 0
    %6273 = vmatmul.mubr.bf16.gmra.mrb[0].mxu0 %v6052
    %v6274 = vpop.f32.mrb[0].mxu0
    %v6275 = vadd.f32 %v6193, %v6274
    %v6276 = vpop.f32.mrb[0].mxu0
    %v6277 = vadd.f32 %v6195, %v6276
    %v6278 = vpop.f32.mrb[0].mxu0
    %v6279 = vpop.f32.mrb[0].mxu0
    %6280 = vdwg.mxu0
    %v6281 = vld [vmem:[%s3608] sm:$0xff]
    %v6282 = vld [vmem:[%s3608 + $0x8] sm:$0xff]
    %v6283 = vld [vmem:[%s3608 + $0x10] sm:$0xff]
    %v6284 = vld [vmem:[%s3608 + $0x18] sm:$0xff]
    %v6285 = vadd.f32 %v6234, %v6281
    %v6286 = vadd.f32 %v6236, %v6282
    %v6287 = vadd.f32 %v6275, %v6283
    %v6288 = vadd.f32 %v6277, %v6284
    %v6289 = vxor.u32 %v6285, 2147483648
    %v6290 = vmul.f32 %v6289, 1.442695
    %v6291 = vpow.pop %v6290
    %v6292 = vadd.f32 %v6291, 1.0
    %v6293 = vrcp.pop %v6292
    %v6294 = vmul.f32 1.0, %v6293
    %v6295 = vxor.u32 %v6286, 2147483648
    %v6296 = vmul.f32 %v6295, 1.442695
    %v6297 = vpow.pop %v6296
    %v6298 = vadd.f32 %v6297, 1.0
    %v6299 = vrcp.pop %v6298
    %v6300 = vmul.f32 1.0, %v6299
    %v6301 = vtanh.pop %v6287
    %v6302 = vxor.u32 %v6288, 2147483648
    %v6303 = vmul.f32 %v6302, 1.442695
    %v6304 = vpow.pop %v6303
    %v6305 = vadd.f32 %v6304, 1.0
    %v6306 = vrcp.pop %v6305
    %v6307 = vmul.f32 1.0, %v6306
    %v6308 = vmul.f32 %v6300, %v5642
    %v6309 = vmul.f32 %v6294, %v6301
    %v6310 = vadd.f32 %v6308, %v6309
    %v6311 = vtanh.pop %v6310
    %v6312 = vmul.f32 %v6307, %v6311
    %v6313 = vpack.c.bf16 %v6312, %v6312
    %v6314 = vld [vmem:[#allocation11] sm:$0xf]
    %v6315 = vld [vmem:[#allocation11 + $0x4] sm:$0xf]
    %v6316 = vld [vmem:[#allocation11 + $0x8] sm:$0xf]
    %v6317 = vld [vmem:[#allocation11 + $0xc] sm:$0xf]
    %v6318 = vld [vmem:[#allocation11 + $0x10] sm:$0xf]
    %v6319 = vld [vmem:[#allocation11 + $0x14] sm:$0xf]
    %v6320 = vld [vmem:[#allocation11 + $0x18] sm:$0xf]
    %v6321 = vld [vmem:[#allocation11 + $0x1c] sm:$0xf]
    %v6322 = vld [vmem:[#allocation11 + $0x20] sm:$0xf]
    %v6323 = vld [vmem:[#allocation11 + $0x24] sm:$0xf]
    %v6324 = vld [vmem:[#allocation11 + $0x28] sm:$0xf]
    %v6325 = vld [vmem:[#allocation11 + $0x2c] sm:$0xf]
    %v6326 = vld [vmem:[#allocation11 + $0x30] sm:$0xf]
    %v6327 = vld [vmem:[#allocation11 + $0x34] sm:$0xf]
    %v6328 = vld [vmem:[#allocation11 + $0x38] sm:$0xf]
    %v6329 = vld [vmem:[#allocation11 + $0x3c] sm:$0xf]
    %v6330 = vld [vmem:[%s8] sm:$0xff]
    %v6347 = vunpack.c.l.b16 %v6314
    %v6348 = vunpack.c.l.b16 %v6315
    %v6349 = vunpack.c.l.b16 %v6316
    %v6350 = vunpack.c.l.b16 %v6317
    %v6351 = vunpack.c.l.b16 %v6318
    %v6352 = vunpack.c.l.b16 %v6319
    %v6353 = vunpack.c.l.b16 %v6320
    %v6354 = vunpack.c.l.b16 %v6321
    %v6355 = vunpack.c.l.b16 %v6322
    %v6356 = vunpack.c.l.b16 %v6323
    %v6357 = vunpack.c.l.b16 %v6324
    %v6358 = vunpack.c.l.b16 %v6325
    %v6359 = vunpack.c.l.b16 %v6326
    %v6360 = vunpack.c.l.b16 %v6327
    %v6361 = vunpack.c.l.b16 %v6328
    %v6362 = vunpack.c.l.b16 %v6329
    %v6363 = vpack.c.b16 %v6348, %v6347
    %v6364 = vpack.c.b16 %v6350, %v6349
    %v6365 = vpack.c.b16 %v6352, %v6351
    %v6366 = vpack.c.b16 %v6354, %v6353
    %v6367 = vpack.c.b16 %v6356, %v6355
    %v6368 = vpack.c.b16 %v6358, %v6357
    %v6369 = vpack.c.b16 %v6360, %v6359
    %v6370 = vpack.c.b16 %v6362, %v6361
    %6379 = vmatprep.subr.bf16.mxu0 0
    %6380 = vmatpush1.bf16.msra.mxu0 %v6363
    %6381 = vmatprep.subr.bf16.mxu0 0
    %6382 = vmatpush1.bf16.msra.mxu0 %v6364
    %6383 = vmatprep.subr.bf16.mxu0 0
    %6384 = vmatpush1.bf16.msra.mxu0 %v6365
    %6385 = vmatprep.subr.bf16.mxu0 0
    %6386 = vmatpush1.bf16.msra.mxu0 %v6366
    %6387 = vmatprep.subr.bf16.mxu0 0
    %6388 = vmatpush1.bf16.msra.mxu0 %v6367
    %6389 = vmatprep.subr.bf16.mxu0 0
    %6390 = vmatpush1.bf16.msra.mxu0 %v6368
    %6391 = vmatprep.subr.bf16.mxu0 0
    %6392 = vmatpush1.bf16.msra.mxu0 %v6369
    %6393 = vmatprep.subr.bf16.mxu0 0
    %6394 = vmatpush1.bf16.msra.mxu0 %v6370
    %6395 = vmatprep.subr.bf16.mxu0 0
    %6396 = vmatpush1.bf16.msra.mxu0 0
    %6397 = vmatprep.subr.bf16.mxu0 0
    %6398 = vmatpush1.bf16.msra.mxu0 0
    %6399 = vmatprep.subr.bf16.mxu0 0
    %6400 = vmatpush1.bf16.msra.mxu0 0
    %6401 = vmatprep.subr.bf16.mxu0 0
    %6402 = vmatpush1.bf16.msra.mxu0 0
    %6403 = vmatprep.subr.bf16.mxu0 0
    %6404 = vmatpush1.bf16.msra.mxu0 0
    %6405 = vmatprep.subr.bf16.mxu0 0
    %6406 = vmatpush1.bf16.msra.mxu0 0
    %6407 = vmatprep.subr.bf16.mxu0 0
    %6408 = vmatpush1.bf16.msra.mxu0 0
    %6409 = vmatprep.subr.bf16.mxu0 0
    %6410 = vmatpush1.bf16.msra.mxu0 0
    %6411 = vmatprep.mubr.bf16.mxu0 0
    %6412 = vmatmul.mubr.bf16.gmra.mrb[0].mxu0 %v6313
    %v6413 = vpop.f32.mrb[0].mxu0
    %v6414 = vadd.f32 %v6330, %v6413
    %v6415 = vpop.f32.mrb[0].mxu0
    %v6416 = vpop.f32.mrb[0].mxu0
    %v6417 = vpop.f32.mrb[0].mxu0
    %6418 = vdwg.mxu0
    %s6419 = scalar_lea.vmem [#allocation13], 40
    %6420 = vst [vmem:[%s6419] sm:$0xff] %v6414
    %6421 = vmax.xlane.f32.xlu0 %v6414
    %v6422 = vpop.xlane.xlu0 %6421
    %vm6423 = vcmp.eq.f32.partialorder %v6414, %v6422
    %v6424 = vsel %vm6423, %v98, 128
    %v6425 = vand.u32 %v6424, 65535
    %v6426 = vshra.s32 %v6424, 16
    %v6427 = vcvt.s32.f32 %v6425
    %v6428 = vcvt.s32.f32 %v6426
    %6429 = vmin.xlane.f32.xlu0 %v6428
    %v6430 = vpop.xlane.xlu0 %6429
    %vm6431 = vcmp.eq.f32.partialorder %v6428, %v6430
    %v6432 = vsel %vm6431, %v6427, inf
    %6433 = vmin.xlane.f32.xlu0 %v6432
    %v6434 = vpop.xlane.xlu0 %6433
    %v6435 = vcvt.f32.s32 %v6434
    %v6436 = vcvt.f32.s32 %v6430
    %v6437 = vshll.u32 %v6436, 16
    %v6438 = vadd.s32 %v6437, %v6435
    %vm6439 = vcmp.eq.s32.totalorder %v98, %v6438
    %v6440 = vsel %vm6439, 1, 0
    %v6441 = vcvt.s32.f32 %v6440
    %v6442 = vpack.c.bf16 %v6441, %v6441
    %v6443 = vld [vmem:[#allocation2] sm:$0xff]
    %v6444 = vld [vmem:[#allocation2 + $0x8] sm:$0xff]
    %v6445 = vld [vmem:[#allocation2 + $0x10] sm:$0xff]
    %v6446 = vld [vmem:[#allocation2 + $0x18] sm:$0xff]
    %v6447 = vld [vmem:[#allocation2 + $0x20] sm:$0xff]
    %v6448 = vld [vmem:[#allocation2 + $0x28] sm:$0xff]
    %v6449 = vld [vmem:[#allocation2 + $0x30] sm:$0xff]
    %v6450 = vld [vmem:[#allocation2 + $0x38] sm:$0xff]
    %v6451 = vld [vmem:[#allocation2 + $0x40] sm:$0xff]
    %v6452 = vld [vmem:[#allocation2 + $0x48] sm:$0xff]
    %v6453 = vld [vmem:[#allocation2 + $0x50] sm:$0xff]
    %v6454 = vld [vmem:[#allocation2 + $0x58] sm:$0xff]
    %v6455 = vld [vmem:[#allocation2 + $0x60] sm:$0xff]
    %v6456 = vld [vmem:[#allocation2 + $0x68] sm:$0xff]
    %v6457 = vld [vmem:[#allocation2 + $0x70] sm:$0xff]
    %v6458 = vld [vmem:[#allocation2 + $0x78] sm:$0xff]
    %v6459 = vld [vmem:[#allocation2 + $0x80] sm:$0xff]
    %v6460 = vld [vmem:[#allocation2 + $0x88] sm:$0xff]
    %v6461 = vld [vmem:[#allocation2 + $0x90] sm:$0xff]
    %v6462 = vld [vmem:[#allocation2 + $0x98] sm:$0xff]
    %v6463 = vld [vmem:[#allocation2 + $0xa0] sm:$0xff]
    %v6464 = vld [vmem:[#allocation2 + $0xa8] sm:$0xff]
    %v6465 = vld [vmem:[#allocation2 + $0xb0] sm:$0xff]
    %v6466 = vld [vmem:[#allocation2 + $0xb8] sm:$0xff]
    %v6467 = vld [vmem:[#allocation2 + $0xc0] sm:$0xff]
    %v6468 = vld [vmem:[#allocation2 + $0xc8] sm:$0xff]
    %v6469 = vld [vmem:[#allocation2 + $0xd0] sm:$0xff]
    %v6470 = vld [vmem:[#allocation2 + $0xd8] sm:$0xff]
    %v6471 = vld [vmem:[#allocation2 + $0xe0] sm:$0xff]
    %v6472 = vld [vmem:[#allocation2 + $0xe8] sm:$0xff]
    %v6473 = vld [vmem:[#allocation2 + $0xf0] sm:$0xff]
    %v6474 = vld [vmem:[#allocation2 + $0xf8] sm:$0xff]
    %6475 = vmatprep.subr.bf16.mxu0 %v6444
    %6476 = vmatpush1.bf16.msra.mxu0 %v6443
    %6477 = vmatprep.subr.bf16.mxu0 %v6448
    %6478 = vmatpush1.bf16.msra.mxu0 %v6447
    %6479 = vmatprep.subr.bf16.mxu0 %v6452
    %6480 = vmatpush1.bf16.msra.mxu0 %v6451
    %6481 = vmatprep.subr.bf16.mxu0 %v6456
    %6482 = vmatpush1.bf16.msra.mxu0 %v6455
    %6483 = vmatprep.subr.bf16.mxu0 %v6460
    %6484 = vmatpush1.bf16.msra.mxu0 %v6459
    %6485 = vmatprep.subr.bf16.mxu0 %v6464
    %6486 = vmatpush1.bf16.msra.mxu0 %v6463
    %6487 = vmatprep.subr.bf16.mxu0 %v6468
    %6488 = vmatpush1.bf16.msra.mxu0 %v6467
    %6489 = vmatprep.subr.bf16.mxu0 %v6472
    %6490 = vmatpush1.bf16.msra.mxu0 %v6471
    %6491 = vmatprep.subr.bf16.mxu0 0
    %6492 = vmatpush1.bf16.msra.mxu0 0
    %6493 = vmatprep.subr.bf16.mxu0 0
    %6494 = vmatpush1.bf16.msra.mxu0 0
    %6495 = vmatprep.subr.bf16.mxu0 0
    %6496 = vmatpush1.bf16.msra.mxu0 0
    %6497 = vmatprep.subr.bf16.mxu0 0
    %6498 = vmatpush1.bf16.msra.mxu0 0
    %6499 = vmatprep.subr.bf16.mxu0 0
    %6500 = vmatpush1.bf16.msra.mxu0 0
    %6501 = vmatprep.subr.bf16.mxu0 0
    %6502 = vmatpush1.bf16.msra.mxu0 0
    %6503 = vmatprep.subr.bf16.mxu0 0
    %6504 = vmatpush1.bf16.msra.mxu0 0
    %6505 = vmatprep.subr.bf16.mxu0 0
    %6506 = vmatpush1.bf16.msra.mxu0 0
    %6507 = vmatprep.mubr.bf16.mxu0 0
    %6508 = vmatmul.mubr.bf16.gmra.mrb[0].mxu0 %v6442
    %v6509 = vpop.f32.mrb[0].mxu0
    %v6510 = vadd.f32 0.0, %v6509
    %v6511 = vpop.f32.mrb[0].mxu0
    %v6512 = vadd.f32 0.0, %v6511
    %v6513 = vpop.f32.mrb[0].mxu0
    %v6514 = vpop.f32.mrb[0].mxu0
    %6515 = vdwg.mxu0
    %6516 = vmatprep.subr.bf16.mxu0 %v6446
    %6517 = vmatpush1.bf16.msra.mxu0 %v6445
    %6518 = vmatprep.subr.bf16.mxu0 %v6450
    %6519 = vmatpush1.bf16.msra.mxu0 %v6449
    %6520 = vmatprep.subr.bf16.mxu0 %v6454
    %6521 = vmatpush1.bf16.msra.mxu0 %v6453
    %6522 = vmatprep.subr.bf16.mxu0 %v6458
    %6523 = vmatpush1.bf16.msra.mxu0 %v6457
    %6524 = vmatprep.subr.bf16.mxu0 %v6462
    %6525 = vmatpush1.bf16.msra.mxu0 %v6461
    %6526 = vmatprep.subr.bf16.mxu0 %v6466
    %6527 = vmatpush1.bf16.msra.mxu0 %v6465
    %6528 = vmatprep.subr.bf16.mxu0 %v6470
    %6529 = vmatpush1.bf16.msra.mxu0 %v6469
    %6530 = vmatprep.subr.bf16.mxu0 %v6474
    %6531 = vmatpush1.bf16.msra.mxu0 %v6473
    %6532 = vmatprep.subr.bf16.mxu0 0
    %6533 = vmatpush1.bf16.msra.mxu0 0
    %6534 = vmatprep.subr.bf16.mxu0 0
    %6535 = vmatpush1.bf16.msra.mxu0 0
    %6536 = vmatprep.subr.bf16.mxu0 0
    %6537 = vmatpush1.bf16.msra.mxu0 0
    %6538 = vmatprep.subr.bf16.mxu0 0
    %6539 = vmatpush1.bf16.msra.mxu0 0
    %6540 = vmatprep.subr.bf16.mxu0 0
    %6541 = vmatpush1.bf16.msra.mxu0 0
    %6542 = vmatprep.subr.bf16.mxu0 0
    %6543 = vmatpush1.bf16.msra.mxu0 0
    %6544 = vmatprep.subr.bf16.mxu0 0
    %6545 = vmatpush1.bf16.msra.mxu0 0
    %6546 = vmatprep.subr.bf16.mxu0 0
    %6547 = vmatpush1.bf16.msra.mxu0 0
    %6548 = vmatprep.mubr.bf16.mxu0 0
    %6549 = vmatmul.mubr.bf16.gmra.mrb[0].mxu0 %v6442
    %v6550 = vpop.f32.mrb[0].mxu0
    %v6551 = vadd.f32 0.0, %v6550
    %v6552 = vpop.f32.mrb[0].mxu0
    %v6553 = vadd.f32 0.0, %v6552
    %v6554 = vpop.f32.mrb[0].mxu0
    %v6555 = vpop.f32.mrb[0].mxu0
    %6556 = vdwg.mxu0
    %v6557 = vld [vmem:[#allocation4 + $0xa0] sm:$0xff]
    %v6558 = vld [vmem:[#allocation4 + $0xa8] sm:$0xff]
    %v6559 = vld [vmem:[#allocation4 + $0xb0] sm:$0xff]
    %v6560 = vld [vmem:[#allocation4 + $0xb8] sm:$0xff]
    %s6561 = sld [smem:[#allocation7 + $0x5]]
    %p6562 = scmp.eq.s32.totalorder %s6561, 1
    %s6563 = scalar_select %p6562, 1, 0
    %v6564 = vstv %s6563
    %vm6565 = vcmp.eq.s32.totalorder %v6564, 1
    %v6566 = vsel %vm6565, %v6557, %v6510
    %v6567 = vsel %vm6565, %v6558, %v6512
    %v6568 = vsel %vm6565, %v6559, %v6551
    %v6569 = vsel %vm6565, %v6560, %v6553
    %v6570 = vld [vmem:[%s3225] sm:$0xff]
    %v6571 = vld [vmem:[%s3225 + $0x8] sm:$0xff]
    %v6572 = vld [vmem:[%s3225 + $0x10] sm:$0xff]
    %v6573 = vld [vmem:[%s3225 + $0x18] sm:$0xff]
    %v6574 = vld [vmem:[%s3225 + $0x20] sm:$0xff]
    %v6575 = vld [vmem:[%s3225 + $0x28] sm:$0xff]
    %v6576 = vld [vmem:[%s3225 + $0x30] sm:$0xff]
    %v6577 = vld [vmem:[%s3225 + $0x38] sm:$0xff]
    %v6578 = vld [vmem:[%s3225 + $0x40] sm:$0xff]
    %v6579 = vld [vmem:[%s3225 + $0x48] sm:$0xff]
    %v6580 = vld [vmem:[%s3225 + $0x50] sm:$0xff]
    %v6581 = vld [vmem:[%s3225 + $0x58] sm:$0xff]
    %v6582 = vld [vmem:[%s3225 + $0x60] sm:$0xff]
    %v6583 = vld [vmem:[%s3225 + $0x68] sm:$0xff]
    %v6584 = vld [vmem:[%s3225 + $0x70] sm:$0xff]
    %v6585 = vld [vmem:[%s3225 + $0x78] sm:$0xff]
    %v6586 = vld [vmem:[%s3225 + $0x80] sm:$0xff]
    %v6587 = vld [vmem:[%s3225 + $0x88] sm:$0xff]
    %v6588 = vld [vmem:[%s3225 + $0x90] sm:$0xff]
    %v6589 = vld [vmem:[%s3225 + $0x98] sm:$0xff]
    %v6590 = vld [vmem:[%s3225 + $0xa0] sm:$0xff]
    %v6591 = vld [vmem:[%s3225 + $0xa8] sm:$0xff]
    %v6592 = vld [vmem:[%s3225 + $0xb0] sm:$0xff]
    %v6593 = vld [vmem:[%s3225 + $0xb8] sm:$0xff]
    %v6594 = vld [vmem:[%s3225 + $0xc0] sm:$0xff]
    %v6595 = vld [vmem:[%s3225 + $0xc8] sm:$0xff]
    %v6596 = vld [vmem:[%s3225 + $0xd0] sm:$0xff]
    %v6597 = vld [vmem:[%s3225 + $0xd8] sm:$0xff]
    %v6598 = vld [vmem:[%s3225 + $0xe0] sm:$0xff]
    %v6599 = vld [vmem:[%s3225 + $0xe8] sm:$0xff]
    %v6600 = vld [vmem:[%s3225 + $0xf0] sm:$0xff]
    %v6601 = vld [vmem:[%s3225 + $0xf8] sm:$0xff]
    %6602 = vmatprep.subr.bf16.mxu0 %v6571
    %6603 = vmatpush1.bf16.msra.mxu0 %v6570
    %6604 = vmatprep.subr.bf16.mxu0 %v6575
    %6605 = vmatpush1.bf16.msra.mxu0 %v6574
    %6606 = vmatprep.subr.bf16.mxu0 %v6579
    %6607 = vmatpush1.bf16.msra.mxu0 %v6578
    %6608 = vmatprep.subr.bf16.mxu0 %v6583
    %6609 = vmatpush1.bf16.msra.mxu0 %v6582
    %6610 = vmatprep.subr.bf16.mxu0 %v6587
    %6611 = vmatpush1.bf16.msra.mxu0 %v6586
    %6612 = vmatprep.subr.bf16.mxu0 %v6591
    %6613 = vmatpush1.bf16.msra.mxu0 %v6590
    %6614 = vmatprep.subr.bf16.mxu0 %v6595
    %6615 = vmatpush1.bf16.msra.mxu0 %v6594
    %6616 = vmatprep.subr.bf16.mxu0 %v6599
    %6617 = vmatpush1.bf16.msra.mxu0 %v6598
    %6618 = vmatprep.subr.bf16.mxu0 0
    %6619 = vmatpush1.bf16.msra.mxu0 0
    %6620 = vmatprep.subr.bf16.mxu0 0
    %6621 = vmatpush1.bf16.msra.mxu0 0
    %6622 = vmatprep.subr.bf16.mxu0 0
    %6623 = vmatpush1.bf16.msra.mxu0 0
    %6624 = vmatprep.subr.bf16.mxu0 0
    %6625 = vmatpush1.bf16.msra.mxu0 0
    %6626 = vmatprep.subr.bf16.mxu0 0
    %6627 = vmatpush1.bf16.msra.mxu0 0
    %6628 = vmatprep.subr.bf16.mxu0 0
    %6629 = vmatpush1.bf16.msra.mxu0 0
    %6630 = vmatprep.subr.bf16.mxu0 0
    %6631 = vmatpush1.bf16.msra.mxu0 0
    %6632 = vmatprep.subr.bf16.mxu0 0
    %6633 = vmatpush1.bf16.msra.mxu0 0
    %6634 = vmatprep.mubr.bf16.mxu0 0
    %6635 = vmatmul.mubr.bf16.gmra.mrb[0].mxu0 %v6052
    %v6636 = vpop.f32.mrb[0].mxu0
    %v6637 = vadd.f32 0.0, %v6636
    %v6638 = vpop.f32.mrb[0].mxu0
    %v6639 = vadd.f32 0.0, %v6638
    %v6640 = vpop.f32.mrb[0].mxu0
    %v6641 = vpop.f32.mrb[0].mxu0
    %6642 = vdwg.mxu0
    %6643 = vmatprep.subr.bf16.mxu0 %v6573
    %6644 = vmatpush1.bf16.msra.mxu0 %v6572
    %6645 = vmatprep.subr.bf16.mxu0 %v6577
    %6646 = vmatpush1.bf16.msra.mxu0 %v6576
    %6647 = vmatprep.subr.bf16.mxu0 %v6581
    %6648 = vmatpush1.bf16.msra.mxu0 %v6580
    %6649 = vmatprep.subr.bf16.mxu0 %v6585
    %6650 = vmatpush1.bf16.msra.mxu0 %v6584
    %6651 = vmatprep.subr.bf16.mxu0 %v6589
    %6652 = vmatpush1.bf16.msra.mxu0 %v6588
    %6653 = vmatprep.subr.bf16.mxu0 %v6593
    %6654 = vmatpush1.bf16.msra.mxu0 %v6592
    %6655 = vmatprep.subr.bf16.mxu0 %v6597
    %6656 = vmatpush1.bf16.msra.mxu0 %v6596
    %6657 = vmatprep.subr.bf16.mxu0 %v6601
    %6658 = vmatpush1.bf16.msra.mxu0 %v6600
    %6659 = vmatprep.subr.bf16.mxu0 0
    %6660 = vmatpush1.bf16.msra.mxu0 0
    %6661 = vmatprep.subr.bf16.mxu0 0
    %6662 = vmatpush1.bf16.msra.mxu0 0
    %6663 = vmatprep.subr.bf16.mxu0 0
    %6664 = vmatpush1.bf16.msra.mxu0 0
    %6665 = vmatprep.subr.bf16.mxu0 0
    %6666 = vmatpush1.bf16.msra.mxu0 0
    %6667 = vmatprep.subr.bf16.mxu0 0
    %6668 = vmatpush1.bf16.msra.mxu0 0
    %6669 = vmatprep.subr.bf16.mxu0 0
    %6670 = vmatpush1.bf16.msra.mxu0 0
    %6671 = vmatprep.subr.bf16.mxu0 0
    %6672 = vmatpush1.bf16.msra.mxu0 0
    %6673 = vmatprep.subr.bf16.mxu0 0
    %6674 = vmatpush1.bf16.msra.mxu0 0
    %6675 = vmatprep.mubr.bf16.mxu0 0
    %6676 = vmatmul.mubr.bf16.gmra.mrb[0].mxu0 %v6052
    %v6677 = vpop.f32.mrb[0].mxu0
    %v6678 = vadd.f32 0.0, %v6677
    %v6679 = vpop.f32.mrb[0].mxu0
    %v6680 = vadd.f32 0.0, %v6679
    %v6681 = vpop.f32.mrb[0].mxu0
    %v6682 = vpop.f32.mrb[0].mxu0
    %6683 = vdwg.mxu0
    %v6684 = vadd.f32 %v6566, %v6637
    %v6685 = vadd.f32 %v6567, %v6639
    %v6686 = vadd.f32 %v6568, %v6678
    %v6687 = vadd.f32 %v6569, %v6680
    %v6688 = vld [vmem:[%s6] sm:$0xff]
    %v6689 = vld [vmem:[%s6 + $0x8] sm:$0xff]
    %v6690 = vld [vmem:[%s6 + $0x10] sm:$0xff]
    %v6691 = vld [vmem:[%s6 + $0x18] sm:$0xff]
    %v6692 = vadd.f32 %v6684, %v6688
    %v6693 = vadd.f32 %v6685, %v6689
    %v6694 = vadd.f32 %v6686, %v6690
    %v6695 = vadd.f32 %v6687, %v6691
    %v6696 = vxor.u32 %v6692, 2147483648
    %v6697 = vmul.f32 %v6696, 1.442695
    %v6698 = vpow.pop %v6697
    %v6699 = vadd.f32 %v6698, 1.0
    %v6700 = vrcp.pop %v6699
    %v6701 = vmul.f32 1.0, %v6700
    %v6702 = vxor.u32 %v6693, 2147483648
    %v6703 = vmul.f32 %v6702, 1.442695
    %v6704 = vpow.pop %v6703
    %v6705 = vadd.f32 %v6704, 1.0
    %v6706 = vrcp.pop %v6705
    %v6707 = vmul.f32 1.0, %v6706
    %v6708 = vtanh.pop %v6694
    %v6709 = vxor.u32 %v6695, 2147483648
    %v6710 = vmul.f32 %v6709, 1.442695
    %v6711 = vpow.pop %v6710
    %v6712 = vadd.f32 %v6711, 1.0
    %v6713 = vrcp.pop %v6712
    %v6714 = vmul.f32 1.0, %v6713
    %v6715 = vmul.f32 %v6707, %v6049
    %v6716 = vmul.f32 %v6701, %v6708
    %v6717 = vadd.f32 %v6715, %v6716
    %v6718 = vtanh.pop %v6717
    %v6719 = vmul.f32 %v6714, %v6718
    %v6720 = vpack.c.bf16 %v6719, %v6719
    %v6721 = vld [vmem:[%s3377] sm:$0xff]
    %v6722 = vld [vmem:[%s3377 + $0x8] sm:$0xff]
    %v6723 = vld [vmem:[%s3377 + $0x10] sm:$0xff]
    %v6724 = vld [vmem:[%s3377 + $0x18] sm:$0xff]
    %v6725 = vld [vmem:[%s3377 + $0x20] sm:$0xff]
    %v6726 = vld [vmem:[%s3377 + $0x28] sm:$0xff]
    %v6727 = vld [vmem:[%s3377 + $0x30] sm:$0xff]
    %v6728 = vld [vmem:[%s3377 + $0x38] sm:$0xff]
    %v6729 = vld [vmem:[%s3377 + $0x40] sm:$0xff]
    %v6730 = vld [vmem:[%s3377 + $0x48] sm:$0xff]
    %v6731 = vld [vmem:[%s3377 + $0x50] sm:$0xff]
    %v6732 = vld [vmem:[%s3377 + $0x58] sm:$0xff]
    %v6733 = vld [vmem:[%s3377 + $0x60] sm:$0xff]
    %v6734 = vld [vmem:[%s3377 + $0x68] sm:$0xff]
    %v6735 = vld [vmem:[%s3377 + $0x70] sm:$0xff]
    %v6736 = vld [vmem:[%s3377 + $0x78] sm:$0xff]
    %v6737 = vld [vmem:[%s3377 + $0x80] sm:$0xff]
    %v6738 = vld [vmem:[%s3377 + $0x88] sm:$0xff]
    %v6739 = vld [vmem:[%s3377 + $0x90] sm:$0xff]
    %v6740 = vld [vmem:[%s3377 + $0x98] sm:$0xff]
    %v6741 = vld [vmem:[%s3377 + $0xa0] sm:$0xff]
    %v6742 = vld [vmem:[%s3377 + $0xa8] sm:$0xff]
    %v6743 = vld [vmem:[%s3377 + $0xb0] sm:$0xff]
    %v6744 = vld [vmem:[%s3377 + $0xb8] sm:$0xff]
    %v6745 = vld [vmem:[%s3377 + $0xc0] sm:$0xff]
    %v6746 = vld [vmem:[%s3377 + $0xc8] sm:$0xff]
    %v6747 = vld [vmem:[%s3377 + $0xd0] sm:$0xff]
    %v6748 = vld [vmem:[%s3377 + $0xd8] sm:$0xff]
    %v6749 = vld [vmem:[%s3377 + $0xe0] sm:$0xff]
    %v6750 = vld [vmem:[%s3377 + $0xe8] sm:$0xff]
    %v6751 = vld [vmem:[%s3377 + $0xf0] sm:$0xff]
    %v6752 = vld [vmem:[%s3377 + $0xf8] sm:$0xff]
    %v6753 = vld [vmem:[%s3411] sm:$0xff]
    %v6754 = vld [vmem:[%s3411 + $0x8] sm:$0xff]
    %v6755 = vld [vmem:[%s3411 + $0x10] sm:$0xff]
    %v6756 = vld [vmem:[%s3411 + $0x18] sm:$0xff]
    %v6757 = vld [vmem:[%s3411 + $0x20] sm:$0xff]
    %v6758 = vld [vmem:[%s3411 + $0x28] sm:$0xff]
    %v6759 = vld [vmem:[%s3411 + $0x30] sm:$0xff]
    %v6760 = vld [vmem:[%s3411 + $0x38] sm:$0xff]
    %v6761 = vld [vmem:[%s3411 + $0x40] sm:$0xff]
    %v6762 = vld [vmem:[%s3411 + $0x48] sm:$0xff]
    %v6763 = vld [vmem:[%s3411 + $0x50] sm:$0xff]
    %v6764 = vld [vmem:[%s3411 + $0x58] sm:$0xff]
    %v6765 = vld [vmem:[%s3411 + $0x60] sm:$0xff]
    %v6766 = vld [vmem:[%s3411 + $0x68] sm:$0xff]
    %v6767 = vld [vmem:[%s3411 + $0x70] sm:$0xff]
    %v6768 = vld [vmem:[%s3411 + $0x78] sm:$0xff]
    %v6769 = vld [vmem:[%s3411 + $0x80] sm:$0xff]
    %v6770 = vld [vmem:[%s3411 + $0x88] sm:$0xff]
    %v6771 = vld [vmem:[%s3411 + $0x90] sm:$0xff]
    %v6772 = vld [vmem:[%s3411 + $0x98] sm:$0xff]
    %v6773 = vld [vmem:[%s3411 + $0xa0] sm:$0xff]
    %v6774 = vld [vmem:[%s3411 + $0xa8] sm:$0xff]
    %v6775 = vld [vmem:[%s3411 + $0xb0] sm:$0xff]
    %v6776 = vld [vmem:[%s3411 + $0xb8] sm:$0xff]
    %v6777 = vld [vmem:[%s3411 + $0xc0] sm:$0xff]
    %v6778 = vld [vmem:[%s3411 + $0xc8] sm:$0xff]
    %v6779 = vld [vmem:[%s3411 + $0xd0] sm:$0xff]
    %v6780 = vld [vmem:[%s3411 + $0xd8] sm:$0xff]
    %v6781 = vld [vmem:[%s3411 + $0xe0] sm:$0xff]
    %v6782 = vld [vmem:[%s3411 + $0xe8] sm:$0xff]
    %v6783 = vld [vmem:[%s3411 + $0xf0] sm:$0xff]
    %v6784 = vld [vmem:[%s3411 + $0xf8] sm:$0xff]
    %6785 = vmatprep.subr.bf16.mxu0 %v6754
    %6786 = vmatpush1.bf16.msra.mxu0 %v6753
    %6787 = vmatprep.subr.bf16.mxu0 %v6758
    %6788 = vmatpush1.bf16.msra.mxu0 %v6757
    %6789 = vmatprep.subr.bf16.mxu0 %v6762
    %6790 = vmatpush1.bf16.msra.mxu0 %v6761
    %6791 = vmatprep.subr.bf16.mxu0 %v6766
    %6792 = vmatpush1.bf16.msra.mxu0 %v6765
    %6793 = vmatprep.subr.bf16.mxu0 %v6770
    %6794 = vmatpush1.bf16.msra.mxu0 %v6769
    %6795 = vmatprep.subr.bf16.mxu0 %v6774
    %6796 = vmatpush1.bf16.msra.mxu0 %v6773
    %6797 = vmatprep.subr.bf16.mxu0 %v6778
    %6798 = vmatpush1.bf16.msra.mxu0 %v6777
    %6799 = vmatprep.subr.bf16.mxu0 %v6782
    %6800 = vmatpush1.bf16.msra.mxu0 %v6781
    %6801 = vmatprep.subr.bf16.mxu0 0
    %6802 = vmatpush1.bf16.msra.mxu0 0
    %6803 = vmatprep.subr.bf16.mxu0 0
    %6804 = vmatpush1.bf16.msra.mxu0 0
    %6805 = vmatprep.subr.bf16.mxu0 0
    %6806 = vmatpush1.bf16.msra.mxu0 0
    %6807 = vmatprep.subr.bf16.mxu0 0
    %6808 = vmatpush1.bf16.msra.mxu0 0
    %6809 = vmatprep.subr.bf16.mxu0 0
    %6810 = vmatpush1.bf16.msra.mxu0 0
    %6811 = vmatprep.subr.bf16.mxu0 0
    %6812 = vmatpush1.bf16.msra.mxu0 0
    %6813 = vmatprep.subr.bf16.mxu0 0
    %6814 = vmatpush1.bf16.msra.mxu0 0
    %6815 = vmatprep.subr.bf16.mxu0 0
    %6816 = vmatpush1.bf16.msra.mxu0 0
    %6817 = vmatprep.mubr.bf16.mxu0 0
    %6818 = vmatmul.mubr.bf16.gmra.mrb[0].mxu0 %v6313
    %v6819 = vpop.f32.mrb[0].mxu0
    %v6820 = vadd.f32 0.0, %v6819
    %v6821 = vpop.f32.mrb[0].mxu0
    %v6822 = vadd.f32 0.0, %v6821
    %v6823 = vpop.f32.mrb[0].mxu0
    %v6824 = vpop.f32.mrb[0].mxu0
    %6825 = vdwg.mxu0
    %6826 = vmatprep.subr.bf16.mxu0 %v6756
    %6827 = vmatpush1.bf16.msra.mxu0 %v6755
    %6828 = vmatprep.subr.bf16.mxu0 %v6760
    %6829 = vmatpush1.bf16.msra.mxu0 %v6759
    %6830 = vmatprep.subr.bf16.mxu0 %v6764
    %6831 = vmatpush1.bf16.msra.mxu0 %v6763
    %6832 = vmatprep.subr.bf16.mxu0 %v6768
    %6833 = vmatpush1.bf16.msra.mxu0 %v6767
    %6834 = vmatprep.subr.bf16.mxu0 %v6772
    %6835 = vmatpush1.bf16.msra.mxu0 %v6771
    %6836 = vmatprep.subr.bf16.mxu0 %v6776
    %6837 = vmatpush1.bf16.msra.mxu0 %v6775
    %6838 = vmatprep.subr.bf16.mxu0 %v6780
    %6839 = vmatpush1.bf16.msra.mxu0 %v6779
    %6840 = vmatprep.subr.bf16.mxu0 %v6784
    %6841 = vmatpush1.bf16.msra.mxu0 %v6783
    %6842 = vmatprep.subr.bf16.mxu0 0
    %6843 = vmatpush1.bf16.msra.mxu0 0
    %6844 = vmatprep.subr.bf16.mxu0 0
    %6845 = vmatpush1.bf16.msra.mxu0 0
    %6846 = vmatprep.subr.bf16.mxu0 0
    %6847 = vmatpush1.bf16.msra.mxu0 0
    %6848 = vmatprep.subr.bf16.mxu0 0
    %6849 = vmatpush1.bf16.msra.mxu0 0
    %6850 = vmatprep.subr.bf16.mxu0 0
    %6851 = vmatpush1.bf16.msra.mxu0 0
    %6852 = vmatprep.subr.bf16.mxu0 0
    %6853 = vmatpush1.bf16.msra.mxu0 0
    %6854 = vmatprep.subr.bf16.mxu0 0
    %6855 = vmatpush1.bf16.msra.mxu0 0
    %6856 = vmatprep.subr.bf16.mxu0 0
    %6857 = vmatpush1.bf16.msra.mxu0 0
    %6858 = vmatprep.mubr.bf16.mxu0 0
    %6859 = vmatmul.mubr.bf16.gmra.mrb[0].mxu0 %v6313
    %v6860 = vpop.f32.mrb[0].mxu0
    %v6861 = vadd.f32 0.0, %v6860
    %v6862 = vpop.f32.mrb[0].mxu0
    %v6863 = vadd.f32 0.0, %v6862
    %v6864 = vpop.f32.mrb[0].mxu0
    %v6865 = vpop.f32.mrb[0].mxu0
    %6866 = vdwg.mxu0
    %6867 = vmatprep.subr.bf16.mxu0 %v6722
    %6868 = vmatpush1.bf16.msra.mxu0 %v6721
    %6869 = vmatprep.subr.bf16.mxu0 %v6726
    %6870 = vmatpush1.bf16.msra.mxu0 %v6725
    %6871 = vmatprep.subr.bf16.mxu0 %v6730
    %6872 = vmatpush1.bf16.msra.mxu0 %v6729
    %6873 = vmatprep.subr.bf16.mxu0 %v6734
    %6874 = vmatpush1.bf16.msra.mxu0 %v6733
    %6875 = vmatprep.subr.bf16.mxu0 %v6738
    %6876 = vmatpush1.bf16.msra.mxu0 %v6737
    %6877 = vmatprep.subr.bf16.mxu0 %v6742
    %6878 = vmatpush1.bf16.msra.mxu0 %v6741
    %6879 = vmatprep.subr.bf16.mxu0 %v6746
    %6880 = vmatpush1.bf16.msra.mxu0 %v6745
    %6881 = vmatprep.subr.bf16.mxu0 %v6750
    %6882 = vmatpush1.bf16.msra.mxu0 %v6749
    %6883 = vmatprep.subr.bf16.mxu0 0
    %6884 = vmatpush1.bf16.msra.mxu0 0
    %6885 = vmatprep.subr.bf16.mxu0 0
    %6886 = vmatpush1.bf16.msra.mxu0 0
    %6887 = vmatprep.subr.bf16.mxu0 0
    %6888 = vmatpush1.bf16.msra.mxu0 0
    %6889 = vmatprep.subr.bf16.mxu0 0
    %6890 = vmatpush1.bf16.msra.mxu0 0
    %6891 = vmatprep.subr.bf16.mxu0 0
    %6892 = vmatpush1.bf16.msra.mxu0 0
    %6893 = vmatprep.subr.bf16.mxu0 0
    %6894 = vmatpush1.bf16.msra.mxu0 0
    %6895 = vmatprep.subr.bf16.mxu0 0
    %6896 = vmatpush1.bf16.msra.mxu0 0
    %6897 = vmatprep.subr.bf16.mxu0 0
    %6898 = vmatpush1.bf16.msra.mxu0 0
    %6899 = vmatprep.mubr.bf16.mxu0 0
    %6900 = vmatmul.mubr.bf16.gmra.mrb[0].mxu0 %v6720
    %v6901 = vpop.f32.mrb[0].mxu0
    %v6902 = vadd.f32 %v6820, %v6901
    %v6903 = vpop.f32.mrb[0].mxu0
    %v6904 = vadd.f32 %v6822, %v6903
    %v6905 = vpop.f32.mrb[0].mxu0
    %v6906 = vpop.f32.mrb[0].mxu0
    %6907 = vdwg.mxu0
    %6908 = vmatprep.subr.bf16.mxu0 %v6724
    %6909 = vmatpush1.bf16.msra.mxu0 %v6723
    %6910 = vmatprep.subr.bf16.mxu0 %v6728
    %6911 = vmatpush1.bf16.msra.mxu0 %v6727
    %6912 = vmatprep.subr.bf16.mxu0 %v6732
    %6913 = vmatpush1.bf16.msra.mxu0 %v6731
    %6914 = vmatprep.subr.bf16.mxu0 %v6736
    %6915 = vmatpush1.bf16.msra.mxu0 %v6735
    %6916 = vmatprep.subr.bf16.mxu0 %v6740
    %6917 = vmatpush1.bf16.msra.mxu0 %v6739
    %6918 = vmatprep.subr.bf16.mxu0 %v6744
    %6919 = vmatpush1.bf16.msra.mxu0 %v6743
    %6920 = vmatprep.subr.bf16.mxu0 %v6748
    %6921 = vmatpush1.bf16.msra.mxu0 %v6747
    %6922 = vmatprep.subr.bf16.mxu0 %v6752
    %6923 = vmatpush1.bf16.msra.mxu0 %v6751
    %6924 = vmatprep.subr.bf16.mxu0 0
    %6925 = vmatpush1.bf16.msra.mxu0 0
    %6926 = vmatprep.subr.bf16.mxu0 0
    %6927 = vmatpush1.bf16.msra.mxu0 0
    %6928 = vmatprep.subr.bf16.mxu0 0
    %6929 = vmatpush1.bf16.msra.mxu0 0
    %6930 = vmatprep.subr.bf16.mxu0 0
    %6931 = vmatpush1.bf16.msra.mxu0 0
    %6932 = vmatprep.subr.bf16.mxu0 0
    %6933 = vmatpush1.bf16.msra.mxu0 0
    %6934 = vmatprep.subr.bf16.mxu0 0
    %6935 = vmatpush1.bf16.msra.mxu0 0
    %6936 = vmatprep.subr.bf16.mxu0 0
    %6937 = vmatpush1.bf16.msra.mxu0 0
    %6938 = vmatprep.subr.bf16.mxu0 0
    %6939 = vmatpush1.bf16.msra.mxu0 0
    %6940 = vmatprep.mubr.bf16.mxu0 0
    %6941 = vmatmul.mubr.bf16.gmra.mrb[0].mxu0 %v6720
    %v6942 = vpop.f32.mrb[0].mxu0
    %v6943 = vadd.f32 %v6861, %v6942
    %v6944 = vpop.f32.mrb[0].mxu0
    %v6945 = vadd.f32 %v6863, %v6944
    %v6946 = vpop.f32.mrb[0].mxu0
    %v6947 = vpop.f32.mrb[0].mxu0
    %6948 = vdwg.mxu0
    %v6949 = vld [vmem:[%s3608] sm:$0xff]
    %v6950 = vld [vmem:[%s3608 + $0x8] sm:$0xff]
    %v6951 = vld [vmem:[%s3608 + $0x10] sm:$0xff]
    %v6952 = vld [vmem:[%s3608 + $0x18] sm:$0xff]
    %v6953 = vadd.f32 %v6902, %v6949
    %v6954 = vadd.f32 %v6904, %v6950
    %v6955 = vadd.f32 %v6943, %v6951
    %v6956 = vadd.f32 %v6945, %v6952
    %v6957 = vxor.u32 %v6953, 2147483648
    %v6958 = vmul.f32 %v6957, 1.442695
    %v6959 = vpow.pop %v6958
    %v6960 = vadd.f32 %v6959, 1.0
    %v6961 = vrcp.pop %v6960
    %v6962 = vmul.f32 1.0, %v6961
    %v6963 = vxor.u32 %v6954, 2147483648
    %v6964 = vmul.f32 %v6963, 1.442695
    %v6965 = vpow.pop %v6964
    %v6966 = vadd.f32 %v6965, 1.0
    %v6967 = vrcp.pop %v6966
    %v6968 = vmul.f32 1.0, %v6967
    %v6969 = vtanh.pop %v6955
    %v6970 = vxor.u32 %v6956, 2147483648
    %v6971 = vmul.f32 %v6970, 1.442695
    %v6972 = vpow.pop %v6971
    %v6973 = vadd.f32 %v6972, 1.0
    %v6974 = vrcp.pop %v6973
    %v6975 = vmul.f32 1.0, %v6974
    %v6976 = vmul.f32 %v6968, %v6310
    %v6977 = vmul.f32 %v6962, %v6969
    %v6978 = vadd.f32 %v6976, %v6977
    %v6979 = vtanh.pop %v6978
    %v6980 = vmul.f32 %v6975, %v6979
    %v6981 = vpack.c.bf16 %v6980, %v6980
    %v6982 = vld [vmem:[#allocation11] sm:$0xf]
    %v6983 = vld [vmem:[#allocation11 + $0x4] sm:$0xf]
    %v6984 = vld [vmem:[#allocation11 + $0x8] sm:$0xf]
    %v6985 = vld [vmem:[#allocation11 + $0xc] sm:$0xf]
    %v6986 = vld [vmem:[#allocation11 + $0x10] sm:$0xf]
    %v6987 = vld [vmem:[#allocation11 + $0x14] sm:$0xf]
    %v6988 = vld [vmem:[#allocation11 + $0x18] sm:$0xf]
    %v6989 = vld [vmem:[#allocation11 + $0x1c] sm:$0xf]
    %v6990 = vld [vmem:[#allocation11 + $0x20] sm:$0xf]
    %v6991 = vld [vmem:[#allocation11 + $0x24] sm:$0xf]
    %v6992 = vld [vmem:[#allocation11 + $0x28] sm:$0xf]
    %v6993 = vld [vmem:[#allocation11 + $0x2c] sm:$0xf]
    %v6994 = vld [vmem:[#allocation11 + $0x30] sm:$0xf]
    %v6995 = vld [vmem:[#allocation11 + $0x34] sm:$0xf]
    %v6996 = vld [vmem:[#allocation11 + $0x38] sm:$0xf]
    %v6997 = vld [vmem:[#allocation11 + $0x3c] sm:$0xf]
    %v6998 = vld [vmem:[%s8] sm:$0xff]
    %v7015 = vunpack.c.l.b16 %v6982
    %v7016 = vunpack.c.l.b16 %v6983
    %v7017 = vunpack.c.l.b16 %v6984
    %v7018 = vunpack.c.l.b16 %v6985
    %v7019 = vunpack.c.l.b16 %v6986
    %v7020 = vunpack.c.l.b16 %v6987
    %v7021 = vunpack.c.l.b16 %v6988
    %v7022 = vunpack.c.l.b16 %v6989
    %v7023 = vunpack.c.l.b16 %v6990
    %v7024 = vunpack.c.l.b16 %v6991
    %v7025 = vunpack.c.l.b16 %v6992
    %v7026 = vunpack.c.l.b16 %v6993
    %v7027 = vunpack.c.l.b16 %v6994
    %v7028 = vunpack.c.l.b16 %v6995
    %v7029 = vunpack.c.l.b16 %v6996
    %v7030 = vunpack.c.l.b16 %v6997
    %v7031 = vpack.c.b16 %v7016, %v7015
    %v7032 = vpack.c.b16 %v7018, %v7017
    %v7033 = vpack.c.b16 %v7020, %v7019
    %v7034 = vpack.c.b16 %v7022, %v7021
    %v7035 = vpack.c.b16 %v7024, %v7023
    %v7036 = vpack.c.b16 %v7026, %v7025
    %v7037 = vpack.c.b16 %v7028, %v7027
    %v7038 = vpack.c.b16 %v7030, %v7029
    %7047 = vmatprep.subr.bf16.mxu0 0
    %7048 = vmatpush1.bf16.msra.mxu0 %v7031
    %7049 = vmatprep.subr.bf16.mxu0 0
    %7050 = vmatpush1.bf16.msra.mxu0 %v7032
    %7051 = vmatprep.subr.bf16.mxu0 0
    %7052 = vmatpush1.bf16.msra.mxu0 %v7033
    %7053 = vmatprep.subr.bf16.mxu0 0
    %7054 = vmatpush1.bf16.msra.mxu0 %v7034
    %7055 = vmatprep.subr.bf16.mxu0 0
    %7056 = vmatpush1.bf16.msra.mxu0 %v7035
    %7057 = vmatprep.subr.bf16.mxu0 0
    %7058 = vmatpush1.bf16.msra.mxu0 %v7036
    %7059 = vmatprep.subr.bf16.mxu0 0
    %7060 = vmatpush1.bf16.msra.mxu0 %v7037
    %7061 = vmatprep.subr.bf16.mxu0 0
    %7062 = vmatpush1.bf16.msra.mxu0 %v7038
    %7063 = vmatprep.subr.bf16.mxu0 0
    %7064 = vmatpush1.bf16.msra.mxu0 0
    %7065 = vmatprep.subr.bf16.mxu0 0
    %7066 = vmatpush1.bf16.msra.mxu0 0
    %7067 = vmatprep.subr.bf16.mxu0 0
    %7068 = vmatpush1.bf16.msra.mxu0 0
    %7069 = vmatprep.subr.bf16.mxu0 0
    %7070 = vmatpush1.bf16.msra.mxu0 0
    %7071 = vmatprep.subr.bf16.mxu0 0
    %7072 = vmatpush1.bf16.msra.mxu0 0
    %7073 = vmatprep.subr.bf16.mxu0 0
    %7074 = vmatpush1.bf16.msra.mxu0 0
    %7075 = vmatprep.subr.bf16.mxu0 0
    %7076 = vmatpush1.bf16.msra.mxu0 0
    %7077 = vmatprep.subr.bf16.mxu0 0
    %7078 = vmatpush1.bf16.msra.mxu0 0
    %7079 = vmatprep.mubr.bf16.mxu0 0
    %7080 = vmatmul.mubr.bf16.gmra.mrb[0].mxu0 %v6981
    %v7081 = vpop.f32.mrb[0].mxu0
    %v7082 = vadd.f32 %v6998, %v7081
    %v7083 = vpop.f32.mrb[0].mxu0
    %v7084 = vpop.f32.mrb[0].mxu0
    %v7085 = vpop.f32.mrb[0].mxu0
    %7086 = vdwg.mxu0
    %s7087 = scalar_lea.vmem [#allocation13], 48
    %7088 = vst [vmem:[%s7087] sm:$0xff] %v7082
    %7089 = vmax.xlane.f32.xlu0 %v7082
    %v7090 = vpop.xlane.xlu0 %7089
    %vm7091 = vcmp.eq.f32.partialorder %v7082, %v7090
    %v7092 = vsel %vm7091, %v98, 128
    %v7093 = vand.u32 %v7092, 65535
    %v7094 = vshra.s32 %v7092, 16
    %v7095 = vcvt.s32.f32 %v7093
    %v7096 = vcvt.s32.f32 %v7094
    %7097 = vmin.xlane.f32.xlu0 %v7096
    %v7098 = vpop.xlane.xlu0 %7097
    %vm7099 = vcmp.eq.f32.partialorder %v7096, %v7098
    %v7100 = vsel %vm7099, %v7095, inf
    %7101 = vmin.xlane.f32.xlu0 %v7100
    %v7102 = vpop.xlane.xlu0 %7101
    %v7103 = vcvt.f32.s32 %v7102
    %v7104 = vcvt.f32.s32 %v7098
    %v7105 = vshll.u32 %v7104, 16
    %v7106 = vadd.s32 %v7105, %v7103
    %vm7107 = vcmp.eq.s32.totalorder %v98, %v7106
    %v7108 = vsel %vm7107, 1, 0
    %v7109 = vcvt.s32.f32 %v7108
    %v7110 = vpack.c.bf16 %v7109, %v7109
    %v7111 = vld [vmem:[#allocation2] sm:$0xff]
    %v7112 = vld [vmem:[#allocation2 + $0x8] sm:$0xff]
    %v7113 = vld [vmem:[#allocation2 + $0x10] sm:$0xff]
    %v7114 = vld [vmem:[#allocation2 + $0x18] sm:$0xff]
    %v7115 = vld [vmem:[#allocation2 + $0x20] sm:$0xff]
    %v7116 = vld [vmem:[#allocation2 + $0x28] sm:$0xff]
    %v7117 = vld [vmem:[#allocation2 + $0x30] sm:$0xff]
    %v7118 = vld [vmem:[#allocation2 + $0x38] sm:$0xff]
    %v7119 = vld [vmem:[#allocation2 + $0x40] sm:$0xff]
    %v7120 = vld [vmem:[#allocation2 + $0x48] sm:$0xff]
    %v7121 = vld [vmem:[#allocation2 + $0x50] sm:$0xff]
    %v7122 = vld [vmem:[#allocation2 + $0x58] sm:$0xff]
    %v7123 = vld [vmem:[#allocation2 + $0x60] sm:$0xff]
    %v7124 = vld [vmem:[#allocation2 + $0x68] sm:$0xff]
    %v7125 = vld [vmem:[#allocation2 + $0x70] sm:$0xff]
    %v7126 = vld [vmem:[#allocation2 + $0x78] sm:$0xff]
    %v7127 = vld [vmem:[#allocation2 + $0x80] sm:$0xff]
    %v7128 = vld [vmem:[#allocation2 + $0x88] sm:$0xff]
    %v7129 = vld [vmem:[#allocation2 + $0x90] sm:$0xff]
    %v7130 = vld [vmem:[#allocation2 + $0x98] sm:$0xff]
    %v7131 = vld [vmem:[#allocation2 + $0xa0] sm:$0xff]
    %v7132 = vld [vmem:[#allocation2 + $0xa8] sm:$0xff]
    %v7133 = vld [vmem:[#allocation2 + $0xb0] sm:$0xff]
    %v7134 = vld [vmem:[#allocation2 + $0xb8] sm:$0xff]
    %v7135 = vld [vmem:[#allocation2 + $0xc0] sm:$0xff]
    %v7136 = vld [vmem:[#allocation2 + $0xc8] sm:$0xff]
    %v7137 = vld [vmem:[#allocation2 + $0xd0] sm:$0xff]
    %v7138 = vld [vmem:[#allocation2 + $0xd8] sm:$0xff]
    %v7139 = vld [vmem:[#allocation2 + $0xe0] sm:$0xff]
    %v7140 = vld [vmem:[#allocation2 + $0xe8] sm:$0xff]
    %v7141 = vld [vmem:[#allocation2 + $0xf0] sm:$0xff]
    %v7142 = vld [vmem:[#allocation2 + $0xf8] sm:$0xff]
    %7143 = vmatprep.subr.bf16.mxu0 %v7112
    %7144 = vmatpush1.bf16.msra.mxu0 %v7111
    %7145 = vmatprep.subr.bf16.mxu0 %v7116
    %7146 = vmatpush1.bf16.msra.mxu0 %v7115
    %7147 = vmatprep.subr.bf16.mxu0 %v7120
    %7148 = vmatpush1.bf16.msra.mxu0 %v7119
    %7149 = vmatprep.subr.bf16.mxu0 %v7124
    %7150 = vmatpush1.bf16.msra.mxu0 %v7123
    %7151 = vmatprep.subr.bf16.mxu0 %v7128
    %7152 = vmatpush1.bf16.msra.mxu0 %v7127
    %7153 = vmatprep.subr.bf16.mxu0 %v7132
    %7154 = vmatpush1.bf16.msra.mxu0 %v7131
    %7155 = vmatprep.subr.bf16.mxu0 %v7136
    %7156 = vmatpush1.bf16.msra.mxu0 %v7135
    %7157 = vmatprep.subr.bf16.mxu0 %v7140
    %7158 = vmatpush1.bf16.msra.mxu0 %v7139
    %7159 = vmatprep.subr.bf16.mxu0 0
    %7160 = vmatpush1.bf16.msra.mxu0 0
    %7161 = vmatprep.subr.bf16.mxu0 0
    %7162 = vmatpush1.bf16.msra.mxu0 0
    %7163 = vmatprep.subr.bf16.mxu0 0
    %7164 = vmatpush1.bf16.msra.mxu0 0
    %7165 = vmatprep.subr.bf16.mxu0 0
    %7166 = vmatpush1.bf16.msra.mxu0 0
    %7167 = vmatprep.subr.bf16.mxu0 0
    %7168 = vmatpush1.bf16.msra.mxu0 0
    %7169 = vmatprep.subr.bf16.mxu0 0
    %7170 = vmatpush1.bf16.msra.mxu0 0
    %7171 = vmatprep.subr.bf16.mxu0 0
    %7172 = vmatpush1.bf16.msra.mxu0 0
    %7173 = vmatprep.subr.bf16.mxu0 0
    %7174 = vmatpush1.bf16.msra.mxu0 0
    %7175 = vmatprep.mubr.bf16.mxu0 0
    %7176 = vmatmul.mubr.bf16.gmra.mrb[0].mxu0 %v7110
    %v7177 = vpop.f32.mrb[0].mxu0
    %v7178 = vadd.f32 0.0, %v7177
    %v7179 = vpop.f32.mrb[0].mxu0
    %v7180 = vadd.f32 0.0, %v7179
    %v7181 = vpop.f32.mrb[0].mxu0
    %v7182 = vpop.f32.mrb[0].mxu0
    %7183 = vdwg.mxu0
    %7184 = vmatprep.subr.bf16.mxu0 %v7114
    %7185 = vmatpush1.bf16.msra.mxu0 %v7113
    %7186 = vmatprep.subr.bf16.mxu0 %v7118
    %7187 = vmatpush1.bf16.msra.mxu0 %v7117
    %7188 = vmatprep.subr.bf16.mxu0 %v7122
    %7189 = vmatpush1.bf16.msra.mxu0 %v7121
    %7190 = vmatprep.subr.bf16.mxu0 %v7126
    %7191 = vmatpush1.bf16.msra.mxu0 %v7125
    %7192 = vmatprep.subr.bf16.mxu0 %v7130
    %7193 = vmatpush1.bf16.msra.mxu0 %v7129
    %7194 = vmatprep.subr.bf16.mxu0 %v7134
    %7195 = vmatpush1.bf16.msra.mxu0 %v7133
    %7196 = vmatprep.subr.bf16.mxu0 %v7138
    %7197 = vmatpush1.bf16.msra.mxu0 %v7137
    %7198 = vmatprep.subr.bf16.mxu0 %v7142
    %7199 = vmatpush1.bf16.msra.mxu0 %v7141
    %7200 = vmatprep.subr.bf16.mxu0 0
    %7201 = vmatpush1.bf16.msra.mxu0 0
    %7202 = vmatprep.subr.bf16.mxu0 0
    %7203 = vmatpush1.bf16.msra.mxu0 0
    %7204 = vmatprep.subr.bf16.mxu0 0
    %7205 = vmatpush1.bf16.msra.mxu0 0
    %7206 = vmatprep.subr.bf16.mxu0 0
    %7207 = vmatpush1.bf16.msra.mxu0 0
    %7208 = vmatprep.subr.bf16.mxu0 0
    %7209 = vmatpush1.bf16.msra.mxu0 0
    %7210 = vmatprep.subr.bf16.mxu0 0
    %7211 = vmatpush1.bf16.msra.mxu0 0
    %7212 = vmatprep.subr.bf16.mxu0 0
    %7213 = vmatpush1.bf16.msra.mxu0 0
    %7214 = vmatprep.subr.bf16.mxu0 0
    %7215 = vmatpush1.bf16.msra.mxu0 0
    %7216 = vmatprep.mubr.bf16.mxu0 0
    %7217 = vmatmul.mubr.bf16.gmra.mrb[0].mxu0 %v7110
    %v7218 = vpop.f32.mrb[0].mxu0
    %v7219 = vadd.f32 0.0, %v7218
    %v7220 = vpop.f32.mrb[0].mxu0
    %v7221 = vadd.f32 0.0, %v7220
    %v7222 = vpop.f32.mrb[0].mxu0
    %v7223 = vpop.f32.mrb[0].mxu0
    %7224 = vdwg.mxu0
    %v7225 = vld [vmem:[#allocation4 + $0xc0] sm:$0xff]
    %v7226 = vld [vmem:[#allocation4 + $0xc8] sm:$0xff]
    %v7227 = vld [vmem:[#allocation4 + $0xd0] sm:$0xff]
    %v7228 = vld [vmem:[#allocation4 + $0xd8] sm:$0xff]
    %s7229 = sld [smem:[#allocation7 + $0x6]]
    %p7230 = scmp.eq.s32.totalorder %s7229, 1
    %s7231 = scalar_select %p7230, 1, 0
    %v7232 = vstv %s7231
    %vm7233 = vcmp.eq.s32.totalorder %v7232, 1
    %v7234 = vsel %vm7233, %v7225, %v7178
    %v7235 = vsel %vm7233, %v7226, %v7180
    %v7236 = vsel %vm7233, %v7227, %v7219
    %v7237 = vsel %vm7233, %v7228, %v7221
    %v7238 = vld [vmem:[%s3225] sm:$0xff]
    %v7239 = vld [vmem:[%s3225 + $0x8] sm:$0xff]
    %v7240 = vld [vmem:[%s3225 + $0x10] sm:$0xff]
    %v7241 = vld [vmem:[%s3225 + $0x18] sm:$0xff]
    %v7242 = vld [vmem:[%s3225 + $0x20] sm:$0xff]
    %v7243 = vld [vmem:[%s3225 + $0x28] sm:$0xff]
    %v7244 = vld [vmem:[%s3225 + $0x30] sm:$0xff]
    %v7245 = vld [vmem:[%s3225 + $0x38] sm:$0xff]
    %v7246 = vld [vmem:[%s3225 + $0x40] sm:$0xff]
    %v7247 = vld [vmem:[%s3225 + $0x48] sm:$0xff]
    %v7248 = vld [vmem:[%s3225 + $0x50] sm:$0xff]
    %v7249 = vld [vmem:[%s3225 + $0x58] sm:$0xff]
    %v7250 = vld [vmem:[%s3225 + $0x60] sm:$0xff]
    %v7251 = vld [vmem:[%s3225 + $0x68] sm:$0xff]
    %v7252 = vld [vmem:[%s3225 + $0x70] sm:$0xff]
    %v7253 = vld [vmem:[%s3225 + $0x78] sm:$0xff]
    %v7254 = vld [vmem:[%s3225 + $0x80] sm:$0xff]
    %v7255 = vld [vmem:[%s3225 + $0x88] sm:$0xff]
    %v7256 = vld [vmem:[%s3225 + $0x90] sm:$0xff]
    %v7257 = vld [vmem:[%s3225 + $0x98] sm:$0xff]
    %v7258 = vld [vmem:[%s3225 + $0xa0] sm:$0xff]
    %v7259 = vld [vmem:[%s3225 + $0xa8] sm:$0xff]
    %v7260 = vld [vmem:[%s3225 + $0xb0] sm:$0xff]
    %v7261 = vld [vmem:[%s3225 + $0xb8] sm:$0xff]
    %v7262 = vld [vmem:[%s3225 + $0xc0] sm:$0xff]
    %v7263 = vld [vmem:[%s3225 + $0xc8] sm:$0xff]
    %v7264 = vld [vmem:[%s3225 + $0xd0] sm:$0xff]
    %v7265 = vld [vmem:[%s3225 + $0xd8] sm:$0xff]
    %v7266 = vld [vmem:[%s3225 + $0xe0] sm:$0xff]
    %v7267 = vld [vmem:[%s3225 + $0xe8] sm:$0xff]
    %v7268 = vld [vmem:[%s3225 + $0xf0] sm:$0xff]
    %v7269 = vld [vmem:[%s3225 + $0xf8] sm:$0xff]
    %7270 = vmatprep.subr.bf16.mxu0 %v7239
    %7271 = vmatpush1.bf16.msra.mxu0 %v7238
    %7272 = vmatprep.subr.bf16.mxu0 %v7243
    %7273 = vmatpush1.bf16.msra.mxu0 %v7242
    %7274 = vmatprep.subr.bf16.mxu0 %v7247
    %7275 = vmatpush1.bf16.msra.mxu0 %v7246
    %7276 = vmatprep.subr.bf16.mxu0 %v7251
    %7277 = vmatpush1.bf16.msra.mxu0 %v7250
    %7278 = vmatprep.subr.bf16.mxu0 %v7255
    %7279 = vmatpush1.bf16.msra.mxu0 %v7254
    %7280 = vmatprep.subr.bf16.mxu0 %v7259
    %7281 = vmatpush1.bf16.msra.mxu0 %v7258
    %7282 = vmatprep.subr.bf16.mxu0 %v7263
    %7283 = vmatpush1.bf16.msra.mxu0 %v7262
    %7284 = vmatprep.subr.bf16.mxu0 %v7267
    %7285 = vmatpush1.bf16.msra.mxu0 %v7266
    %7286 = vmatprep.subr.bf16.mxu0 0
    %7287 = vmatpush1.bf16.msra.mxu0 0
    %7288 = vmatprep.subr.bf16.mxu0 0
    %7289 = vmatpush1.bf16.msra.mxu0 0
    %7290 = vmatprep.subr.bf16.mxu0 0
    %7291 = vmatpush1.bf16.msra.mxu0 0
    %7292 = vmatprep.subr.bf16.mxu0 0
    %7293 = vmatpush1.bf16.msra.mxu0 0
    %7294 = vmatprep.subr.bf16.mxu0 0
    %7295 = vmatpush1.bf16.msra.mxu0 0
    %7296 = vmatprep.subr.bf16.mxu0 0
    %7297 = vmatpush1.bf16.msra.mxu0 0
    %7298 = vmatprep.subr.bf16.mxu0 0
    %7299 = vmatpush1.bf16.msra.mxu0 0
    %7300 = vmatprep.subr.bf16.mxu0 0
    %7301 = vmatpush1.bf16.msra.mxu0 0
    %7302 = vmatprep.mubr.bf16.mxu0 0
    %7303 = vmatmul.mubr.bf16.gmra.mrb[0].mxu0 %v6720
    %v7304 = vpop.f32.mrb[0].mxu0
    %v7305 = vadd.f32 0.0, %v7304
    %v7306 = vpop.f32.mrb[0].mxu0
    %v7307 = vadd.f32 0.0, %v7306
    %v7308 = vpop.f32.mrb[0].mxu0
    %v7309 = vpop.f32.mrb[0].mxu0
    %7310 = vdwg.mxu0
    %7311 = vmatprep.subr.bf16.mxu0 %v7241
    %7312 = vmatpush1.bf16.msra.mxu0 %v7240
    %7313 = vmatprep.subr.bf16.mxu0 %v7245
    %7314 = vmatpush1.bf16.msra.mxu0 %v7244
    %7315 = vmatprep.subr.bf16.mxu0 %v7249
    %7316 = vmatpush1.bf16.msra.mxu0 %v7248
    %7317 = vmatprep.subr.bf16.mxu0 %v7253
    %7318 = vmatpush1.bf16.msra.mxu0 %v7252
    %7319 = vmatprep.subr.bf16.mxu0 %v7257
    %7320 = vmatpush1.bf16.msra.mxu0 %v7256
    %7321 = vmatprep.subr.bf16.mxu0 %v7261
    %7322 = vmatpush1.bf16.msra.mxu0 %v7260
    %7323 = vmatprep.subr.bf16.mxu0 %v7265
    %7324 = vmatpush1.bf16.msra.mxu0 %v7264
    %7325 = vmatprep.subr.bf16.mxu0 %v7269
    %7326 = vmatpush1.bf16.msra.mxu0 %v7268
    %7327 = vmatprep.subr.bf16.mxu0 0
    %7328 = vmatpush1.bf16.msra.mxu0 0
    %7329 = vmatprep.subr.bf16.mxu0 0
    %7330 = vmatpush1.bf16.msra.mxu0 0
    %7331 = vmatprep.subr.bf16.mxu0 0
    %7332 = vmatpush1.bf16.msra.mxu0 0
    %7333 = vmatprep.subr.bf16.mxu0 0
    %7334 = vmatpush1.bf16.msra.mxu0 0
    %7335 = vmatprep.subr.bf16.mxu0 0
    %7336 = vmatpush1.bf16.msra.mxu0 0
    %7337 = vmatprep.subr.bf16.mxu0 0
    %7338 = vmatpush1.bf16.msra.mxu0 0
    %7339 = vmatprep.subr.bf16.mxu0 0
    %7340 = vmatpush1.bf16.msra.mxu0 0
    %7341 = vmatprep.subr.bf16.mxu0 0
    %7342 = vmatpush1.bf16.msra.mxu0 0
    %7343 = vmatprep.mubr.bf16.mxu0 0
    %7344 = vmatmul.mubr.bf16.gmra.mrb[0].mxu0 %v6720
    %v7345 = vpop.f32.mrb[0].mxu0
    %v7346 = vadd.f32 0.0, %v7345
    %v7347 = vpop.f32.mrb[0].mxu0
    %v7348 = vadd.f32 0.0, %v7347
    %v7349 = vpop.f32.mrb[0].mxu0
    %v7350 = vpop.f32.mrb[0].mxu0
    %7351 = vdwg.mxu0
    %v7352 = vadd.f32 %v7234, %v7305
    %v7353 = vadd.f32 %v7235, %v7307
    %v7354 = vadd.f32 %v7236, %v7346
    %v7355 = vadd.f32 %v7237, %v7348
    %v7356 = vld [vmem:[%s6] sm:$0xff]
    %v7357 = vld [vmem:[%s6 + $0x8] sm:$0xff]
    %v7358 = vld [vmem:[%s6 + $0x10] sm:$0xff]
    %v7359 = vld [vmem:[%s6 + $0x18] sm:$0xff]
    %v7360 = vadd.f32 %v7352, %v7356
    %v7361 = vadd.f32 %v7353, %v7357
    %v7362 = vadd.f32 %v7354, %v7358
    %v7363 = vadd.f32 %v7355, %v7359
    %v7364 = vxor.u32 %v7360, 2147483648
    %v7365 = vmul.f32 %v7364, 1.442695
    %v7366 = vpow.pop %v7365
    %v7367 = vadd.f32 %v7366, 1.0
    %v7368 = vrcp.pop %v7367
    %v7369 = vmul.f32 1.0, %v7368
    %v7370 = vxor.u32 %v7361, 2147483648
    %v7371 = vmul.f32 %v7370, 1.442695
    %v7372 = vpow.pop %v7371
    %v7373 = vadd.f32 %v7372, 1.0
    %v7374 = vrcp.pop %v7373
    %v7375 = vmul.f32 1.0, %v7374
    %v7376 = vtanh.pop %v7362
    %v7377 = vxor.u32 %v7363, 2147483648
    %v7378 = vmul.f32 %v7377, 1.442695
    %v7379 = vpow.pop %v7378
    %v7380 = vadd.f32 %v7379, 1.0
    %v7381 = vrcp.pop %v7380
    %v7382 = vmul.f32 1.0, %v7381
    %v7383 = vmul.f32 %v7375, %v6717
    %v7384 = vmul.f32 %v7369, %v7376
    %v7385 = vadd.f32 %v7383, %v7384
    %v7386 = vtanh.pop %v7385
    %v7387 = vmul.f32 %v7382, %v7386
    %v7388 = vpack.c.bf16 %v7387, %v7387
    %v7389 = vld [vmem:[%s3377] sm:$0xff]
    %v7390 = vld [vmem:[%s3377 + $0x8] sm:$0xff]
    %v7391 = vld [vmem:[%s3377 + $0x10] sm:$0xff]
    %v7392 = vld [vmem:[%s3377 + $0x18] sm:$0xff]
    %v7393 = vld [vmem:[%s3377 + $0x20] sm:$0xff]
    %v7394 = vld [vmem:[%s3377 + $0x28] sm:$0xff]
    %v7395 = vld [vmem:[%s3377 + $0x30] sm:$0xff]
    %v7396 = vld [vmem:[%s3377 + $0x38] sm:$0xff]
    %v7397 = vld [vmem:[%s3377 + $0x40] sm:$0xff]
    %v7398 = vld [vmem:[%s3377 + $0x48] sm:$0xff]
    %v7399 = vld [vmem:[%s3377 + $0x50] sm:$0xff]
    %v7400 = vld [vmem:[%s3377 + $0x58] sm:$0xff]
    %v7401 = vld [vmem:[%s3377 + $0x60] sm:$0xff]
    %v7402 = vld [vmem:[%s3377 + $0x68] sm:$0xff]
    %v7403 = vld [vmem:[%s3377 + $0x70] sm:$0xff]
    %v7404 = vld [vmem:[%s3377 + $0x78] sm:$0xff]
    %v7405 = vld [vmem:[%s3377 + $0x80] sm:$0xff]
    %v7406 = vld [vmem:[%s3377 + $0x88] sm:$0xff]
    %v7407 = vld [vmem:[%s3377 + $0x90] sm:$0xff]
    %v7408 = vld [vmem:[%s3377 + $0x98] sm:$0xff]
    %v7409 = vld [vmem:[%s3377 + $0xa0] sm:$0xff]
    %v7410 = vld [vmem:[%s3377 + $0xa8] sm:$0xff]
    %v7411 = vld [vmem:[%s3377 + $0xb0] sm:$0xff]
    %v7412 = vld [vmem:[%s3377 + $0xb8] sm:$0xff]
    %v7413 = vld [vmem:[%s3377 + $0xc0] sm:$0xff]
    %v7414 = vld [vmem:[%s3377 + $0xc8] sm:$0xff]
    %v7415 = vld [vmem:[%s3377 + $0xd0] sm:$0xff]
    %v7416 = vld [vmem:[%s3377 + $0xd8] sm:$0xff]
    %v7417 = vld [vmem:[%s3377 + $0xe0] sm:$0xff]
    %v7418 = vld [vmem:[%s3377 + $0xe8] sm:$0xff]
    %v7419 = vld [vmem:[%s3377 + $0xf0] sm:$0xff]
    %v7420 = vld [vmem:[%s3377 + $0xf8] sm:$0xff]
    %v7421 = vld [vmem:[%s3411] sm:$0xff]
    %v7422 = vld [vmem:[%s3411 + $0x8] sm:$0xff]
    %v7423 = vld [vmem:[%s3411 + $0x10] sm:$0xff]
    %v7424 = vld [vmem:[%s3411 + $0x18] sm:$0xff]
    %v7425 = vld [vmem:[%s3411 + $0x20] sm:$0xff]
    %v7426 = vld [vmem:[%s3411 + $0x28] sm:$0xff]
    %v7427 = vld [vmem:[%s3411 + $0x30] sm:$0xff]
    %v7428 = vld [vmem:[%s3411 + $0x38] sm:$0xff]
    %v7429 = vld [vmem:[%s3411 + $0x40] sm:$0xff]
    %v7430 = vld [vmem:[%s3411 + $0x48] sm:$0xff]
    %v7431 = vld [vmem:[%s3411 + $0x50] sm:$0xff]
    %v7432 = vld [vmem:[%s3411 + $0x58] sm:$0xff]
    %v7433 = vld [vmem:[%s3411 + $0x60] sm:$0xff]
    %v7434 = vld [vmem:[%s3411 + $0x68] sm:$0xff]
    %v7435 = vld [vmem:[%s3411 + $0x70] sm:$0xff]
    %v7436 = vld [vmem:[%s3411 + $0x78] sm:$0xff]
    %v7437 = vld [vmem:[%s3411 + $0x80] sm:$0xff]
    %v7438 = vld [vmem:[%s3411 + $0x88] sm:$0xff]
    %v7439 = vld [vmem:[%s3411 + $0x90] sm:$0xff]
    %v7440 = vld [vmem:[%s3411 + $0x98] sm:$0xff]
    %v7441 = vld [vmem:[%s3411 + $0xa0] sm:$0xff]
    %v7442 = vld [vmem:[%s3411 + $0xa8] sm:$0xff]
    %v7443 = vld [vmem:[%s3411 + $0xb0] sm:$0xff]
    %v7444 = vld [vmem:[%s3411 + $0xb8] sm:$0xff]
    %v7445 = vld [vmem:[%s3411 + $0xc0] sm:$0xff]
    %v7446 = vld [vmem:[%s3411 + $0xc8] sm:$0xff]
    %v7447 = vld [vmem:[%s3411 + $0xd0] sm:$0xff]
    %v7448 = vld [vmem:[%s3411 + $0xd8] sm:$0xff]
    %v7449 = vld [vmem:[%s3411 + $0xe0] sm:$0xff]
    %v7450 = vld [vmem:[%s3411 + $0xe8] sm:$0xff]
    %v7451 = vld [vmem:[%s3411 + $0xf0] sm:$0xff]
    %v7452 = vld [vmem:[%s3411 + $0xf8] sm:$0xff]
    %7453 = vmatprep.subr.bf16.mxu0 %v7422
    %7454 = vmatpush1.bf16.msra.mxu0 %v7421
    %7455 = vmatprep.subr.bf16.mxu0 %v7426
    %7456 = vmatpush1.bf16.msra.mxu0 %v7425
    %7457 = vmatprep.subr.bf16.mxu0 %v7430
    %7458 = vmatpush1.bf16.msra.mxu0 %v7429
    %7459 = vmatprep.subr.bf16.mxu0 %v7434
    %7460 = vmatpush1.bf16.msra.mxu0 %v7433
    %7461 = vmatprep.subr.bf16.mxu0 %v7438
    %7462 = vmatpush1.bf16.msra.mxu0 %v7437
    %7463 = vmatprep.subr.bf16.mxu0 %v7442
    %7464 = vmatpush1.bf16.msra.mxu0 %v7441
    %7465 = vmatprep.subr.bf16.mxu0 %v7446
    %7466 = vmatpush1.bf16.msra.mxu0 %v7445
    %7467 = vmatprep.subr.bf16.mxu0 %v7450
    %7468 = vmatpush1.bf16.msra.mxu0 %v7449
    %7469 = vmatprep.subr.bf16.mxu0 0
    %7470 = vmatpush1.bf16.msra.mxu0 0
    %7471 = vmatprep.subr.bf16.mxu0 0
    %7472 = vmatpush1.bf16.msra.mxu0 0
    %7473 = vmatprep.subr.bf16.mxu0 0
    %7474 = vmatpush1.bf16.msra.mxu0 0
    %7475 = vmatprep.subr.bf16.mxu0 0
    %7476 = vmatpush1.bf16.msra.mxu0 0
    %7477 = vmatprep.subr.bf16.mxu0 0
    %7478 = vmatpush1.bf16.msra.mxu0 0
    %7479 = vmatprep.subr.bf16.mxu0 0
    %7480 = vmatpush1.bf16.msra.mxu0 0
    %7481 = vmatprep.subr.bf16.mxu0 0
    %7482 = vmatpush1.bf16.msra.mxu0 0
    %7483 = vmatprep.subr.bf16.mxu0 0
    %7484 = vmatpush1.bf16.msra.mxu0 0
    %7485 = vmatprep.mubr.bf16.mxu0 0
    %7486 = vmatmul.mubr.bf16.gmra.mrb[0].mxu0 %v6981
    %v7487 = vpop.f32.mrb[0].mxu0
    %v7488 = vadd.f32 0.0, %v7487
    %v7489 = vpop.f32.mrb[0].mxu0
    %v7490 = vadd.f32 0.0, %v7489
    %v7491 = vpop.f32.mrb[0].mxu0
    %v7492 = vpop.f32.mrb[0].mxu0
    %7493 = vdwg.mxu0
    %7494 = vmatprep.subr.bf16.mxu0 %v7424
    %7495 = vmatpush1.bf16.msra.mxu0 %v7423
    %7496 = vmatprep.subr.bf16.mxu0 %v7428
    %7497 = vmatpush1.bf16.msra.mxu0 %v7427
    %7498 = vmatprep.subr.bf16.mxu0 %v7432
    %7499 = vmatpush1.bf16.msra.mxu0 %v7431
    %7500 = vmatprep.subr.bf16.mxu0 %v7436
    %7501 = vmatpush1.bf16.msra.mxu0 %v7435
    %7502 = vmatprep.subr.bf16.mxu0 %v7440
    %7503 = vmatpush1.bf16.msra.mxu0 %v7439
    %7504 = vmatprep.subr.bf16.mxu0 %v7444
    %7505 = vmatpush1.bf16.msra.mxu0 %v7443
    %7506 = vmatprep.subr.bf16.mxu0 %v7448
    %7507 = vmatpush1.bf16.msra.mxu0 %v7447
    %7508 = vmatprep.subr.bf16.mxu0 %v7452
    %7509 = vmatpush1.bf16.msra.mxu0 %v7451
    %7510 = vmatprep.subr.bf16.mxu0 0
    %7511 = vmatpush1.bf16.msra.mxu0 0
    %7512 = vmatprep.subr.bf16.mxu0 0
    %7513 = vmatpush1.bf16.msra.mxu0 0
    %7514 = vmatprep.subr.bf16.mxu0 0
    %7515 = vmatpush1.bf16.msra.mxu0 0
    %7516 = vmatprep.subr.bf16.mxu0 0
    %7517 = vmatpush1.bf16.msra.mxu0 0
    %7518 = vmatprep.subr.bf16.mxu0 0
    %7519 = vmatpush1.bf16.msra.mxu0 0
    %7520 = vmatprep.subr.bf16.mxu0 0
    %7521 = vmatpush1.bf16.msra.mxu0 0
    %7522 = vmatprep.subr.bf16.mxu0 0
    %7523 = vmatpush1.bf16.msra.mxu0 0
    %7524 = vmatprep.subr.bf16.mxu0 0
    %7525 = vmatpush1.bf16.msra.mxu0 0
    %7526 = vmatprep.mubr.bf16.mxu0 0
    %7527 = vmatmul.mubr.bf16.gmra.mrb[0].mxu0 %v6981
    %v7528 = vpop.f32.mrb[0].mxu0
    %v7529 = vadd.f32 0.0, %v7528
    %v7530 = vpop.f32.mrb[0].mxu0
    %v7531 = vadd.f32 0.0, %v7530
    %v7532 = vpop.f32.mrb[0].mxu0
    %v7533 = vpop.f32.mrb[0].mxu0
    %7534 = vdwg.mxu0
    %7535 = vmatprep.subr.bf16.mxu0 %v7390
    %7536 = vmatpush1.bf16.msra.mxu0 %v7389
    %7537 = vmatprep.subr.bf16.mxu0 %v7394
    %7538 = vmatpush1.bf16.msra.mxu0 %v7393
    %7539 = vmatprep.subr.bf16.mxu0 %v7398
    %7540 = vmatpush1.bf16.msra.mxu0 %v7397
    %7541 = vmatprep.subr.bf16.mxu0 %v7402
    %7542 = vmatpush1.bf16.msra.mxu0 %v7401
    %7543 = vmatprep.subr.bf16.mxu0 %v7406
    %7544 = vmatpush1.bf16.msra.mxu0 %v7405
    %7545 = vmatprep.subr.bf16.mxu0 %v7410
    %7546 = vmatpush1.bf16.msra.mxu0 %v7409
    %7547 = vmatprep.subr.bf16.mxu0 %v7414
    %7548 = vmatpush1.bf16.msra.mxu0 %v7413
    %7549 = vmatprep.subr.bf16.mxu0 %v7418
    %7550 = vmatpush1.bf16.msra.mxu0 %v7417
    %7551 = vmatprep.subr.bf16.mxu0 0
    %7552 = vmatpush1.bf16.msra.mxu0 0
    %7553 = vmatprep.subr.bf16.mxu0 0
    %7554 = vmatpush1.bf16.msra.mxu0 0
    %7555 = vmatprep.subr.bf16.mxu0 0
    %7556 = vmatpush1.bf16.msra.mxu0 0
    %7557 = vmatprep.subr.bf16.mxu0 0
    %7558 = vmatpush1.bf16.msra.mxu0 0
    %7559 = vmatprep.subr.bf16.mxu0 0
    %7560 = vmatpush1.bf16.msra.mxu0 0
    %7561 = vmatprep.subr.bf16.mxu0 0
    %7562 = vmatpush1.bf16.msra.mxu0 0
    %7563 = vmatprep.subr.bf16.mxu0 0
    %7564 = vmatpush1.bf16.msra.mxu0 0
    %7565 = vmatprep.subr.bf16.mxu0 0
    %7566 = vmatpush1.bf16.msra.mxu0 0
    %7567 = vmatprep.mubr.bf16.mxu0 0
    %7568 = vmatmul.mubr.bf16.gmra.mrb[0].mxu0 %v7388
    %v7569 = vpop.f32.mrb[0].mxu0
    %v7570 = vadd.f32 %v7488, %v7569
    %v7571 = vpop.f32.mrb[0].mxu0
    %v7572 = vadd.f32 %v7490, %v7571
    %v7573 = vpop.f32.mrb[0].mxu0
    %v7574 = vpop.f32.mrb[0].mxu0
    %7575 = vdwg.mxu0
    %7576 = vmatprep.subr.bf16.mxu0 %v7392
    %7577 = vmatpush1.bf16.msra.mxu0 %v7391
    %7578 = vmatprep.subr.bf16.mxu0 %v7396
    %7579 = vmatpush1.bf16.msra.mxu0 %v7395
    %7580 = vmatprep.subr.bf16.mxu0 %v7400
    %7581 = vmatpush1.bf16.msra.mxu0 %v7399
    %7582 = vmatprep.subr.bf16.mxu0 %v7404
    %7583 = vmatpush1.bf16.msra.mxu0 %v7403
    %7584 = vmatprep.subr.bf16.mxu0 %v7408
    %7585 = vmatpush1.bf16.msra.mxu0 %v7407
    %7586 = vmatprep.subr.bf16.mxu0 %v7412
    %7587 = vmatpush1.bf16.msra.mxu0 %v7411
    %7588 = vmatprep.subr.bf16.mxu0 %v7416
    %7589 = vmatpush1.bf16.msra.mxu0 %v7415
    %7590 = vmatprep.subr.bf16.mxu0 %v7420
    %7591 = vmatpush1.bf16.msra.mxu0 %v7419
    %7592 = vmatprep.subr.bf16.mxu0 0
    %7593 = vmatpush1.bf16.msra.mxu0 0
    %7594 = vmatprep.subr.bf16.mxu0 0
    %7595 = vmatpush1.bf16.msra.mxu0 0
    %7596 = vmatprep.subr.bf16.mxu0 0
    %7597 = vmatpush1.bf16.msra.mxu0 0
    %7598 = vmatprep.subr.bf16.mxu0 0
    %7599 = vmatpush1.bf16.msra.mxu0 0
    %7600 = vmatprep.subr.bf16.mxu0 0
    %7601 = vmatpush1.bf16.msra.mxu0 0
    %7602 = vmatprep.subr.bf16.mxu0 0
    %7603 = vmatpush1.bf16.msra.mxu0 0
    %7604 = vmatprep.subr.bf16.mxu0 0
    %7605 = vmatpush1.bf16.msra.mxu0 0
    %7606 = vmatprep.subr.bf16.mxu0 0
    %7607 = vmatpush1.bf16.msra.mxu0 0
    %7608 = vmatprep.mubr.bf16.mxu0 0
    %7609 = vmatmul.mubr.bf16.gmra.mrb[0].mxu0 %v7388
    %v7610 = vpop.f32.mrb[0].mxu0
    %v7611 = vadd.f32 %v7529, %v7610
    %v7612 = vpop.f32.mrb[0].mxu0
    %v7613 = vadd.f32 %v7531, %v7612
    %v7614 = vpop.f32.mrb[0].mxu0
    %v7615 = vpop.f32.mrb[0].mxu0
    %7616 = vdwg.mxu0
    %v7617 = vld [vmem:[%s3608] sm:$0xff]
    %v7618 = vld [vmem:[%s3608 + $0x8] sm:$0xff]
    %v7619 = vld [vmem:[%s3608 + $0x10] sm:$0xff]
    %v7620 = vld [vmem:[%s3608 + $0x18] sm:$0xff]
    %v7621 = vadd.f32 %v7570, %v7617
    %v7622 = vadd.f32 %v7572, %v7618
    %v7623 = vadd.f32 %v7611, %v7619
    %v7624 = vadd.f32 %v7613, %v7620
    %v7625 = vxor.u32 %v7621, 2147483648
    %v7626 = vmul.f32 %v7625, 1.442695
    %v7627 = vpow.pop %v7626
    %v7628 = vadd.f32 %v7627, 1.0
    %v7629 = vrcp.pop %v7628
    %v7630 = vmul.f32 1.0, %v7629
    %v7631 = vxor.u32 %v7622, 2147483648
    %v7632 = vmul.f32 %v7631, 1.442695
    %v7633 = vpow.pop %v7632
    %v7634 = vadd.f32 %v7633, 1.0
    %v7635 = vrcp.pop %v7634
    %v7636 = vmul.f32 1.0, %v7635
    %v7637 = vtanh.pop %v7623
    %v7638 = vxor.u32 %v7624, 2147483648
    %v7639 = vmul.f32 %v7638, 1.442695
    %v7640 = vpow.pop %v7639
    %v7641 = vadd.f32 %v7640, 1.0
    %v7642 = vrcp.pop %v7641
    %v7643 = vmul.f32 1.0, %v7642
    %v7644 = vmul.f32 %v7636, %v6978
    %v7645 = vmul.f32 %v7630, %v7637
    %v7646 = vadd.f32 %v7644, %v7645
    %v7647 = vtanh.pop %v7646
    %v7648 = vmul.f32 %v7643, %v7647
    %v7649 = vpack.c.bf16 %v7648, %v7648
    %v7650 = vld [vmem:[#allocation11] sm:$0xf]
    %v7651 = vld [vmem:[#allocation11 + $0x4] sm:$0xf]
    %v7652 = vld [vmem:[#allocation11 + $0x8] sm:$0xf]
    %v7653 = vld [vmem:[#allocation11 + $0xc] sm:$0xf]
    %v7654 = vld [vmem:[#allocation11 + $0x10] sm:$0xf]
    %v7655 = vld [vmem:[#allocation11 + $0x14] sm:$0xf]
    %v7656 = vld [vmem:[#allocation11 + $0x18] sm:$0xf]
    %v7657 = vld [vmem:[#allocation11 + $0x1c] sm:$0xf]
    %v7658 = vld [vmem:[#allocation11 + $0x20] sm:$0xf]
    %v7659 = vld [vmem:[#allocation11 + $0x24] sm:$0xf]
    %v7660 = vld [vmem:[#allocation11 + $0x28] sm:$0xf]
    %v7661 = vld [vmem:[#allocation11 + $0x2c] sm:$0xf]
    %v7662 = vld [vmem:[#allocation11 + $0x30] sm:$0xf]
    %v7663 = vld [vmem:[#allocation11 + $0x34] sm:$0xf]
    %v7664 = vld [vmem:[#allocation11 + $0x38] sm:$0xf]
    %v7665 = vld [vmem:[#allocation11 + $0x3c] sm:$0xf]
    %v7666 = vld [vmem:[%s8] sm:$0xff]
    %v7683 = vunpack.c.l.b16 %v7650
    %v7684 = vunpack.c.l.b16 %v7651
    %v7685 = vunpack.c.l.b16 %v7652
    %v7686 = vunpack.c.l.b16 %v7653
    %v7687 = vunpack.c.l.b16 %v7654
    %v7688 = vunpack.c.l.b16 %v7655
    %v7689 = vunpack.c.l.b16 %v7656
    %v7690 = vunpack.c.l.b16 %v7657
    %v7691 = vunpack.c.l.b16 %v7658
    %v7692 = vunpack.c.l.b16 %v7659
    %v7693 = vunpack.c.l.b16 %v7660
    %v7694 = vunpack.c.l.b16 %v7661
    %v7695 = vunpack.c.l.b16 %v7662
    %v7696 = vunpack.c.l.b16 %v7663
    %v7697 = vunpack.c.l.b16 %v7664
    %v7698 = vunpack.c.l.b16 %v7665
    %v7699 = vpack.c.b16 %v7684, %v7683
    %v7700 = vpack.c.b16 %v7686, %v7685
    %v7701 = vpack.c.b16 %v7688, %v7687
    %v7702 = vpack.c.b16 %v7690, %v7689
    %v7703 = vpack.c.b16 %v7692, %v7691
    %v7704 = vpack.c.b16 %v7694, %v7693
    %v7705 = vpack.c.b16 %v7696, %v7695
    %v7706 = vpack.c.b16 %v7698, %v7697
    %7715 = vmatprep.subr.bf16.mxu0 0
    %7716 = vmatpush1.bf16.msra.mxu0 %v7699
    %7717 = vmatprep.subr.bf16.mxu0 0
    %7718 = vmatpush1.bf16.msra.mxu0 %v7700
    %7719 = vmatprep.subr.bf16.mxu0 0
    %7720 = vmatpush1.bf16.msra.mxu0 %v7701
    %7721 = vmatprep.subr.bf16.mxu0 0
    %7722 = vmatpush1.bf16.msra.mxu0 %v7702
    %7723 = vmatprep.subr.bf16.mxu0 0
    %7724 = vmatpush1.bf16.msra.mxu0 %v7703
    %7725 = vmatprep.subr.bf16.mxu0 0
    %7726 = vmatpush1.bf16.msra.mxu0 %v7704
    %7727 = vmatprep.subr.bf16.mxu0 0
    %7728 = vmatpush1.bf16.msra.mxu0 %v7705
    %7729 = vmatprep.subr.bf16.mxu0 0
    %7730 = vmatpush1.bf16.msra.mxu0 %v7706
    %7731 = vmatprep.subr.bf16.mxu0 0
    %7732 = vmatpush1.bf16.msra.mxu0 0
    %7733 = vmatprep.subr.bf16.mxu0 0
    %7734 = vmatpush1.bf16.msra.mxu0 0
    %7735 = vmatprep.subr.bf16.mxu0 0
    %7736 = vmatpush1.bf16.msra.mxu0 0
    %7737 = vmatprep.subr.bf16.mxu0 0
    %7738 = vmatpush1.bf16.msra.mxu0 0
    %7739 = vmatprep.subr.bf16.mxu0 0
    %7740 = vmatpush1.bf16.msra.mxu0 0
    %7741 = vmatprep.subr.bf16.mxu0 0
    %7742 = vmatpush1.bf16.msra.mxu0 0
    %7743 = vmatprep.subr.bf16.mxu0 0
    %7744 = vmatpush1.bf16.msra.mxu0 0
    %7745 = vmatprep.subr.bf16.mxu0 0
    %7746 = vmatpush1.bf16.msra.mxu0 0
    %7747 = vmatprep.mubr.bf16.mxu0 0
    %7748 = vmatmul.mubr.bf16.gmra.mrb[0].mxu0 %v7649
    %v7749 = vpop.f32.mrb[0].mxu0
    %v7750 = vadd.f32 %v7666, %v7749
    %v7751 = vpop.f32.mrb[0].mxu0
    %v7752 = vpop.f32.mrb[0].mxu0
    %v7753 = vpop.f32.mrb[0].mxu0
    %7754 = vdwg.mxu0
    %s7755 = scalar_lea.vmem [#allocation13], 56
    %7756 = vst [vmem:[%s7755] sm:$0xff] %v7750
    // Predicated region
    $region38: #{tpu_custom_call.1} parent=1 // pred_check
      _
    $region39: #{tpu_custom_call.1} parent=1 // pred_check_branch
      %7758 = sbr.rel (0) target = $region41
    $region40: #{tpu_custom_call.1} parent=1 // pred_region
      %s7760 = ssub.s32 1024, 1024
      %7761 = vsyncadd [#allocation10], %s7760
      %s7762 = sshll.u32 [#allocation13], 4
      %s7763 = int_to_ptr.vmem [resolvable:$true] %s7762
      %7768 = dma.vmem_to_hbm [thread:$0]  %s7763, 1024, %s9, [#allocation10], 128, 128, 8
    $region41: #{tpu_custom_call.1} parent=1 // pred_fallthru
      _
    // Predicated region
    $region42: #{tpu_custom_call.1} parent=1 // pred_check
      _
    $region43: #{tpu_custom_call.1} parent=1 // pred_check_branch
      %7770 = sbr.rel (0) target = $region45
    $region44: #{tpu_custom_call.1} parent=1 // pred_region
      %7771 = dma.done [#allocation10], 1024
    $region45: #{tpu_custom_call.1} parent=1 // pred_fallthru
      _
    %7772 = vsyncpa [#allocation9], 1
    %7773 = vsyncpa [#allocation12], 1
    %7774 = vsyncpa [#allocation10], 1
  %7775 = vsyncmov [#allocation5]
  %s7776 = vpop.sfrf %7775
  %p7777 = scmp.eq.s32.totalorder %s7776, 0
  %p7778 = pneg %p7777
  %7780 = shalt.err (%p7778)

</llo_original>
